<compile_context>
chip_gen: v7x
topology: tpu7x:2x2x1
jax: 0.10.0
libtpu: 0.0.40
codegen_flags: <defaults>
</compile_context>

<pallas_src>
import jax
import jax.numpy as jnp
from jax.experimental import pallas as pl
from jax.experimental.pallas import tpu as pltpu


# ---------------------------------------------------------------------------
# Fused kernel: one grid step == Bt images.  x_ref: (24, Bt, 256) im2col rows.
# ---------------------------------------------------------------------------
def _lenet5_kernel(x_ref, w1_ref, b1_ref, w2_ref, b2_ref, w3_ref, b3_ref,
                   w4_ref, b4_ref, w5_ref, b5_ref, o_ref):
    f32 = jnp.float32
    w1 = w1_ref[...]                                  # (256, 256)
    b1 = b1_ref[...]                                  # (1, 256)

    # conv1 (1->6, 5x5) + tanh + row pair-average -> 12 slabs of (Bt, 256),
    # lanes = ow*6 + oc (144 real).  One full-depth matmul per conv1 output row.
    p1r = []
    for ohp in range(12):
        r0 = jnp.tanh(jnp.dot(x_ref[2 * ohp], w1, preferred_element_type=f32) + b1)
        r1 = jnp.tanh(jnp.dot(x_ref[2 * ohp + 1], w1, preferred_element_type=f32) + b1)
        p1r.append(0.5 * (r0 + r1))

    # conv2 (6->16, 5x5) + tanh + row pair-average -> 4 slabs of (Bt, 128),
    # lanes = ow*16 + oc (128 real).  Pool1 lane-sum is folded into w2_ref (K=256).
    b2 = b2_ref[...]

    def conv2_row(oh):
        acc = jnp.dot(p1r[oh], w2_ref[0], preferred_element_type=f32)
        for ki in range(1, 5):
            acc = acc + jnp.dot(p1r[oh + ki], w2_ref[ki], preferred_element_type=f32)
        return jnp.tanh(acc + b2)

    p2r = []
    for ohp in range(4):
        p2r.append(0.5 * (conv2_row(2 * ohp) + conv2_row(2 * ohp + 1)))

    # conv3 (16->120, 4x4) + tanh -> (Bt, 128), lanes = oc (120 real == flatten order).
    # Pool2 lane-sum is folded into w3_ref.
    acc3 = jnp.dot(p2r[0], w3_ref[0], preferred_element_type=f32)
    for ki in range(1, 4):
        acc3 = acc3 + jnp.dot(p2r[ki], w3_ref[ki], preferred_element_type=f32)
    a3 = jnp.tanh(acc3 + b3_ref[...])

    # fc1 (120->84) + tanh, fc2 (84->10), softmax over the 10 real lanes.
    h = jnp.tanh(jnp.dot(a3, w4_ref[...], preferred_element_type=f32) + b4_ref[...])
    logits = jnp.dot(h, w5_ref[...], preferred_element_type=f32) + b5_ref[...]
    lane = jax.lax.broadcasted_iota(jnp.int32, logits.shape, 1)
    logits = jnp.where(lane < 10, logits, -1e30)       # mask padded lanes
    m = jnp.max(logits, axis=-1, keepdims=True)
    e = jnp.exp(logits - m)
    o_ref[...] = e / jnp.sum(e, axis=-1, keepdims=True)  # padded lanes -> 0.0


# ---------------------------------------------------------------------------
# One-time (tiny) weight repacking: im2col conv1 weights, pool-folded Toeplitz
# conv2/conv3 weights, lane-tiled biases, zero-padded FC weights.  Pure JAX.
# ---------------------------------------------------------------------------
def _pack_params(p):
    f32 = jnp.float32

    # conv1 (im2col form): w1cat[ki*28 + w, ow*6 + oc] = w1[oc,0,ki,w-ow], 0<=w-ow<5.
    w1 = p["conv1_w"].astype(f32)[:, 0]                               # (6, 5, 5)
    m1 = (jnp.arange(28)[:, None, None]
          == jnp.arange(24)[None, :, None]
          + jnp.arange(5)[None, None, :]).astype(f32)                 # (28, 24, 5)
    w1cat = jnp.einsum("woj,cij->iwoc", m1, w1).reshape(140, 144)
    w1cat = jnp.pad(w1cat, ((0, 256 - 140), (0, 256 - 144)))          # (256, 256)
    j1 = jnp.arange(256)
    b1t = jnp.where(j1 < 144, p["conv1_b"].astype(f32)[j1 % 6], 0.0).reshape(1, 256)

    # conv2 Toeplitz, then fold pool1 lane pair-average (pw1) into it.
    w2 = p["conv2_w"].astype(f32)                                     # (16, 6, 5, 5)
    m2 = (jnp.arange(12)[:, None, None]
          == jnp.arange(8)[None, :, None]
          + jnp.arange(5)[None, None, :]).astype(f32)                 # (12, 8, 5)
    w2big = jnp.einsum("wom,acim->iwcoa", m2, w2).reshape(5, 72, 128)
    w2big = jnp.pad(w2big, ((0, 0), (0, 128 - 72), (0, 0)))           # (5, 128, 128)
    ji, jo = jnp.arange(256)[:, None], jnp.arange(128)[None, :]
    pw1 = jnp.where((ji < 144) & (jo < 72) & (ji % 6 == jo % 6)
                    & (ji // 6 // 2 == jo // 6), 0.5, 0.0).astype(f32)  # (256, 128)
    w2f = jnp.einsum("ij,kjo->kio", pw1, w2big)                       # (5, 256, 128)
    b2t = p["conv2_b"].astype(f32)[jnp.arange(128) % 16].reshape(1, 128)

    # conv3 weights, then fold pool2 lane pair-average (pw2) into them.
    w3 = p["conv3_w"].astype(f32)                                     # (120, 16, 4, 4)
    w3big = jnp.transpose(w3, (2, 3, 1, 0)).reshape(4, 64, 120)
    w3big = jnp.pad(w3big, ((0, 0), (0, 64), (0, 8)))                 # (4, 128, 128)
    ji, jo = jnp.arange(128)[:, None], jnp.arange(128)[None, :]
    pw2 = jnp.where((jo < 64) & (ji % 16 == jo % 16)
                    & (ji // 16 // 2 == jo // 16), 0.5, 0.0).astype(f32)  # (128, 128)
    w3f = jnp.einsum("ij,kjo->kio", pw2, w3big)                       # (4, 128, 128)
    b3t = jnp.pad(p["conv3_b"].astype(f32), (0, 8)).reshape(1, 128)

    # fc layers (PyTorch Linear: x @ W.T + b), zero-padded to 128x128.
    w4 = jnp.pad(p["fc1_w"].astype(f32).T, ((0, 8), (0, 44)))         # (128, 128)
    b4t = jnp.pad(p["fc1_b"].astype(f32), (0, 44)).reshape(1, 128)
    w5 = jnp.pad(p["fc2_w"].astype(f32).T, ((0, 44), (0, 118)))       # (128, 128)
    b5t = jnp.pad(p["fc2_b"].astype(f32), (0, 118)).reshape(1, 128)

    return (w1cat, b1t, w2f, b2t, w3f, b3t, w4, b4t, w5, b5t)


def _round_up(x, m):
    return ((x + m - 1) // m) * m


# ---------------------------------------------------------------------------
# Forward: single fused pallas_call, grid over batch blocks of Bt images.
# ---------------------------------------------------------------------------
def lenet5_forward(params, x, *, block_n=128):
    # x: (N, 1, 28, 28) float32, NCHW like the PyTorch module.
    n = x.shape[0]
    packed = _pack_params(params)

    bt = min(block_n, _round_up(n, 8))           # batch block (multiple of 8 sublanes)
    np_ = _round_up(n, bt)                       # padded batch
    n_steps = np_ // bt

    # Wrapper-side im2col of conv1 rows (DMA'd layout): x_prep[oh, n, ki*28+w].
    x2 = x[:, 0, :, :].astype(jnp.float32)                            # (N, 28, 28)
    if np_ > n:
        x2 = jnp.pad(x2, ((0, np_ - n), (0, 0), (0, 0)))
    ridx = jnp.arange(24)[:, None] + jnp.arange(5)[None, :]           # (24, 5)
    xw = x2[:, ridx, :]                                               # (Np, 24, 5, 28)
    xw = jnp.transpose(xw, (1, 0, 2, 3)).reshape(24, np_, 140)
    x_prep = jnp.pad(xw, ((0, 0), (0, 0), (0, 256 - 140)))            # (24, Np, 256)

    flops_per_img = 2 * (24 * 256 * 256 + 40 * 256 * 128 + 4 * 128 * 128
                         + 2 * 128 * 128)
    cost = pl.CostEstimate(
        flops=flops_per_img * np_,
        transcendentals=(24 * 256 + 8 * 128 + 3 * 128) * np_,
        bytes_accessed=int(x_prep.size * 4 + np_ * 128 * 4
                           + sum(int(w.size) * 4 for w in packed)))

    out = pl.pallas_call(
        _lenet5_kernel,
        out_shape=jax.ShapeDtypeStruct((np_, 128), jnp.float32),
        grid=(n_steps,),
        in_specs=[
            pl.BlockSpec((24, bt, 256), lambda i: (0, i, 0)),   # im2col'd images
            pl.BlockSpec((256, 256), lambda i: (0, 0)),         # conv1 weights
            pl.BlockSpec((1, 256), lambda i: (0, 0)),           # conv1 bias tile
            pl.BlockSpec((5, 256, 128), lambda i: (0, 0, 0)),   # conv2 (pool-folded)
            pl.BlockSpec((1, 128), lambda i: (0, 0)),           # conv2 bias tile
            pl.BlockSpec((4, 128, 128), lambda i: (0, 0, 0)),   # conv3 (pool-folded)
            pl.BlockSpec((1, 128), lambda i: (0, 0)),           # conv3 bias
            pl.BlockSpec((128, 128), lambda i: (0, 0)),         # fc1 weight
            pl.BlockSpec((1, 128), lambda i: (0, 0)),           # fc1 bias
            pl.BlockSpec((128, 128), lambda i: (0, 0)),         # fc2 weight
            pl.BlockSpec((1, 128), lambda i: (0, 0)),           # fc2 bias
        ],
        out_specs=pl.BlockSpec((bt, 128), lambda i: (i, 0)),
        compiler_params=pltpu.CompilerParams(
            dimension_semantics=("parallel",),
            vmem_limit_bytes=32 * 1024 * 1024),
        cost_estimate=cost,
    )(x_prep, *packed)

    return out[:n, :10]                           # (N, 10), rows sum to 1


# ---------------------------------------------------------------------------
# Pure-JAX reference (correctness smoke-check) + params.
# ---------------------------------------------------------------------------
def _avgpool2_ref(y):
    n, c, h, w = y.shape
    return y.reshape(n, c, h // 2, 2, w // 2, 2).mean(axis=(3, 5))


def lenet5_reference(params, x):
    dn = ("NCHW", "OIHW", "NCHW")
    hi = jax.lax.Precision.HIGHEST
    y = jax.lax.conv_general_dilated(x, params["conv1_w"], (1, 1), "VALID",
                                     dimension_numbers=dn, precision=hi)
    y = jnp.tanh(y + params["conv1_b"][None, :, None, None])
    y = _avgpool2_ref(y)
    y = jax.lax.conv_general_dilated(y, params["conv2_w"], (1, 1), "VALID",
                                     dimension_numbers=dn, precision=hi)
    y = jnp.tanh(y + params["conv2_b"][None, :, None, None])
    y = _avgpool2_ref(y)
    y = jax.lax.conv_general_dilated(y, params["conv3_w"], (1, 1), "VALID",
                                     dimension_numbers=dn, precision=hi)
    y = jnp.tanh(y + params["conv3_b"][None, :, None, None])
    y = y.reshape(y.shape[0], -1)
    y = jnp.tanh(jnp.dot(y, params["fc1_w"].T, precision=hi) + params["fc1_b"])
    y = jnp.dot(y, params["fc2_w"].T, precision=hi) + params["fc2_b"]
    return jax.nn.softmax(y, axis=1)


def init_params(key):
    ks = jax.random.split(key, 10)

    def normal(k, shape, scale):
        return (scale * jax.random.normal(k, shape)).astype(jnp.float32)

    return {
        "conv1_w": normal(ks[0], (6, 1, 5, 5), 0.2),
        "conv1_b": normal(ks[1], (6,), 0.1),
        "conv2_w": normal(ks[2], (16, 6, 5, 5), 0.1),
        "conv2_b": normal(ks[3], (16,), 0.1),
        "conv3_w": normal(ks[4], (120, 16, 4, 4), 0.06),
        "conv3_b": normal(ks[5], (120,), 0.1),
        "fc1_w": normal(ks[6], (84, 120), 0.1),
        "fc1_b": normal(ks[7], (84,), 0.1),
        "fc2_w": normal(ks[8], (10, 84), 0.1),
        "fc2_b": normal(ks[9], (10,), 0.1),
    }


if __name__ == "__main__":
    key = jax.random.PRNGKey(0)
    pkey, xkey, xkey2 = jax.random.split(key, 3)
    params = init_params(pkey)

    # Case 1: tiny batch (pads 4 -> 8, single grid step).
    x = jax.random.normal(xkey, (4, 1, 28, 28), dtype=jnp.float32)
    out = jax.block_until_ready(jax.jit(lenet5_forward)(params, x))
    ref = jax.block_until_ready(jax.jit(lenet5_reference)(params, x))
    assert out.shape == (4, 10)
    assert bool(jnp.all(jnp.isfinite(out)))
    assert bool(jnp.allclose(jnp.sum(out, axis=1), 1.0, atol=1e-5))
    # Loose tolerance: kernel matmuls use default MXU f32 precision.
    assert bool(jnp.allclose(out, ref, atol=2e-2))

    # Case 2: exercise multi-step grid + tail padding (20 images, blocks of 8).
    x2 = jax.random.normal(xkey2, (20, 1, 28, 28), dtype=jnp.float32)
    fwd_small_block = jax.jit(lambda p, a: lenet5_forward(p, a, block_n=8))
    out2 = jax.block_until_ready(fwd_small_block(params, x2))
    ref2 = jax.block_until_ready(jax.jit(lenet5_reference)(params, x2))
    assert out2.shape == (20, 10)
    assert bool(jnp.all(jnp.isfinite(out2)))
    assert bool(jnp.allclose(jnp.sum(out2, axis=1), 1.0, atol=1e-5))
    assert bool(jnp.allclose(out2, ref2, atol=2e-2))

    print("KERNEL_OK")
</pallas_src>

<mosaic_0001>
module attributes {stable_mosaic.version = 11 : i64} {
  func.func @_lenet5_kernel(%arg0: i32, %arg1: memref<24x8x256xf32, #tpu.memory_space<vmem>>, %arg2: memref<256x256xf32, #tpu.memory_space<vmem>>, %arg3: memref<1x256xf32, #tpu.memory_space<vmem>>, %arg4: memref<5x256x128xf32, #tpu.memory_space<vmem>>, %arg5: memref<1x128xf32, #tpu.memory_space<vmem>>, %arg6: memref<4x128x128xf32, #tpu.memory_space<vmem>>, %arg7: memref<1x128xf32, #tpu.memory_space<vmem>>, %arg8: memref<128x128xf32, #tpu.memory_space<vmem>>, %arg9: memref<1x128xf32, #tpu.memory_space<vmem>>, %arg10: memref<128x128xf32, #tpu.memory_space<vmem>>, %arg11: memref<1x128xf32, #tpu.memory_space<vmem>>, %arg12: memref<8x128xf32, #tpu.memory_space<vmem>>) attributes {dimension_semantics = [#tpu.dimension_semantics<parallel>], iteration_bounds = array<i64: 1>, scalar_prefetch = 0 : i64, scratch_operands = 0 : i64, tpu.core_type = #tpu.core_type<tc>, window_params = [{transform_indices = @transform_0, window_bounds = array<i64: 24, 8, 256>}, {pipeline_mode = #tpu.pipeline_mode<synchronous>, transform_indices = @transform_1, window_bounds = array<i64: 256, 256>}, {pipeline_mode = #tpu.pipeline_mode<synchronous>, transform_indices = @transform_2, window_bounds = array<i64: 1, 256>}, {pipeline_mode = #tpu.pipeline_mode<synchronous>, transform_indices = @transform_3, window_bounds = array<i64: 5, 256, 128>}, {pipeline_mode = #tpu.pipeline_mode<synchronous>, transform_indices = @transform_4, window_bounds = array<i64: 1, 128>}, {pipeline_mode = #tpu.pipeline_mode<synchronous>, transform_indices = @transform_5, window_bounds = array<i64: 4, 128, 128>}, {pipeline_mode = #tpu.pipeline_mode<synchronous>, transform_indices = @transform_6, window_bounds = array<i64: 1, 128>}, {pipeline_mode = #tpu.pipeline_mode<synchronous>, transform_indices = @transform_7, window_bounds = array<i64: 128, 128>}, {pipeline_mode = #tpu.pipeline_mode<synchronous>, transform_indices = @transform_8, window_bounds = array<i64: 1, 128>}, {pipeline_mode = #tpu.pipeline_mode<synchronous>, transform_indices = @transform_9, window_bounds = array<i64: 128, 128>}, {pipeline_mode = #tpu.pipeline_mode<synchronous>, transform_indices = @transform_10, window_bounds = array<i64: 1, 128>}, {transform_indices = @transform_11, window_bounds = array<i64: 8, 128>}]} {
    %c0 = arith.constant 0 : index
    %c0_0 = arith.constant 0 : index
    %0 = vector.load %arg2[%c0, %c0_0] : memref<256x256xf32, #tpu.memory_space<vmem>>, vector<256x256xf32>
    %c0_1 = arith.constant 0 : index
    %c0_2 = arith.constant 0 : index
    %1 = vector.load %arg3[%c0_1, %c0_2] : memref<1x256xf32, #tpu.memory_space<vmem>>, vector<1x256xf32>
    %c0_3 = arith.constant 0 : index
    %c0_4 = arith.constant 0 : index
    %c0_5 = arith.constant 0 : index
    %2 = vector.load %arg1[%c0_3, %c0_4, %c0_5] : memref<24x8x256xf32, #tpu.memory_space<vmem>>, vector<1x8x256xf32>
    %3 = vector.shape_cast %2 : vector<1x8x256xf32> to vector<8x256xf32>
    %cst = arith.constant dense<0.000000e+00> : vector<8x256xf32>
    %4 = tpu.matmul %3, %0, %cst {dimension_numbers = #tpu.dot_dimension_numbers<[1], [0], [0], [1], [0, 0, 1, 1], [], []>} : vector<8x256xf32>, vector<256x256xf32>, vector<8x256xf32> -> vector<8x256xf32>
    %5 = vector.broadcast %1 : vector<1x256xf32> to vector<8x256xf32>
    %6 = arith.addf %4, %5 : vector<8x256xf32>
    %7 = math.tanh %6 : vector<8x256xf32>
    %c1 = arith.constant 1 : index
    %c0_6 = arith.constant 0 : index
    %c0_7 = arith.constant 0 : index
    %8 = vector.load %arg1[%c1, %c0_6, %c0_7] : memref<24x8x256xf32, #tpu.memory_space<vmem>>, vector<1x8x256xf32>
    %9 = vector.shape_cast %8 : vector<1x8x256xf32> to vector<8x256xf32>
    %cst_8 = arith.constant dense<0.000000e+00> : vector<8x256xf32>
    %10 = tpu.matmul %9, %0, %cst_8 {dimension_numbers = #tpu.dot_dimension_numbers<[1], [0], [0], [1], [0, 0, 1, 1], [], []>} : vector<8x256xf32>, vector<256x256xf32>, vector<8x256xf32> -> vector<8x256xf32>
    %11 = vector.broadcast %1 : vector<1x256xf32> to vector<8x256xf32>
    %12 = arith.addf %10, %11 : vector<8x256xf32>
    %13 = math.tanh %12 : vector<8x256xf32>
    %14 = arith.addf %7, %13 : vector<8x256xf32>
    %cst_9 = arith.constant 5.000000e-01 : f32
    %15 = vector.broadcast %cst_9 : f32 to vector<8x256xf32>
    %16 = arith.mulf %15, %14 : vector<8x256xf32>
    %c2 = arith.constant 2 : index
    %c0_10 = arith.constant 0 : index
    %c0_11 = arith.constant 0 : index
    %17 = vector.load %arg1[%c2, %c0_10, %c0_11] : memref<24x8x256xf32, #tpu.memory_space<vmem>>, vector<1x8x256xf32>
    %18 = vector.shape_cast %17 : vector<1x8x256xf32> to vector<8x256xf32>
    %cst_12 = arith.constant dense<0.000000e+00> : vector<8x256xf32>
    %19 = tpu.matmul %18, %0, %cst_12 {dimension_numbers = #tpu.dot_dimension_numbers<[1], [0], [0], [1], [0, 0, 1, 1], [], []>} : vector<8x256xf32>, vector<256x256xf32>, vector<8x256xf32> -> vector<8x256xf32>
    %20 = vector.broadcast %1 : vector<1x256xf32> to vector<8x256xf32>
    %21 = arith.addf %19, %20 : vector<8x256xf32>
    %22 = math.tanh %21 : vector<8x256xf32>
    %c3 = arith.constant 3 : index
    %c0_13 = arith.constant 0 : index
    %c0_14 = arith.constant 0 : index
    %23 = vector.load %arg1[%c3, %c0_13, %c0_14] : memref<24x8x256xf32, #tpu.memory_space<vmem>>, vector<1x8x256xf32>
    %24 = vector.shape_cast %23 : vector<1x8x256xf32> to vector<8x256xf32>
    %cst_15 = arith.constant dense<0.000000e+00> : vector<8x256xf32>
    %25 = tpu.matmul %24, %0, %cst_15 {dimension_numbers = #tpu.dot_dimension_numbers<[1], [0], [0], [1], [0, 0, 1, 1], [], []>} : vector<8x256xf32>, vector<256x256xf32>, vector<8x256xf32> -> vector<8x256xf32>
    %26 = vector.broadcast %1 : vector<1x256xf32> to vector<8x256xf32>
    %27 = arith.addf %25, %26 : vector<8x256xf32>
    %28 = math.tanh %27 : vector<8x256xf32>
    %29 = arith.addf %22, %28 : vector<8x256xf32>
    %cst_16 = arith.constant 5.000000e-01 : f32
    %30 = vector.broadcast %cst_16 : f32 to vector<8x256xf32>
    %31 = arith.mulf %30, %29 : vector<8x256xf32>
    %c4 = arith.constant 4 : index
    %c0_17 = arith.constant 0 : index
    %c0_18 = arith.constant 0 : index
    %32 = vector.load %arg1[%c4, %c0_17, %c0_18] : memref<24x8x256xf32, #tpu.memory_space<vmem>>, vector<1x8x256xf32>
    %33 = vector.shape_cast %32 : vector<1x8x256xf32> to vector<8x256xf32>
    %cst_19 = arith.constant dense<0.000000e+00> : vector<8x256xf32>
    %34 = tpu.matmul %33, %0, %cst_19 {dimension_numbers = #tpu.dot_dimension_numbers<[1], [0], [0], [1], [0, 0, 1, 1], [], []>} : vector<8x256xf32>, vector<256x256xf32>, vector<8x256xf32> -> vector<8x256xf32>
    %35 = vector.broadcast %1 : vector<1x256xf32> to vector<8x256xf32>
    %36 = arith.addf %34, %35 : vector<8x256xf32>
    %37 = math.tanh %36 : vector<8x256xf32>
    %c5 = arith.constant 5 : index
    %c0_20 = arith.constant 0 : index
    %c0_21 = arith.constant 0 : index
    %38 = vector.load %arg1[%c5, %c0_20, %c0_21] : memref<24x8x256xf32, #tpu.memory_space<vmem>>, vector<1x8x256xf32>
    %39 = vector.shape_cast %38 : vector<1x8x256xf32> to vector<8x256xf32>
    %cst_22 = arith.constant dense<0.000000e+00> : vector<8x256xf32>
    %40 = tpu.matmul %39, %0, %cst_22 {dimension_numbers = #tpu.dot_dimension_numbers<[1], [0], [0], [1], [0, 0, 1, 1], [], []>} : vector<8x256xf32>, vector<256x256xf32>, vector<8x256xf32> -> vector<8x256xf32>
    %41 = vector.broadcast %1 : vector<1x256xf32> to vector<8x256xf32>
    %42 = arith.addf %40, %41 : vector<8x256xf32>
    %43 = math.tanh %42 : vector<8x256xf32>
    %44 = arith.addf %37, %43 : vector<8x256xf32>
    %cst_23 = arith.constant 5.000000e-01 : f32
    %45 = vector.broadcast %cst_23 : f32 to vector<8x256xf32>
    %46 = arith.mulf %45, %44 : vector<8x256xf32>
    %c6 = arith.constant 6 : index
    %c0_24 = arith.constant 0 : index
    %c0_25 = arith.constant 0 : index
    %47 = vector.load %arg1[%c6, %c0_24, %c0_25] : memref<24x8x256xf32, #tpu.memory_space<vmem>>, vector<1x8x256xf32>
    %48 = vector.shape_cast %47 : vector<1x8x256xf32> to vector<8x256xf32>
    %cst_26 = arith.constant dense<0.000000e+00> : vector<8x256xf32>
    %49 = tpu.matmul %48, %0, %cst_26 {dimension_numbers = #tpu.dot_dimension_numbers<[1], [0], [0], [1], [0, 0, 1, 1], [], []>} : vector<8x256xf32>, vector<256x256xf32>, vector<8x256xf32> -> vector<8x256xf32>
    %50 = vector.broadcast %1 : vector<1x256xf32> to vector<8x256xf32>
    %51 = arith.addf %49, %50 : vector<8x256xf32>
    %52 = math.tanh %51 : vector<8x256xf32>
    %c7 = arith.constant 7 : index
    %c0_27 = arith.constant 0 : index
    %c0_28 = arith.constant 0 : index
    %53 = vector.load %arg1[%c7, %c0_27, %c0_28] : memref<24x8x256xf32, #tpu.memory_space<vmem>>, vector<1x8x256xf32>
    %54 = vector.shape_cast %53 : vector<1x8x256xf32> to vector<8x256xf32>
    %cst_29 = arith.constant dense<0.000000e+00> : vector<8x256xf32>
    %55 = tpu.matmul %54, %0, %cst_29 {dimension_numbers = #tpu.dot_dimension_numbers<[1], [0], [0], [1], [0, 0, 1, 1], [], []>} : vector<8x256xf32>, vector<256x256xf32>, vector<8x256xf32> -> vector<8x256xf32>
    %56 = vector.broadcast %1 : vector<1x256xf32> to vector<8x256xf32>
    %57 = arith.addf %55, %56 : vector<8x256xf32>
    %58 = math.tanh %57 : vector<8x256xf32>
    %59 = arith.addf %52, %58 : vector<8x256xf32>
    %cst_30 = arith.constant 5.000000e-01 : f32
    %60 = vector.broadcast %cst_30 : f32 to vector<8x256xf32>
    %61 = arith.mulf %60, %59 : vector<8x256xf32>
    %c8 = arith.constant 8 : index
    %c0_31 = arith.constant 0 : index
    %c0_32 = arith.constant 0 : index
    %62 = vector.load %arg1[%c8, %c0_31, %c0_32] : memref<24x8x256xf32, #tpu.memory_space<vmem>>, vector<1x8x256xf32>
    %63 = vector.shape_cast %62 : vector<1x8x256xf32> to vector<8x256xf32>
    %cst_33 = arith.constant dense<0.000000e+00> : vector<8x256xf32>
    %64 = tpu.matmul %63, %0, %cst_33 {dimension_numbers = #tpu.dot_dimension_numbers<[1], [0], [0], [1], [0, 0, 1, 1], [], []>} : vector<8x256xf32>, vector<256x256xf32>, vector<8x256xf32> -> vector<8x256xf32>
    %65 = vector.broadcast %1 : vector<1x256xf32> to vector<8x256xf32>
    %66 = arith.addf %64, %65 : vector<8x256xf32>
    %67 = math.tanh %66 : vector<8x256xf32>
    %c9 = arith.constant 9 : index
    %c0_34 = arith.constant 0 : index
    %c0_35 = arith.constant 0 : index
    %68 = vector.load %arg1[%c9, %c0_34, %c0_35] : memref<24x8x256xf32, #tpu.memory_space<vmem>>, vector<1x8x256xf32>
    %69 = vector.shape_cast %68 : vector<1x8x256xf32> to vector<8x256xf32>
    %cst_36 = arith.constant dense<0.000000e+00> : vector<8x256xf32>
    %70 = tpu.matmul %69, %0, %cst_36 {dimension_numbers = #tpu.dot_dimension_numbers<[1], [0], [0], [1], [0, 0, 1, 1], [], []>} : vector<8x256xf32>, vector<256x256xf32>, vector<8x256xf32> -> vector<8x256xf32>
    %71 = vector.broadcast %1 : vector<1x256xf32> to vector<8x256xf32>
    %72 = arith.addf %70, %71 : vector<8x256xf32>
    %73 = math.tanh %72 : vector<8x256xf32>
    %74 = arith.addf %67, %73 : vector<8x256xf32>
    %cst_37 = arith.constant 5.000000e-01 : f32
    %75 = vector.broadcast %cst_37 : f32 to vector<8x256xf32>
    %76 = arith.mulf %75, %74 : vector<8x256xf32>
    %c10 = arith.constant 10 : index
    %c0_38 = arith.constant 0 : index
    %c0_39 = arith.constant 0 : index
    %77 = vector.load %arg1[%c10, %c0_38, %c0_39] : memref<24x8x256xf32, #tpu.memory_space<vmem>>, vector<1x8x256xf32>
    %78 = vector.shape_cast %77 : vector<1x8x256xf32> to vector<8x256xf32>
    %cst_40 = arith.constant dense<0.000000e+00> : vector<8x256xf32>
    %79 = tpu.matmul %78, %0, %cst_40 {dimension_numbers = #tpu.dot_dimension_numbers<[1], [0], [0], [1], [0, 0, 1, 1], [], []>} : vector<8x256xf32>, vector<256x256xf32>, vector<8x256xf32> -> vector<8x256xf32>
    %80 = vector.broadcast %1 : vector<1x256xf32> to vector<8x256xf32>
    %81 = arith.addf %79, %80 : vector<8x256xf32>
    %82 = math.tanh %81 : vector<8x256xf32>
    %c11 = arith.constant 11 : index
    %c0_41 = arith.constant 0 : index
    %c0_42 = arith.constant 0 : index
    %83 = vector.load %arg1[%c11, %c0_41, %c0_42] : memref<24x8x256xf32, #tpu.memory_space<vmem>>, vector<1x8x256xf32>
    %84 = vector.shape_cast %83 : vector<1x8x256xf32> to vector<8x256xf32>
    %cst_43 = arith.constant dense<0.000000e+00> : vector<8x256xf32>
    %85 = tpu.matmul %84, %0, %cst_43 {dimension_numbers = #tpu.dot_dimension_numbers<[1], [0], [0], [1], [0, 0, 1, 1], [], []>} : vector<8x256xf32>, vector<256x256xf32>, vector<8x256xf32> -> vector<8x256xf32>
    %86 = vector.broadcast %1 : vector<1x256xf32> to vector<8x256xf32>
    %87 = arith.addf %85, %86 : vector<8x256xf32>
    %88 = math.tanh %87 : vector<8x256xf32>
    %89 = arith.addf %82, %88 : vector<8x256xf32>
    %cst_44 = arith.constant 5.000000e-01 : f32
    %90 = vector.broadcast %cst_44 : f32 to vector<8x256xf32>
    %91 = arith.mulf %90, %89 : vector<8x256xf32>
    %c12 = arith.constant 12 : index
    %c0_45 = arith.constant 0 : index
    %c0_46 = arith.constant 0 : index
    %92 = vector.load %arg1[%c12, %c0_45, %c0_46] : memref<24x8x256xf32, #tpu.memory_space<vmem>>, vector<1x8x256xf32>
    %93 = vector.shape_cast %92 : vector<1x8x256xf32> to vector<8x256xf32>
    %cst_47 = arith.constant dense<0.000000e+00> : vector<8x256xf32>
    %94 = tpu.matmul %93, %0, %cst_47 {dimension_numbers = #tpu.dot_dimension_numbers<[1], [0], [0], [1], [0, 0, 1, 1], [], []>} : vector<8x256xf32>, vector<256x256xf32>, vector<8x256xf32> -> vector<8x256xf32>
    %95 = vector.broadcast %1 : vector<1x256xf32> to vector<8x256xf32>
    %96 = arith.addf %94, %95 : vector<8x256xf32>
    %97 = math.tanh %96 : vector<8x256xf32>
    %c13 = arith.constant 13 : index
    %c0_48 = arith.constant 0 : index
    %c0_49 = arith.constant 0 : index
    %98 = vector.load %arg1[%c13, %c0_48, %c0_49] : memref<24x8x256xf32, #tpu.memory_space<vmem>>, vector<1x8x256xf32>
    %99 = vector.shape_cast %98 : vector<1x8x256xf32> to vector<8x256xf32>
    %cst_50 = arith.constant dense<0.000000e+00> : vector<8x256xf32>
    %100 = tpu.matmul %99, %0, %cst_50 {dimension_numbers = #tpu.dot_dimension_numbers<[1], [0], [0], [1], [0, 0, 1, 1], [], []>} : vector<8x256xf32>, vector<256x256xf32>, vector<8x256xf32> -> vector<8x256xf32>
    %101 = vector.broadcast %1 : vector<1x256xf32> to vector<8x256xf32>
    %102 = arith.addf %100, %101 : vector<8x256xf32>
    %103 = math.tanh %102 : vector<8x256xf32>
    %104 = arith.addf %97, %103 : vector<8x256xf32>
    %cst_51 = arith.constant 5.000000e-01 : f32
    %105 = vector.broadcast %cst_51 : f32 to vector<8x256xf32>
    %106 = arith.mulf %105, %104 : vector<8x256xf32>
    %c14 = arith.constant 14 : index
    %c0_52 = arith.constant 0 : index
    %c0_53 = arith.constant 0 : index
    %107 = vector.load %arg1[%c14, %c0_52, %c0_53] : memref<24x8x256xf32, #tpu.memory_space<vmem>>, vector<1x8x256xf32>
    %108 = vector.shape_cast %107 : vector<1x8x256xf32> to vector<8x256xf32>
    %cst_54 = arith.constant dense<0.000000e+00> : vector<8x256xf32>
    %109 = tpu.matmul %108, %0, %cst_54 {dimension_numbers = #tpu.dot_dimension_numbers<[1], [0], [0], [1], [0, 0, 1, 1], [], []>} : vector<8x256xf32>, vector<256x256xf32>, vector<8x256xf32> -> vector<8x256xf32>
    %110 = vector.broadcast %1 : vector<1x256xf32> to vector<8x256xf32>
    %111 = arith.addf %109, %110 : vector<8x256xf32>
    %112 = math.tanh %111 : vector<8x256xf32>
    %c15 = arith.constant 15 : index
    %c0_55 = arith.constant 0 : index
    %c0_56 = arith.constant 0 : index
    %113 = vector.load %arg1[%c15, %c0_55, %c0_56] : memref<24x8x256xf32, #tpu.memory_space<vmem>>, vector<1x8x256xf32>
    %114 = vector.shape_cast %113 : vector<1x8x256xf32> to vector<8x256xf32>
    %cst_57 = arith.constant dense<0.000000e+00> : vector<8x256xf32>
    %115 = tpu.matmul %114, %0, %cst_57 {dimension_numbers = #tpu.dot_dimension_numbers<[1], [0], [0], [1], [0, 0, 1, 1], [], []>} : vector<8x256xf32>, vector<256x256xf32>, vector<8x256xf32> -> vector<8x256xf32>
    %116 = vector.broadcast %1 : vector<1x256xf32> to vector<8x256xf32>
    %117 = arith.addf %115, %116 : vector<8x256xf32>
    %118 = math.tanh %117 : vector<8x256xf32>
    %119 = arith.addf %112, %118 : vector<8x256xf32>
    %cst_58 = arith.constant 5.000000e-01 : f32
    %120 = vector.broadcast %cst_58 : f32 to vector<8x256xf32>
    %121 = arith.mulf %120, %119 : vector<8x256xf32>
    %c16 = arith.constant 16 : index
    %c0_59 = arith.constant 0 : index
    %c0_60 = arith.constant 0 : index
    %122 = vector.load %arg1[%c16, %c0_59, %c0_60] : memref<24x8x256xf32, #tpu.memory_space<vmem>>, vector<1x8x256xf32>
    %123 = vector.shape_cast %122 : vector<1x8x256xf32> to vector<8x256xf32>
    %cst_61 = arith.constant dense<0.000000e+00> : vector<8x256xf32>
    %124 = tpu.matmul %123, %0, %cst_61 {dimension_numbers = #tpu.dot_dimension_numbers<[1], [0], [0], [1], [0, 0, 1, 1], [], []>} : vector<8x256xf32>, vector<256x256xf32>, vector<8x256xf32> -> vector<8x256xf32>
    %125 = vector.broadcast %1 : vector<1x256xf32> to vector<8x256xf32>
    %126 = arith.addf %124, %125 : vector<8x256xf32>
    %127 = math.tanh %126 : vector<8x256xf32>
    %c17 = arith.constant 17 : index
    %c0_62 = arith.constant 0 : index
    %c0_63 = arith.constant 0 : index
    %128 = vector.load %arg1[%c17, %c0_62, %c0_63] : memref<24x8x256xf32, #tpu.memory_space<vmem>>, vector<1x8x256xf32>
    %129 = vector.shape_cast %128 : vector<1x8x256xf32> to vector<8x256xf32>
    %cst_64 = arith.constant dense<0.000000e+00> : vector<8x256xf32>
    %130 = tpu.matmul %129, %0, %cst_64 {dimension_numbers = #tpu.dot_dimension_numbers<[1], [0], [0], [1], [0, 0, 1, 1], [], []>} : vector<8x256xf32>, vector<256x256xf32>, vector<8x256xf32> -> vector<8x256xf32>
    %131 = vector.broadcast %1 : vector<1x256xf32> to vector<8x256xf32>
    %132 = arith.addf %130, %131 : vector<8x256xf32>
    %133 = math.tanh %132 : vector<8x256xf32>
    %134 = arith.addf %127, %133 : vector<8x256xf32>
    %cst_65 = arith.constant 5.000000e-01 : f32
    %135 = vector.broadcast %cst_65 : f32 to vector<8x256xf32>
    %136 = arith.mulf %135, %134 : vector<8x256xf32>
    %c18 = arith.constant 18 : index
    %c0_66 = arith.constant 0 : index
    %c0_67 = arith.constant 0 : index
    %137 = vector.load %arg1[%c18, %c0_66, %c0_67] : memref<24x8x256xf32, #tpu.memory_space<vmem>>, vector<1x8x256xf32>
    %138 = vector.shape_cast %137 : vector<1x8x256xf32> to vector<8x256xf32>
    %cst_68 = arith.constant dense<0.000000e+00> : vector<8x256xf32>
    %139 = tpu.matmul %138, %0, %cst_68 {dimension_numbers = #tpu.dot_dimension_numbers<[1], [0], [0], [1], [0, 0, 1, 1], [], []>} : vector<8x256xf32>, vector<256x256xf32>, vector<8x256xf32> -> vector<8x256xf32>
    %140 = vector.broadcast %1 : vector<1x256xf32> to vector<8x256xf32>
    %141 = arith.addf %139, %140 : vector<8x256xf32>
    %142 = math.tanh %141 : vector<8x256xf32>
    %c19 = arith.constant 19 : index
    %c0_69 = arith.constant 0 : index
    %c0_70 = arith.constant 0 : index
    %143 = vector.load %arg1[%c19, %c0_69, %c0_70] : memref<24x8x256xf32, #tpu.memory_space<vmem>>, vector<1x8x256xf32>
    %144 = vector.shape_cast %143 : vector<1x8x256xf32> to vector<8x256xf32>
    %cst_71 = arith.constant dense<0.000000e+00> : vector<8x256xf32>
    %145 = tpu.matmul %144, %0, %cst_71 {dimension_numbers = #tpu.dot_dimension_numbers<[1], [0], [0], [1], [0, 0, 1, 1], [], []>} : vector<8x256xf32>, vector<256x256xf32>, vector<8x256xf32> -> vector<8x256xf32>
    %146 = vector.broadcast %1 : vector<1x256xf32> to vector<8x256xf32>
    %147 = arith.addf %145, %146 : vector<8x256xf32>
    %148 = math.tanh %147 : vector<8x256xf32>
    %149 = arith.addf %142, %148 : vector<8x256xf32>
    %cst_72 = arith.constant 5.000000e-01 : f32
    %150 = vector.broadcast %cst_72 : f32 to vector<8x256xf32>
    %151 = arith.mulf %150, %149 : vector<8x256xf32>
    %c20 = arith.constant 20 : index
    %c0_73 = arith.constant 0 : index
    %c0_74 = arith.constant 0 : index
    %152 = vector.load %arg1[%c20, %c0_73, %c0_74] : memref<24x8x256xf32, #tpu.memory_space<vmem>>, vector<1x8x256xf32>
    %153 = vector.shape_cast %152 : vector<1x8x256xf32> to vector<8x256xf32>
    %cst_75 = arith.constant dense<0.000000e+00> : vector<8x256xf32>
    %154 = tpu.matmul %153, %0, %cst_75 {dimension_numbers = #tpu.dot_dimension_numbers<[1], [0], [0], [1], [0, 0, 1, 1], [], []>} : vector<8x256xf32>, vector<256x256xf32>, vector<8x256xf32> -> vector<8x256xf32>
    %155 = vector.broadcast %1 : vector<1x256xf32> to vector<8x256xf32>
    %156 = arith.addf %154, %155 : vector<8x256xf32>
    %157 = math.tanh %156 : vector<8x256xf32>
    %c21 = arith.constant 21 : index
    %c0_76 = arith.constant 0 : index
    %c0_77 = arith.constant 0 : index
    %158 = vector.load %arg1[%c21, %c0_76, %c0_77] : memref<24x8x256xf32, #tpu.memory_space<vmem>>, vector<1x8x256xf32>
    %159 = vector.shape_cast %158 : vector<1x8x256xf32> to vector<8x256xf32>
    %cst_78 = arith.constant dense<0.000000e+00> : vector<8x256xf32>
    %160 = tpu.matmul %159, %0, %cst_78 {dimension_numbers = #tpu.dot_dimension_numbers<[1], [0], [0], [1], [0, 0, 1, 1], [], []>} : vector<8x256xf32>, vector<256x256xf32>, vector<8x256xf32> -> vector<8x256xf32>
    %161 = vector.broadcast %1 : vector<1x256xf32> to vector<8x256xf32>
    %162 = arith.addf %160, %161 : vector<8x256xf32>
    %163 = math.tanh %162 : vector<8x256xf32>
    %164 = arith.addf %157, %163 : vector<8x256xf32>
    %cst_79 = arith.constant 5.000000e-01 : f32
    %165 = vector.broadcast %cst_79 : f32 to vector<8x256xf32>
    %166 = arith.mulf %165, %164 : vector<8x256xf32>
    %c22 = arith.constant 22 : index
    %c0_80 = arith.constant 0 : index
    %c0_81 = arith.constant 0 : index
    %167 = vector.load %arg1[%c22, %c0_80, %c0_81] : memref<24x8x256xf32, #tpu.memory_space<vmem>>, vector<1x8x256xf32>
    %168 = vector.shape_cast %167 : vector<1x8x256xf32> to vector<8x256xf32>
    %cst_82 = arith.constant dense<0.000000e+00> : vector<8x256xf32>
    %169 = tpu.matmul %168, %0, %cst_82 {dimension_numbers = #tpu.dot_dimension_numbers<[1], [0], [0], [1], [0, 0, 1, 1], [], []>} : vector<8x256xf32>, vector<256x256xf32>, vector<8x256xf32> -> vector<8x256xf32>
    %170 = vector.broadcast %1 : vector<1x256xf32> to vector<8x256xf32>
    %171 = arith.addf %169, %170 : vector<8x256xf32>
    %172 = math.tanh %171 : vector<8x256xf32>
    %c23 = arith.constant 23 : index
    %c0_83 = arith.constant 0 : index
    %c0_84 = arith.constant 0 : index
    %173 = vector.load %arg1[%c23, %c0_83, %c0_84] : memref<24x8x256xf32, #tpu.memory_space<vmem>>, vector<1x8x256xf32>
    %174 = vector.shape_cast %173 : vector<1x8x256xf32> to vector<8x256xf32>
    %cst_85 = arith.constant dense<0.000000e+00> : vector<8x256xf32>
    %175 = tpu.matmul %174, %0, %cst_85 {dimension_numbers = #tpu.dot_dimension_numbers<[1], [0], [0], [1], [0, 0, 1, 1], [], []>} : vector<8x256xf32>, vector<256x256xf32>, vector<8x256xf32> -> vector<8x256xf32>
    %176 = vector.broadcast %1 : vector<1x256xf32> to vector<8x256xf32>
    %177 = arith.addf %175, %176 : vector<8x256xf32>
    %178 = math.tanh %177 : vector<8x256xf32>
    %179 = arith.addf %172, %178 : vector<8x256xf32>
    %cst_86 = arith.constant 5.000000e-01 : f32
    %180 = vector.broadcast %cst_86 : f32 to vector<8x256xf32>
    %181 = arith.mulf %180, %179 : vector<8x256xf32>
    %c0_87 = arith.constant 0 : index
    %c0_88 = arith.constant 0 : index
    %182 = vector.load %arg5[%c0_87, %c0_88] : memref<1x128xf32, #tpu.memory_space<vmem>>, vector<1x128xf32>
    %c0_89 = arith.constant 0 : index
    %c0_90 = arith.constant 0 : index
    %c0_91 = arith.constant 0 : index
    %183 = vector.load %arg4[%c0_89, %c0_90, %c0_91] : memref<5x256x128xf32, #tpu.memory_space<vmem>>, vector<1x256x128xf32>
    %184 = vector.shape_cast %183 : vector<1x256x128xf32> to vector<256x128xf32>
    %cst_92 = arith.constant dense<0.000000e+00> : vector<8x128xf32>
    %185 = tpu.matmul %16, %184, %cst_92 {dimension_numbers = #tpu.dot_dimension_numbers<[1], [0], [0], [1], [0, 0, 1, 1], [], []>} : vector<8x256xf32>, vector<256x128xf32>, vector<8x128xf32> -> vector<8x128xf32>
    %c1_93 = arith.constant 1 : index
    %c0_94 = arith.constant 0 : index
    %c0_95 = arith.constant 0 : index
    %186 = vector.load %arg4[%c1_93, %c0_94, %c0_95] : memref<5x256x128xf32, #tpu.memory_space<vmem>>, vector<1x256x128xf32>
    %187 = vector.shape_cast %186 : vector<1x256x128xf32> to vector<256x128xf32>
    %cst_96 = arith.constant dense<0.000000e+00> : vector<8x128xf32>
    %188 = tpu.matmul %31, %187, %cst_96 {dimension_numbers = #tpu.dot_dimension_numbers<[1], [0], [0], [1], [0, 0, 1, 1], [], []>} : vector<8x256xf32>, vector<256x128xf32>, vector<8x128xf32> -> vector<8x128xf32>
    %189 = arith.addf %185, %188 : vector<8x128xf32>
    %c2_97 = arith.constant 2 : index
    %c0_98 = arith.constant 0 : index
    %c0_99 = arith.constant 0 : index
    %190 = vector.load %arg4[%c2_97, %c0_98, %c0_99] : memref<5x256x128xf32, #tpu.memory_space<vmem>>, vector<1x256x128xf32>
    %191 = vector.shape_cast %190 : vector<1x256x128xf32> to vector<256x128xf32>
    %cst_100 = arith.constant dense<0.000000e+00> : vector<8x128xf32>
    %192 = tpu.matmul %46, %191, %cst_100 {dimension_numbers = #tpu.dot_dimension_numbers<[1], [0], [0], [1], [0, 0, 1, 1], [], []>} : vector<8x256xf32>, vector<256x128xf32>, vector<8x128xf32> -> vector<8x128xf32>
    %193 = arith.addf %189, %192 : vector<8x128xf32>
    %c3_101 = arith.constant 3 : index
    %c0_102 = arith.constant 0 : index
    %c0_103 = arith.constant 0 : index
    %194 = vector.load %arg4[%c3_101, %c0_102, %c0_103] : memref<5x256x128xf32, #tpu.memory_space<vmem>>, vector<1x256x128xf32>
    %195 = vector.shape_cast %194 : vector<1x256x128xf32> to vector<256x128xf32>
    %cst_104 = arith.constant dense<0.000000e+00> : vector<8x128xf32>
    %196 = tpu.matmul %61, %195, %cst_104 {dimension_numbers = #tpu.dot_dimension_numbers<[1], [0], [0], [1], [0, 0, 1, 1], [], []>} : vector<8x256xf32>, vector<256x128xf32>, vector<8x128xf32> -> vector<8x128xf32>
    %197 = arith.addf %193, %196 : vector<8x128xf32>
    %c4_105 = arith.constant 4 : index
    %c0_106 = arith.constant 0 : index
    %c0_107 = arith.constant 0 : index
    %198 = vector.load %arg4[%c4_105, %c0_106, %c0_107] : memref<5x256x128xf32, #tpu.memory_space<vmem>>, vector<1x256x128xf32>
    %199 = vector.shape_cast %198 : vector<1x256x128xf32> to vector<256x128xf32>
    %cst_108 = arith.constant dense<0.000000e+00> : vector<8x128xf32>
    %200 = tpu.matmul %76, %199, %cst_108 {dimension_numbers = #tpu.dot_dimension_numbers<[1], [0], [0], [1], [0, 0, 1, 1], [], []>} : vector<8x256xf32>, vector<256x128xf32>, vector<8x128xf32> -> vector<8x128xf32>
    %201 = arith.addf %197, %200 : vector<8x128xf32>
    %202 = vector.broadcast %182 : vector<1x128xf32> to vector<8x128xf32>
    %203 = arith.addf %201, %202 : vector<8x128xf32>
    %204 = math.tanh %203 : vector<8x128xf32>
    %c0_109 = arith.constant 0 : index
    %c0_110 = arith.constant 0 : index
    %c0_111 = arith.constant 0 : index
    %205 = vector.load %arg4[%c0_109, %c0_110, %c0_111] : memref<5x256x128xf32, #tpu.memory_space<vmem>>, vector<1x256x128xf32>
    %206 = vector.shape_cast %205 : vector<1x256x128xf32> to vector<256x128xf32>
    %cst_112 = arith.constant dense<0.000000e+00> : vector<8x128xf32>
    %207 = tpu.matmul %31, %206, %cst_112 {dimension_numbers = #tpu.dot_dimension_numbers<[1], [0], [0], [1], [0, 0, 1, 1], [], []>} : vector<8x256xf32>, vector<256x128xf32>, vector<8x128xf32> -> vector<8x128xf32>
    %c1_113 = arith.constant 1 : index
    %c0_114 = arith.constant 0 : index
    %c0_115 = arith.constant 0 : index
    %208 = vector.load %arg4[%c1_113, %c0_114, %c0_115] : memref<5x256x128xf32, #tpu.memory_space<vmem>>, vector<1x256x128xf32>
    %209 = vector.shape_cast %208 : vector<1x256x128xf32> to vector<256x128xf32>
    %cst_116 = arith.constant dense<0.000000e+00> : vector<8x128xf32>
    %210 = tpu.matmul %46, %209, %cst_116 {dimension_numbers = #tpu.dot_dimension_numbers<[1], [0], [0], [1], [0, 0, 1, 1], [], []>} : vector<8x256xf32>, vector<256x128xf32>, vector<8x128xf32> -> vector<8x128xf32>
    %211 = arith.addf %207, %210 : vector<8x128xf32>
    %c2_117 = arith.constant 2 : index
    %c0_118 = arith.constant 0 : index
    %c0_119 = arith.constant 0 : index
    %212 = vector.load %arg4[%c2_117, %c0_118, %c0_119] : memref<5x256x128xf32, #tpu.memory_space<vmem>>, vector<1x256x128xf32>
    %213 = vector.shape_cast %212 : vector<1x256x128xf32> to vector<256x128xf32>
    %cst_120 = arith.constant dense<0.000000e+00> : vector<8x128xf32>
    %214 = tpu.matmul %61, %213, %cst_120 {dimension_numbers = #tpu.dot_dimension_numbers<[1], [0], [0], [1], [0, 0, 1, 1], [], []>} : vector<8x256xf32>, vector<256x128xf32>, vector<8x128xf32> -> vector<8x128xf32>
    %215 = arith.addf %211, %214 : vector<8x128xf32>
    %c3_121 = arith.constant 3 : index
    %c0_122 = arith.constant 0 : index
    %c0_123 = arith.constant 0 : index
    %216 = vector.load %arg4[%c3_121, %c0_122, %c0_123] : memref<5x256x128xf32, #tpu.memory_space<vmem>>, vector<1x256x128xf32>
    %217 = vector.shape_cast %216 : vector<1x256x128xf32> to vector<256x128xf32>
    %cst_124 = arith.constant dense<0.000000e+00> : vector<8x128xf32>
    %218 = tpu.matmul %76, %217, %cst_124 {dimension_numbers = #tpu.dot_dimension_numbers<[1], [0], [0], [1], [0, 0, 1, 1], [], []>} : vector<8x256xf32>, vector<256x128xf32>, vector<8x128xf32> -> vector<8x128xf32>
    %219 = arith.addf %215, %218 : vector<8x128xf32>
    %c4_125 = arith.constant 4 : index
    %c0_126 = arith.constant 0 : index
    %c0_127 = arith.constant 0 : index
    %220 = vector.load %arg4[%c4_125, %c0_126, %c0_127] : memref<5x256x128xf32, #tpu.memory_space<vmem>>, vector<1x256x128xf32>
    %221 = vector.shape_cast %220 : vector<1x256x128xf32> to vector<256x128xf32>
    %cst_128 = arith.constant dense<0.000000e+00> : vector<8x128xf32>
    %222 = tpu.matmul %91, %221, %cst_128 {dimension_numbers = #tpu.dot_dimension_numbers<[1], [0], [0], [1], [0, 0, 1, 1], [], []>} : vector<8x256xf32>, vector<256x128xf32>, vector<8x128xf32> -> vector<8x128xf32>
    %223 = arith.addf %219, %222 : vector<8x128xf32>
    %224 = vector.broadcast %182 : vector<1x128xf32> to vector<8x128xf32>
    %225 = arith.addf %223, %224 : vector<8x128xf32>
    %226 = math.tanh %225 : vector<8x128xf32>
    %227 = arith.addf %204, %226 : vector<8x128xf32>
    %cst_129 = arith.constant 5.000000e-01 : f32
    %228 = vector.broadcast %cst_129 : f32 to vector<8x128xf32>
    %229 = arith.mulf %228, %227 : vector<8x128xf32>
    %c0_130 = arith.constant 0 : index
    %c0_131 = arith.constant 0 : index
    %c0_132 = arith.constant 0 : index
    %230 = vector.load %arg4[%c0_130, %c0_131, %c0_132] : memref<5x256x128xf32, #tpu.memory_space<vmem>>, vector<1x256x128xf32>
    %231 = vector.shape_cast %230 : vector<1x256x128xf32> to vector<256x128xf32>
    %cst_133 = arith.constant dense<0.000000e+00> : vector<8x128xf32>
    %232 = tpu.matmul %46, %231, %cst_133 {dimension_numbers = #tpu.dot_dimension_numbers<[1], [0], [0], [1], [0, 0, 1, 1], [], []>} : vector<8x256xf32>, vector<256x128xf32>, vector<8x128xf32> -> vector<8x128xf32>
    %c1_134 = arith.constant 1 : index
    %c0_135 = arith.constant 0 : index
    %c0_136 = arith.constant 0 : index
    %233 = vector.load %arg4[%c1_134, %c0_135, %c0_136] : memref<5x256x128xf32, #tpu.memory_space<vmem>>, vector<1x256x128xf32>
    %234 = vector.shape_cast %233 : vector<1x256x128xf32> to vector<256x128xf32>
    %cst_137 = arith.constant dense<0.000000e+00> : vector<8x128xf32>
    %235 = tpu.matmul %61, %234, %cst_137 {dimension_numbers = #tpu.dot_dimension_numbers<[1], [0], [0], [1], [0, 0, 1, 1], [], []>} : vector<8x256xf32>, vector<256x128xf32>, vector<8x128xf32> -> vector<8x128xf32>
    %236 = arith.addf %232, %235 : vector<8x128xf32>
    %c2_138 = arith.constant 2 : index
    %c0_139 = arith.constant 0 : index
    %c0_140 = arith.constant 0 : index
    %237 = vector.load %arg4[%c2_138, %c0_139, %c0_140] : memref<5x256x128xf32, #tpu.memory_space<vmem>>, vector<1x256x128xf32>
    %238 = vector.shape_cast %237 : vector<1x256x128xf32> to vector<256x128xf32>
    %cst_141 = arith.constant dense<0.000000e+00> : vector<8x128xf32>
    %239 = tpu.matmul %76, %238, %cst_141 {dimension_numbers = #tpu.dot_dimension_numbers<[1], [0], [0], [1], [0, 0, 1, 1], [], []>} : vector<8x256xf32>, vector<256x128xf32>, vector<8x128xf32> -> vector<8x128xf32>
    %240 = arith.addf %236, %239 : vector<8x128xf32>
    %c3_142 = arith.constant 3 : index
    %c0_143 = arith.constant 0 : index
    %c0_144 = arith.constant 0 : index
    %241 = vector.load %arg4[%c3_142, %c0_143, %c0_144] : memref<5x256x128xf32, #tpu.memory_space<vmem>>, vector<1x256x128xf32>
    %242 = vector.shape_cast %241 : vector<1x256x128xf32> to vector<256x128xf32>
    %cst_145 = arith.constant dense<0.000000e+00> : vector<8x128xf32>
    %243 = tpu.matmul %91, %242, %cst_145 {dimension_numbers = #tpu.dot_dimension_numbers<[1], [0], [0], [1], [0, 0, 1, 1], [], []>} : vector<8x256xf32>, vector<256x128xf32>, vector<8x128xf32> -> vector<8x128xf32>
    %244 = arith.addf %240, %243 : vector<8x128xf32>
    %c4_146 = arith.constant 4 : index
    %c0_147 = arith.constant 0 : index
    %c0_148 = arith.constant 0 : index
    %245 = vector.load %arg4[%c4_146, %c0_147, %c0_148] : memref<5x256x128xf32, #tpu.memory_space<vmem>>, vector<1x256x128xf32>
    %246 = vector.shape_cast %245 : vector<1x256x128xf32> to vector<256x128xf32>
    %cst_149 = arith.constant dense<0.000000e+00> : vector<8x128xf32>
    %247 = tpu.matmul %106, %246, %cst_149 {dimension_numbers = #tpu.dot_dimension_numbers<[1], [0], [0], [1], [0, 0, 1, 1], [], []>} : vector<8x256xf32>, vector<256x128xf32>, vector<8x128xf32> -> vector<8x128xf32>
    %248 = arith.addf %244, %247 : vector<8x128xf32>
    %249 = vector.broadcast %182 : vector<1x128xf32> to vector<8x128xf32>
    %250 = arith.addf %248, %249 : vector<8x128xf32>
    %251 = math.tanh %250 : vector<8x128xf32>
    %c0_150 = arith.constant 0 : index
    %c0_151 = arith.constant 0 : index
    %c0_152 = arith.constant 0 : index
    %252 = vector.load %arg4[%c0_150, %c0_151, %c0_152] : memref<5x256x128xf32, #tpu.memory_space<vmem>>, vector<1x256x128xf32>
    %253 = vector.shape_cast %252 : vector<1x256x128xf32> to vector<256x128xf32>
    %cst_153 = arith.constant dense<0.000000e+00> : vector<8x128xf32>
    %254 = tpu.matmul %61, %253, %cst_153 {dimension_numbers = #tpu.dot_dimension_numbers<[1], [0], [0], [1], [0, 0, 1, 1], [], []>} : vector<8x256xf32>, vector<256x128xf32>, vector<8x128xf32> -> vector<8x128xf32>
    %c1_154 = arith.constant 1 : index
    %c0_155 = arith.constant 0 : index
    %c0_156 = arith.constant 0 : index
    %255 = vector.load %arg4[%c1_154, %c0_155, %c0_156] : memref<5x256x128xf32, #tpu.memory_space<vmem>>, vector<1x256x128xf32>
    %256 = vector.shape_cast %255 : vector<1x256x128xf32> to vector<256x128xf32>
    %cst_157 = arith.constant dense<0.000000e+00> : vector<8x128xf32>
    %257 = tpu.matmul %76, %256, %cst_157 {dimension_numbers = #tpu.dot_dimension_numbers<[1], [0], [0], [1], [0, 0, 1, 1], [], []>} : vector<8x256xf32>, vector<256x128xf32>, vector<8x128xf32> -> vector<8x128xf32>
    %258 = arith.addf %254, %257 : vector<8x128xf32>
    %c2_158 = arith.constant 2 : index
    %c0_159 = arith.constant 0 : index
    %c0_160 = arith.constant 0 : index
    %259 = vector.load %arg4[%c2_158, %c0_159, %c0_160] : memref<5x256x128xf32, #tpu.memory_space<vmem>>, vector<1x256x128xf32>
    %260 = vector.shape_cast %259 : vector<1x256x128xf32> to vector<256x128xf32>
    %cst_161 = arith.constant dense<0.000000e+00> : vector<8x128xf32>
    %261 = tpu.matmul %91, %260, %cst_161 {dimension_numbers = #tpu.dot_dimension_numbers<[1], [0], [0], [1], [0, 0, 1, 1], [], []>} : vector<8x256xf32>, vector<256x128xf32>, vector<8x128xf32> -> vector<8x128xf32>
    %262 = arith.addf %258, %261 : vector<8x128xf32>
    %c3_162 = arith.constant 3 : index
    %c0_163 = arith.constant 0 : index
    %c0_164 = arith.constant 0 : index
    %263 = vector.load %arg4[%c3_162, %c0_163, %c0_164] : memref<5x256x128xf32, #tpu.memory_space<vmem>>, vector<1x256x128xf32>
    %264 = vector.shape_cast %263 : vector<1x256x128xf32> to vector<256x128xf32>
    %cst_165 = arith.constant dense<0.000000e+00> : vector<8x128xf32>
    %265 = tpu.matmul %106, %264, %cst_165 {dimension_numbers = #tpu.dot_dimension_numbers<[1], [0], [0], [1], [0, 0, 1, 1], [], []>} : vector<8x256xf32>, vector<256x128xf32>, vector<8x128xf32> -> vector<8x128xf32>
    %266 = arith.addf %262, %265 : vector<8x128xf32>
    %c4_166 = arith.constant 4 : index
    %c0_167 = arith.constant 0 : index
    %c0_168 = arith.constant 0 : index
    %267 = vector.load %arg4[%c4_166, %c0_167, %c0_168] : memref<5x256x128xf32, #tpu.memory_space<vmem>>, vector<1x256x128xf32>
    %268 = vector.shape_cast %267 : vector<1x256x128xf32> to vector<256x128xf32>
    %cst_169 = arith.constant dense<0.000000e+00> : vector<8x128xf32>
    %269 = tpu.matmul %121, %268, %cst_169 {dimension_numbers = #tpu.dot_dimension_numbers<[1], [0], [0], [1], [0, 0, 1, 1], [], []>} : vector<8x256xf32>, vector<256x128xf32>, vector<8x128xf32> -> vector<8x128xf32>
    %270 = arith.addf %266, %269 : vector<8x128xf32>
    %271 = vector.broadcast %182 : vector<1x128xf32> to vector<8x128xf32>
    %272 = arith.addf %270, %271 : vector<8x128xf32>
    %273 = math.tanh %272 : vector<8x128xf32>
    %274 = arith.addf %251, %273 : vector<8x128xf32>
    %cst_170 = arith.constant 5.000000e-01 : f32
    %275 = vector.broadcast %cst_170 : f32 to vector<8x128xf32>
    %276 = arith.mulf %275, %274 : vector<8x128xf32>
    %c0_171 = arith.constant 0 : index
    %c0_172 = arith.constant 0 : index
    %c0_173 = arith.constant 0 : index
    %277 = vector.load %arg4[%c0_171, %c0_172, %c0_173] : memref<5x256x128xf32, #tpu.memory_space<vmem>>, vector<1x256x128xf32>
    %278 = vector.shape_cast %277 : vector<1x256x128xf32> to vector<256x128xf32>
    %cst_174 = arith.constant dense<0.000000e+00> : vector<8x128xf32>
    %279 = tpu.matmul %76, %278, %cst_174 {dimension_numbers = #tpu.dot_dimension_numbers<[1], [0], [0], [1], [0, 0, 1, 1], [], []>} : vector<8x256xf32>, vector<256x128xf32>, vector<8x128xf32> -> vector<8x128xf32>
    %c1_175 = arith.constant 1 : index
    %c0_176 = arith.constant 0 : index
    %c0_177 = arith.constant 0 : index
    %280 = vector.load %arg4[%c1_175, %c0_176, %c0_177] : memref<5x256x128xf32, #tpu.memory_space<vmem>>, vector<1x256x128xf32>
    %281 = vector.shape_cast %280 : vector<1x256x128xf32> to vector<256x128xf32>
    %cst_178 = arith.constant dense<0.000000e+00> : vector<8x128xf32>
    %282 = tpu.matmul %91, %281, %cst_178 {dimension_numbers = #tpu.dot_dimension_numbers<[1], [0], [0], [1], [0, 0, 1, 1], [], []>} : vector<8x256xf32>, vector<256x128xf32>, vector<8x128xf32> -> vector<8x128xf32>
    %283 = arith.addf %279, %282 : vector<8x128xf32>
    %c2_179 = arith.constant 2 : index
    %c0_180 = arith.constant 0 : index
    %c0_181 = arith.constant 0 : index
    %284 = vector.load %arg4[%c2_179, %c0_180, %c0_181] : memref<5x256x128xf32, #tpu.memory_space<vmem>>, vector<1x256x128xf32>
    %285 = vector.shape_cast %284 : vector<1x256x128xf32> to vector<256x128xf32>
    %cst_182 = arith.constant dense<0.000000e+00> : vector<8x128xf32>
    %286 = tpu.matmul %106, %285, %cst_182 {dimension_numbers = #tpu.dot_dimension_numbers<[1], [0], [0], [1], [0, 0, 1, 1], [], []>} : vector<8x256xf32>, vector<256x128xf32>, vector<8x128xf32> -> vector<8x128xf32>
    %287 = arith.addf %283, %286 : vector<8x128xf32>
    %c3_183 = arith.constant 3 : index
    %c0_184 = arith.constant 0 : index
    %c0_185 = arith.constant 0 : index
    %288 = vector.load %arg4[%c3_183, %c0_184, %c0_185] : memref<5x256x128xf32, #tpu.memory_space<vmem>>, vector<1x256x128xf32>
    %289 = vector.shape_cast %288 : vector<1x256x128xf32> to vector<256x128xf32>
    %cst_186 = arith.constant dense<0.000000e+00> : vector<8x128xf32>
    %290 = tpu.matmul %121, %289, %cst_186 {dimension_numbers = #tpu.dot_dimension_numbers<[1], [0], [0], [1], [0, 0, 1, 1], [], []>} : vector<8x256xf32>, vector<256x128xf32>, vector<8x128xf32> -> vector<8x128xf32>
    %291 = arith.addf %287, %290 : vector<8x128xf32>
    %c4_187 = arith.constant 4 : index
    %c0_188 = arith.constant 0 : index
    %c0_189 = arith.constant 0 : index
    %292 = vector.load %arg4[%c4_187, %c0_188, %c0_189] : memref<5x256x128xf32, #tpu.memory_space<vmem>>, vector<1x256x128xf32>
    %293 = vector.shape_cast %292 : vector<1x256x128xf32> to vector<256x128xf32>
    %cst_190 = arith.constant dense<0.000000e+00> : vector<8x128xf32>
    %294 = tpu.matmul %136, %293, %cst_190 {dimension_numbers = #tpu.dot_dimension_numbers<[1], [0], [0], [1], [0, 0, 1, 1], [], []>} : vector<8x256xf32>, vector<256x128xf32>, vector<8x128xf32> -> vector<8x128xf32>
    %295 = arith.addf %291, %294 : vector<8x128xf32>
    %296 = vector.broadcast %182 : vector<1x128xf32> to vector<8x128xf32>
    %297 = arith.addf %295, %296 : vector<8x128xf32>
    %298 = math.tanh %297 : vector<8x128xf32>
    %c0_191 = arith.constant 0 : index
    %c0_192 = arith.constant 0 : index
    %c0_193 = arith.constant 0 : index
    %299 = vector.load %arg4[%c0_191, %c0_192, %c0_193] : memref<5x256x128xf32, #tpu.memory_space<vmem>>, vector<1x256x128xf32>
    %300 = vector.shape_cast %299 : vector<1x256x128xf32> to vector<256x128xf32>
    %cst_194 = arith.constant dense<0.000000e+00> : vector<8x128xf32>
    %301 = tpu.matmul %91, %300, %cst_194 {dimension_numbers = #tpu.dot_dimension_numbers<[1], [0], [0], [1], [0, 0, 1, 1], [], []>} : vector<8x256xf32>, vector<256x128xf32>, vector<8x128xf32> -> vector<8x128xf32>
    %c1_195 = arith.constant 1 : index
    %c0_196 = arith.constant 0 : index
    %c0_197 = arith.constant 0 : index
    %302 = vector.load %arg4[%c1_195, %c0_196, %c0_197] : memref<5x256x128xf32, #tpu.memory_space<vmem>>, vector<1x256x128xf32>
    %303 = vector.shape_cast %302 : vector<1x256x128xf32> to vector<256x128xf32>
    %cst_198 = arith.constant dense<0.000000e+00> : vector<8x128xf32>
    %304 = tpu.matmul %106, %303, %cst_198 {dimension_numbers = #tpu.dot_dimension_numbers<[1], [0], [0], [1], [0, 0, 1, 1], [], []>} : vector<8x256xf32>, vector<256x128xf32>, vector<8x128xf32> -> vector<8x128xf32>
    %305 = arith.addf %301, %304 : vector<8x128xf32>
    %c2_199 = arith.constant 2 : index
    %c0_200 = arith.constant 0 : index
    %c0_201 = arith.constant 0 : index
    %306 = vector.load %arg4[%c2_199, %c0_200, %c0_201] : memref<5x256x128xf32, #tpu.memory_space<vmem>>, vector<1x256x128xf32>
    %307 = vector.shape_cast %306 : vector<1x256x128xf32> to vector<256x128xf32>
    %cst_202 = arith.constant dense<0.000000e+00> : vector<8x128xf32>
    %308 = tpu.matmul %121, %307, %cst_202 {dimension_numbers = #tpu.dot_dimension_numbers<[1], [0], [0], [1], [0, 0, 1, 1], [], []>} : vector<8x256xf32>, vector<256x128xf32>, vector<8x128xf32> -> vector<8x128xf32>
    %309 = arith.addf %305, %308 : vector<8x128xf32>
    %c3_203 = arith.constant 3 : index
    %c0_204 = arith.constant 0 : index
    %c0_205 = arith.constant 0 : index
    %310 = vector.load %arg4[%c3_203, %c0_204, %c0_205] : memref<5x256x128xf32, #tpu.memory_space<vmem>>, vector<1x256x128xf32>
    %311 = vector.shape_cast %310 : vector<1x256x128xf32> to vector<256x128xf32>
    %cst_206 = arith.constant dense<0.000000e+00> : vector<8x128xf32>
    %312 = tpu.matmul %136, %311, %cst_206 {dimension_numbers = #tpu.dot_dimension_numbers<[1], [0], [0], [1], [0, 0, 1, 1], [], []>} : vector<8x256xf32>, vector<256x128xf32>, vector<8x128xf32> -> vector<8x128xf32>
    %313 = arith.addf %309, %312 : vector<8x128xf32>
    %c4_207 = arith.constant 4 : index
    %c0_208 = arith.constant 0 : index
    %c0_209 = arith.constant 0 : index
    %314 = vector.load %arg4[%c4_207, %c0_208, %c0_209] : memref<5x256x128xf32, #tpu.memory_space<vmem>>, vector<1x256x128xf32>
    %315 = vector.shape_cast %314 : vector<1x256x128xf32> to vector<256x128xf32>
    %cst_210 = arith.constant dense<0.000000e+00> : vector<8x128xf32>
    %316 = tpu.matmul %151, %315, %cst_210 {dimension_numbers = #tpu.dot_dimension_numbers<[1], [0], [0], [1], [0, 0, 1, 1], [], []>} : vector<8x256xf32>, vector<256x128xf32>, vector<8x128xf32> -> vector<8x128xf32>
    %317 = arith.addf %313, %316 : vector<8x128xf32>
    %318 = vector.broadcast %182 : vector<1x128xf32> to vector<8x128xf32>
    %319 = arith.addf %317, %318 : vector<8x128xf32>
    %320 = math.tanh %319 : vector<8x128xf32>
    %321 = arith.addf %298, %320 : vector<8x128xf32>
    %cst_211 = arith.constant 5.000000e-01 : f32
    %322 = vector.broadcast %cst_211 : f32 to vector<8x128xf32>
    %323 = arith.mulf %322, %321 : vector<8x128xf32>
    %c0_212 = arith.constant 0 : index
    %c0_213 = arith.constant 0 : index
    %c0_214 = arith.constant 0 : index
    %324 = vector.load %arg4[%c0_212, %c0_213, %c0_214] : memref<5x256x128xf32, #tpu.memory_space<vmem>>, vector<1x256x128xf32>
    %325 = vector.shape_cast %324 : vector<1x256x128xf32> to vector<256x128xf32>
    %cst_215 = arith.constant dense<0.000000e+00> : vector<8x128xf32>
    %326 = tpu.matmul %106, %325, %cst_215 {dimension_numbers = #tpu.dot_dimension_numbers<[1], [0], [0], [1], [0, 0, 1, 1], [], []>} : vector<8x256xf32>, vector<256x128xf32>, vector<8x128xf32> -> vector<8x128xf32>
    %c1_216 = arith.constant 1 : index
    %c0_217 = arith.constant 0 : index
    %c0_218 = arith.constant 0 : index
    %327 = vector.load %arg4[%c1_216, %c0_217, %c0_218] : memref<5x256x128xf32, #tpu.memory_space<vmem>>, vector<1x256x128xf32>
    %328 = vector.shape_cast %327 : vector<1x256x128xf32> to vector<256x128xf32>
    %cst_219 = arith.constant dense<0.000000e+00> : vector<8x128xf32>
    %329 = tpu.matmul %121, %328, %cst_219 {dimension_numbers = #tpu.dot_dimension_numbers<[1], [0], [0], [1], [0, 0, 1, 1], [], []>} : vector<8x256xf32>, vector<256x128xf32>, vector<8x128xf32> -> vector<8x128xf32>
    %330 = arith.addf %326, %329 : vector<8x128xf32>
    %c2_220 = arith.constant 2 : index
    %c0_221 = arith.constant 0 : index
    %c0_222 = arith.constant 0 : index
    %331 = vector.load %arg4[%c2_220, %c0_221, %c0_222] : memref<5x256x128xf32, #tpu.memory_space<vmem>>, vector<1x256x128xf32>
    %332 = vector.shape_cast %331 : vector<1x256x128xf32> to vector<256x128xf32>
    %cst_223 = arith.constant dense<0.000000e+00> : vector<8x128xf32>
    %333 = tpu.matmul %136, %332, %cst_223 {dimension_numbers = #tpu.dot_dimension_numbers<[1], [0], [0], [1], [0, 0, 1, 1], [], []>} : vector<8x256xf32>, vector<256x128xf32>, vector<8x128xf32> -> vector<8x128xf32>
    %334 = arith.addf %330, %333 : vector<8x128xf32>
    %c3_224 = arith.constant 3 : index
    %c0_225 = arith.constant 0 : index
    %c0_226 = arith.constant 0 : index
    %335 = vector.load %arg4[%c3_224, %c0_225, %c0_226] : memref<5x256x128xf32, #tpu.memory_space<vmem>>, vector<1x256x128xf32>
    %336 = vector.shape_cast %335 : vector<1x256x128xf32> to vector<256x128xf32>
    %cst_227 = arith.constant dense<0.000000e+00> : vector<8x128xf32>
    %337 = tpu.matmul %151, %336, %cst_227 {dimension_numbers = #tpu.dot_dimension_numbers<[1], [0], [0], [1], [0, 0, 1, 1], [], []>} : vector<8x256xf32>, vector<256x128xf32>, vector<8x128xf32> -> vector<8x128xf32>
    %338 = arith.addf %334, %337 : vector<8x128xf32>
    %c4_228 = arith.constant 4 : index
    %c0_229 = arith.constant 0 : index
    %c0_230 = arith.constant 0 : index
    %339 = vector.load %arg4[%c4_228, %c0_229, %c0_230] : memref<5x256x128xf32, #tpu.memory_space<vmem>>, vector<1x256x128xf32>
    %340 = vector.shape_cast %339 : vector<1x256x128xf32> to vector<256x128xf32>
    %cst_231 = arith.constant dense<0.000000e+00> : vector<8x128xf32>
    %341 = tpu.matmul %166, %340, %cst_231 {dimension_numbers = #tpu.dot_dimension_numbers<[1], [0], [0], [1], [0, 0, 1, 1], [], []>} : vector<8x256xf32>, vector<256x128xf32>, vector<8x128xf32> -> vector<8x128xf32>
    %342 = arith.addf %338, %341 : vector<8x128xf32>
    %343 = vector.broadcast %182 : vector<1x128xf32> to vector<8x128xf32>
    %344 = arith.addf %342, %343 : vector<8x128xf32>
    %345 = math.tanh %344 : vector<8x128xf32>
    %c0_232 = arith.constant 0 : index
    %c0_233 = arith.constant 0 : index
    %c0_234 = arith.constant 0 : index
    %346 = vector.load %arg4[%c0_232, %c0_233, %c0_234] : memref<5x256x128xf32, #tpu.memory_space<vmem>>, vector<1x256x128xf32>
    %347 = vector.shape_cast %346 : vector<1x256x128xf32> to vector<256x128xf32>
    %cst_235 = arith.constant dense<0.000000e+00> : vector<8x128xf32>
    %348 = tpu.matmul %121, %347, %cst_235 {dimension_numbers = #tpu.dot_dimension_numbers<[1], [0], [0], [1], [0, 0, 1, 1], [], []>} : vector<8x256xf32>, vector<256x128xf32>, vector<8x128xf32> -> vector<8x128xf32>
    %c1_236 = arith.constant 1 : index
    %c0_237 = arith.constant 0 : index
    %c0_238 = arith.constant 0 : index
    %349 = vector.load %arg4[%c1_236, %c0_237, %c0_238] : memref<5x256x128xf32, #tpu.memory_space<vmem>>, vector<1x256x128xf32>
    %350 = vector.shape_cast %349 : vector<1x256x128xf32> to vector<256x128xf32>
    %cst_239 = arith.constant dense<0.000000e+00> : vector<8x128xf32>
    %351 = tpu.matmul %136, %350, %cst_239 {dimension_numbers = #tpu.dot_dimension_numbers<[1], [0], [0], [1], [0, 0, 1, 1], [], []>} : vector<8x256xf32>, vector<256x128xf32>, vector<8x128xf32> -> vector<8x128xf32>
    %352 = arith.addf %348, %351 : vector<8x128xf32>
    %c2_240 = arith.constant 2 : index
    %c0_241 = arith.constant 0 : index
    %c0_242 = arith.constant 0 : index
    %353 = vector.load %arg4[%c2_240, %c0_241, %c0_242] : memref<5x256x128xf32, #tpu.memory_space<vmem>>, vector<1x256x128xf32>
    %354 = vector.shape_cast %353 : vector<1x256x128xf32> to vector<256x128xf32>
    %cst_243 = arith.constant dense<0.000000e+00> : vector<8x128xf32>
    %355 = tpu.matmul %151, %354, %cst_243 {dimension_numbers = #tpu.dot_dimension_numbers<[1], [0], [0], [1], [0, 0, 1, 1], [], []>} : vector<8x256xf32>, vector<256x128xf32>, vector<8x128xf32> -> vector<8x128xf32>
    %356 = arith.addf %352, %355 : vector<8x128xf32>
    %c3_244 = arith.constant 3 : index
    %c0_245 = arith.constant 0 : index
    %c0_246 = arith.constant 0 : index
    %357 = vector.load %arg4[%c3_244, %c0_245, %c0_246] : memref<5x256x128xf32, #tpu.memory_space<vmem>>, vector<1x256x128xf32>
    %358 = vector.shape_cast %357 : vector<1x256x128xf32> to vector<256x128xf32>
    %cst_247 = arith.constant dense<0.000000e+00> : vector<8x128xf32>
    %359 = tpu.matmul %166, %358, %cst_247 {dimension_numbers = #tpu.dot_dimension_numbers<[1], [0], [0], [1], [0, 0, 1, 1], [], []>} : vector<8x256xf32>, vector<256x128xf32>, vector<8x128xf32> -> vector<8x128xf32>
    %360 = arith.addf %356, %359 : vector<8x128xf32>
    %c4_248 = arith.constant 4 : index
    %c0_249 = arith.constant 0 : index
    %c0_250 = arith.constant 0 : index
    %361 = vector.load %arg4[%c4_248, %c0_249, %c0_250] : memref<5x256x128xf32, #tpu.memory_space<vmem>>, vector<1x256x128xf32>
    %362 = vector.shape_cast %361 : vector<1x256x128xf32> to vector<256x128xf32>
    %cst_251 = arith.constant dense<0.000000e+00> : vector<8x128xf32>
    %363 = tpu.matmul %181, %362, %cst_251 {dimension_numbers = #tpu.dot_dimension_numbers<[1], [0], [0], [1], [0, 0, 1, 1], [], []>} : vector<8x256xf32>, vector<256x128xf32>, vector<8x128xf32> -> vector<8x128xf32>
    %364 = arith.addf %360, %363 : vector<8x128xf32>
    %365 = vector.broadcast %182 : vector<1x128xf32> to vector<8x128xf32>
    %366 = arith.addf %364, %365 : vector<8x128xf32>
    %367 = math.tanh %366 : vector<8x128xf32>
    %368 = arith.addf %345, %367 : vector<8x128xf32>
    %cst_252 = arith.constant 5.000000e-01 : f32
    %369 = vector.broadcast %cst_252 : f32 to vector<8x128xf32>
    %370 = arith.mulf %369, %368 : vector<8x128xf32>
    %c0_253 = arith.constant 0 : index
    %c0_254 = arith.constant 0 : index
    %c0_255 = arith.constant 0 : index
    %371 = vector.load %arg6[%c0_253, %c0_254, %c0_255] : memref<4x128x128xf32, #tpu.memory_space<vmem>>, vector<1x128x128xf32>
    %372 = vector.shape_cast %371 : vector<1x128x128xf32> to vector<128x128xf32>
    %cst_256 = arith.constant dense<0.000000e+00> : vector<8x128xf32>
    %373 = tpu.matmul %229, %372, %cst_256 {dimension_numbers = #tpu.dot_dimension_numbers<[1], [0], [0], [1], [0, 0, 1, 1], [], []>} : vector<8x128xf32>, vector<128x128xf32>, vector<8x128xf32> -> vector<8x128xf32>
    %c1_257 = arith.constant 1 : index
    %c0_258 = arith.constant 0 : index
    %c0_259 = arith.constant 0 : index
    %374 = vector.load %arg6[%c1_257, %c0_258, %c0_259] : memref<4x128x128xf32, #tpu.memory_space<vmem>>, vector<1x128x128xf32>
    %375 = vector.shape_cast %374 : vector<1x128x128xf32> to vector<128x128xf32>
    %cst_260 = arith.constant dense<0.000000e+00> : vector<8x128xf32>
    %376 = tpu.matmul %276, %375, %cst_260 {dimension_numbers = #tpu.dot_dimension_numbers<[1], [0], [0], [1], [0, 0, 1, 1], [], []>} : vector<8x128xf32>, vector<128x128xf32>, vector<8x128xf32> -> vector<8x128xf32>
    %377 = arith.addf %373, %376 : vector<8x128xf32>
    %c2_261 = arith.constant 2 : index
    %c0_262 = arith.constant 0 : index
    %c0_263 = arith.constant 0 : index
    %378 = vector.load %arg6[%c2_261, %c0_262, %c0_263] : memref<4x128x128xf32, #tpu.memory_space<vmem>>, vector<1x128x128xf32>
    %379 = vector.shape_cast %378 : vector<1x128x128xf32> to vector<128x128xf32>
    %cst_264 = arith.constant dense<0.000000e+00> : vector<8x128xf32>
    %380 = tpu.matmul %323, %379, %cst_264 {dimension_numbers = #tpu.dot_dimension_numbers<[1], [0], [0], [1], [0, 0, 1, 1], [], []>} : vector<8x128xf32>, vector<128x128xf32>, vector<8x128xf32> -> vector<8x128xf32>
    %381 = arith.addf %377, %380 : vector<8x128xf32>
    %c3_265 = arith.constant 3 : index
    %c0_266 = arith.constant 0 : index
    %c0_267 = arith.constant 0 : index
    %382 = vector.load %arg6[%c3_265, %c0_266, %c0_267] : memref<4x128x128xf32, #tpu.memory_space<vmem>>, vector<1x128x128xf32>
    %383 = vector.shape_cast %382 : vector<1x128x128xf32> to vector<128x128xf32>
    %cst_268 = arith.constant dense<0.000000e+00> : vector<8x128xf32>
    %384 = tpu.matmul %370, %383, %cst_268 {dimension_numbers = #tpu.dot_dimension_numbers<[1], [0], [0], [1], [0, 0, 1, 1], [], []>} : vector<8x128xf32>, vector<128x128xf32>, vector<8x128xf32> -> vector<8x128xf32>
    %385 = arith.addf %381, %384 : vector<8x128xf32>
    %c0_269 = arith.constant 0 : index
    %c0_270 = arith.constant 0 : index
    %386 = vector.load %arg7[%c0_269, %c0_270] : memref<1x128xf32, #tpu.memory_space<vmem>>, vector<1x128xf32>
    %387 = vector.broadcast %386 : vector<1x128xf32> to vector<8x128xf32>
    %388 = arith.addf %385, %387 : vector<8x128xf32>
    %389 = math.tanh %388 : vector<8x128xf32>
    %c0_271 = arith.constant 0 : index
    %c0_272 = arith.constant 0 : index
    %390 = vector.load %arg8[%c0_271, %c0_272] : memref<128x128xf32, #tpu.memory_space<vmem>>, vector<128x128xf32>
    %cst_273 = arith.constant dense<0.000000e+00> : vector<8x128xf32>
    %391 = tpu.matmul %389, %390, %cst_273 {dimension_numbers = #tpu.dot_dimension_numbers<[1], [0], [0], [1], [0, 0, 1, 1], [], []>} : vector<8x128xf32>, vector<128x128xf32>, vector<8x128xf32> -> vector<8x128xf32>
    %c0_274 = arith.constant 0 : index
    %c0_275 = arith.constant 0 : index
    %392 = vector.load %arg9[%c0_274, %c0_275] : memref<1x128xf32, #tpu.memory_space<vmem>>, vector<1x128xf32>
    %393 = vector.broadcast %392 : vector<1x128xf32> to vector<8x128xf32>
    %394 = arith.addf %391, %393 : vector<8x128xf32>
    %395 = math.tanh %394 : vector<8x128xf32>
    %c0_276 = arith.constant 0 : index
    %c0_277 = arith.constant 0 : index
    %396 = vector.load %arg10[%c0_276, %c0_277] : memref<128x128xf32, #tpu.memory_space<vmem>>, vector<128x128xf32>
    %cst_278 = arith.constant dense<0.000000e+00> : vector<8x128xf32>
    %397 = tpu.matmul %395, %396, %cst_278 {dimension_numbers = #tpu.dot_dimension_numbers<[1], [0], [0], [1], [0, 0, 1, 1], [], []>} : vector<8x128xf32>, vector<128x128xf32>, vector<8x128xf32> -> vector<8x128xf32>
    %c0_279 = arith.constant 0 : index
    %c0_280 = arith.constant 0 : index
    %398 = vector.load %arg11[%c0_279, %c0_280] : memref<1x128xf32, #tpu.memory_space<vmem>>, vector<1x128xf32>
    %399 = vector.broadcast %398 : vector<1x128xf32> to vector<8x128xf32>
    %400 = arith.addf %397, %399 : vector<8x128xf32>
    %401 = tpu.iota {dimensions = array<i32: 1>} : vector<8x128xi32>
    %c10_i32 = arith.constant 10 : i32
    %402 = vector.broadcast %c10_i32 : i32 to vector<8x128xi32>
    %403 = arith.cmpi slt, %401, %402 : vector<8x128xi32>
    %cst_281 = arith.constant -1.000000e+30 : f32
    %404 = vector.broadcast %cst_281 : f32 to vector<8x128xf32>
    %405 = arith.select %403, %400, %404 : vector<8x128xi1>, vector<8x128xf32>
    %cst_282 = arith.constant dense<0xFF800000> : vector<8xf32>
    %406 = vector.multi_reduction <maximumf>, %405, %cst_282 [1] : vector<8x128xf32> to vector<8xf32>
    %407 = vector.shape_cast %406 : vector<8xf32> to vector<8x1xf32>
    %408 = vector.broadcast %407 : vector<8x1xf32> to vector<8x128xf32>
    %409 = arith.subf %405, %408 : vector<8x128xf32>
    %410 = math.exp %409 : vector<8x128xf32>
    %cst_283 = arith.constant dense<0.000000e+00> : vector<8xf32>
    %411 = vector.multi_reduction <add>, %410, %cst_283 [1] : vector<8x128xf32> to vector<8xf32>
    %412 = vector.shape_cast %411 : vector<8xf32> to vector<8x1xf32>
    %413 = vector.broadcast %412 : vector<8x1xf32> to vector<8x128xf32>
    %414 = arith.divf %410, %413 : vector<8x128xf32>
    %c0_284 = arith.constant 0 : index
    %c0_285 = arith.constant 0 : index
    %415 = vector.load %arg12[%c0_284, %c0_285] : memref<8x128xf32, #tpu.memory_space<vmem>>, vector<8x128xf32>
    tpu.vector_store %arg12[%c0_284, %c0_285], %414 {strides = array<i32>} : memref<8x128xf32, #tpu.memory_space<vmem>>, vector<8x128xf32>,
    return
  }
  func.func @transform_0(%arg0: i32) -> (i32, i32, i32) {
    %c0_i32 = arith.constant 0 : i32
    %c0_i32_0 = arith.constant 0 : i32
    %c0_i32_1 = arith.constant 0 : i32
    return %c0_i32, %arg0, %c0_i32_0 : i32, i32, i32
  }
  func.func @transform_1(%arg0: i32) -> (i32, i32) {
    %c0_i32 = arith.constant 0 : i32
    %c0_i32_0 = arith.constant 0 : i32
    %c0_i32_1 = arith.constant 0 : i32
    return %c0_i32, %c0_i32_0 : i32, i32
  }
  func.func @transform_2(%arg0: i32) -> (i32, i32) {
    %c0_i32 = arith.constant 0 : i32
    %c0_i32_0 = arith.constant 0 : i32
    %c0_i32_1 = arith.constant 0 : i32
    return %c0_i32, %c0_i32_0 : i32, i32
  }
  func.func @transform_3(%arg0: i32) -> (i32, i32, i32) {
    %c0_i32 = arith.constant 0 : i32
    %c0_i32_0 = arith.constant 0 : i32
    %c0_i32_1 = arith.constant 0 : i32
    %c0_i32_2 = arith.constant 0 : i32
    return %c0_i32, %c0_i32_0, %c0_i32_1 : i32, i32, i32
  }
  func.func @transform_4(%arg0: i32) -> (i32, i32) {
    %c0_i32 = arith.constant 0 : i32
    %c0_i32_0 = arith.constant 0 : i32
    %c0_i32_1 = arith.constant 0 : i32
    return %c0_i32, %c0_i32_0 : i32, i32
  }
  func.func @transform_5(%arg0: i32) -> (i32, i32, i32) {
    %c0_i32 = arith.constant 0 : i32
    %c0_i32_0 = arith.constant 0 : i32
    %c0_i32_1 = arith.constant 0 : i32
    %c0_i32_2 = arith.constant 0 : i32
    return %c0_i32, %c0_i32_0, %c0_i32_1 : i32, i32, i32
  }
  func.func @transform_6(%arg0: i32) -> (i32, i32) {
    %c0_i32 = arith.constant 0 : i32
    %c0_i32_0 = arith.constant 0 : i32
    %c0_i32_1 = arith.constant 0 : i32
    return %c0_i32, %c0_i32_0 : i32, i32
  }
  func.func @transform_7(%arg0: i32) -> (i32, i32) {
    %c0_i32 = arith.constant 0 : i32
    %c0_i32_0 = arith.constant 0 : i32
    %c0_i32_1 = arith.constant 0 : i32
    return %c0_i32, %c0_i32_0 : i32, i32
  }
  func.func @transform_8(%arg0: i32) -> (i32, i32) {
    %c0_i32 = arith.constant 0 : i32
    %c0_i32_0 = arith.constant 0 : i32
    %c0_i32_1 = arith.constant 0 : i32
    return %c0_i32, %c0_i32_0 : i32, i32
  }
  func.func @transform_9(%arg0: i32) -> (i32, i32) {
    %c0_i32 = arith.constant 0 : i32
    %c0_i32_0 = arith.constant 0 : i32
    %c0_i32_1 = arith.constant 0 : i32
    return %c0_i32, %c0_i32_0 : i32, i32
  }
  func.func @transform_10(%arg0: i32) -> (i32, i32) {
    %c0_i32 = arith.constant 0 : i32
    %c0_i32_0 = arith.constant 0 : i32
    %c0_i32_1 = arith.constant 0 : i32
    return %c0_i32, %c0_i32_0 : i32, i32
  }
  func.func @transform_11(%arg0: i32) -> (i32, i32) {
    %c0_i32 = arith.constant 0 : i32
    %c0_i32_0 = arith.constant 0 : i32
    return %arg0, %c0_i32 : i32, i32
  }
}

</mosaic_0001>

<llo_original>
// kernel: lenet5_forward.1
$region0: #{lenet5_forward.1}
  #allocation0 [shape = 'u32[]', space=smem, size = 0x4, offset = 0x4, fixed_abs, tag = 'smem constant byte address 0x4 - core index']
  #allocation1 [shape = 'u32[144,128]{1,0:T(1,128)}', space=vmem, size = 0x12000, scoped, tag = 'internal scratch']
  %s0 = inlined_call_operand.vmem [shape: f32[24,8,256], index: 0, kind: input, shape index: {}]
  %s1 = inlined_call_operand.vmem [shape: f32[256,256], index: 1, kind: input, shape index: {}]
  %s2 = inlined_call_operand.vmem [shape: f32[1,256], index: 2, kind: input, shape index: {}]
  %s3 = inlined_call_operand.vmem [shape: f32[5,256,128], index: 3, kind: input, shape index: {}]
  %s4 = inlined_call_operand.vmem [shape: f32[1,128], index: 4, kind: input, shape index: {}]
  %s5 = inlined_call_operand.vmem [shape: f32[4,128,128], index: 5, kind: input, shape index: {}]
  %s6 = inlined_call_operand.vmem [shape: f32[1,128], index: 6, kind: input, shape index: {}]
  %s7 = inlined_call_operand.vmem [shape: f32[128,128], index: 7, kind: input, shape index: {}]
  %s8 = inlined_call_operand.vmem [shape: f32[1,128], index: 8, kind: input, shape index: {}]
  %s9 = inlined_call_operand.vmem [shape: f32[128,128], index: 9, kind: input, shape index: {}]
  %s10 = inlined_call_operand.vmem [shape: f32[1,128], index: 10, kind: input, shape index: {}]
  %s11 = inlined_call_operand.vmem [shape: f32[8,128], index: 11, kind: output, shape index: {}]
  %s12 = sld [smem:[#allocation0]]
  $region54: #{lenet5_forward.1} parent=0
    _
  %s14 = ssub.s32 1, %s12
  %s15 = scalar_select 0, %s14, %s12
  // Predicated region
  $region2: #{lenet5_forward.1} parent=0 // pred_check
    _
  $region3: #{lenet5_forward.1} parent=0 // pred_check_branch
    %17 = sbr.rel (0) target = $region5
  $region4: #{lenet5_forward.1} parent=0 // pred_region
    _
  $region5: #{lenet5_forward.1} parent=0 // pred_fallthru
    _
  // Predicated region
  $region6: #{lenet5_forward.1} parent=0 // pred_check
    _
  $region7: #{lenet5_forward.1} parent=0 // pred_check_branch
    %19 = sbr.rel (0) target = $region9
  $region8: #{lenet5_forward.1} parent=0 // pred_region
    _
  $region9: #{lenet5_forward.1} parent=0 // pred_fallthru
    _
  // Predicated region
  $region10: #{lenet5_forward.1} parent=0 // pred_check
    _
  $region11: #{lenet5_forward.1} parent=0 // pred_check_branch
    %21 = sbr.rel (0) target = $region13
  $region12: #{lenet5_forward.1} parent=0 // pred_region
    _
  $region13: #{lenet5_forward.1} parent=0 // pred_fallthru
    _
  // Predicated region
  $region14: #{lenet5_forward.1} parent=0 // pred_check
    _
  $region15: #{lenet5_forward.1} parent=0 // pred_check_branch
    %23 = sbr.rel (0) target = $region17
  $region16: #{lenet5_forward.1} parent=0 // pred_region
    _
  $region17: #{lenet5_forward.1} parent=0 // pred_fallthru
    _
  // Predicated region
  $region18: #{lenet5_forward.1} parent=0 // pred_check
    _
  $region19: #{lenet5_forward.1} parent=0 // pred_check_branch
    %25 = sbr.rel (0) target = $region21
  $region20: #{lenet5_forward.1} parent=0 // pred_region
    _
  $region21: #{lenet5_forward.1} parent=0 // pred_fallthru
    _
  // Predicated region
  $region22: #{lenet5_forward.1} parent=0 // pred_check
    _
  $region23: #{lenet5_forward.1} parent=0 // pred_check_branch
    %27 = sbr.rel (0) target = $region25
  $region24: #{lenet5_forward.1} parent=0 // pred_region
    _
  $region25: #{lenet5_forward.1} parent=0 // pred_fallthru
    _
  // Predicated region
  $region26: #{lenet5_forward.1} parent=0 // pred_check
    _
  $region27: #{lenet5_forward.1} parent=0 // pred_check_branch
    %29 = sbr.rel (0) target = $region29
  $region28: #{lenet5_forward.1} parent=0 // pred_region
    _
  $region29: #{lenet5_forward.1} parent=0 // pred_fallthru
    _
  // Predicated region
  $region30: #{lenet5_forward.1} parent=0 // pred_check
    _
  $region31: #{lenet5_forward.1} parent=0 // pred_check_branch
    %31 = sbr.rel (0) target = $region33
  $region32: #{lenet5_forward.1} parent=0 // pred_region
    _
  $region33: #{lenet5_forward.1} parent=0 // pred_fallthru
    _
  // Predicated region
  $region34: #{lenet5_forward.1} parent=0 // pred_check
    _
  $region35: #{lenet5_forward.1} parent=0 // pred_check_branch
    %33 = sbr.rel (0) target = $region37
  $region36: #{lenet5_forward.1} parent=0 // pred_region
    _
  $region37: #{lenet5_forward.1} parent=0 // pred_fallthru
    _
  // Predicated region
  $region38: #{lenet5_forward.1} parent=0 // pred_check
    _
  $region39: #{lenet5_forward.1} parent=0 // pred_check_branch
    %35 = sbr.rel (0) target = $region41
  $region40: #{lenet5_forward.1} parent=0 // pred_region
    _
  $region41: #{lenet5_forward.1} parent=0 // pred_fallthru
    _
  // Predicated region
  $region42: #{lenet5_forward.1} parent=0 // pred_check
    _
  $region43: #{lenet5_forward.1} parent=0 // pred_check_branch
    %37 = sbr.rel (0) target = $region45
  $region44: #{lenet5_forward.1} parent=0 // pred_region
    _
  $region45: #{lenet5_forward.1} parent=0 // pred_fallthru
    _
  %v38 = vld [vmem:[%s1] sm:$0xff]
  %v39 = vld [vmem:[%s1 + $0x8] sm:$0xff]
  %v40 = vld [vmem:[%s1 + $0x10] sm:$0xff]
  %v41 = vld [vmem:[%s1 + $0x18] sm:$0xff]
  %v42 = vld [vmem:[%s1 + $0x20] sm:$0xff]
  %v43 = vld [vmem:[%s1 + $0x28] sm:$0xff]
  %v44 = vld [vmem:[%s1 + $0x30] sm:$0xff]
  %v45 = vld [vmem:[%s1 + $0x38] sm:$0xff]
  %v46 = vld [vmem:[%s1 + $0x40] sm:$0xff]
  %v47 = vld [vmem:[%s1 + $0x48] sm:$0xff]
  %v48 = vld [vmem:[%s1 + $0x50] sm:$0xff]
  %v49 = vld [vmem:[%s1 + $0x58] sm:$0xff]
  %v50 = vld [vmem:[%s1 + $0x60] sm:$0xff]
  %v51 = vld [vmem:[%s1 + $0x68] sm:$0xff]
  %v52 = vld [vmem:[%s1 + $0x70] sm:$0xff]
  %v53 = vld [vmem:[%s1 + $0x78] sm:$0xff]
  %v54 = vld [vmem:[%s1 + $0x80] sm:$0xff]
  %v55 = vld [vmem:[%s1 + $0x88] sm:$0xff]
  %v56 = vld [vmem:[%s1 + $0x90] sm:$0xff]
  %v57 = vld [vmem:[%s1 + $0x98] sm:$0xff]
  %v58 = vld [vmem:[%s1 + $0xa0] sm:$0xff]
  %v59 = vld [vmem:[%s1 + $0xa8] sm:$0xff]
  %v60 = vld [vmem:[%s1 + $0xb0] sm:$0xff]
  %v61 = vld [vmem:[%s1 + $0xb8] sm:$0xff]
  %v62 = vld [vmem:[%s1 + $0xc0] sm:$0xff]
  %v63 = vld [vmem:[%s1 + $0xc8] sm:$0xff]
  %v64 = vld [vmem:[%s1 + $0xd0] sm:$0xff]
  %v65 = vld [vmem:[%s1 + $0xd8] sm:$0xff]
  %v66 = vld [vmem:[%s1 + $0xe0] sm:$0xff]
  %v67 = vld [vmem:[%s1 + $0xe8] sm:$0xff]
  %v68 = vld [vmem:[%s1 + $0xf0] sm:$0xff]
  %v69 = vld [vmem:[%s1 + $0xf8] sm:$0xff]
  %v70 = vld [vmem:[%s1 + $0x100] sm:$0xff]
  %v71 = vld [vmem:[%s1 + $0x108] sm:$0xff]
  %v72 = vld [vmem:[%s1 + $0x110] sm:$0xff]
  %v73 = vld [vmem:[%s1 + $0x118] sm:$0xff]
  %v74 = vld [vmem:[%s1 + $0x120] sm:$0xff]
  %v75 = vld [vmem:[%s1 + $0x128] sm:$0xff]
  %v76 = vld [vmem:[%s1 + $0x130] sm:$0xff]
  %v77 = vld [vmem:[%s1 + $0x138] sm:$0xff]
  %v78 = vld [vmem:[%s1 + $0x140] sm:$0xff]
  %v79 = vld [vmem:[%s1 + $0x148] sm:$0xff]
  %v80 = vld [vmem:[%s1 + $0x150] sm:$0xff]
  %v81 = vld [vmem:[%s1 + $0x158] sm:$0xff]
  %v82 = vld [vmem:[%s1 + $0x160] sm:$0xff]
  %v83 = vld [vmem:[%s1 + $0x168] sm:$0xff]
  %v84 = vld [vmem:[%s1 + $0x170] sm:$0xff]
  %v85 = vld [vmem:[%s1 + $0x178] sm:$0xff]
  %v86 = vld [vmem:[%s1 + $0x180] sm:$0xff]
  %v87 = vld [vmem:[%s1 + $0x188] sm:$0xff]
  %v88 = vld [vmem:[%s1 + $0x190] sm:$0xff]
  %v89 = vld [vmem:[%s1 + $0x198] sm:$0xff]
  %v90 = vld [vmem:[%s1 + $0x1a0] sm:$0xff]
  %v91 = vld [vmem:[%s1 + $0x1a8] sm:$0xff]
  %v92 = vld [vmem:[%s1 + $0x1b0] sm:$0xff]
  %v93 = vld [vmem:[%s1 + $0x1b8] sm:$0xff]
  %v94 = vld [vmem:[%s1 + $0x1c0] sm:$0xff]
  %v95 = vld [vmem:[%s1 + $0x1c8] sm:$0xff]
  %v96 = vld [vmem:[%s1 + $0x1d0] sm:$0xff]
  %v97 = vld [vmem:[%s1 + $0x1d8] sm:$0xff]
  %v98 = vld [vmem:[%s1 + $0x1e0] sm:$0xff]
  %v99 = vld [vmem:[%s1 + $0x1e8] sm:$0xff]
  %v100 = vld [vmem:[%s1 + $0x1f0] sm:$0xff]
  %v101 = vld [vmem:[%s1 + $0x1f8] sm:$0xff]
  %v102 = vld [vmem:[%s2] sm:$0x3]
  %v103 = vld [vmem:[%s0] sm:$0xff]
  %v104 = vld [vmem:[%s0 + $0x8] sm:$0xff]
  %v106 = vlaneseq
  %v107 = vshrl.u32 %v106, 7
  %v108 = vsub.s32 0, %v107
  %v109 = vrot.slane %v102, %v108
  %v110 = vlaneseq
  %v111 = vshrl.u32 %v110, 7
  %v112 = vsub.s32 1, %v111
  %v113 = vrot.slane %v102, %v112
  %116 = vmatprep.subr.mxu0 %v39
  %117 = vmatpush1.msra.mxu0 %v38
  %118 = vmatprep.subr.mxu0 %v41
  %119 = vmatpush1.msra.mxu0 %v40
  %120 = vmatprep.subr.mxu0 %v43
  %121 = vmatpush1.msra.mxu0 %v42
  %122 = vmatprep.subr.mxu0 %v45
  %123 = vmatpush1.msra.mxu0 %v44
  %124 = vmatprep.subr.mxu0 %v47
  %125 = vmatpush1.msra.mxu0 %v46
  %126 = vmatprep.subr.mxu0 %v49
  %127 = vmatpush1.msra.mxu0 %v48
  %128 = vmatprep.subr.mxu0 %v51
  %129 = vmatpush1.msra.mxu0 %v50
  %130 = vmatprep.subr.mxu0 %v53
  %131 = vmatpush1.msra.mxu0 %v52
  %132 = vmatprep.subr.mxu0 %v55
  %133 = vmatpush1.msra.mxu0 %v54
  %134 = vmatprep.subr.mxu0 %v57
  %135 = vmatpush1.msra.mxu0 %v56
  %136 = vmatprep.subr.mxu0 %v59
  %137 = vmatpush1.msra.mxu0 %v58
  %138 = vmatprep.subr.mxu0 %v61
  %139 = vmatpush1.msra.mxu0 %v60
  %140 = vmatprep.subr.mxu0 %v63
  %141 = vmatpush1.msra.mxu0 %v62
  %142 = vmatprep.subr.mxu0 %v65
  %143 = vmatpush1.msra.mxu0 %v64
  %144 = vmatprep.subr.mxu0 %v67
  %145 = vmatpush1.msra.mxu0 %v66
  %146 = vmatprep.subr.mxu0 %v69
  %147 = vmatpush1.msra.mxu0 %v68
  %148 = vmatprep.subr.mxu0 %v71
  %149 = vmatpush1.msra.mxu0 %v70
  %150 = vmatprep.subr.mxu0 %v73
  %151 = vmatpush1.msra.mxu0 %v72
  %152 = vmatprep.subr.mxu0 %v75
  %153 = vmatpush1.msra.mxu0 %v74
  %154 = vmatprep.subr.mxu0 %v77
  %155 = vmatpush1.msra.mxu0 %v76
  %156 = vmatprep.subr.mxu0 %v79
  %157 = vmatpush1.msra.mxu0 %v78
  %158 = vmatprep.subr.mxu0 %v81
  %159 = vmatpush1.msra.mxu0 %v80
  %160 = vmatprep.subr.mxu0 %v83
  %161 = vmatpush1.msra.mxu0 %v82
  %162 = vmatprep.subr.mxu0 %v85
  %163 = vmatpush1.msra.mxu0 %v84
  %164 = vmatprep.subr.mxu0 %v87
  %165 = vmatpush1.msra.mxu0 %v86
  %166 = vmatprep.subr.mxu0 %v89
  %167 = vmatpush1.msra.mxu0 %v88
  %168 = vmatprep.subr.mxu0 %v91
  %169 = vmatpush1.msra.mxu0 %v90
  %170 = vmatprep.subr.mxu0 %v93
  %171 = vmatpush1.msra.mxu0 %v92
  %172 = vmatprep.subr.mxu0 %v95
  %173 = vmatpush1.msra.mxu0 %v94
  %174 = vmatprep.subr.mxu0 %v97
  %175 = vmatpush1.msra.mxu0 %v96
  %176 = vmatprep.subr.mxu0 %v99
  %177 = vmatpush1.msra.mxu0 %v98
  %178 = vmatprep.subr.mxu0 %v101
  %179 = vmatpush1.msra.mxu0 %v100
  %180 = vmatprep.mubr.f32.mxu0 %v104
  %181 = vmatmul.mubr.f32.gmra.mrb[0].mxu0 %v103
  %v182 = vpop.f32.mrb[0].mxu0
  %v183 = vadd.f32 %v109, %v182
  %v184 = vpop.f32.mrb[0].mxu0
  %v185 = vadd.f32 %v113, %v184
  %186 = vdwg.mxu0
  %v187 = vtanh.pop %v183
  %v188 = vtanh.pop %v185
  %s189 = scalar_lea.vmem %s0, 16
  %v190 = vld [vmem:[%s189] sm:$0xff]
  %v191 = vld [vmem:[%s189 + $0x8] sm:$0xff]
  %192 = vmatprep.subr.mxu0 %v39
  %193 = vmatpush1.msra.mxu0 %v38
  %194 = vmatprep.subr.mxu0 %v41
  %195 = vmatpush1.msra.mxu0 %v40
  %196 = vmatprep.subr.mxu0 %v43
  %197 = vmatpush1.msra.mxu0 %v42
  %198 = vmatprep.subr.mxu0 %v45
  %199 = vmatpush1.msra.mxu0 %v44
  %200 = vmatprep.subr.mxu0 %v47
  %201 = vmatpush1.msra.mxu0 %v46
  %202 = vmatprep.subr.mxu0 %v49
  %203 = vmatpush1.msra.mxu0 %v48
  %204 = vmatprep.subr.mxu0 %v51
  %205 = vmatpush1.msra.mxu0 %v50
  %206 = vmatprep.subr.mxu0 %v53
  %207 = vmatpush1.msra.mxu0 %v52
  %208 = vmatprep.subr.mxu0 %v55
  %209 = vmatpush1.msra.mxu0 %v54
  %210 = vmatprep.subr.mxu0 %v57
  %211 = vmatpush1.msra.mxu0 %v56
  %212 = vmatprep.subr.mxu0 %v59
  %213 = vmatpush1.msra.mxu0 %v58
  %214 = vmatprep.subr.mxu0 %v61
  %215 = vmatpush1.msra.mxu0 %v60
  %216 = vmatprep.subr.mxu0 %v63
  %217 = vmatpush1.msra.mxu0 %v62
  %218 = vmatprep.subr.mxu0 %v65
  %219 = vmatpush1.msra.mxu0 %v64
  %220 = vmatprep.subr.mxu0 %v67
  %221 = vmatpush1.msra.mxu0 %v66
  %222 = vmatprep.subr.mxu0 %v69
  %223 = vmatpush1.msra.mxu0 %v68
  %224 = vmatprep.subr.mxu0 %v71
  %225 = vmatpush1.msra.mxu0 %v70
  %226 = vmatprep.subr.mxu0 %v73
  %227 = vmatpush1.msra.mxu0 %v72
  %228 = vmatprep.subr.mxu0 %v75
  %229 = vmatpush1.msra.mxu0 %v74
  %230 = vmatprep.subr.mxu0 %v77
  %231 = vmatpush1.msra.mxu0 %v76
  %232 = vmatprep.subr.mxu0 %v79
  %233 = vmatpush1.msra.mxu0 %v78
  %234 = vmatprep.subr.mxu0 %v81
  %235 = vmatpush1.msra.mxu0 %v80
  %236 = vmatprep.subr.mxu0 %v83
  %237 = vmatpush1.msra.mxu0 %v82
  %238 = vmatprep.subr.mxu0 %v85
  %239 = vmatpush1.msra.mxu0 %v84
  %240 = vmatprep.subr.mxu0 %v87
  %241 = vmatpush1.msra.mxu0 %v86
  %242 = vmatprep.subr.mxu0 %v89
  %243 = vmatpush1.msra.mxu0 %v88
  %244 = vmatprep.subr.mxu0 %v91
  %245 = vmatpush1.msra.mxu0 %v90
  %246 = vmatprep.subr.mxu0 %v93
  %247 = vmatpush1.msra.mxu0 %v92
  %248 = vmatprep.subr.mxu0 %v95
  %249 = vmatpush1.msra.mxu0 %v94
  %250 = vmatprep.subr.mxu0 %v97
  %251 = vmatpush1.msra.mxu0 %v96
  %252 = vmatprep.subr.mxu0 %v99
  %253 = vmatpush1.msra.mxu0 %v98
  %254 = vmatprep.subr.mxu0 %v101
  %255 = vmatpush1.msra.mxu0 %v100
  %256 = vmatprep.mubr.f32.mxu0 %v191
  %257 = vmatmul.mubr.f32.gmra.mrb[0].mxu0 %v190
  %v258 = vpop.f32.mrb[0].mxu0
  %v259 = vadd.f32 %v109, %v258
  %v260 = vpop.f32.mrb[0].mxu0
  %v261 = vadd.f32 %v113, %v260
  %262 = vdwg.mxu0
  %v263 = vtanh.pop %v259
  %v264 = vtanh.pop %v261
  %v265 = vadd.f32 %v187, %v263
  %v266 = vadd.f32 %v188, %v264
  %v267 = vmul.f32 %v265, 0.5
  %v268 = vmul.f32 %v266, 0.5
  %s269 = scalar_lea.vmem %s0, 32
  %v270 = vld [vmem:[%s269] sm:$0xff]
  %v271 = vld [vmem:[%s269 + $0x8] sm:$0xff]
  %272 = vmatprep.subr.mxu0 %v39
  %273 = vmatpush1.msra.mxu0 %v38
  %274 = vmatprep.subr.mxu0 %v41
  %275 = vmatpush1.msra.mxu0 %v40
  %276 = vmatprep.subr.mxu0 %v43
  %277 = vmatpush1.msra.mxu0 %v42
  %278 = vmatprep.subr.mxu0 %v45
  %279 = vmatpush1.msra.mxu0 %v44
  %280 = vmatprep.subr.mxu0 %v47
  %281 = vmatpush1.msra.mxu0 %v46
  %282 = vmatprep.subr.mxu0 %v49
  %283 = vmatpush1.msra.mxu0 %v48
  %284 = vmatprep.subr.mxu0 %v51
  %285 = vmatpush1.msra.mxu0 %v50
  %286 = vmatprep.subr.mxu0 %v53
  %287 = vmatpush1.msra.mxu0 %v52
  %288 = vmatprep.subr.mxu0 %v55
  %289 = vmatpush1.msra.mxu0 %v54
  %290 = vmatprep.subr.mxu0 %v57
  %291 = vmatpush1.msra.mxu0 %v56
  %292 = vmatprep.subr.mxu0 %v59
  %293 = vmatpush1.msra.mxu0 %v58
  %294 = vmatprep.subr.mxu0 %v61
  %295 = vmatpush1.msra.mxu0 %v60
  %296 = vmatprep.subr.mxu0 %v63
  %297 = vmatpush1.msra.mxu0 %v62
  %298 = vmatprep.subr.mxu0 %v65
  %299 = vmatpush1.msra.mxu0 %v64
  %300 = vmatprep.subr.mxu0 %v67
  %301 = vmatpush1.msra.mxu0 %v66
  %302 = vmatprep.subr.mxu0 %v69
  %303 = vmatpush1.msra.mxu0 %v68
  %304 = vmatprep.subr.mxu0 %v71
  %305 = vmatpush1.msra.mxu0 %v70
  %306 = vmatprep.subr.mxu0 %v73
  %307 = vmatpush1.msra.mxu0 %v72
  %308 = vmatprep.subr.mxu0 %v75
  %309 = vmatpush1.msra.mxu0 %v74
  %310 = vmatprep.subr.mxu0 %v77
  %311 = vmatpush1.msra.mxu0 %v76
  %312 = vmatprep.subr.mxu0 %v79
  %313 = vmatpush1.msra.mxu0 %v78
  %314 = vmatprep.subr.mxu0 %v81
  %315 = vmatpush1.msra.mxu0 %v80
  %316 = vmatprep.subr.mxu0 %v83
  %317 = vmatpush1.msra.mxu0 %v82
  %318 = vmatprep.subr.mxu0 %v85
  %319 = vmatpush1.msra.mxu0 %v84
  %320 = vmatprep.subr.mxu0 %v87
  %321 = vmatpush1.msra.mxu0 %v86
  %322 = vmatprep.subr.mxu0 %v89
  %323 = vmatpush1.msra.mxu0 %v88
  %324 = vmatprep.subr.mxu0 %v91
  %325 = vmatpush1.msra.mxu0 %v90
  %326 = vmatprep.subr.mxu0 %v93
  %327 = vmatpush1.msra.mxu0 %v92
  %328 = vmatprep.subr.mxu0 %v95
  %329 = vmatpush1.msra.mxu0 %v94
  %330 = vmatprep.subr.mxu0 %v97
  %331 = vmatpush1.msra.mxu0 %v96
  %332 = vmatprep.subr.mxu0 %v99
  %333 = vmatpush1.msra.mxu0 %v98
  %334 = vmatprep.subr.mxu0 %v101
  %335 = vmatpush1.msra.mxu0 %v100
  %336 = vmatprep.mubr.f32.mxu0 %v271
  %337 = vmatmul.mubr.f32.gmra.mrb[0].mxu0 %v270
  %v338 = vpop.f32.mrb[0].mxu0
  %v339 = vadd.f32 %v109, %v338
  %v340 = vpop.f32.mrb[0].mxu0
  %v341 = vadd.f32 %v113, %v340
  %342 = vdwg.mxu0
  %v343 = vtanh.pop %v339
  %v344 = vtanh.pop %v341
  %s345 = scalar_lea.vmem %s0, 48
  %v346 = vld [vmem:[%s345] sm:$0xff]
  %v347 = vld [vmem:[%s345 + $0x8] sm:$0xff]
  %348 = vmatprep.subr.mxu0 %v39
  %349 = vmatpush1.msra.mxu0 %v38
  %350 = vmatprep.subr.mxu0 %v41
  %351 = vmatpush1.msra.mxu0 %v40
  %352 = vmatprep.subr.mxu0 %v43
  %353 = vmatpush1.msra.mxu0 %v42
  %354 = vmatprep.subr.mxu0 %v45
  %355 = vmatpush1.msra.mxu0 %v44
  %356 = vmatprep.subr.mxu0 %v47
  %357 = vmatpush1.msra.mxu0 %v46
  %358 = vmatprep.subr.mxu0 %v49
  %359 = vmatpush1.msra.mxu0 %v48
  %360 = vmatprep.subr.mxu0 %v51
  %361 = vmatpush1.msra.mxu0 %v50
  %362 = vmatprep.subr.mxu0 %v53
  %363 = vmatpush1.msra.mxu0 %v52
  %364 = vmatprep.subr.mxu0 %v55
  %365 = vmatpush1.msra.mxu0 %v54
  %366 = vmatprep.subr.mxu0 %v57
  %367 = vmatpush1.msra.mxu0 %v56
  %368 = vmatprep.subr.mxu0 %v59
  %369 = vmatpush1.msra.mxu0 %v58
  %370 = vmatprep.subr.mxu0 %v61
  %371 = vmatpush1.msra.mxu0 %v60
  %372 = vmatprep.subr.mxu0 %v63
  %373 = vmatpush1.msra.mxu0 %v62
  %374 = vmatprep.subr.mxu0 %v65
  %375 = vmatpush1.msra.mxu0 %v64
  %376 = vmatprep.subr.mxu0 %v67
  %377 = vmatpush1.msra.mxu0 %v66
  %378 = vmatprep.subr.mxu0 %v69
  %379 = vmatpush1.msra.mxu0 %v68
  %380 = vmatprep.subr.mxu0 %v71
  %381 = vmatpush1.msra.mxu0 %v70
  %382 = vmatprep.subr.mxu0 %v73
  %383 = vmatpush1.msra.mxu0 %v72
  %384 = vmatprep.subr.mxu0 %v75
  %385 = vmatpush1.msra.mxu0 %v74
  %386 = vmatprep.subr.mxu0 %v77
  %387 = vmatpush1.msra.mxu0 %v76
  %388 = vmatprep.subr.mxu0 %v79
  %389 = vmatpush1.msra.mxu0 %v78
  %390 = vmatprep.subr.mxu0 %v81
  %391 = vmatpush1.msra.mxu0 %v80
  %392 = vmatprep.subr.mxu0 %v83
  %393 = vmatpush1.msra.mxu0 %v82
  %394 = vmatprep.subr.mxu0 %v85
  %395 = vmatpush1.msra.mxu0 %v84
  %396 = vmatprep.subr.mxu0 %v87
  %397 = vmatpush1.msra.mxu0 %v86
  %398 = vmatprep.subr.mxu0 %v89
  %399 = vmatpush1.msra.mxu0 %v88
  %400 = vmatprep.subr.mxu0 %v91
  %401 = vmatpush1.msra.mxu0 %v90
  %402 = vmatprep.subr.mxu0 %v93
  %403 = vmatpush1.msra.mxu0 %v92
  %404 = vmatprep.subr.mxu0 %v95
  %405 = vmatpush1.msra.mxu0 %v94
  %406 = vmatprep.subr.mxu0 %v97
  %407 = vmatpush1.msra.mxu0 %v96
  %408 = vmatprep.subr.mxu0 %v99
  %409 = vmatpush1.msra.mxu0 %v98
  %410 = vmatprep.subr.mxu0 %v101
  %411 = vmatpush1.msra.mxu0 %v100
  %412 = vmatprep.mubr.f32.mxu0 %v347
  %413 = vmatmul.mubr.f32.gmra.mrb[0].mxu0 %v346
  %v414 = vpop.f32.mrb[0].mxu0
  %v415 = vadd.f32 %v109, %v414
  %v416 = vpop.f32.mrb[0].mxu0
  %v417 = vadd.f32 %v113, %v416
  %418 = vdwg.mxu0
  %v419 = vtanh.pop %v415
  %v420 = vtanh.pop %v417
  %v421 = vadd.f32 %v343, %v419
  %v422 = vadd.f32 %v344, %v420
  %v423 = vmul.f32 %v421, 0.5
  %v424 = vmul.f32 %v422, 0.5
  %s425 = scalar_lea.vmem %s0, 64
  %v426 = vld [vmem:[%s425] sm:$0xff]
  %v427 = vld [vmem:[%s425 + $0x8] sm:$0xff]
  %428 = vmatprep.subr.mxu0 %v39
  %429 = vmatpush1.msra.mxu0 %v38
  %430 = vmatprep.subr.mxu0 %v41
  %431 = vmatpush1.msra.mxu0 %v40
  %432 = vmatprep.subr.mxu0 %v43
  %433 = vmatpush1.msra.mxu0 %v42
  %434 = vmatprep.subr.mxu0 %v45
  %435 = vmatpush1.msra.mxu0 %v44
  %436 = vmatprep.subr.mxu0 %v47
  %437 = vmatpush1.msra.mxu0 %v46
  %438 = vmatprep.subr.mxu0 %v49
  %439 = vmatpush1.msra.mxu0 %v48
  %440 = vmatprep.subr.mxu0 %v51
  %441 = vmatpush1.msra.mxu0 %v50
  %442 = vmatprep.subr.mxu0 %v53
  %443 = vmatpush1.msra.mxu0 %v52
  %444 = vmatprep.subr.mxu0 %v55
  %445 = vmatpush1.msra.mxu0 %v54
  %446 = vmatprep.subr.mxu0 %v57
  %447 = vmatpush1.msra.mxu0 %v56
  %448 = vmatprep.subr.mxu0 %v59
  %449 = vmatpush1.msra.mxu0 %v58
  %450 = vmatprep.subr.mxu0 %v61
  %451 = vmatpush1.msra.mxu0 %v60
  %452 = vmatprep.subr.mxu0 %v63
  %453 = vmatpush1.msra.mxu0 %v62
  %454 = vmatprep.subr.mxu0 %v65
  %455 = vmatpush1.msra.mxu0 %v64
  %456 = vmatprep.subr.mxu0 %v67
  %457 = vmatpush1.msra.mxu0 %v66
  %458 = vmatprep.subr.mxu0 %v69
  %459 = vmatpush1.msra.mxu0 %v68
  %460 = vmatprep.subr.mxu0 %v71
  %461 = vmatpush1.msra.mxu0 %v70
  %462 = vmatprep.subr.mxu0 %v73
  %463 = vmatpush1.msra.mxu0 %v72
  %464 = vmatprep.subr.mxu0 %v75
  %465 = vmatpush1.msra.mxu0 %v74
  %466 = vmatprep.subr.mxu0 %v77
  %467 = vmatpush1.msra.mxu0 %v76
  %468 = vmatprep.subr.mxu0 %v79
  %469 = vmatpush1.msra.mxu0 %v78
  %470 = vmatprep.subr.mxu0 %v81
  %471 = vmatpush1.msra.mxu0 %v80
  %472 = vmatprep.subr.mxu0 %v83
  %473 = vmatpush1.msra.mxu0 %v82
  %474 = vmatprep.subr.mxu0 %v85
  %475 = vmatpush1.msra.mxu0 %v84
  %476 = vmatprep.subr.mxu0 %v87
  %477 = vmatpush1.msra.mxu0 %v86
  %478 = vmatprep.subr.mxu0 %v89
  %479 = vmatpush1.msra.mxu0 %v88
  %480 = vmatprep.subr.mxu0 %v91
  %481 = vmatpush1.msra.mxu0 %v90
  %482 = vmatprep.subr.mxu0 %v93
  %483 = vmatpush1.msra.mxu0 %v92
  %484 = vmatprep.subr.mxu0 %v95
  %485 = vmatpush1.msra.mxu0 %v94
  %486 = vmatprep.subr.mxu0 %v97
  %487 = vmatpush1.msra.mxu0 %v96
  %488 = vmatprep.subr.mxu0 %v99
  %489 = vmatpush1.msra.mxu0 %v98
  %490 = vmatprep.subr.mxu0 %v101
  %491 = vmatpush1.msra.mxu0 %v100
  %492 = vmatprep.mubr.f32.mxu0 %v427
  %493 = vmatmul.mubr.f32.gmra.mrb[0].mxu0 %v426
  %v494 = vpop.f32.mrb[0].mxu0
  %v495 = vadd.f32 %v109, %v494
  %v496 = vpop.f32.mrb[0].mxu0
  %v497 = vadd.f32 %v113, %v496
  %498 = vdwg.mxu0
  %v499 = vtanh.pop %v495
  %v500 = vtanh.pop %v497
  %s501 = scalar_lea.vmem %s0, 80
  %v502 = vld [vmem:[%s501] sm:$0xff]
  %v503 = vld [vmem:[%s501 + $0x8] sm:$0xff]
  %504 = vmatprep.subr.mxu0 %v39
  %505 = vmatpush1.msra.mxu0 %v38
  %506 = vmatprep.subr.mxu0 %v41
  %507 = vmatpush1.msra.mxu0 %v40
  %508 = vmatprep.subr.mxu0 %v43
  %509 = vmatpush1.msra.mxu0 %v42
  %510 = vmatprep.subr.mxu0 %v45
  %511 = vmatpush1.msra.mxu0 %v44
  %512 = vmatprep.subr.mxu0 %v47
  %513 = vmatpush1.msra.mxu0 %v46
  %514 = vmatprep.subr.mxu0 %v49
  %515 = vmatpush1.msra.mxu0 %v48
  %516 = vmatprep.subr.mxu0 %v51
  %517 = vmatpush1.msra.mxu0 %v50
  %518 = vmatprep.subr.mxu0 %v53
  %519 = vmatpush1.msra.mxu0 %v52
  %520 = vmatprep.subr.mxu0 %v55
  %521 = vmatpush1.msra.mxu0 %v54
  %522 = vmatprep.subr.mxu0 %v57
  %523 = vmatpush1.msra.mxu0 %v56
  %524 = vmatprep.subr.mxu0 %v59
  %525 = vmatpush1.msra.mxu0 %v58
  %526 = vmatprep.subr.mxu0 %v61
  %527 = vmatpush1.msra.mxu0 %v60
  %528 = vmatprep.subr.mxu0 %v63
  %529 = vmatpush1.msra.mxu0 %v62
  %530 = vmatprep.subr.mxu0 %v65
  %531 = vmatpush1.msra.mxu0 %v64
  %532 = vmatprep.subr.mxu0 %v67
  %533 = vmatpush1.msra.mxu0 %v66
  %534 = vmatprep.subr.mxu0 %v69
  %535 = vmatpush1.msra.mxu0 %v68
  %536 = vmatprep.subr.mxu0 %v71
  %537 = vmatpush1.msra.mxu0 %v70
  %538 = vmatprep.subr.mxu0 %v73
  %539 = vmatpush1.msra.mxu0 %v72
  %540 = vmatprep.subr.mxu0 %v75
  %541 = vmatpush1.msra.mxu0 %v74
  %542 = vmatprep.subr.mxu0 %v77
  %543 = vmatpush1.msra.mxu0 %v76
  %544 = vmatprep.subr.mxu0 %v79
  %545 = vmatpush1.msra.mxu0 %v78
  %546 = vmatprep.subr.mxu0 %v81
  %547 = vmatpush1.msra.mxu0 %v80
  %548 = vmatprep.subr.mxu0 %v83
  %549 = vmatpush1.msra.mxu0 %v82
  %550 = vmatprep.subr.mxu0 %v85
  %551 = vmatpush1.msra.mxu0 %v84
  %552 = vmatprep.subr.mxu0 %v87
  %553 = vmatpush1.msra.mxu0 %v86
  %554 = vmatprep.subr.mxu0 %v89
  %555 = vmatpush1.msra.mxu0 %v88
  %556 = vmatprep.subr.mxu0 %v91
  %557 = vmatpush1.msra.mxu0 %v90
  %558 = vmatprep.subr.mxu0 %v93
  %559 = vmatpush1.msra.mxu0 %v92
  %560 = vmatprep.subr.mxu0 %v95
  %561 = vmatpush1.msra.mxu0 %v94
  %562 = vmatprep.subr.mxu0 %v97
  %563 = vmatpush1.msra.mxu0 %v96
  %564 = vmatprep.subr.mxu0 %v99
  %565 = vmatpush1.msra.mxu0 %v98
  %566 = vmatprep.subr.mxu0 %v101
  %567 = vmatpush1.msra.mxu0 %v100
  %568 = vmatprep.mubr.f32.mxu0 %v503
  %569 = vmatmul.mubr.f32.gmra.mrb[0].mxu0 %v502
  %v570 = vpop.f32.mrb[0].mxu0
  %v571 = vadd.f32 %v109, %v570
  %v572 = vpop.f32.mrb[0].mxu0
  %v573 = vadd.f32 %v113, %v572
  %574 = vdwg.mxu0
  %v575 = vtanh.pop %v571
  %v576 = vtanh.pop %v573
  %v577 = vadd.f32 %v499, %v575
  %v578 = vadd.f32 %v500, %v576
  %v579 = vmul.f32 %v577, 0.5
  %v580 = vmul.f32 %v578, 0.5
  %s581 = scalar_lea.vmem %s0, 96
  %v582 = vld [vmem:[%s581] sm:$0xff]
  %v583 = vld [vmem:[%s581 + $0x8] sm:$0xff]
  %584 = vmatprep.subr.mxu0 %v39
  %585 = vmatpush1.msra.mxu0 %v38
  %586 = vmatprep.subr.mxu0 %v41
  %587 = vmatpush1.msra.mxu0 %v40
  %588 = vmatprep.subr.mxu0 %v43
  %589 = vmatpush1.msra.mxu0 %v42
  %590 = vmatprep.subr.mxu0 %v45
  %591 = vmatpush1.msra.mxu0 %v44
  %592 = vmatprep.subr.mxu0 %v47
  %593 = vmatpush1.msra.mxu0 %v46
  %594 = vmatprep.subr.mxu0 %v49
  %595 = vmatpush1.msra.mxu0 %v48
  %596 = vmatprep.subr.mxu0 %v51
  %597 = vmatpush1.msra.mxu0 %v50
  %598 = vmatprep.subr.mxu0 %v53
  %599 = vmatpush1.msra.mxu0 %v52
  %600 = vmatprep.subr.mxu0 %v55
  %601 = vmatpush1.msra.mxu0 %v54
  %602 = vmatprep.subr.mxu0 %v57
  %603 = vmatpush1.msra.mxu0 %v56
  %604 = vmatprep.subr.mxu0 %v59
  %605 = vmatpush1.msra.mxu0 %v58
  %606 = vmatprep.subr.mxu0 %v61
  %607 = vmatpush1.msra.mxu0 %v60
  %608 = vmatprep.subr.mxu0 %v63
  %609 = vmatpush1.msra.mxu0 %v62
  %610 = vmatprep.subr.mxu0 %v65
  %611 = vmatpush1.msra.mxu0 %v64
  %612 = vmatprep.subr.mxu0 %v67
  %613 = vmatpush1.msra.mxu0 %v66
  %614 = vmatprep.subr.mxu0 %v69
  %615 = vmatpush1.msra.mxu0 %v68
  %616 = vmatprep.subr.mxu0 %v71
  %617 = vmatpush1.msra.mxu0 %v70
  %618 = vmatprep.subr.mxu0 %v73
  %619 = vmatpush1.msra.mxu0 %v72
  %620 = vmatprep.subr.mxu0 %v75
  %621 = vmatpush1.msra.mxu0 %v74
  %622 = vmatprep.subr.mxu0 %v77
  %623 = vmatpush1.msra.mxu0 %v76
  %624 = vmatprep.subr.mxu0 %v79
  %625 = vmatpush1.msra.mxu0 %v78
  %626 = vmatprep.subr.mxu0 %v81
  %627 = vmatpush1.msra.mxu0 %v80
  %628 = vmatprep.subr.mxu0 %v83
  %629 = vmatpush1.msra.mxu0 %v82
  %630 = vmatprep.subr.mxu0 %v85
  %631 = vmatpush1.msra.mxu0 %v84
  %632 = vmatprep.subr.mxu0 %v87
  %633 = vmatpush1.msra.mxu0 %v86
  %634 = vmatprep.subr.mxu0 %v89
  %635 = vmatpush1.msra.mxu0 %v88
  %636 = vmatprep.subr.mxu0 %v91
  %637 = vmatpush1.msra.mxu0 %v90
  %638 = vmatprep.subr.mxu0 %v93
  %639 = vmatpush1.msra.mxu0 %v92
  %640 = vmatprep.subr.mxu0 %v95
  %641 = vmatpush1.msra.mxu0 %v94
  %642 = vmatprep.subr.mxu0 %v97
  %643 = vmatpush1.msra.mxu0 %v96
  %644 = vmatprep.subr.mxu0 %v99
  %645 = vmatpush1.msra.mxu0 %v98
  %646 = vmatprep.subr.mxu0 %v101
  %647 = vmatpush1.msra.mxu0 %v100
  %648 = vmatprep.mubr.f32.mxu0 %v583
  %649 = vmatmul.mubr.f32.gmra.mrb[0].mxu0 %v582
  %v650 = vpop.f32.mrb[0].mxu0
  %v651 = vadd.f32 %v109, %v650
  %v652 = vpop.f32.mrb[0].mxu0
  %v653 = vadd.f32 %v113, %v652
  %654 = vdwg.mxu0
  %v655 = vtanh.pop %v651
  %v656 = vtanh.pop %v653
  %s657 = scalar_lea.vmem %s0, 112
  %v658 = vld [vmem:[%s657] sm:$0xff]
  %v659 = vld [vmem:[%s657 + $0x8] sm:$0xff]
  %660 = vmatprep.subr.mxu0 %v39
  %661 = vmatpush1.msra.mxu0 %v38
  %662 = vmatprep.subr.mxu0 %v41
  %663 = vmatpush1.msra.mxu0 %v40
  %664 = vmatprep.subr.mxu0 %v43
  %665 = vmatpush1.msra.mxu0 %v42
  %666 = vmatprep.subr.mxu0 %v45
  %667 = vmatpush1.msra.mxu0 %v44
  %668 = vmatprep.subr.mxu0 %v47
  %669 = vmatpush1.msra.mxu0 %v46
  %670 = vmatprep.subr.mxu0 %v49
  %671 = vmatpush1.msra.mxu0 %v48
  %672 = vmatprep.subr.mxu0 %v51
  %673 = vmatpush1.msra.mxu0 %v50
  %674 = vmatprep.subr.mxu0 %v53
  %675 = vmatpush1.msra.mxu0 %v52
  %676 = vmatprep.subr.mxu0 %v55
  %677 = vmatpush1.msra.mxu0 %v54
  %678 = vmatprep.subr.mxu0 %v57
  %679 = vmatpush1.msra.mxu0 %v56
  %680 = vmatprep.subr.mxu0 %v59
  %681 = vmatpush1.msra.mxu0 %v58
  %682 = vmatprep.subr.mxu0 %v61
  %683 = vmatpush1.msra.mxu0 %v60
  %684 = vmatprep.subr.mxu0 %v63
  %685 = vmatpush1.msra.mxu0 %v62
  %686 = vmatprep.subr.mxu0 %v65
  %687 = vmatpush1.msra.mxu0 %v64
  %688 = vmatprep.subr.mxu0 %v67
  %689 = vmatpush1.msra.mxu0 %v66
  %690 = vmatprep.subr.mxu0 %v69
  %691 = vmatpush1.msra.mxu0 %v68
  %692 = vmatprep.subr.mxu0 %v71
  %693 = vmatpush1.msra.mxu0 %v70
  %694 = vmatprep.subr.mxu0 %v73
  %695 = vmatpush1.msra.mxu0 %v72
  %696 = vmatprep.subr.mxu0 %v75
  %697 = vmatpush1.msra.mxu0 %v74
  %698 = vmatprep.subr.mxu0 %v77
  %699 = vmatpush1.msra.mxu0 %v76
  %700 = vmatprep.subr.mxu0 %v79
  %701 = vmatpush1.msra.mxu0 %v78
  %702 = vmatprep.subr.mxu0 %v81
  %703 = vmatpush1.msra.mxu0 %v80
  %704 = vmatprep.subr.mxu0 %v83
  %705 = vmatpush1.msra.mxu0 %v82
  %706 = vmatprep.subr.mxu0 %v85
  %707 = vmatpush1.msra.mxu0 %v84
  %708 = vmatprep.subr.mxu0 %v87
  %709 = vmatpush1.msra.mxu0 %v86
  %710 = vmatprep.subr.mxu0 %v89
  %711 = vmatpush1.msra.mxu0 %v88
  %712 = vmatprep.subr.mxu0 %v91
  %713 = vmatpush1.msra.mxu0 %v90
  %714 = vmatprep.subr.mxu0 %v93
  %715 = vmatpush1.msra.mxu0 %v92
  %716 = vmatprep.subr.mxu0 %v95
  %717 = vmatpush1.msra.mxu0 %v94
  %718 = vmatprep.subr.mxu0 %v97
  %719 = vmatpush1.msra.mxu0 %v96
  %720 = vmatprep.subr.mxu0 %v99
  %721 = vmatpush1.msra.mxu0 %v98
  %722 = vmatprep.subr.mxu0 %v101
  %723 = vmatpush1.msra.mxu0 %v100
  %724 = vmatprep.mubr.f32.mxu0 %v659
  %725 = vmatmul.mubr.f32.gmra.mrb[0].mxu0 %v658
  %v726 = vpop.f32.mrb[0].mxu0
  %v727 = vadd.f32 %v109, %v726
  %v728 = vpop.f32.mrb[0].mxu0
  %v729 = vadd.f32 %v113, %v728
  %730 = vdwg.mxu0
  %v731 = vtanh.pop %v727
  %v732 = vtanh.pop %v729
  %v733 = vadd.f32 %v655, %v731
  %v734 = vadd.f32 %v656, %v732
  %v735 = vmul.f32 %v733, 0.5
  %v736 = vmul.f32 %v734, 0.5
  %s737 = scalar_lea.vmem %s0, 128
  %v738 = vld [vmem:[%s737] sm:$0xff]
  %v739 = vld [vmem:[%s737 + $0x8] sm:$0xff]
  %740 = vmatprep.subr.mxu0 %v39
  %741 = vmatpush1.msra.mxu0 %v38
  %742 = vmatprep.subr.mxu0 %v41
  %743 = vmatpush1.msra.mxu0 %v40
  %744 = vmatprep.subr.mxu0 %v43
  %745 = vmatpush1.msra.mxu0 %v42
  %746 = vmatprep.subr.mxu0 %v45
  %747 = vmatpush1.msra.mxu0 %v44
  %748 = vmatprep.subr.mxu0 %v47
  %749 = vmatpush1.msra.mxu0 %v46
  %750 = vmatprep.subr.mxu0 %v49
  %751 = vmatpush1.msra.mxu0 %v48
  %752 = vmatprep.subr.mxu0 %v51
  %753 = vmatpush1.msra.mxu0 %v50
  %754 = vmatprep.subr.mxu0 %v53
  %755 = vmatpush1.msra.mxu0 %v52
  %756 = vmatprep.subr.mxu0 %v55
  %757 = vmatpush1.msra.mxu0 %v54
  %758 = vmatprep.subr.mxu0 %v57
  %759 = vmatpush1.msra.mxu0 %v56
  %760 = vmatprep.subr.mxu0 %v59
  %761 = vmatpush1.msra.mxu0 %v58
  %762 = vmatprep.subr.mxu0 %v61
  %763 = vmatpush1.msra.mxu0 %v60
  %764 = vmatprep.subr.mxu0 %v63
  %765 = vmatpush1.msra.mxu0 %v62
  %766 = vmatprep.subr.mxu0 %v65
  %767 = vmatpush1.msra.mxu0 %v64
  %768 = vmatprep.subr.mxu0 %v67
  %769 = vmatpush1.msra.mxu0 %v66
  %770 = vmatprep.subr.mxu0 %v69
  %771 = vmatpush1.msra.mxu0 %v68
  %772 = vmatprep.subr.mxu0 %v71
  %773 = vmatpush1.msra.mxu0 %v70
  %774 = vmatprep.subr.mxu0 %v73
  %775 = vmatpush1.msra.mxu0 %v72
  %776 = vmatprep.subr.mxu0 %v75
  %777 = vmatpush1.msra.mxu0 %v74
  %778 = vmatprep.subr.mxu0 %v77
  %779 = vmatpush1.msra.mxu0 %v76
  %780 = vmatprep.subr.mxu0 %v79
  %781 = vmatpush1.msra.mxu0 %v78
  %782 = vmatprep.subr.mxu0 %v81
  %783 = vmatpush1.msra.mxu0 %v80
  %784 = vmatprep.subr.mxu0 %v83
  %785 = vmatpush1.msra.mxu0 %v82
  %786 = vmatprep.subr.mxu0 %v85
  %787 = vmatpush1.msra.mxu0 %v84
  %788 = vmatprep.subr.mxu0 %v87
  %789 = vmatpush1.msra.mxu0 %v86
  %790 = vmatprep.subr.mxu0 %v89
  %791 = vmatpush1.msra.mxu0 %v88
  %792 = vmatprep.subr.mxu0 %v91
  %793 = vmatpush1.msra.mxu0 %v90
  %794 = vmatprep.subr.mxu0 %v93
  %795 = vmatpush1.msra.mxu0 %v92
  %796 = vmatprep.subr.mxu0 %v95
  %797 = vmatpush1.msra.mxu0 %v94
  %798 = vmatprep.subr.mxu0 %v97
  %799 = vmatpush1.msra.mxu0 %v96
  %800 = vmatprep.subr.mxu0 %v99
  %801 = vmatpush1.msra.mxu0 %v98
  %802 = vmatprep.subr.mxu0 %v101
  %803 = vmatpush1.msra.mxu0 %v100
  %804 = vmatprep.mubr.f32.mxu0 %v739
  %805 = vmatmul.mubr.f32.gmra.mrb[0].mxu0 %v738
  %v806 = vpop.f32.mrb[0].mxu0
  %v807 = vadd.f32 %v109, %v806
  %v808 = vpop.f32.mrb[0].mxu0
  %v809 = vadd.f32 %v113, %v808
  %810 = vdwg.mxu0
  %v811 = vtanh.pop %v807
  %v812 = vtanh.pop %v809
  %s813 = scalar_lea.vmem %s0, 144
  %v814 = vld [vmem:[%s813] sm:$0xff]
  %v815 = vld [vmem:[%s813 + $0x8] sm:$0xff]
  %816 = vmatprep.subr.mxu0 %v39
  %817 = vmatpush1.msra.mxu0 %v38
  %818 = vmatprep.subr.mxu0 %v41
  %819 = vmatpush1.msra.mxu0 %v40
  %820 = vmatprep.subr.mxu0 %v43
  %821 = vmatpush1.msra.mxu0 %v42
  %822 = vmatprep.subr.mxu0 %v45
  %823 = vmatpush1.msra.mxu0 %v44
  %824 = vmatprep.subr.mxu0 %v47
  %825 = vmatpush1.msra.mxu0 %v46
  %826 = vmatprep.subr.mxu0 %v49
  %827 = vmatpush1.msra.mxu0 %v48
  %828 = vmatprep.subr.mxu0 %v51
  %829 = vmatpush1.msra.mxu0 %v50
  %830 = vmatprep.subr.mxu0 %v53
  %831 = vmatpush1.msra.mxu0 %v52
  %832 = vmatprep.subr.mxu0 %v55
  %833 = vmatpush1.msra.mxu0 %v54
  %834 = vmatprep.subr.mxu0 %v57
  %835 = vmatpush1.msra.mxu0 %v56
  %836 = vmatprep.subr.mxu0 %v59
  %837 = vmatpush1.msra.mxu0 %v58
  %838 = vmatprep.subr.mxu0 %v61
  %839 = vmatpush1.msra.mxu0 %v60
  %840 = vmatprep.subr.mxu0 %v63
  %841 = vmatpush1.msra.mxu0 %v62
  %842 = vmatprep.subr.mxu0 %v65
  %843 = vmatpush1.msra.mxu0 %v64
  %844 = vmatprep.subr.mxu0 %v67
  %845 = vmatpush1.msra.mxu0 %v66
  %846 = vmatprep.subr.mxu0 %v69
  %847 = vmatpush1.msra.mxu0 %v68
  %848 = vmatprep.subr.mxu0 %v71
  %849 = vmatpush1.msra.mxu0 %v70
  %850 = vmatprep.subr.mxu0 %v73
  %851 = vmatpush1.msra.mxu0 %v72
  %852 = vmatprep.subr.mxu0 %v75
  %853 = vmatpush1.msra.mxu0 %v74
  %854 = vmatprep.subr.mxu0 %v77
  %855 = vmatpush1.msra.mxu0 %v76
  %856 = vmatprep.subr.mxu0 %v79
  %857 = vmatpush1.msra.mxu0 %v78
  %858 = vmatprep.subr.mxu0 %v81
  %859 = vmatpush1.msra.mxu0 %v80
  %860 = vmatprep.subr.mxu0 %v83
  %861 = vmatpush1.msra.mxu0 %v82
  %862 = vmatprep.subr.mxu0 %v85
  %863 = vmatpush1.msra.mxu0 %v84
  %864 = vmatprep.subr.mxu0 %v87
  %865 = vmatpush1.msra.mxu0 %v86
  %866 = vmatprep.subr.mxu0 %v89
  %867 = vmatpush1.msra.mxu0 %v88
  %868 = vmatprep.subr.mxu0 %v91
  %869 = vmatpush1.msra.mxu0 %v90
  %870 = vmatprep.subr.mxu0 %v93
  %871 = vmatpush1.msra.mxu0 %v92
  %872 = vmatprep.subr.mxu0 %v95
  %873 = vmatpush1.msra.mxu0 %v94
  %874 = vmatprep.subr.mxu0 %v97
  %875 = vmatpush1.msra.mxu0 %v96
  %876 = vmatprep.subr.mxu0 %v99
  %877 = vmatpush1.msra.mxu0 %v98
  %878 = vmatprep.subr.mxu0 %v101
  %879 = vmatpush1.msra.mxu0 %v100
  %880 = vmatprep.mubr.f32.mxu0 %v815
  %881 = vmatmul.mubr.f32.gmra.mrb[0].mxu0 %v814
  %v882 = vpop.f32.mrb[0].mxu0
  %v883 = vadd.f32 %v109, %v882
  %v884 = vpop.f32.mrb[0].mxu0
  %v885 = vadd.f32 %v113, %v884
  %886 = vdwg.mxu0
  %v887 = vtanh.pop %v883
  %v888 = vtanh.pop %v885
  %v889 = vadd.f32 %v811, %v887
  %v890 = vadd.f32 %v812, %v888
  %v891 = vmul.f32 %v889, 0.5
  %v892 = vmul.f32 %v890, 0.5
  %s893 = scalar_lea.vmem %s0, 160
  %v894 = vld [vmem:[%s893] sm:$0xff]
  %v895 = vld [vmem:[%s893 + $0x8] sm:$0xff]
  %896 = vmatprep.subr.mxu0 %v39
  %897 = vmatpush1.msra.mxu0 %v38
  %898 = vmatprep.subr.mxu0 %v41
  %899 = vmatpush1.msra.mxu0 %v40
  %900 = vmatprep.subr.mxu0 %v43
  %901 = vmatpush1.msra.mxu0 %v42
  %902 = vmatprep.subr.mxu0 %v45
  %903 = vmatpush1.msra.mxu0 %v44
  %904 = vmatprep.subr.mxu0 %v47
  %905 = vmatpush1.msra.mxu0 %v46
  %906 = vmatprep.subr.mxu0 %v49
  %907 = vmatpush1.msra.mxu0 %v48
  %908 = vmatprep.subr.mxu0 %v51
  %909 = vmatpush1.msra.mxu0 %v50
  %910 = vmatprep.subr.mxu0 %v53
  %911 = vmatpush1.msra.mxu0 %v52
  %912 = vmatprep.subr.mxu0 %v55
  %913 = vmatpush1.msra.mxu0 %v54
  %914 = vmatprep.subr.mxu0 %v57
  %915 = vmatpush1.msra.mxu0 %v56
  %916 = vmatprep.subr.mxu0 %v59
  %917 = vmatpush1.msra.mxu0 %v58
  %918 = vmatprep.subr.mxu0 %v61
  %919 = vmatpush1.msra.mxu0 %v60
  %920 = vmatprep.subr.mxu0 %v63
  %921 = vmatpush1.msra.mxu0 %v62
  %922 = vmatprep.subr.mxu0 %v65
  %923 = vmatpush1.msra.mxu0 %v64
  %924 = vmatprep.subr.mxu0 %v67
  %925 = vmatpush1.msra.mxu0 %v66
  %926 = vmatprep.subr.mxu0 %v69
  %927 = vmatpush1.msra.mxu0 %v68
  %928 = vmatprep.subr.mxu0 %v71
  %929 = vmatpush1.msra.mxu0 %v70
  %930 = vmatprep.subr.mxu0 %v73
  %931 = vmatpush1.msra.mxu0 %v72
  %932 = vmatprep.subr.mxu0 %v75
  %933 = vmatpush1.msra.mxu0 %v74
  %934 = vmatprep.subr.mxu0 %v77
  %935 = vmatpush1.msra.mxu0 %v76
  %936 = vmatprep.subr.mxu0 %v79
  %937 = vmatpush1.msra.mxu0 %v78
  %938 = vmatprep.subr.mxu0 %v81
  %939 = vmatpush1.msra.mxu0 %v80
  %940 = vmatprep.subr.mxu0 %v83
  %941 = vmatpush1.msra.mxu0 %v82
  %942 = vmatprep.subr.mxu0 %v85
  %943 = vmatpush1.msra.mxu0 %v84
  %944 = vmatprep.subr.mxu0 %v87
  %945 = vmatpush1.msra.mxu0 %v86
  %946 = vmatprep.subr.mxu0 %v89
  %947 = vmatpush1.msra.mxu0 %v88
  %948 = vmatprep.subr.mxu0 %v91
  %949 = vmatpush1.msra.mxu0 %v90
  %950 = vmatprep.subr.mxu0 %v93
  %951 = vmatpush1.msra.mxu0 %v92
  %952 = vmatprep.subr.mxu0 %v95
  %953 = vmatpush1.msra.mxu0 %v94
  %954 = vmatprep.subr.mxu0 %v97
  %955 = vmatpush1.msra.mxu0 %v96
  %956 = vmatprep.subr.mxu0 %v99
  %957 = vmatpush1.msra.mxu0 %v98
  %958 = vmatprep.subr.mxu0 %v101
  %959 = vmatpush1.msra.mxu0 %v100
  %960 = vmatprep.mubr.f32.mxu0 %v895
  %961 = vmatmul.mubr.f32.gmra.mrb[0].mxu0 %v894
  %v962 = vpop.f32.mrb[0].mxu0
  %v963 = vadd.f32 %v109, %v962
  %v964 = vpop.f32.mrb[0].mxu0
  %v965 = vadd.f32 %v113, %v964
  %966 = vdwg.mxu0
  %v967 = vtanh.pop %v963
  %v968 = vtanh.pop %v965
  %s969 = scalar_lea.vmem %s0, 176
  %v970 = vld [vmem:[%s969] sm:$0xff]
  %v971 = vld [vmem:[%s969 + $0x8] sm:$0xff]
  %972 = vmatprep.subr.mxu0 %v39
  %973 = vmatpush1.msra.mxu0 %v38
  %974 = vmatprep.subr.mxu0 %v41
  %975 = vmatpush1.msra.mxu0 %v40
  %976 = vmatprep.subr.mxu0 %v43
  %977 = vmatpush1.msra.mxu0 %v42
  %978 = vmatprep.subr.mxu0 %v45
  %979 = vmatpush1.msra.mxu0 %v44
  %980 = vmatprep.subr.mxu0 %v47
  %981 = vmatpush1.msra.mxu0 %v46
  %982 = vmatprep.subr.mxu0 %v49
  %983 = vmatpush1.msra.mxu0 %v48
  %984 = vmatprep.subr.mxu0 %v51
  %985 = vmatpush1.msra.mxu0 %v50
  %986 = vmatprep.subr.mxu0 %v53
  %987 = vmatpush1.msra.mxu0 %v52
  %988 = vmatprep.subr.mxu0 %v55
  %989 = vmatpush1.msra.mxu0 %v54
  %990 = vmatprep.subr.mxu0 %v57
  %991 = vmatpush1.msra.mxu0 %v56
  %992 = vmatprep.subr.mxu0 %v59
  %993 = vmatpush1.msra.mxu0 %v58
  %994 = vmatprep.subr.mxu0 %v61
  %995 = vmatpush1.msra.mxu0 %v60
  %996 = vmatprep.subr.mxu0 %v63
  %997 = vmatpush1.msra.mxu0 %v62
  %998 = vmatprep.subr.mxu0 %v65
  %999 = vmatpush1.msra.mxu0 %v64
  %1000 = vmatprep.subr.mxu0 %v67
  %1001 = vmatpush1.msra.mxu0 %v66
  %1002 = vmatprep.subr.mxu0 %v69
  %1003 = vmatpush1.msra.mxu0 %v68
  %1004 = vmatprep.subr.mxu0 %v71
  %1005 = vmatpush1.msra.mxu0 %v70
  %1006 = vmatprep.subr.mxu0 %v73
  %1007 = vmatpush1.msra.mxu0 %v72
  %1008 = vmatprep.subr.mxu0 %v75
  %1009 = vmatpush1.msra.mxu0 %v74
  %1010 = vmatprep.subr.mxu0 %v77
  %1011 = vmatpush1.msra.mxu0 %v76
  %1012 = vmatprep.subr.mxu0 %v79
  %1013 = vmatpush1.msra.mxu0 %v78
  %1014 = vmatprep.subr.mxu0 %v81
  %1015 = vmatpush1.msra.mxu0 %v80
  %1016 = vmatprep.subr.mxu0 %v83
  %1017 = vmatpush1.msra.mxu0 %v82
  %1018 = vmatprep.subr.mxu0 %v85
  %1019 = vmatpush1.msra.mxu0 %v84
  %1020 = vmatprep.subr.mxu0 %v87
  %1021 = vmatpush1.msra.mxu0 %v86
  %1022 = vmatprep.subr.mxu0 %v89
  %1023 = vmatpush1.msra.mxu0 %v88
  %1024 = vmatprep.subr.mxu0 %v91
  %1025 = vmatpush1.msra.mxu0 %v90
  %1026 = vmatprep.subr.mxu0 %v93
  %1027 = vmatpush1.msra.mxu0 %v92
  %1028 = vmatprep.subr.mxu0 %v95
  %1029 = vmatpush1.msra.mxu0 %v94
  %1030 = vmatprep.subr.mxu0 %v97
  %1031 = vmatpush1.msra.mxu0 %v96
  %1032 = vmatprep.subr.mxu0 %v99
  %1033 = vmatpush1.msra.mxu0 %v98
  %1034 = vmatprep.subr.mxu0 %v101
  %1035 = vmatpush1.msra.mxu0 %v100
  %1036 = vmatprep.mubr.f32.mxu0 %v971
  %1037 = vmatmul.mubr.f32.gmra.mrb[0].mxu0 %v970
  %v1038 = vpop.f32.mrb[0].mxu0
  %v1039 = vadd.f32 %v109, %v1038
  %v1040 = vpop.f32.mrb[0].mxu0
  %v1041 = vadd.f32 %v113, %v1040
  %1042 = vdwg.mxu0
  %v1043 = vtanh.pop %v1039
  %v1044 = vtanh.pop %v1041
  %v1045 = vadd.f32 %v967, %v1043
  %v1046 = vadd.f32 %v968, %v1044
  %v1047 = vmul.f32 %v1045, 0.5
  %v1048 = vmul.f32 %v1046, 0.5
  %s1049 = scalar_lea.vmem %s0, 192
  %v1050 = vld [vmem:[%s1049] sm:$0xff]
  %v1051 = vld [vmem:[%s1049 + $0x8] sm:$0xff]
  %1052 = vmatprep.subr.mxu0 %v39
  %1053 = vmatpush1.msra.mxu0 %v38
  %1054 = vmatprep.subr.mxu0 %v41
  %1055 = vmatpush1.msra.mxu0 %v40
  %1056 = vmatprep.subr.mxu0 %v43
  %1057 = vmatpush1.msra.mxu0 %v42
  %1058 = vmatprep.subr.mxu0 %v45
  %1059 = vmatpush1.msra.mxu0 %v44
  %1060 = vmatprep.subr.mxu0 %v47
  %1061 = vmatpush1.msra.mxu0 %v46
  %1062 = vmatprep.subr.mxu0 %v49
  %1063 = vmatpush1.msra.mxu0 %v48
  %1064 = vmatprep.subr.mxu0 %v51
  %1065 = vmatpush1.msra.mxu0 %v50
  %1066 = vmatprep.subr.mxu0 %v53
  %1067 = vmatpush1.msra.mxu0 %v52
  %1068 = vmatprep.subr.mxu0 %v55
  %1069 = vmatpush1.msra.mxu0 %v54
  %1070 = vmatprep.subr.mxu0 %v57
  %1071 = vmatpush1.msra.mxu0 %v56
  %1072 = vmatprep.subr.mxu0 %v59
  %1073 = vmatpush1.msra.mxu0 %v58
  %1074 = vmatprep.subr.mxu0 %v61
  %1075 = vmatpush1.msra.mxu0 %v60
  %1076 = vmatprep.subr.mxu0 %v63
  %1077 = vmatpush1.msra.mxu0 %v62
  %1078 = vmatprep.subr.mxu0 %v65
  %1079 = vmatpush1.msra.mxu0 %v64
  %1080 = vmatprep.subr.mxu0 %v67
  %1081 = vmatpush1.msra.mxu0 %v66
  %1082 = vmatprep.subr.mxu0 %v69
  %1083 = vmatpush1.msra.mxu0 %v68
  %1084 = vmatprep.subr.mxu0 %v71
  %1085 = vmatpush1.msra.mxu0 %v70
  %1086 = vmatprep.subr.mxu0 %v73
  %1087 = vmatpush1.msra.mxu0 %v72
  %1088 = vmatprep.subr.mxu0 %v75
  %1089 = vmatpush1.msra.mxu0 %v74
  %1090 = vmatprep.subr.mxu0 %v77
  %1091 = vmatpush1.msra.mxu0 %v76
  %1092 = vmatprep.subr.mxu0 %v79
  %1093 = vmatpush1.msra.mxu0 %v78
  %1094 = vmatprep.subr.mxu0 %v81
  %1095 = vmatpush1.msra.mxu0 %v80
  %1096 = vmatprep.subr.mxu0 %v83
  %1097 = vmatpush1.msra.mxu0 %v82
  %1098 = vmatprep.subr.mxu0 %v85
  %1099 = vmatpush1.msra.mxu0 %v84
  %1100 = vmatprep.subr.mxu0 %v87
  %1101 = vmatpush1.msra.mxu0 %v86
  %1102 = vmatprep.subr.mxu0 %v89
  %1103 = vmatpush1.msra.mxu0 %v88
  %1104 = vmatprep.subr.mxu0 %v91
  %1105 = vmatpush1.msra.mxu0 %v90
  %1106 = vmatprep.subr.mxu0 %v93
  %1107 = vmatpush1.msra.mxu0 %v92
  %1108 = vmatprep.subr.mxu0 %v95
  %1109 = vmatpush1.msra.mxu0 %v94
  %1110 = vmatprep.subr.mxu0 %v97
  %1111 = vmatpush1.msra.mxu0 %v96
  %1112 = vmatprep.subr.mxu0 %v99
  %1113 = vmatpush1.msra.mxu0 %v98
  %1114 = vmatprep.subr.mxu0 %v101
  %1115 = vmatpush1.msra.mxu0 %v100
  %1116 = vmatprep.mubr.f32.mxu0 %v1051
  %1117 = vmatmul.mubr.f32.gmra.mrb[0].mxu0 %v1050
  %v1118 = vpop.f32.mrb[0].mxu0
  %v1119 = vadd.f32 %v109, %v1118
  %v1120 = vpop.f32.mrb[0].mxu0
  %v1121 = vadd.f32 %v113, %v1120
  %1122 = vdwg.mxu0
  %v1123 = vtanh.pop %v1119
  %v1124 = vtanh.pop %v1121
  %s1125 = scalar_lea.vmem %s0, 208
  %v1126 = vld [vmem:[%s1125] sm:$0xff]
  %v1127 = vld [vmem:[%s1125 + $0x8] sm:$0xff]
  %1128 = vmatprep.subr.mxu0 %v39
  %1129 = vmatpush1.msra.mxu0 %v38
  %1130 = vmatprep.subr.mxu0 %v41
  %1131 = vmatpush1.msra.mxu0 %v40
  %1132 = vmatprep.subr.mxu0 %v43
  %1133 = vmatpush1.msra.mxu0 %v42
  %1134 = vmatprep.subr.mxu0 %v45
  %1135 = vmatpush1.msra.mxu0 %v44
  %1136 = vmatprep.subr.mxu0 %v47
  %1137 = vmatpush1.msra.mxu0 %v46
  %1138 = vmatprep.subr.mxu0 %v49
  %1139 = vmatpush1.msra.mxu0 %v48
  %1140 = vmatprep.subr.mxu0 %v51
  %1141 = vmatpush1.msra.mxu0 %v50
  %1142 = vmatprep.subr.mxu0 %v53
  %1143 = vmatpush1.msra.mxu0 %v52
  %1144 = vmatprep.subr.mxu0 %v55
  %1145 = vmatpush1.msra.mxu0 %v54
  %1146 = vmatprep.subr.mxu0 %v57
  %1147 = vmatpush1.msra.mxu0 %v56
  %1148 = vmatprep.subr.mxu0 %v59
  %1149 = vmatpush1.msra.mxu0 %v58
  %1150 = vmatprep.subr.mxu0 %v61
  %1151 = vmatpush1.msra.mxu0 %v60
  %1152 = vmatprep.subr.mxu0 %v63
  %1153 = vmatpush1.msra.mxu0 %v62
  %1154 = vmatprep.subr.mxu0 %v65
  %1155 = vmatpush1.msra.mxu0 %v64
  %1156 = vmatprep.subr.mxu0 %v67
  %1157 = vmatpush1.msra.mxu0 %v66
  %1158 = vmatprep.subr.mxu0 %v69
  %1159 = vmatpush1.msra.mxu0 %v68
  %1160 = vmatprep.subr.mxu0 %v71
  %1161 = vmatpush1.msra.mxu0 %v70
  %1162 = vmatprep.subr.mxu0 %v73
  %1163 = vmatpush1.msra.mxu0 %v72
  %1164 = vmatprep.subr.mxu0 %v75
  %1165 = vmatpush1.msra.mxu0 %v74
  %1166 = vmatprep.subr.mxu0 %v77
  %1167 = vmatpush1.msra.mxu0 %v76
  %1168 = vmatprep.subr.mxu0 %v79
  %1169 = vmatpush1.msra.mxu0 %v78
  %1170 = vmatprep.subr.mxu0 %v81
  %1171 = vmatpush1.msra.mxu0 %v80
  %1172 = vmatprep.subr.mxu0 %v83
  %1173 = vmatpush1.msra.mxu0 %v82
  %1174 = vmatprep.subr.mxu0 %v85
  %1175 = vmatpush1.msra.mxu0 %v84
  %1176 = vmatprep.subr.mxu0 %v87
  %1177 = vmatpush1.msra.mxu0 %v86
  %1178 = vmatprep.subr.mxu0 %v89
  %1179 = vmatpush1.msra.mxu0 %v88
  %1180 = vmatprep.subr.mxu0 %v91
  %1181 = vmatpush1.msra.mxu0 %v90
  %1182 = vmatprep.subr.mxu0 %v93
  %1183 = vmatpush1.msra.mxu0 %v92
  %1184 = vmatprep.subr.mxu0 %v95
  %1185 = vmatpush1.msra.mxu0 %v94
  %1186 = vmatprep.subr.mxu0 %v97
  %1187 = vmatpush1.msra.mxu0 %v96
  %1188 = vmatprep.subr.mxu0 %v99
  %1189 = vmatpush1.msra.mxu0 %v98
  %1190 = vmatprep.subr.mxu0 %v101
  %1191 = vmatpush1.msra.mxu0 %v100
  %1192 = vmatprep.mubr.f32.mxu0 %v1127
  %1193 = vmatmul.mubr.f32.gmra.mrb[0].mxu0 %v1126
  %v1194 = vpop.f32.mrb[0].mxu0
  %v1195 = vadd.f32 %v109, %v1194
  %v1196 = vpop.f32.mrb[0].mxu0
  %v1197 = vadd.f32 %v113, %v1196
  %1198 = vdwg.mxu0
  %v1199 = vtanh.pop %v1195
  %v1200 = vtanh.pop %v1197
  %v1201 = vadd.f32 %v1123, %v1199
  %v1202 = vadd.f32 %v1124, %v1200
  %v1203 = vmul.f32 %v1201, 0.5
  %v1204 = vmul.f32 %v1202, 0.5
  %s1205 = scalar_lea.vmem %s0, 224
  %v1206 = vld [vmem:[%s1205] sm:$0xff]
  %v1207 = vld [vmem:[%s1205 + $0x8] sm:$0xff]
  %1208 = vmatprep.subr.mxu0 %v39
  %1209 = vmatpush1.msra.mxu0 %v38
  %1210 = vmatprep.subr.mxu0 %v41
  %1211 = vmatpush1.msra.mxu0 %v40
  %1212 = vmatprep.subr.mxu0 %v43
  %1213 = vmatpush1.msra.mxu0 %v42
  %1214 = vmatprep.subr.mxu0 %v45
  %1215 = vmatpush1.msra.mxu0 %v44
  %1216 = vmatprep.subr.mxu0 %v47
  %1217 = vmatpush1.msra.mxu0 %v46
  %1218 = vmatprep.subr.mxu0 %v49
  %1219 = vmatpush1.msra.mxu0 %v48
  %1220 = vmatprep.subr.mxu0 %v51
  %1221 = vmatpush1.msra.mxu0 %v50
  %1222 = vmatprep.subr.mxu0 %v53
  %1223 = vmatpush1.msra.mxu0 %v52
  %1224 = vmatprep.subr.mxu0 %v55
  %1225 = vmatpush1.msra.mxu0 %v54
  %1226 = vmatprep.subr.mxu0 %v57
  %1227 = vmatpush1.msra.mxu0 %v56
  %1228 = vmatprep.subr.mxu0 %v59
  %1229 = vmatpush1.msra.mxu0 %v58
  %1230 = vmatprep.subr.mxu0 %v61
  %1231 = vmatpush1.msra.mxu0 %v60
  %1232 = vmatprep.subr.mxu0 %v63
  %1233 = vmatpush1.msra.mxu0 %v62
  %1234 = vmatprep.subr.mxu0 %v65
  %1235 = vmatpush1.msra.mxu0 %v64
  %1236 = vmatprep.subr.mxu0 %v67
  %1237 = vmatpush1.msra.mxu0 %v66
  %1238 = vmatprep.subr.mxu0 %v69
  %1239 = vmatpush1.msra.mxu0 %v68
  %1240 = vmatprep.subr.mxu0 %v71
  %1241 = vmatpush1.msra.mxu0 %v70
  %1242 = vmatprep.subr.mxu0 %v73
  %1243 = vmatpush1.msra.mxu0 %v72
  %1244 = vmatprep.subr.mxu0 %v75
  %1245 = vmatpush1.msra.mxu0 %v74
  %1246 = vmatprep.subr.mxu0 %v77
  %1247 = vmatpush1.msra.mxu0 %v76
  %1248 = vmatprep.subr.mxu0 %v79
  %1249 = vmatpush1.msra.mxu0 %v78
  %1250 = vmatprep.subr.mxu0 %v81
  %1251 = vmatpush1.msra.mxu0 %v80
  %1252 = vmatprep.subr.mxu0 %v83
  %1253 = vmatpush1.msra.mxu0 %v82
  %1254 = vmatprep.subr.mxu0 %v85
  %1255 = vmatpush1.msra.mxu0 %v84
  %1256 = vmatprep.subr.mxu0 %v87
  %1257 = vmatpush1.msra.mxu0 %v86
  %1258 = vmatprep.subr.mxu0 %v89
  %1259 = vmatpush1.msra.mxu0 %v88
  %1260 = vmatprep.subr.mxu0 %v91
  %1261 = vmatpush1.msra.mxu0 %v90
  %1262 = vmatprep.subr.mxu0 %v93
  %1263 = vmatpush1.msra.mxu0 %v92
  %1264 = vmatprep.subr.mxu0 %v95
  %1265 = vmatpush1.msra.mxu0 %v94
  %1266 = vmatprep.subr.mxu0 %v97
  %1267 = vmatpush1.msra.mxu0 %v96
  %1268 = vmatprep.subr.mxu0 %v99
  %1269 = vmatpush1.msra.mxu0 %v98
  %1270 = vmatprep.subr.mxu0 %v101
  %1271 = vmatpush1.msra.mxu0 %v100
  %1272 = vmatprep.mubr.f32.mxu0 %v1207
  %1273 = vmatmul.mubr.f32.gmra.mrb[0].mxu0 %v1206
  %v1274 = vpop.f32.mrb[0].mxu0
  %v1275 = vadd.f32 %v109, %v1274
  %v1276 = vpop.f32.mrb[0].mxu0
  %v1277 = vadd.f32 %v113, %v1276
  %1278 = vdwg.mxu0
  %v1279 = vtanh.pop %v1275
  %v1280 = vtanh.pop %v1277
  %s1281 = scalar_lea.vmem %s0, 240
  %v1282 = vld [vmem:[%s1281] sm:$0xff]
  %v1283 = vld [vmem:[%s1281 + $0x8] sm:$0xff]
  %1284 = vmatprep.subr.mxu0 %v39
  %1285 = vmatpush1.msra.mxu0 %v38
  %1286 = vmatprep.subr.mxu0 %v41
  %1287 = vmatpush1.msra.mxu0 %v40
  %1288 = vmatprep.subr.mxu0 %v43
  %1289 = vmatpush1.msra.mxu0 %v42
  %1290 = vmatprep.subr.mxu0 %v45
  %1291 = vmatpush1.msra.mxu0 %v44
  %1292 = vmatprep.subr.mxu0 %v47
  %1293 = vmatpush1.msra.mxu0 %v46
  %1294 = vmatprep.subr.mxu0 %v49
  %1295 = vmatpush1.msra.mxu0 %v48
  %1296 = vmatprep.subr.mxu0 %v51
  %1297 = vmatpush1.msra.mxu0 %v50
  %1298 = vmatprep.subr.mxu0 %v53
  %1299 = vmatpush1.msra.mxu0 %v52
  %1300 = vmatprep.subr.mxu0 %v55
  %1301 = vmatpush1.msra.mxu0 %v54
  %1302 = vmatprep.subr.mxu0 %v57
  %1303 = vmatpush1.msra.mxu0 %v56
  %1304 = vmatprep.subr.mxu0 %v59
  %1305 = vmatpush1.msra.mxu0 %v58
  %1306 = vmatprep.subr.mxu0 %v61
  %1307 = vmatpush1.msra.mxu0 %v60
  %1308 = vmatprep.subr.mxu0 %v63
  %1309 = vmatpush1.msra.mxu0 %v62
  %1310 = vmatprep.subr.mxu0 %v65
  %1311 = vmatpush1.msra.mxu0 %v64
  %1312 = vmatprep.subr.mxu0 %v67
  %1313 = vmatpush1.msra.mxu0 %v66
  %1314 = vmatprep.subr.mxu0 %v69
  %1315 = vmatpush1.msra.mxu0 %v68
  %1316 = vmatprep.subr.mxu0 %v71
  %1317 = vmatpush1.msra.mxu0 %v70
  %1318 = vmatprep.subr.mxu0 %v73
  %1319 = vmatpush1.msra.mxu0 %v72
  %1320 = vmatprep.subr.mxu0 %v75
  %1321 = vmatpush1.msra.mxu0 %v74
  %1322 = vmatprep.subr.mxu0 %v77
  %1323 = vmatpush1.msra.mxu0 %v76
  %1324 = vmatprep.subr.mxu0 %v79
  %1325 = vmatpush1.msra.mxu0 %v78
  %1326 = vmatprep.subr.mxu0 %v81
  %1327 = vmatpush1.msra.mxu0 %v80
  %1328 = vmatprep.subr.mxu0 %v83
  %1329 = vmatpush1.msra.mxu0 %v82
  %1330 = vmatprep.subr.mxu0 %v85
  %1331 = vmatpush1.msra.mxu0 %v84
  %1332 = vmatprep.subr.mxu0 %v87
  %1333 = vmatpush1.msra.mxu0 %v86
  %1334 = vmatprep.subr.mxu0 %v89
  %1335 = vmatpush1.msra.mxu0 %v88
  %1336 = vmatprep.subr.mxu0 %v91
  %1337 = vmatpush1.msra.mxu0 %v90
  %1338 = vmatprep.subr.mxu0 %v93
  %1339 = vmatpush1.msra.mxu0 %v92
  %1340 = vmatprep.subr.mxu0 %v95
  %1341 = vmatpush1.msra.mxu0 %v94
  %1342 = vmatprep.subr.mxu0 %v97
  %1343 = vmatpush1.msra.mxu0 %v96
  %1344 = vmatprep.subr.mxu0 %v99
  %1345 = vmatpush1.msra.mxu0 %v98
  %1346 = vmatprep.subr.mxu0 %v101
  %1347 = vmatpush1.msra.mxu0 %v100
  %1348 = vmatprep.mubr.f32.mxu0 %v1283
  %1349 = vmatmul.mubr.f32.gmra.mrb[0].mxu0 %v1282
  %v1350 = vpop.f32.mrb[0].mxu0
  %v1351 = vadd.f32 %v109, %v1350
  %v1352 = vpop.f32.mrb[0].mxu0
  %v1353 = vadd.f32 %v113, %v1352
  %1354 = vdwg.mxu0
  %v1355 = vtanh.pop %v1351
  %v1356 = vtanh.pop %v1353
  %v1357 = vadd.f32 %v1279, %v1355
  %v1358 = vadd.f32 %v1280, %v1356
  %v1359 = vmul.f32 %v1357, 0.5
  %v1360 = vmul.f32 %v1358, 0.5
  %s1361 = scalar_lea.vmem %s0, 256
  %v1362 = vld [vmem:[%s1361] sm:$0xff]
  %v1363 = vld [vmem:[%s1361 + $0x8] sm:$0xff]
  %1364 = vmatprep.subr.mxu0 %v39
  %1365 = vmatpush1.msra.mxu0 %v38
  %1366 = vmatprep.subr.mxu0 %v41
  %1367 = vmatpush1.msra.mxu0 %v40
  %1368 = vmatprep.subr.mxu0 %v43
  %1369 = vmatpush1.msra.mxu0 %v42
  %1370 = vmatprep.subr.mxu0 %v45
  %1371 = vmatpush1.msra.mxu0 %v44
  %1372 = vmatprep.subr.mxu0 %v47
  %1373 = vmatpush1.msra.mxu0 %v46
  %1374 = vmatprep.subr.mxu0 %v49
  %1375 = vmatpush1.msra.mxu0 %v48
  %1376 = vmatprep.subr.mxu0 %v51
  %1377 = vmatpush1.msra.mxu0 %v50
  %1378 = vmatprep.subr.mxu0 %v53
  %1379 = vmatpush1.msra.mxu0 %v52
  %1380 = vmatprep.subr.mxu0 %v55
  %1381 = vmatpush1.msra.mxu0 %v54
  %1382 = vmatprep.subr.mxu0 %v57
  %1383 = vmatpush1.msra.mxu0 %v56
  %1384 = vmatprep.subr.mxu0 %v59
  %1385 = vmatpush1.msra.mxu0 %v58
  %1386 = vmatprep.subr.mxu0 %v61
  %1387 = vmatpush1.msra.mxu0 %v60
  %1388 = vmatprep.subr.mxu0 %v63
  %1389 = vmatpush1.msra.mxu0 %v62
  %1390 = vmatprep.subr.mxu0 %v65
  %1391 = vmatpush1.msra.mxu0 %v64
  %1392 = vmatprep.subr.mxu0 %v67
  %1393 = vmatpush1.msra.mxu0 %v66
  %1394 = vmatprep.subr.mxu0 %v69
  %1395 = vmatpush1.msra.mxu0 %v68
  %1396 = vmatprep.subr.mxu0 %v71
  %1397 = vmatpush1.msra.mxu0 %v70
  %1398 = vmatprep.subr.mxu0 %v73
  %1399 = vmatpush1.msra.mxu0 %v72
  %1400 = vmatprep.subr.mxu0 %v75
  %1401 = vmatpush1.msra.mxu0 %v74
  %1402 = vmatprep.subr.mxu0 %v77
  %1403 = vmatpush1.msra.mxu0 %v76
  %1404 = vmatprep.subr.mxu0 %v79
  %1405 = vmatpush1.msra.mxu0 %v78
  %1406 = vmatprep.subr.mxu0 %v81
  %1407 = vmatpush1.msra.mxu0 %v80
  %1408 = vmatprep.subr.mxu0 %v83
  %1409 = vmatpush1.msra.mxu0 %v82
  %1410 = vmatprep.subr.mxu0 %v85
  %1411 = vmatpush1.msra.mxu0 %v84
  %1412 = vmatprep.subr.mxu0 %v87
  %1413 = vmatpush1.msra.mxu0 %v86
  %1414 = vmatprep.subr.mxu0 %v89
  %1415 = vmatpush1.msra.mxu0 %v88
  %1416 = vmatprep.subr.mxu0 %v91
  %1417 = vmatpush1.msra.mxu0 %v90
  %1418 = vmatprep.subr.mxu0 %v93
  %1419 = vmatpush1.msra.mxu0 %v92
  %1420 = vmatprep.subr.mxu0 %v95
  %1421 = vmatpush1.msra.mxu0 %v94
  %1422 = vmatprep.subr.mxu0 %v97
  %1423 = vmatpush1.msra.mxu0 %v96
  %1424 = vmatprep.subr.mxu0 %v99
  %1425 = vmatpush1.msra.mxu0 %v98
  %1426 = vmatprep.subr.mxu0 %v101
  %1427 = vmatpush1.msra.mxu0 %v100
  %1428 = vmatprep.mubr.f32.mxu0 %v1363
  %1429 = vmatmul.mubr.f32.gmra.mrb[0].mxu0 %v1362
  %v1430 = vpop.f32.mrb[0].mxu0
  %v1431 = vadd.f32 %v109, %v1430
  %v1432 = vpop.f32.mrb[0].mxu0
  %v1433 = vadd.f32 %v113, %v1432
  %1434 = vdwg.mxu0
  %v1435 = vtanh.pop %v1431
  %v1436 = vtanh.pop %v1433
  %s1437 = scalar_lea.vmem %s0, 272
  %v1438 = vld [vmem:[%s1437] sm:$0xff]
  %v1439 = vld [vmem:[%s1437 + $0x8] sm:$0xff]
  %1440 = vmatprep.subr.mxu0 %v39
  %1441 = vmatpush1.msra.mxu0 %v38
  %1442 = vmatprep.subr.mxu0 %v41
  %1443 = vmatpush1.msra.mxu0 %v40
  %1444 = vmatprep.subr.mxu0 %v43
  %1445 = vmatpush1.msra.mxu0 %v42
  %1446 = vmatprep.subr.mxu0 %v45
  %1447 = vmatpush1.msra.mxu0 %v44
  %1448 = vmatprep.subr.mxu0 %v47
  %1449 = vmatpush1.msra.mxu0 %v46
  %1450 = vmatprep.subr.mxu0 %v49
  %1451 = vmatpush1.msra.mxu0 %v48
  %1452 = vmatprep.subr.mxu0 %v51
  %1453 = vmatpush1.msra.mxu0 %v50
  %1454 = vmatprep.subr.mxu0 %v53
  %1455 = vmatpush1.msra.mxu0 %v52
  %1456 = vmatprep.subr.mxu0 %v55
  %1457 = vmatpush1.msra.mxu0 %v54
  %1458 = vmatprep.subr.mxu0 %v57
  %1459 = vmatpush1.msra.mxu0 %v56
  %1460 = vmatprep.subr.mxu0 %v59
  %1461 = vmatpush1.msra.mxu0 %v58
  %1462 = vmatprep.subr.mxu0 %v61
  %1463 = vmatpush1.msra.mxu0 %v60
  %1464 = vmatprep.subr.mxu0 %v63
  %1465 = vmatpush1.msra.mxu0 %v62
  %1466 = vmatprep.subr.mxu0 %v65
  %1467 = vmatpush1.msra.mxu0 %v64
  %1468 = vmatprep.subr.mxu0 %v67
  %1469 = vmatpush1.msra.mxu0 %v66
  %1470 = vmatprep.subr.mxu0 %v69
  %1471 = vmatpush1.msra.mxu0 %v68
  %1472 = vmatprep.subr.mxu0 %v71
  %1473 = vmatpush1.msra.mxu0 %v70
  %1474 = vmatprep.subr.mxu0 %v73
  %1475 = vmatpush1.msra.mxu0 %v72
  %1476 = vmatprep.subr.mxu0 %v75
  %1477 = vmatpush1.msra.mxu0 %v74
  %1478 = vmatprep.subr.mxu0 %v77
  %1479 = vmatpush1.msra.mxu0 %v76
  %1480 = vmatprep.subr.mxu0 %v79
  %1481 = vmatpush1.msra.mxu0 %v78
  %1482 = vmatprep.subr.mxu0 %v81
  %1483 = vmatpush1.msra.mxu0 %v80
  %1484 = vmatprep.subr.mxu0 %v83
  %1485 = vmatpush1.msra.mxu0 %v82
  %1486 = vmatprep.subr.mxu0 %v85
  %1487 = vmatpush1.msra.mxu0 %v84
  %1488 = vmatprep.subr.mxu0 %v87
  %1489 = vmatpush1.msra.mxu0 %v86
  %1490 = vmatprep.subr.mxu0 %v89
  %1491 = vmatpush1.msra.mxu0 %v88
  %1492 = vmatprep.subr.mxu0 %v91
  %1493 = vmatpush1.msra.mxu0 %v90
  %1494 = vmatprep.subr.mxu0 %v93
  %1495 = vmatpush1.msra.mxu0 %v92
  %1496 = vmatprep.subr.mxu0 %v95
  %1497 = vmatpush1.msra.mxu0 %v94
  %1498 = vmatprep.subr.mxu0 %v97
  %1499 = vmatpush1.msra.mxu0 %v96
  %1500 = vmatprep.subr.mxu0 %v99
  %1501 = vmatpush1.msra.mxu0 %v98
  %1502 = vmatprep.subr.mxu0 %v101
  %1503 = vmatpush1.msra.mxu0 %v100
  %1504 = vmatprep.mubr.f32.mxu0 %v1439
  %1505 = vmatmul.mubr.f32.gmra.mrb[0].mxu0 %v1438
  %v1506 = vpop.f32.mrb[0].mxu0
  %v1507 = vadd.f32 %v109, %v1506
  %v1508 = vpop.f32.mrb[0].mxu0
  %v1509 = vadd.f32 %v113, %v1508
  %1510 = vdwg.mxu0
  %v1511 = vtanh.pop %v1507
  %v1512 = vtanh.pop %v1509
  %v1513 = vadd.f32 %v1435, %v1511
  %v1514 = vadd.f32 %v1436, %v1512
  %v1515 = vmul.f32 %v1513, 0.5
  %v1516 = vmul.f32 %v1514, 0.5
  %s1517 = scalar_lea.vmem %s0, 288
  %v1518 = vld [vmem:[%s1517] sm:$0xff]
  %v1519 = vld [vmem:[%s1517 + $0x8] sm:$0xff]
  %1520 = vmatprep.subr.mxu0 %v39
  %1521 = vmatpush1.msra.mxu0 %v38
  %1522 = vmatprep.subr.mxu0 %v41
  %1523 = vmatpush1.msra.mxu0 %v40
  %1524 = vmatprep.subr.mxu0 %v43
  %1525 = vmatpush1.msra.mxu0 %v42
  %1526 = vmatprep.subr.mxu0 %v45
  %1527 = vmatpush1.msra.mxu0 %v44
  %1528 = vmatprep.subr.mxu0 %v47
  %1529 = vmatpush1.msra.mxu0 %v46
  %1530 = vmatprep.subr.mxu0 %v49
  %1531 = vmatpush1.msra.mxu0 %v48
  %1532 = vmatprep.subr.mxu0 %v51
  %1533 = vmatpush1.msra.mxu0 %v50
  %1534 = vmatprep.subr.mxu0 %v53
  %1535 = vmatpush1.msra.mxu0 %v52
  %1536 = vmatprep.subr.mxu0 %v55
  %1537 = vmatpush1.msra.mxu0 %v54
  %1538 = vmatprep.subr.mxu0 %v57
  %1539 = vmatpush1.msra.mxu0 %v56
  %1540 = vmatprep.subr.mxu0 %v59
  %1541 = vmatpush1.msra.mxu0 %v58
  %1542 = vmatprep.subr.mxu0 %v61
  %1543 = vmatpush1.msra.mxu0 %v60
  %1544 = vmatprep.subr.mxu0 %v63
  %1545 = vmatpush1.msra.mxu0 %v62
  %1546 = vmatprep.subr.mxu0 %v65
  %1547 = vmatpush1.msra.mxu0 %v64
  %1548 = vmatprep.subr.mxu0 %v67
  %1549 = vmatpush1.msra.mxu0 %v66
  %1550 = vmatprep.subr.mxu0 %v69
  %1551 = vmatpush1.msra.mxu0 %v68
  %1552 = vmatprep.subr.mxu0 %v71
  %1553 = vmatpush1.msra.mxu0 %v70
  %1554 = vmatprep.subr.mxu0 %v73
  %1555 = vmatpush1.msra.mxu0 %v72
  %1556 = vmatprep.subr.mxu0 %v75
  %1557 = vmatpush1.msra.mxu0 %v74
  %1558 = vmatprep.subr.mxu0 %v77
  %1559 = vmatpush1.msra.mxu0 %v76
  %1560 = vmatprep.subr.mxu0 %v79
  %1561 = vmatpush1.msra.mxu0 %v78
  %1562 = vmatprep.subr.mxu0 %v81
  %1563 = vmatpush1.msra.mxu0 %v80
  %1564 = vmatprep.subr.mxu0 %v83
  %1565 = vmatpush1.msra.mxu0 %v82
  %1566 = vmatprep.subr.mxu0 %v85
  %1567 = vmatpush1.msra.mxu0 %v84
  %1568 = vmatprep.subr.mxu0 %v87
  %1569 = vmatpush1.msra.mxu0 %v86
  %1570 = vmatprep.subr.mxu0 %v89
  %1571 = vmatpush1.msra.mxu0 %v88
  %1572 = vmatprep.subr.mxu0 %v91
  %1573 = vmatpush1.msra.mxu0 %v90
  %1574 = vmatprep.subr.mxu0 %v93
  %1575 = vmatpush1.msra.mxu0 %v92
  %1576 = vmatprep.subr.mxu0 %v95
  %1577 = vmatpush1.msra.mxu0 %v94
  %1578 = vmatprep.subr.mxu0 %v97
  %1579 = vmatpush1.msra.mxu0 %v96
  %1580 = vmatprep.subr.mxu0 %v99
  %1581 = vmatpush1.msra.mxu0 %v98
  %1582 = vmatprep.subr.mxu0 %v101
  %1583 = vmatpush1.msra.mxu0 %v100
  %1584 = vmatprep.mubr.f32.mxu0 %v1519
  %1585 = vmatmul.mubr.f32.gmra.mrb[0].mxu0 %v1518
  %v1586 = vpop.f32.mrb[0].mxu0
  %v1587 = vadd.f32 %v109, %v1586
  %v1588 = vpop.f32.mrb[0].mxu0
  %v1589 = vadd.f32 %v113, %v1588
  %1590 = vdwg.mxu0
  %v1591 = vtanh.pop %v1587
  %v1592 = vtanh.pop %v1589
  %s1593 = scalar_lea.vmem %s0, 304
  %v1594 = vld [vmem:[%s1593] sm:$0xff]
  %v1595 = vld [vmem:[%s1593 + $0x8] sm:$0xff]
  %1596 = vmatprep.subr.mxu0 %v39
  %1597 = vmatpush1.msra.mxu0 %v38
  %1598 = vmatprep.subr.mxu0 %v41
  %1599 = vmatpush1.msra.mxu0 %v40
  %1600 = vmatprep.subr.mxu0 %v43
  %1601 = vmatpush1.msra.mxu0 %v42
  %1602 = vmatprep.subr.mxu0 %v45
  %1603 = vmatpush1.msra.mxu0 %v44
  %1604 = vmatprep.subr.mxu0 %v47
  %1605 = vmatpush1.msra.mxu0 %v46
  %1606 = vmatprep.subr.mxu0 %v49
  %1607 = vmatpush1.msra.mxu0 %v48
  %1608 = vmatprep.subr.mxu0 %v51
  %1609 = vmatpush1.msra.mxu0 %v50
  %1610 = vmatprep.subr.mxu0 %v53
  %1611 = vmatpush1.msra.mxu0 %v52
  %1612 = vmatprep.subr.mxu0 %v55
  %1613 = vmatpush1.msra.mxu0 %v54
  %1614 = vmatprep.subr.mxu0 %v57
  %1615 = vmatpush1.msra.mxu0 %v56
  %1616 = vmatprep.subr.mxu0 %v59
  %1617 = vmatpush1.msra.mxu0 %v58
  %1618 = vmatprep.subr.mxu0 %v61
  %1619 = vmatpush1.msra.mxu0 %v60
  %1620 = vmatprep.subr.mxu0 %v63
  %1621 = vmatpush1.msra.mxu0 %v62
  %1622 = vmatprep.subr.mxu0 %v65
  %1623 = vmatpush1.msra.mxu0 %v64
  %1624 = vmatprep.subr.mxu0 %v67
  %1625 = vmatpush1.msra.mxu0 %v66
  %1626 = vmatprep.subr.mxu0 %v69
  %1627 = vmatpush1.msra.mxu0 %v68
  %1628 = vmatprep.subr.mxu0 %v71
  %1629 = vmatpush1.msra.mxu0 %v70
  %1630 = vmatprep.subr.mxu0 %v73
  %1631 = vmatpush1.msra.mxu0 %v72
  %1632 = vmatprep.subr.mxu0 %v75
  %1633 = vmatpush1.msra.mxu0 %v74
  %1634 = vmatprep.subr.mxu0 %v77
  %1635 = vmatpush1.msra.mxu0 %v76
  %1636 = vmatprep.subr.mxu0 %v79
  %1637 = vmatpush1.msra.mxu0 %v78
  %1638 = vmatprep.subr.mxu0 %v81
  %1639 = vmatpush1.msra.mxu0 %v80
  %1640 = vmatprep.subr.mxu0 %v83
  %1641 = vmatpush1.msra.mxu0 %v82
  %1642 = vmatprep.subr.mxu0 %v85
  %1643 = vmatpush1.msra.mxu0 %v84
  %1644 = vmatprep.subr.mxu0 %v87
  %1645 = vmatpush1.msra.mxu0 %v86
  %1646 = vmatprep.subr.mxu0 %v89
  %1647 = vmatpush1.msra.mxu0 %v88
  %1648 = vmatprep.subr.mxu0 %v91
  %1649 = vmatpush1.msra.mxu0 %v90
  %1650 = vmatprep.subr.mxu0 %v93
  %1651 = vmatpush1.msra.mxu0 %v92
  %1652 = vmatprep.subr.mxu0 %v95
  %1653 = vmatpush1.msra.mxu0 %v94
  %1654 = vmatprep.subr.mxu0 %v97
  %1655 = vmatpush1.msra.mxu0 %v96
  %1656 = vmatprep.subr.mxu0 %v99
  %1657 = vmatpush1.msra.mxu0 %v98
  %1658 = vmatprep.subr.mxu0 %v101
  %1659 = vmatpush1.msra.mxu0 %v100
  %1660 = vmatprep.mubr.f32.mxu0 %v1595
  %1661 = vmatmul.mubr.f32.gmra.mrb[0].mxu0 %v1594
  %v1662 = vpop.f32.mrb[0].mxu0
  %v1663 = vadd.f32 %v109, %v1662
  %v1664 = vpop.f32.mrb[0].mxu0
  %v1665 = vadd.f32 %v113, %v1664
  %1666 = vdwg.mxu0
  %v1667 = vtanh.pop %v1663
  %v1668 = vtanh.pop %v1665
  %v1669 = vadd.f32 %v1591, %v1667
  %v1670 = vadd.f32 %v1592, %v1668
  %v1671 = vmul.f32 %v1669, 0.5
  %v1672 = vmul.f32 %v1670, 0.5
  %s1673 = scalar_lea.vmem %s0, 320
  %v1674 = vld [vmem:[%s1673] sm:$0xff]
  %v1675 = vld [vmem:[%s1673 + $0x8] sm:$0xff]
  %1676 = vmatprep.subr.mxu0 %v39
  %1677 = vmatpush1.msra.mxu0 %v38
  %1678 = vmatprep.subr.mxu0 %v41
  %1679 = vmatpush1.msra.mxu0 %v40
  %1680 = vmatprep.subr.mxu0 %v43
  %1681 = vmatpush1.msra.mxu0 %v42
  %1682 = vmatprep.subr.mxu0 %v45
  %1683 = vmatpush1.msra.mxu0 %v44
  %1684 = vmatprep.subr.mxu0 %v47
  %1685 = vmatpush1.msra.mxu0 %v46
  %1686 = vmatprep.subr.mxu0 %v49
  %1687 = vmatpush1.msra.mxu0 %v48
  %1688 = vmatprep.subr.mxu0 %v51
  %1689 = vmatpush1.msra.mxu0 %v50
  %1690 = vmatprep.subr.mxu0 %v53
  %1691 = vmatpush1.msra.mxu0 %v52
  %1692 = vmatprep.subr.mxu0 %v55
  %1693 = vmatpush1.msra.mxu0 %v54
  %1694 = vmatprep.subr.mxu0 %v57
  %1695 = vmatpush1.msra.mxu0 %v56
  %1696 = vmatprep.subr.mxu0 %v59
  %1697 = vmatpush1.msra.mxu0 %v58
  %1698 = vmatprep.subr.mxu0 %v61
  %1699 = vmatpush1.msra.mxu0 %v60
  %1700 = vmatprep.subr.mxu0 %v63
  %1701 = vmatpush1.msra.mxu0 %v62
  %1702 = vmatprep.subr.mxu0 %v65
  %1703 = vmatpush1.msra.mxu0 %v64
  %1704 = vmatprep.subr.mxu0 %v67
  %1705 = vmatpush1.msra.mxu0 %v66
  %1706 = vmatprep.subr.mxu0 %v69
  %1707 = vmatpush1.msra.mxu0 %v68
  %1708 = vmatprep.subr.mxu0 %v71
  %1709 = vmatpush1.msra.mxu0 %v70
  %1710 = vmatprep.subr.mxu0 %v73
  %1711 = vmatpush1.msra.mxu0 %v72
  %1712 = vmatprep.subr.mxu0 %v75
  %1713 = vmatpush1.msra.mxu0 %v74
  %1714 = vmatprep.subr.mxu0 %v77
  %1715 = vmatpush1.msra.mxu0 %v76
  %1716 = vmatprep.subr.mxu0 %v79
  %1717 = vmatpush1.msra.mxu0 %v78
  %1718 = vmatprep.subr.mxu0 %v81
  %1719 = vmatpush1.msra.mxu0 %v80
  %1720 = vmatprep.subr.mxu0 %v83
  %1721 = vmatpush1.msra.mxu0 %v82
  %1722 = vmatprep.subr.mxu0 %v85
  %1723 = vmatpush1.msra.mxu0 %v84
  %1724 = vmatprep.subr.mxu0 %v87
  %1725 = vmatpush1.msra.mxu0 %v86
  %1726 = vmatprep.subr.mxu0 %v89
  %1727 = vmatpush1.msra.mxu0 %v88
  %1728 = vmatprep.subr.mxu0 %v91
  %1729 = vmatpush1.msra.mxu0 %v90
  %1730 = vmatprep.subr.mxu0 %v93
  %1731 = vmatpush1.msra.mxu0 %v92
  %1732 = vmatprep.subr.mxu0 %v95
  %1733 = vmatpush1.msra.mxu0 %v94
  %1734 = vmatprep.subr.mxu0 %v97
  %1735 = vmatpush1.msra.mxu0 %v96
  %1736 = vmatprep.subr.mxu0 %v99
  %1737 = vmatpush1.msra.mxu0 %v98
  %1738 = vmatprep.subr.mxu0 %v101
  %1739 = vmatpush1.msra.mxu0 %v100
  %1740 = vmatprep.mubr.f32.mxu0 %v1675
  %1741 = vmatmul.mubr.f32.gmra.mrb[0].mxu0 %v1674
  %v1742 = vpop.f32.mrb[0].mxu0
  %v1743 = vadd.f32 %v109, %v1742
  %v1744 = vpop.f32.mrb[0].mxu0
  %v1745 = vadd.f32 %v113, %v1744
  %1746 = vdwg.mxu0
  %v1747 = vtanh.pop %v1743
  %v1748 = vtanh.pop %v1745
  %s1749 = scalar_lea.vmem %s0, 336
  %v1750 = vld [vmem:[%s1749] sm:$0xff]
  %v1751 = vld [vmem:[%s1749 + $0x8] sm:$0xff]
  %1752 = vmatprep.subr.mxu0 %v39
  %1753 = vmatpush1.msra.mxu0 %v38
  %1754 = vmatprep.subr.mxu0 %v41
  %1755 = vmatpush1.msra.mxu0 %v40
  %1756 = vmatprep.subr.mxu0 %v43
  %1757 = vmatpush1.msra.mxu0 %v42
  %1758 = vmatprep.subr.mxu0 %v45
  %1759 = vmatpush1.msra.mxu0 %v44
  %1760 = vmatprep.subr.mxu0 %v47
  %1761 = vmatpush1.msra.mxu0 %v46
  %1762 = vmatprep.subr.mxu0 %v49
  %1763 = vmatpush1.msra.mxu0 %v48
  %1764 = vmatprep.subr.mxu0 %v51
  %1765 = vmatpush1.msra.mxu0 %v50
  %1766 = vmatprep.subr.mxu0 %v53
  %1767 = vmatpush1.msra.mxu0 %v52
  %1768 = vmatprep.subr.mxu0 %v55
  %1769 = vmatpush1.msra.mxu0 %v54
  %1770 = vmatprep.subr.mxu0 %v57
  %1771 = vmatpush1.msra.mxu0 %v56
  %1772 = vmatprep.subr.mxu0 %v59
  %1773 = vmatpush1.msra.mxu0 %v58
  %1774 = vmatprep.subr.mxu0 %v61
  %1775 = vmatpush1.msra.mxu0 %v60
  %1776 = vmatprep.subr.mxu0 %v63
  %1777 = vmatpush1.msra.mxu0 %v62
  %1778 = vmatprep.subr.mxu0 %v65
  %1779 = vmatpush1.msra.mxu0 %v64
  %1780 = vmatprep.subr.mxu0 %v67
  %1781 = vmatpush1.msra.mxu0 %v66
  %1782 = vmatprep.subr.mxu0 %v69
  %1783 = vmatpush1.msra.mxu0 %v68
  %1784 = vmatprep.subr.mxu0 %v71
  %1785 = vmatpush1.msra.mxu0 %v70
  %1786 = vmatprep.subr.mxu0 %v73
  %1787 = vmatpush1.msra.mxu0 %v72
  %1788 = vmatprep.subr.mxu0 %v75
  %1789 = vmatpush1.msra.mxu0 %v74
  %1790 = vmatprep.subr.mxu0 %v77
  %1791 = vmatpush1.msra.mxu0 %v76
  %1792 = vmatprep.subr.mxu0 %v79
  %1793 = vmatpush1.msra.mxu0 %v78
  %1794 = vmatprep.subr.mxu0 %v81
  %1795 = vmatpush1.msra.mxu0 %v80
  %1796 = vmatprep.subr.mxu0 %v83
  %1797 = vmatpush1.msra.mxu0 %v82
  %1798 = vmatprep.subr.mxu0 %v85
  %1799 = vmatpush1.msra.mxu0 %v84
  %1800 = vmatprep.subr.mxu0 %v87
  %1801 = vmatpush1.msra.mxu0 %v86
  %1802 = vmatprep.subr.mxu0 %v89
  %1803 = vmatpush1.msra.mxu0 %v88
  %1804 = vmatprep.subr.mxu0 %v91
  %1805 = vmatpush1.msra.mxu0 %v90
  %1806 = vmatprep.subr.mxu0 %v93
  %1807 = vmatpush1.msra.mxu0 %v92
  %1808 = vmatprep.subr.mxu0 %v95
  %1809 = vmatpush1.msra.mxu0 %v94
  %1810 = vmatprep.subr.mxu0 %v97
  %1811 = vmatpush1.msra.mxu0 %v96
  %1812 = vmatprep.subr.mxu0 %v99
  %1813 = vmatpush1.msra.mxu0 %v98
  %1814 = vmatprep.subr.mxu0 %v101
  %1815 = vmatpush1.msra.mxu0 %v100
  %1816 = vmatprep.mubr.f32.mxu0 %v1751
  %1817 = vmatmul.mubr.f32.gmra.mrb[0].mxu0 %v1750
  %v1818 = vpop.f32.mrb[0].mxu0
  %v1819 = vadd.f32 %v109, %v1818
  %v1820 = vpop.f32.mrb[0].mxu0
  %v1821 = vadd.f32 %v113, %v1820
  %1822 = vdwg.mxu0
  %v1823 = vtanh.pop %v1819
  %v1824 = vtanh.pop %v1821
  %v1825 = vadd.f32 %v1747, %v1823
  %v1826 = vadd.f32 %v1748, %v1824
  %v1827 = vmul.f32 %v1825, 0.5
  %v1828 = vmul.f32 %v1826, 0.5
  %s1829 = scalar_lea.vmem %s0, 352
  %v1830 = vld [vmem:[%s1829] sm:$0xff]
  %v1831 = vld [vmem:[%s1829 + $0x8] sm:$0xff]
  %1832 = vmatprep.subr.mxu0 %v39
  %1833 = vmatpush1.msra.mxu0 %v38
  %1834 = vmatprep.subr.mxu0 %v41
  %1835 = vmatpush1.msra.mxu0 %v40
  %1836 = vmatprep.subr.mxu0 %v43
  %1837 = vmatpush1.msra.mxu0 %v42
  %1838 = vmatprep.subr.mxu0 %v45
  %1839 = vmatpush1.msra.mxu0 %v44
  %1840 = vmatprep.subr.mxu0 %v47
  %1841 = vmatpush1.msra.mxu0 %v46
  %1842 = vmatprep.subr.mxu0 %v49
  %1843 = vmatpush1.msra.mxu0 %v48
  %1844 = vmatprep.subr.mxu0 %v51
  %1845 = vmatpush1.msra.mxu0 %v50
  %1846 = vmatprep.subr.mxu0 %v53
  %1847 = vmatpush1.msra.mxu0 %v52
  %1848 = vmatprep.subr.mxu0 %v55
  %1849 = vmatpush1.msra.mxu0 %v54
  %1850 = vmatprep.subr.mxu0 %v57
  %1851 = vmatpush1.msra.mxu0 %v56
  %1852 = vmatprep.subr.mxu0 %v59
  %1853 = vmatpush1.msra.mxu0 %v58
  %1854 = vmatprep.subr.mxu0 %v61
  %1855 = vmatpush1.msra.mxu0 %v60
  %1856 = vmatprep.subr.mxu0 %v63
  %1857 = vmatpush1.msra.mxu0 %v62
  %1858 = vmatprep.subr.mxu0 %v65
  %1859 = vmatpush1.msra.mxu0 %v64
  %1860 = vmatprep.subr.mxu0 %v67
  %1861 = vmatpush1.msra.mxu0 %v66
  %1862 = vmatprep.subr.mxu0 %v69
  %1863 = vmatpush1.msra.mxu0 %v68
  %1864 = vmatprep.subr.mxu0 %v71
  %1865 = vmatpush1.msra.mxu0 %v70
  %1866 = vmatprep.subr.mxu0 %v73
  %1867 = vmatpush1.msra.mxu0 %v72
  %1868 = vmatprep.subr.mxu0 %v75
  %1869 = vmatpush1.msra.mxu0 %v74
  %1870 = vmatprep.subr.mxu0 %v77
  %1871 = vmatpush1.msra.mxu0 %v76
  %1872 = vmatprep.subr.mxu0 %v79
  %1873 = vmatpush1.msra.mxu0 %v78
  %1874 = vmatprep.subr.mxu0 %v81
  %1875 = vmatpush1.msra.mxu0 %v80
  %1876 = vmatprep.subr.mxu0 %v83
  %1877 = vmatpush1.msra.mxu0 %v82
  %1878 = vmatprep.subr.mxu0 %v85
  %1879 = vmatpush1.msra.mxu0 %v84
  %1880 = vmatprep.subr.mxu0 %v87
  %1881 = vmatpush1.msra.mxu0 %v86
  %1882 = vmatprep.subr.mxu0 %v89
  %1883 = vmatpush1.msra.mxu0 %v88
  %1884 = vmatprep.subr.mxu0 %v91
  %1885 = vmatpush1.msra.mxu0 %v90
  %1886 = vmatprep.subr.mxu0 %v93
  %1887 = vmatpush1.msra.mxu0 %v92
  %1888 = vmatprep.subr.mxu0 %v95
  %1889 = vmatpush1.msra.mxu0 %v94
  %1890 = vmatprep.subr.mxu0 %v97
  %1891 = vmatpush1.msra.mxu0 %v96
  %1892 = vmatprep.subr.mxu0 %v99
  %1893 = vmatpush1.msra.mxu0 %v98
  %1894 = vmatprep.subr.mxu0 %v101
  %1895 = vmatpush1.msra.mxu0 %v100
  %1896 = vmatprep.mubr.f32.mxu0 %v1831
  %1897 = vmatmul.mubr.f32.gmra.mrb[0].mxu0 %v1830
  %v1898 = vpop.f32.mrb[0].mxu0
  %v1899 = vadd.f32 %v109, %v1898
  %v1900 = vpop.f32.mrb[0].mxu0
  %v1901 = vadd.f32 %v113, %v1900
  %1902 = vdwg.mxu0
  %v1903 = vtanh.pop %v1899
  %v1904 = vtanh.pop %v1901
  %s1905 = scalar_lea.vmem %s0, 368
  %v1906 = vld [vmem:[%s1905] sm:$0xff]
  %v1907 = vld [vmem:[%s1905 + $0x8] sm:$0xff]
  %1908 = vmatprep.subr.mxu0 %v39
  %1909 = vmatpush1.msra.mxu0 %v38
  %1910 = vmatprep.subr.mxu0 %v41
  %1911 = vmatpush1.msra.mxu0 %v40
  %1912 = vmatprep.subr.mxu0 %v43
  %1913 = vmatpush1.msra.mxu0 %v42
  %1914 = vmatprep.subr.mxu0 %v45
  %1915 = vmatpush1.msra.mxu0 %v44
  %1916 = vmatprep.subr.mxu0 %v47
  %1917 = vmatpush1.msra.mxu0 %v46
  %1918 = vmatprep.subr.mxu0 %v49
  %1919 = vmatpush1.msra.mxu0 %v48
  %1920 = vmatprep.subr.mxu0 %v51
  %1921 = vmatpush1.msra.mxu0 %v50
  %1922 = vmatprep.subr.mxu0 %v53
  %1923 = vmatpush1.msra.mxu0 %v52
  %1924 = vmatprep.subr.mxu0 %v55
  %1925 = vmatpush1.msra.mxu0 %v54
  %1926 = vmatprep.subr.mxu0 %v57
  %1927 = vmatpush1.msra.mxu0 %v56
  %1928 = vmatprep.subr.mxu0 %v59
  %1929 = vmatpush1.msra.mxu0 %v58
  %1930 = vmatprep.subr.mxu0 %v61
  %1931 = vmatpush1.msra.mxu0 %v60
  %1932 = vmatprep.subr.mxu0 %v63
  %1933 = vmatpush1.msra.mxu0 %v62
  %1934 = vmatprep.subr.mxu0 %v65
  %1935 = vmatpush1.msra.mxu0 %v64
  %1936 = vmatprep.subr.mxu0 %v67
  %1937 = vmatpush1.msra.mxu0 %v66
  %1938 = vmatprep.subr.mxu0 %v69
  %1939 = vmatpush1.msra.mxu0 %v68
  %1940 = vmatprep.subr.mxu0 %v71
  %1941 = vmatpush1.msra.mxu0 %v70
  %1942 = vmatprep.subr.mxu0 %v73
  %1943 = vmatpush1.msra.mxu0 %v72
  %1944 = vmatprep.subr.mxu0 %v75
  %1945 = vmatpush1.msra.mxu0 %v74
  %1946 = vmatprep.subr.mxu0 %v77
  %1947 = vmatpush1.msra.mxu0 %v76
  %1948 = vmatprep.subr.mxu0 %v79
  %1949 = vmatpush1.msra.mxu0 %v78
  %1950 = vmatprep.subr.mxu0 %v81
  %1951 = vmatpush1.msra.mxu0 %v80
  %1952 = vmatprep.subr.mxu0 %v83
  %1953 = vmatpush1.msra.mxu0 %v82
  %1954 = vmatprep.subr.mxu0 %v85
  %1955 = vmatpush1.msra.mxu0 %v84
  %1956 = vmatprep.subr.mxu0 %v87
  %1957 = vmatpush1.msra.mxu0 %v86
  %1958 = vmatprep.subr.mxu0 %v89
  %1959 = vmatpush1.msra.mxu0 %v88
  %1960 = vmatprep.subr.mxu0 %v91
  %1961 = vmatpush1.msra.mxu0 %v90
  %1962 = vmatprep.subr.mxu0 %v93
  %1963 = vmatpush1.msra.mxu0 %v92
  %1964 = vmatprep.subr.mxu0 %v95
  %1965 = vmatpush1.msra.mxu0 %v94
  %1966 = vmatprep.subr.mxu0 %v97
  %1967 = vmatpush1.msra.mxu0 %v96
  %1968 = vmatprep.subr.mxu0 %v99
  %1969 = vmatpush1.msra.mxu0 %v98
  %1970 = vmatprep.subr.mxu0 %v101
  %1971 = vmatpush1.msra.mxu0 %v100
  %1972 = vmatprep.mubr.f32.mxu0 %v1907
  %1973 = vmatmul.mubr.f32.gmra.mrb[0].mxu0 %v1906
  %v1974 = vpop.f32.mrb[0].mxu0
  %v1975 = vadd.f32 %v109, %v1974
  %v1976 = vpop.f32.mrb[0].mxu0
  %v1977 = vadd.f32 %v113, %v1976
  %1978 = vdwg.mxu0
  %v1979 = vtanh.pop %v1975
  %v1980 = vtanh.pop %v1977
  %v1981 = vadd.f32 %v1903, %v1979
  %v1982 = vadd.f32 %v1904, %v1980
  %v1983 = vmul.f32 %v1981, 0.5
  %v1984 = vmul.f32 %v1982, 0.5
  %v1985 = vld [vmem:[%s4] sm:$0x1]
  %v1986 = vld [vmem:[%s3] sm:$0xff]
  %v1987 = vld [vmem:[%s3 + $0x8] sm:$0xff]
  %v1988 = vld [vmem:[%s3 + $0x10] sm:$0xff]
  %v1989 = vld [vmem:[%s3 + $0x18] sm:$0xff]
  %v1990 = vld [vmem:[%s3 + $0x20] sm:$0xff]
  %v1991 = vld [vmem:[%s3 + $0x28] sm:$0xff]
  %v1992 = vld [vmem:[%s3 + $0x30] sm:$0xff]
  %v1993 = vld [vmem:[%s3 + $0x38] sm:$0xff]
  %v1994 = vld [vmem:[%s3 + $0x40] sm:$0xff]
  %v1995 = vld [vmem:[%s3 + $0x48] sm:$0xff]
  %v1996 = vld [vmem:[%s3 + $0x50] sm:$0xff]
  %v1997 = vld [vmem:[%s3 + $0x58] sm:$0xff]
  %v1998 = vld [vmem:[%s3 + $0x60] sm:$0xff]
  %v1999 = vld [vmem:[%s3 + $0x68] sm:$0xff]
  %v2000 = vld [vmem:[%s3 + $0x70] sm:$0xff]
  %v2001 = vld [vmem:[%s3 + $0x78] sm:$0xff]
  %v2002 = vld [vmem:[%s3 + $0x80] sm:$0xff]
  %v2003 = vld [vmem:[%s3 + $0x88] sm:$0xff]
  %v2004 = vld [vmem:[%s3 + $0x90] sm:$0xff]
  %v2005 = vld [vmem:[%s3 + $0x98] sm:$0xff]
  %v2006 = vld [vmem:[%s3 + $0xa0] sm:$0xff]
  %v2007 = vld [vmem:[%s3 + $0xa8] sm:$0xff]
  %v2008 = vld [vmem:[%s3 + $0xb0] sm:$0xff]
  %v2009 = vld [vmem:[%s3 + $0xb8] sm:$0xff]
  %v2010 = vld [vmem:[%s3 + $0xc0] sm:$0xff]
  %v2011 = vld [vmem:[%s3 + $0xc8] sm:$0xff]
  %v2012 = vld [vmem:[%s3 + $0xd0] sm:$0xff]
  %v2013 = vld [vmem:[%s3 + $0xd8] sm:$0xff]
  %v2014 = vld [vmem:[%s3 + $0xe0] sm:$0xff]
  %v2015 = vld [vmem:[%s3 + $0xe8] sm:$0xff]
  %v2016 = vld [vmem:[%s3 + $0xf0] sm:$0xff]
  %v2017 = vld [vmem:[%s3 + $0xf8] sm:$0xff]
  %s2018 = scalar_lea.vmem %s3, 256
  %v2019 = vld [vmem:[%s2018] sm:$0xff]
  %v2020 = vld [vmem:[%s2018 + $0x8] sm:$0xff]
  %v2021 = vld [vmem:[%s2018 + $0x10] sm:$0xff]
  %v2022 = vld [vmem:[%s2018 + $0x18] sm:$0xff]
  %v2023 = vld [vmem:[%s2018 + $0x20] sm:$0xff]
  %v2024 = vld [vmem:[%s2018 + $0x28] sm:$0xff]
  %v2025 = vld [vmem:[%s2018 + $0x30] sm:$0xff]
  %v2026 = vld [vmem:[%s2018 + $0x38] sm:$0xff]
  %v2027 = vld [vmem:[%s2018 + $0x40] sm:$0xff]
  %v2028 = vld [vmem:[%s2018 + $0x48] sm:$0xff]
  %v2029 = vld [vmem:[%s2018 + $0x50] sm:$0xff]
  %v2030 = vld [vmem:[%s2018 + $0x58] sm:$0xff]
  %v2031 = vld [vmem:[%s2018 + $0x60] sm:$0xff]
  %v2032 = vld [vmem:[%s2018 + $0x68] sm:$0xff]
  %v2033 = vld [vmem:[%s2018 + $0x70] sm:$0xff]
  %v2034 = vld [vmem:[%s2018 + $0x78] sm:$0xff]
  %v2035 = vld [vmem:[%s2018 + $0x80] sm:$0xff]
  %v2036 = vld [vmem:[%s2018 + $0x88] sm:$0xff]
  %v2037 = vld [vmem:[%s2018 + $0x90] sm:$0xff]
  %v2038 = vld [vmem:[%s2018 + $0x98] sm:$0xff]
  %v2039 = vld [vmem:[%s2018 + $0xa0] sm:$0xff]
  %v2040 = vld [vmem:[%s2018 + $0xa8] sm:$0xff]
  %v2041 = vld [vmem:[%s2018 + $0xb0] sm:$0xff]
  %v2042 = vld [vmem:[%s2018 + $0xb8] sm:$0xff]
  %v2043 = vld [vmem:[%s2018 + $0xc0] sm:$0xff]
  %v2044 = vld [vmem:[%s2018 + $0xc8] sm:$0xff]
  %v2045 = vld [vmem:[%s2018 + $0xd0] sm:$0xff]
  %v2046 = vld [vmem:[%s2018 + $0xd8] sm:$0xff]
  %v2047 = vld [vmem:[%s2018 + $0xe0] sm:$0xff]
  %v2048 = vld [vmem:[%s2018 + $0xe8] sm:$0xff]
  %v2049 = vld [vmem:[%s2018 + $0xf0] sm:$0xff]
  %v2050 = vld [vmem:[%s2018 + $0xf8] sm:$0xff]
  %2051 = vmatprep.subr.mxu0 0.0
  %2052 = vmatpush1.msra.mxu0 %v2019
  %2053 = vmatprep.subr.mxu0 0.0
  %2054 = vmatpush1.msra.mxu0 %v2020
  %2055 = vmatprep.subr.mxu0 0.0
  %2056 = vmatpush1.msra.mxu0 %v2021
  %2057 = vmatprep.subr.mxu0 0.0
  %2058 = vmatpush1.msra.mxu0 %v2022
  %2059 = vmatprep.subr.mxu0 0.0
  %2060 = vmatpush1.msra.mxu0 %v2023
  %2061 = vmatprep.subr.mxu0 0.0
  %2062 = vmatpush1.msra.mxu0 %v2024
  %2063 = vmatprep.subr.mxu0 0.0
  %2064 = vmatpush1.msra.mxu0 %v2025
  %2065 = vmatprep.subr.mxu0 0.0
  %2066 = vmatpush1.msra.mxu0 %v2026
  %2067 = vmatprep.subr.mxu0 0.0
  %2068 = vmatpush1.msra.mxu0 %v2027
  %2069 = vmatprep.subr.mxu0 0.0
  %2070 = vmatpush1.msra.mxu0 %v2028
  %2071 = vmatprep.subr.mxu0 0.0
  %2072 = vmatpush1.msra.mxu0 %v2029
  %2073 = vmatprep.subr.mxu0 0.0
  %2074 = vmatpush1.msra.mxu0 %v2030
  %2075 = vmatprep.subr.mxu0 0.0
  %2076 = vmatpush1.msra.mxu0 %v2031
  %2077 = vmatprep.subr.mxu0 0.0
  %2078 = vmatpush1.msra.mxu0 %v2032
  %2079 = vmatprep.subr.mxu0 0.0
  %2080 = vmatpush1.msra.mxu0 %v2033
  %2081 = vmatprep.subr.mxu0 0.0
  %2082 = vmatpush1.msra.mxu0 %v2034
  %2083 = vmatprep.subr.mxu0 0.0
  %2084 = vmatpush1.msra.mxu0 %v2035
  %2085 = vmatprep.subr.mxu0 0.0
  %2086 = vmatpush1.msra.mxu0 %v2036
  %2087 = vmatprep.subr.mxu0 0.0
  %2088 = vmatpush1.msra.mxu0 %v2037
  %2089 = vmatprep.subr.mxu0 0.0
  %2090 = vmatpush1.msra.mxu0 %v2038
  %2091 = vmatprep.subr.mxu0 0.0
  %2092 = vmatpush1.msra.mxu0 %v2039
  %2093 = vmatprep.subr.mxu0 0.0
  %2094 = vmatpush1.msra.mxu0 %v2040
  %2095 = vmatprep.subr.mxu0 0.0
  %2096 = vmatpush1.msra.mxu0 %v2041
  %2097 = vmatprep.subr.mxu0 0.0
  %2098 = vmatpush1.msra.mxu0 %v2042
  %2099 = vmatprep.subr.mxu0 0.0
  %2100 = vmatpush1.msra.mxu0 %v2043
  %2101 = vmatprep.subr.mxu0 0.0
  %2102 = vmatpush1.msra.mxu0 %v2044
  %2103 = vmatprep.subr.mxu0 0.0
  %2104 = vmatpush1.msra.mxu0 %v2045
  %2105 = vmatprep.subr.mxu0 0.0
  %2106 = vmatpush1.msra.mxu0 %v2046
  %2107 = vmatprep.subr.mxu0 0.0
  %2108 = vmatpush1.msra.mxu0 %v2047
  %2109 = vmatprep.subr.mxu0 0.0
  %2110 = vmatpush1.msra.mxu0 %v2048
  %2111 = vmatprep.subr.mxu0 0.0
  %2112 = vmatpush1.msra.mxu0 %v2049
  %2113 = vmatprep.subr.mxu0 0.0
  %2114 = vmatpush1.msra.mxu0 %v2050
  %2115 = vmatprep.mubr.f32.mxu0 %v424
  %2116 = vmatmul.mubr.f32.gmra.mrb[0].mxu0 %v423
  %v2117 = vpop.f32.mrb[0].mxu0
  %v2118 = vadd.f32 0.0, %v2117
  %v2119 = vpop.f32.mrb[0].mxu0
  %2120 = vdwg.mxu0
  %2121 = vmatprep.subr.mxu0 0.0
  %2122 = vmatpush1.msra.mxu0 %v1986
  %2123 = vmatprep.subr.mxu0 0.0
  %2124 = vmatpush1.msra.mxu0 %v1987
  %2125 = vmatprep.subr.mxu0 0.0
  %2126 = vmatpush1.msra.mxu0 %v1988
  %2127 = vmatprep.subr.mxu0 0.0
  %2128 = vmatpush1.msra.mxu0 %v1989
  %2129 = vmatprep.subr.mxu0 0.0
  %2130 = vmatpush1.msra.mxu0 %v1990
  %2131 = vmatprep.subr.mxu0 0.0
  %2132 = vmatpush1.msra.mxu0 %v1991
  %2133 = vmatprep.subr.mxu0 0.0
  %2134 = vmatpush1.msra.mxu0 %v1992
  %2135 = vmatprep.subr.mxu0 0.0
  %2136 = vmatpush1.msra.mxu0 %v1993
  %2137 = vmatprep.subr.mxu0 0.0
  %2138 = vmatpush1.msra.mxu0 %v1994
  %2139 = vmatprep.subr.mxu0 0.0
  %2140 = vmatpush1.msra.mxu0 %v1995
  %2141 = vmatprep.subr.mxu0 0.0
  %2142 = vmatpush1.msra.mxu0 %v1996
  %2143 = vmatprep.subr.mxu0 0.0
  %2144 = vmatpush1.msra.mxu0 %v1997
  %2145 = vmatprep.subr.mxu0 0.0
  %2146 = vmatpush1.msra.mxu0 %v1998
  %2147 = vmatprep.subr.mxu0 0.0
  %2148 = vmatpush1.msra.mxu0 %v1999
  %2149 = vmatprep.subr.mxu0 0.0
  %2150 = vmatpush1.msra.mxu0 %v2000
  %2151 = vmatprep.subr.mxu0 0.0
  %2152 = vmatpush1.msra.mxu0 %v2001
  %2153 = vmatprep.subr.mxu0 0.0
  %2154 = vmatpush1.msra.mxu0 %v2002
  %2155 = vmatprep.subr.mxu0 0.0
  %2156 = vmatpush1.msra.mxu0 %v2003
  %2157 = vmatprep.subr.mxu0 0.0
  %2158 = vmatpush1.msra.mxu0 %v2004
  %2159 = vmatprep.subr.mxu0 0.0
  %2160 = vmatpush1.msra.mxu0 %v2005
  %2161 = vmatprep.subr.mxu0 0.0
  %2162 = vmatpush1.msra.mxu0 %v2006
  %2163 = vmatprep.subr.mxu0 0.0
  %2164 = vmatpush1.msra.mxu0 %v2007
  %2165 = vmatprep.subr.mxu0 0.0
  %2166 = vmatpush1.msra.mxu0 %v2008
  %2167 = vmatprep.subr.mxu0 0.0
  %2168 = vmatpush1.msra.mxu0 %v2009
  %2169 = vmatprep.subr.mxu0 0.0
  %2170 = vmatpush1.msra.mxu0 %v2010
  %2171 = vmatprep.subr.mxu0 0.0
  %2172 = vmatpush1.msra.mxu0 %v2011
  %2173 = vmatprep.subr.mxu0 0.0
  %2174 = vmatpush1.msra.mxu0 %v2012
  %2175 = vmatprep.subr.mxu0 0.0
  %2176 = vmatpush1.msra.mxu0 %v2013
  %2177 = vmatprep.subr.mxu0 0.0
  %2178 = vmatpush1.msra.mxu0 %v2014
  %2179 = vmatprep.subr.mxu0 0.0
  %2180 = vmatpush1.msra.mxu0 %v2015
  %2181 = vmatprep.subr.mxu0 0.0
  %2182 = vmatpush1.msra.mxu0 %v2016
  %2183 = vmatprep.subr.mxu0 0.0
  %2184 = vmatpush1.msra.mxu0 %v2017
  %2185 = vmatprep.mubr.f32.mxu0 %v268
  %2186 = vmatmul.mubr.f32.gmra.mrb[0].mxu0 %v267
  %v2187 = vpop.f32.mrb[0].mxu0
  %v2188 = vadd.f32 %v2118, %v2187
  %v2189 = vpop.f32.mrb[0].mxu0
  %2190 = vdwg.mxu0
  %s2191 = scalar_lea.vmem %s3, 512
  %v2192 = vld [vmem:[%s2191] sm:$0xff]
  %v2193 = vld [vmem:[%s2191 + $0x8] sm:$0xff]
  %v2194 = vld [vmem:[%s2191 + $0x10] sm:$0xff]
  %v2195 = vld [vmem:[%s2191 + $0x18] sm:$0xff]
  %v2196 = vld [vmem:[%s2191 + $0x20] sm:$0xff]
  %v2197 = vld [vmem:[%s2191 + $0x28] sm:$0xff]
  %v2198 = vld [vmem:[%s2191 + $0x30] sm:$0xff]
  %v2199 = vld [vmem:[%s2191 + $0x38] sm:$0xff]
  %v2200 = vld [vmem:[%s2191 + $0x40] sm:$0xff]
  %v2201 = vld [vmem:[%s2191 + $0x48] sm:$0xff]
  %v2202 = vld [vmem:[%s2191 + $0x50] sm:$0xff]
  %v2203 = vld [vmem:[%s2191 + $0x58] sm:$0xff]
  %v2204 = vld [vmem:[%s2191 + $0x60] sm:$0xff]
  %v2205 = vld [vmem:[%s2191 + $0x68] sm:$0xff]
  %v2206 = vld [vmem:[%s2191 + $0x70] sm:$0xff]
  %v2207 = vld [vmem:[%s2191 + $0x78] sm:$0xff]
  %v2208 = vld [vmem:[%s2191 + $0x80] sm:$0xff]
  %v2209 = vld [vmem:[%s2191 + $0x88] sm:$0xff]
  %v2210 = vld [vmem:[%s2191 + $0x90] sm:$0xff]
  %v2211 = vld [vmem:[%s2191 + $0x98] sm:$0xff]
  %v2212 = vld [vmem:[%s2191 + $0xa0] sm:$0xff]
  %v2213 = vld [vmem:[%s2191 + $0xa8] sm:$0xff]
  %v2214 = vld [vmem:[%s2191 + $0xb0] sm:$0xff]
  %v2215 = vld [vmem:[%s2191 + $0xb8] sm:$0xff]
  %v2216 = vld [vmem:[%s2191 + $0xc0] sm:$0xff]
  %v2217 = vld [vmem:[%s2191 + $0xc8] sm:$0xff]
  %v2218 = vld [vmem:[%s2191 + $0xd0] sm:$0xff]
  %v2219 = vld [vmem:[%s2191 + $0xd8] sm:$0xff]
  %v2220 = vld [vmem:[%s2191 + $0xe0] sm:$0xff]
  %v2221 = vld [vmem:[%s2191 + $0xe8] sm:$0xff]
  %v2222 = vld [vmem:[%s2191 + $0xf0] sm:$0xff]
  %v2223 = vld [vmem:[%s2191 + $0xf8] sm:$0xff]
  %2224 = vmatprep.subr.mxu0 0.0
  %2225 = vmatpush1.msra.mxu0 %v2192
  %2226 = vmatprep.subr.mxu0 0.0
  %2227 = vmatpush1.msra.mxu0 %v2193
  %2228 = vmatprep.subr.mxu0 0.0
  %2229 = vmatpush1.msra.mxu0 %v2194
  %2230 = vmatprep.subr.mxu0 0.0
  %2231 = vmatpush1.msra.mxu0 %v2195
  %2232 = vmatprep.subr.mxu0 0.0
  %2233 = vmatpush1.msra.mxu0 %v2196
  %2234 = vmatprep.subr.mxu0 0.0
  %2235 = vmatpush1.msra.mxu0 %v2197
  %2236 = vmatprep.subr.mxu0 0.0
  %2237 = vmatpush1.msra.mxu0 %v2198
  %2238 = vmatprep.subr.mxu0 0.0
  %2239 = vmatpush1.msra.mxu0 %v2199
  %2240 = vmatprep.subr.mxu0 0.0
  %2241 = vmatpush1.msra.mxu0 %v2200
  %2242 = vmatprep.subr.mxu0 0.0
  %2243 = vmatpush1.msra.mxu0 %v2201
  %2244 = vmatprep.subr.mxu0 0.0
  %2245 = vmatpush1.msra.mxu0 %v2202
  %2246 = vmatprep.subr.mxu0 0.0
  %2247 = vmatpush1.msra.mxu0 %v2203
  %2248 = vmatprep.subr.mxu0 0.0
  %2249 = vmatpush1.msra.mxu0 %v2204
  %2250 = vmatprep.subr.mxu0 0.0
  %2251 = vmatpush1.msra.mxu0 %v2205
  %2252 = vmatprep.subr.mxu0 0.0
  %2253 = vmatpush1.msra.mxu0 %v2206
  %2254 = vmatprep.subr.mxu0 0.0
  %2255 = vmatpush1.msra.mxu0 %v2207
  %2256 = vmatprep.subr.mxu0 0.0
  %2257 = vmatpush1.msra.mxu0 %v2208
  %2258 = vmatprep.subr.mxu0 0.0
  %2259 = vmatpush1.msra.mxu0 %v2209
  %2260 = vmatprep.subr.mxu0 0.0
  %2261 = vmatpush1.msra.mxu0 %v2210
  %2262 = vmatprep.subr.mxu0 0.0
  %2263 = vmatpush1.msra.mxu0 %v2211
  %2264 = vmatprep.subr.mxu0 0.0
  %2265 = vmatpush1.msra.mxu0 %v2212
  %2266 = vmatprep.subr.mxu0 0.0
  %2267 = vmatpush1.msra.mxu0 %v2213
  %2268 = vmatprep.subr.mxu0 0.0
  %2269 = vmatpush1.msra.mxu0 %v2214
  %2270 = vmatprep.subr.mxu0 0.0
  %2271 = vmatpush1.msra.mxu0 %v2215
  %2272 = vmatprep.subr.mxu0 0.0
  %2273 = vmatpush1.msra.mxu0 %v2216
  %2274 = vmatprep.subr.mxu0 0.0
  %2275 = vmatpush1.msra.mxu0 %v2217
  %2276 = vmatprep.subr.mxu0 0.0
  %2277 = vmatpush1.msra.mxu0 %v2218
  %2278 = vmatprep.subr.mxu0 0.0
  %2279 = vmatpush1.msra.mxu0 %v2219
  %2280 = vmatprep.subr.mxu0 0.0
  %2281 = vmatpush1.msra.mxu0 %v2220
  %2282 = vmatprep.subr.mxu0 0.0
  %2283 = vmatpush1.msra.mxu0 %v2221
  %2284 = vmatprep.subr.mxu0 0.0
  %2285 = vmatpush1.msra.mxu0 %v2222
  %2286 = vmatprep.subr.mxu0 0.0
  %2287 = vmatpush1.msra.mxu0 %v2223
  %2288 = vmatprep.mubr.f32.mxu0 %v580
  %2289 = vmatmul.mubr.f32.gmra.mrb[0].mxu0 %v579
  %v2290 = vpop.f32.mrb[0].mxu0
  %v2291 = vadd.f32 0.0, %v2290
  %v2292 = vpop.f32.mrb[0].mxu0
  %2293 = vdwg.mxu0
  %v2294 = vadd.f32 %v2188, %v2291
  %s2295 = scalar_lea.vmem %s3, 768
  %v2296 = vld [vmem:[%s2295] sm:$0xff]
  %v2297 = vld [vmem:[%s2295 + $0x8] sm:$0xff]
  %v2298 = vld [vmem:[%s2295 + $0x10] sm:$0xff]
  %v2299 = vld [vmem:[%s2295 + $0x18] sm:$0xff]
  %v2300 = vld [vmem:[%s2295 + $0x20] sm:$0xff]
  %v2301 = vld [vmem:[%s2295 + $0x28] sm:$0xff]
  %v2302 = vld [vmem:[%s2295 + $0x30] sm:$0xff]
  %v2303 = vld [vmem:[%s2295 + $0x38] sm:$0xff]
  %v2304 = vld [vmem:[%s2295 + $0x40] sm:$0xff]
  %v2305 = vld [vmem:[%s2295 + $0x48] sm:$0xff]
  %v2306 = vld [vmem:[%s2295 + $0x50] sm:$0xff]
  %v2307 = vld [vmem:[%s2295 + $0x58] sm:$0xff]
  %v2308 = vld [vmem:[%s2295 + $0x60] sm:$0xff]
  %v2309 = vld [vmem:[%s2295 + $0x68] sm:$0xff]
  %v2310 = vld [vmem:[%s2295 + $0x70] sm:$0xff]
  %v2311 = vld [vmem:[%s2295 + $0x78] sm:$0xff]
  %v2312 = vld [vmem:[%s2295 + $0x80] sm:$0xff]
  %v2313 = vld [vmem:[%s2295 + $0x88] sm:$0xff]
  %v2314 = vld [vmem:[%s2295 + $0x90] sm:$0xff]
  %v2315 = vld [vmem:[%s2295 + $0x98] sm:$0xff]
  %v2316 = vld [vmem:[%s2295 + $0xa0] sm:$0xff]
  %v2317 = vld [vmem:[%s2295 + $0xa8] sm:$0xff]
  %v2318 = vld [vmem:[%s2295 + $0xb0] sm:$0xff]
  %v2319 = vld [vmem:[%s2295 + $0xb8] sm:$0xff]
  %v2320 = vld [vmem:[%s2295 + $0xc0] sm:$0xff]
  %v2321 = vld [vmem:[%s2295 + $0xc8] sm:$0xff]
  %v2322 = vld [vmem:[%s2295 + $0xd0] sm:$0xff]
  %v2323 = vld [vmem:[%s2295 + $0xd8] sm:$0xff]
  %v2324 = vld [vmem:[%s2295 + $0xe0] sm:$0xff]
  %v2325 = vld [vmem:[%s2295 + $0xe8] sm:$0xff]
  %v2326 = vld [vmem:[%s2295 + $0xf0] sm:$0xff]
  %v2327 = vld [vmem:[%s2295 + $0xf8] sm:$0xff]
  %2328 = vmatprep.subr.mxu0 0.0
  %2329 = vmatpush1.msra.mxu0 %v2296
  %2330 = vmatprep.subr.mxu0 0.0
  %2331 = vmatpush1.msra.mxu0 %v2297
  %2332 = vmatprep.subr.mxu0 0.0
  %2333 = vmatpush1.msra.mxu0 %v2298
  %2334 = vmatprep.subr.mxu0 0.0
  %2335 = vmatpush1.msra.mxu0 %v2299
  %2336 = vmatprep.subr.mxu0 0.0
  %2337 = vmatpush1.msra.mxu0 %v2300
  %2338 = vmatprep.subr.mxu0 0.0
  %2339 = vmatpush1.msra.mxu0 %v2301
  %2340 = vmatprep.subr.mxu0 0.0
  %2341 = vmatpush1.msra.mxu0 %v2302
  %2342 = vmatprep.subr.mxu0 0.0
  %2343 = vmatpush1.msra.mxu0 %v2303
  %2344 = vmatprep.subr.mxu0 0.0
  %2345 = vmatpush1.msra.mxu0 %v2304
  %2346 = vmatprep.subr.mxu0 0.0
  %2347 = vmatpush1.msra.mxu0 %v2305
  %2348 = vmatprep.subr.mxu0 0.0
  %2349 = vmatpush1.msra.mxu0 %v2306
  %2350 = vmatprep.subr.mxu0 0.0
  %2351 = vmatpush1.msra.mxu0 %v2307
  %2352 = vmatprep.subr.mxu0 0.0
  %2353 = vmatpush1.msra.mxu0 %v2308
  %2354 = vmatprep.subr.mxu0 0.0
  %2355 = vmatpush1.msra.mxu0 %v2309
  %2356 = vmatprep.subr.mxu0 0.0
  %2357 = vmatpush1.msra.mxu0 %v2310
  %2358 = vmatprep.subr.mxu0 0.0
  %2359 = vmatpush1.msra.mxu0 %v2311
  %2360 = vmatprep.subr.mxu0 0.0
  %2361 = vmatpush1.msra.mxu0 %v2312
  %2362 = vmatprep.subr.mxu0 0.0
  %2363 = vmatpush1.msra.mxu0 %v2313
  %2364 = vmatprep.subr.mxu0 0.0
  %2365 = vmatpush1.msra.mxu0 %v2314
  %2366 = vmatprep.subr.mxu0 0.0
  %2367 = vmatpush1.msra.mxu0 %v2315
  %2368 = vmatprep.subr.mxu0 0.0
  %2369 = vmatpush1.msra.mxu0 %v2316
  %2370 = vmatprep.subr.mxu0 0.0
  %2371 = vmatpush1.msra.mxu0 %v2317
  %2372 = vmatprep.subr.mxu0 0.0
  %2373 = vmatpush1.msra.mxu0 %v2318
  %2374 = vmatprep.subr.mxu0 0.0
  %2375 = vmatpush1.msra.mxu0 %v2319
  %2376 = vmatprep.subr.mxu0 0.0
  %2377 = vmatpush1.msra.mxu0 %v2320
  %2378 = vmatprep.subr.mxu0 0.0
  %2379 = vmatpush1.msra.mxu0 %v2321
  %2380 = vmatprep.subr.mxu0 0.0
  %2381 = vmatpush1.msra.mxu0 %v2322
  %2382 = vmatprep.subr.mxu0 0.0
  %2383 = vmatpush1.msra.mxu0 %v2323
  %2384 = vmatprep.subr.mxu0 0.0
  %2385 = vmatpush1.msra.mxu0 %v2324
  %2386 = vmatprep.subr.mxu0 0.0
  %2387 = vmatpush1.msra.mxu0 %v2325
  %2388 = vmatprep.subr.mxu0 0.0
  %2389 = vmatpush1.msra.mxu0 %v2326
  %2390 = vmatprep.subr.mxu0 0.0
  %2391 = vmatpush1.msra.mxu0 %v2327
  %2392 = vmatprep.mubr.f32.mxu0 %v736
  %2393 = vmatmul.mubr.f32.gmra.mrb[0].mxu0 %v735
  %v2394 = vpop.f32.mrb[0].mxu0
  %v2395 = vadd.f32 0.0, %v2394
  %v2396 = vpop.f32.mrb[0].mxu0
  %2397 = vdwg.mxu0
  %v2398 = vadd.f32 %v2294, %v2395
  %s2399 = scalar_lea.vmem %s3, 1024
  %v2400 = vld [vmem:[%s2399] sm:$0xff]
  %v2401 = vld [vmem:[%s2399 + $0x8] sm:$0xff]
  %v2402 = vld [vmem:[%s2399 + $0x10] sm:$0xff]
  %v2403 = vld [vmem:[%s2399 + $0x18] sm:$0xff]
  %v2404 = vld [vmem:[%s2399 + $0x20] sm:$0xff]
  %v2405 = vld [vmem:[%s2399 + $0x28] sm:$0xff]
  %v2406 = vld [vmem:[%s2399 + $0x30] sm:$0xff]
  %v2407 = vld [vmem:[%s2399 + $0x38] sm:$0xff]
  %v2408 = vld [vmem:[%s2399 + $0x40] sm:$0xff]
  %v2409 = vld [vmem:[%s2399 + $0x48] sm:$0xff]
  %v2410 = vld [vmem:[%s2399 + $0x50] sm:$0xff]
  %v2411 = vld [vmem:[%s2399 + $0x58] sm:$0xff]
  %v2412 = vld [vmem:[%s2399 + $0x60] sm:$0xff]
  %v2413 = vld [vmem:[%s2399 + $0x68] sm:$0xff]
  %v2414 = vld [vmem:[%s2399 + $0x70] sm:$0xff]
  %v2415 = vld [vmem:[%s2399 + $0x78] sm:$0xff]
  %v2416 = vld [vmem:[%s2399 + $0x80] sm:$0xff]
  %v2417 = vld [vmem:[%s2399 + $0x88] sm:$0xff]
  %v2418 = vld [vmem:[%s2399 + $0x90] sm:$0xff]
  %v2419 = vld [vmem:[%s2399 + $0x98] sm:$0xff]
  %v2420 = vld [vmem:[%s2399 + $0xa0] sm:$0xff]
  %v2421 = vld [vmem:[%s2399 + $0xa8] sm:$0xff]
  %v2422 = vld [vmem:[%s2399 + $0xb0] sm:$0xff]
  %v2423 = vld [vmem:[%s2399 + $0xb8] sm:$0xff]
  %v2424 = vld [vmem:[%s2399 + $0xc0] sm:$0xff]
  %v2425 = vld [vmem:[%s2399 + $0xc8] sm:$0xff]
  %v2426 = vld [vmem:[%s2399 + $0xd0] sm:$0xff]
  %v2427 = vld [vmem:[%s2399 + $0xd8] sm:$0xff]
  %v2428 = vld [vmem:[%s2399 + $0xe0] sm:$0xff]
  %v2429 = vld [vmem:[%s2399 + $0xe8] sm:$0xff]
  %v2430 = vld [vmem:[%s2399 + $0xf0] sm:$0xff]
  %v2431 = vld [vmem:[%s2399 + $0xf8] sm:$0xff]
  %2432 = vmatprep.subr.mxu0 0.0
  %2433 = vmatpush1.msra.mxu0 %v2400
  %2434 = vmatprep.subr.mxu0 0.0
  %2435 = vmatpush1.msra.mxu0 %v2401
  %2436 = vmatprep.subr.mxu0 0.0
  %2437 = vmatpush1.msra.mxu0 %v2402
  %2438 = vmatprep.subr.mxu0 0.0
  %2439 = vmatpush1.msra.mxu0 %v2403
  %2440 = vmatprep.subr.mxu0 0.0
  %2441 = vmatpush1.msra.mxu0 %v2404
  %2442 = vmatprep.subr.mxu0 0.0
  %2443 = vmatpush1.msra.mxu0 %v2405
  %2444 = vmatprep.subr.mxu0 0.0
  %2445 = vmatpush1.msra.mxu0 %v2406
  %2446 = vmatprep.subr.mxu0 0.0
  %2447 = vmatpush1.msra.mxu0 %v2407
  %2448 = vmatprep.subr.mxu0 0.0
  %2449 = vmatpush1.msra.mxu0 %v2408
  %2450 = vmatprep.subr.mxu0 0.0
  %2451 = vmatpush1.msra.mxu0 %v2409
  %2452 = vmatprep.subr.mxu0 0.0
  %2453 = vmatpush1.msra.mxu0 %v2410
  %2454 = vmatprep.subr.mxu0 0.0
  %2455 = vmatpush1.msra.mxu0 %v2411
  %2456 = vmatprep.subr.mxu0 0.0
  %2457 = vmatpush1.msra.mxu0 %v2412
  %2458 = vmatprep.subr.mxu0 0.0
  %2459 = vmatpush1.msra.mxu0 %v2413
  %2460 = vmatprep.subr.mxu0 0.0
  %2461 = vmatpush1.msra.mxu0 %v2414
  %2462 = vmatprep.subr.mxu0 0.0
  %2463 = vmatpush1.msra.mxu0 %v2415
  %2464 = vmatprep.subr.mxu0 0.0
  %2465 = vmatpush1.msra.mxu0 %v2416
  %2466 = vmatprep.subr.mxu0 0.0
  %2467 = vmatpush1.msra.mxu0 %v2417
  %2468 = vmatprep.subr.mxu0 0.0
  %2469 = vmatpush1.msra.mxu0 %v2418
  %2470 = vmatprep.subr.mxu0 0.0
  %2471 = vmatpush1.msra.mxu0 %v2419
  %2472 = vmatprep.subr.mxu0 0.0
  %2473 = vmatpush1.msra.mxu0 %v2420
  %2474 = vmatprep.subr.mxu0 0.0
  %2475 = vmatpush1.msra.mxu0 %v2421
  %2476 = vmatprep.subr.mxu0 0.0
  %2477 = vmatpush1.msra.mxu0 %v2422
  %2478 = vmatprep.subr.mxu0 0.0
  %2479 = vmatpush1.msra.mxu0 %v2423
  %2480 = vmatprep.subr.mxu0 0.0
  %2481 = vmatpush1.msra.mxu0 %v2424
  %2482 = vmatprep.subr.mxu0 0.0
  %2483 = vmatpush1.msra.mxu0 %v2425
  %2484 = vmatprep.subr.mxu0 0.0
  %2485 = vmatpush1.msra.mxu0 %v2426
  %2486 = vmatprep.subr.mxu0 0.0
  %2487 = vmatpush1.msra.mxu0 %v2427
  %2488 = vmatprep.subr.mxu0 0.0
  %2489 = vmatpush1.msra.mxu0 %v2428
  %2490 = vmatprep.subr.mxu0 0.0
  %2491 = vmatpush1.msra.mxu0 %v2429
  %2492 = vmatprep.subr.mxu0 0.0
  %2493 = vmatpush1.msra.mxu0 %v2430
  %2494 = vmatprep.subr.mxu0 0.0
  %2495 = vmatpush1.msra.mxu0 %v2431
  %2496 = vmatprep.mubr.f32.mxu0 %v892
  %2497 = vmatmul.mubr.f32.gmra.mrb[0].mxu0 %v891
  %v2498 = vpop.f32.mrb[0].mxu0
  %v2499 = vadd.f32 0.0, %v2498
  %v2500 = vpop.f32.mrb[0].mxu0
  %2501 = vdwg.mxu0
  %v2502 = vadd.f32 %v2398, %v2499
  %v2504 = vlaneseq
  %v2505 = vshrl.u32 %v2504, 7
  %v2506 = vsub.s32 0, %v2505
  %v2507 = vrot.slane %v1985, %v2506
  %v2509 = vadd.f32 %v2502, %v2507
  %v2510 = vtanh.pop %v2509
  %2511 = vmatprep.subr.mxu0 0.0
  %2512 = vmatpush1.msra.mxu0 %v2019
  %2513 = vmatprep.subr.mxu0 0.0
  %2514 = vmatpush1.msra.mxu0 %v2020
  %2515 = vmatprep.subr.mxu0 0.0
  %2516 = vmatpush1.msra.mxu0 %v2021
  %2517 = vmatprep.subr.mxu0 0.0
  %2518 = vmatpush1.msra.mxu0 %v2022
  %2519 = vmatprep.subr.mxu0 0.0
  %2520 = vmatpush1.msra.mxu0 %v2023
  %2521 = vmatprep.subr.mxu0 0.0
  %2522 = vmatpush1.msra.mxu0 %v2024
  %2523 = vmatprep.subr.mxu0 0.0
  %2524 = vmatpush1.msra.mxu0 %v2025
  %2525 = vmatprep.subr.mxu0 0.0
  %2526 = vmatpush1.msra.mxu0 %v2026
  %2527 = vmatprep.subr.mxu0 0.0
  %2528 = vmatpush1.msra.mxu0 %v2027
  %2529 = vmatprep.subr.mxu0 0.0
  %2530 = vmatpush1.msra.mxu0 %v2028
  %2531 = vmatprep.subr.mxu0 0.0
  %2532 = vmatpush1.msra.mxu0 %v2029
  %2533 = vmatprep.subr.mxu0 0.0
  %2534 = vmatpush1.msra.mxu0 %v2030
  %2535 = vmatprep.subr.mxu0 0.0
  %2536 = vmatpush1.msra.mxu0 %v2031
  %2537 = vmatprep.subr.mxu0 0.0
  %2538 = vmatpush1.msra.mxu0 %v2032
  %2539 = vmatprep.subr.mxu0 0.0
  %2540 = vmatpush1.msra.mxu0 %v2033
  %2541 = vmatprep.subr.mxu0 0.0
  %2542 = vmatpush1.msra.mxu0 %v2034
  %2543 = vmatprep.subr.mxu0 0.0
  %2544 = vmatpush1.msra.mxu0 %v2035
  %2545 = vmatprep.subr.mxu0 0.0
  %2546 = vmatpush1.msra.mxu0 %v2036
  %2547 = vmatprep.subr.mxu0 0.0
  %2548 = vmatpush1.msra.mxu0 %v2037
  %2549 = vmatprep.subr.mxu0 0.0
  %2550 = vmatpush1.msra.mxu0 %v2038
  %2551 = vmatprep.subr.mxu0 0.0
  %2552 = vmatpush1.msra.mxu0 %v2039
  %2553 = vmatprep.subr.mxu0 0.0
  %2554 = vmatpush1.msra.mxu0 %v2040
  %2555 = vmatprep.subr.mxu0 0.0
  %2556 = vmatpush1.msra.mxu0 %v2041
  %2557 = vmatprep.subr.mxu0 0.0
  %2558 = vmatpush1.msra.mxu0 %v2042
  %2559 = vmatprep.subr.mxu0 0.0
  %2560 = vmatpush1.msra.mxu0 %v2043
  %2561 = vmatprep.subr.mxu0 0.0
  %2562 = vmatpush1.msra.mxu0 %v2044
  %2563 = vmatprep.subr.mxu0 0.0
  %2564 = vmatpush1.msra.mxu0 %v2045
  %2565 = vmatprep.subr.mxu0 0.0
  %2566 = vmatpush1.msra.mxu0 %v2046
  %2567 = vmatprep.subr.mxu0 0.0
  %2568 = vmatpush1.msra.mxu0 %v2047
  %2569 = vmatprep.subr.mxu0 0.0
  %2570 = vmatpush1.msra.mxu0 %v2048
  %2571 = vmatprep.subr.mxu0 0.0
  %2572 = vmatpush1.msra.mxu0 %v2049
  %2573 = vmatprep.subr.mxu0 0.0
  %2574 = vmatpush1.msra.mxu0 %v2050
  %2575 = vmatprep.mubr.f32.mxu0 %v580
  %2576 = vmatmul.mubr.f32.gmra.mrb[0].mxu0 %v579
  %v2577 = vpop.f32.mrb[0].mxu0
  %v2578 = vadd.f32 0.0, %v2577
  %v2579 = vpop.f32.mrb[0].mxu0
  %2580 = vdwg.mxu0
  %2581 = vmatprep.subr.mxu0 0.0
  %2582 = vmatpush1.msra.mxu0 %v1986
  %2583 = vmatprep.subr.mxu0 0.0
  %2584 = vmatpush1.msra.mxu0 %v1987
  %2585 = vmatprep.subr.mxu0 0.0
  %2586 = vmatpush1.msra.mxu0 %v1988
  %2587 = vmatprep.subr.mxu0 0.0
  %2588 = vmatpush1.msra.mxu0 %v1989
  %2589 = vmatprep.subr.mxu0 0.0
  %2590 = vmatpush1.msra.mxu0 %v1990
  %2591 = vmatprep.subr.mxu0 0.0
  %2592 = vmatpush1.msra.mxu0 %v1991
  %2593 = vmatprep.subr.mxu0 0.0
  %2594 = vmatpush1.msra.mxu0 %v1992
  %2595 = vmatprep.subr.mxu0 0.0
  %2596 = vmatpush1.msra.mxu0 %v1993
  %2597 = vmatprep.subr.mxu0 0.0
  %2598 = vmatpush1.msra.mxu0 %v1994
  %2599 = vmatprep.subr.mxu0 0.0
  %2600 = vmatpush1.msra.mxu0 %v1995
  %2601 = vmatprep.subr.mxu0 0.0
  %2602 = vmatpush1.msra.mxu0 %v1996
  %2603 = vmatprep.subr.mxu0 0.0
  %2604 = vmatpush1.msra.mxu0 %v1997
  %2605 = vmatprep.subr.mxu0 0.0
  %2606 = vmatpush1.msra.mxu0 %v1998
  %2607 = vmatprep.subr.mxu0 0.0
  %2608 = vmatpush1.msra.mxu0 %v1999
  %2609 = vmatprep.subr.mxu0 0.0
  %2610 = vmatpush1.msra.mxu0 %v2000
  %2611 = vmatprep.subr.mxu0 0.0
  %2612 = vmatpush1.msra.mxu0 %v2001
  %2613 = vmatprep.subr.mxu0 0.0
  %2614 = vmatpush1.msra.mxu0 %v2002
  %2615 = vmatprep.subr.mxu0 0.0
  %2616 = vmatpush1.msra.mxu0 %v2003
  %2617 = vmatprep.subr.mxu0 0.0
  %2618 = vmatpush1.msra.mxu0 %v2004
  %2619 = vmatprep.subr.mxu0 0.0
  %2620 = vmatpush1.msra.mxu0 %v2005
  %2621 = vmatprep.subr.mxu0 0.0
  %2622 = vmatpush1.msra.mxu0 %v2006
  %2623 = vmatprep.subr.mxu0 0.0
  %2624 = vmatpush1.msra.mxu0 %v2007
  %2625 = vmatprep.subr.mxu0 0.0
  %2626 = vmatpush1.msra.mxu0 %v2008
  %2627 = vmatprep.subr.mxu0 0.0
  %2628 = vmatpush1.msra.mxu0 %v2009
  %2629 = vmatprep.subr.mxu0 0.0
  %2630 = vmatpush1.msra.mxu0 %v2010
  %2631 = vmatprep.subr.mxu0 0.0
  %2632 = vmatpush1.msra.mxu0 %v2011
  %2633 = vmatprep.subr.mxu0 0.0
  %2634 = vmatpush1.msra.mxu0 %v2012
  %2635 = vmatprep.subr.mxu0 0.0
  %2636 = vmatpush1.msra.mxu0 %v2013
  %2637 = vmatprep.subr.mxu0 0.0
  %2638 = vmatpush1.msra.mxu0 %v2014
  %2639 = vmatprep.subr.mxu0 0.0
  %2640 = vmatpush1.msra.mxu0 %v2015
  %2641 = vmatprep.subr.mxu0 0.0
  %2642 = vmatpush1.msra.mxu0 %v2016
  %2643 = vmatprep.subr.mxu0 0.0
  %2644 = vmatpush1.msra.mxu0 %v2017
  %2645 = vmatprep.mubr.f32.mxu0 %v424
  %2646 = vmatmul.mubr.f32.gmra.mrb[0].mxu0 %v423
  %v2647 = vpop.f32.mrb[0].mxu0
  %v2648 = vadd.f32 %v2578, %v2647
  %v2649 = vpop.f32.mrb[0].mxu0
  %2650 = vdwg.mxu0
  %2651 = vmatprep.subr.mxu0 0.0
  %2652 = vmatpush1.msra.mxu0 %v2192
  %2653 = vmatprep.subr.mxu0 0.0
  %2654 = vmatpush1.msra.mxu0 %v2193
  %2655 = vmatprep.subr.mxu0 0.0
  %2656 = vmatpush1.msra.mxu0 %v2194
  %2657 = vmatprep.subr.mxu0 0.0
  %2658 = vmatpush1.msra.mxu0 %v2195
  %2659 = vmatprep.subr.mxu0 0.0
  %2660 = vmatpush1.msra.mxu0 %v2196
  %2661 = vmatprep.subr.mxu0 0.0
  %2662 = vmatpush1.msra.mxu0 %v2197
  %2663 = vmatprep.subr.mxu0 0.0
  %2664 = vmatpush1.msra.mxu0 %v2198
  %2665 = vmatprep.subr.mxu0 0.0
  %2666 = vmatpush1.msra.mxu0 %v2199
  %2667 = vmatprep.subr.mxu0 0.0
  %2668 = vmatpush1.msra.mxu0 %v2200
  %2669 = vmatprep.subr.mxu0 0.0
  %2670 = vmatpush1.msra.mxu0 %v2201
  %2671 = vmatprep.subr.mxu0 0.0
  %2672 = vmatpush1.msra.mxu0 %v2202
  %2673 = vmatprep.subr.mxu0 0.0
  %2674 = vmatpush1.msra.mxu0 %v2203
  %2675 = vmatprep.subr.mxu0 0.0
  %2676 = vmatpush1.msra.mxu0 %v2204
  %2677 = vmatprep.subr.mxu0 0.0
  %2678 = vmatpush1.msra.mxu0 %v2205
  %2679 = vmatprep.subr.mxu0 0.0
  %2680 = vmatpush1.msra.mxu0 %v2206
  %2681 = vmatprep.subr.mxu0 0.0
  %2682 = vmatpush1.msra.mxu0 %v2207
  %2683 = vmatprep.subr.mxu0 0.0
  %2684 = vmatpush1.msra.mxu0 %v2208
  %2685 = vmatprep.subr.mxu0 0.0
  %2686 = vmatpush1.msra.mxu0 %v2209
  %2687 = vmatprep.subr.mxu0 0.0
  %2688 = vmatpush1.msra.mxu0 %v2210
  %2689 = vmatprep.subr.mxu0 0.0
  %2690 = vmatpush1.msra.mxu0 %v2211
  %2691 = vmatprep.subr.mxu0 0.0
  %2692 = vmatpush1.msra.mxu0 %v2212
  %2693 = vmatprep.subr.mxu0 0.0
  %2694 = vmatpush1.msra.mxu0 %v2213
  %2695 = vmatprep.subr.mxu0 0.0
  %2696 = vmatpush1.msra.mxu0 %v2214
  %2697 = vmatprep.subr.mxu0 0.0
  %2698 = vmatpush1.msra.mxu0 %v2215
  %2699 = vmatprep.subr.mxu0 0.0
  %2700 = vmatpush1.msra.mxu0 %v2216
  %2701 = vmatprep.subr.mxu0 0.0
  %2702 = vmatpush1.msra.mxu0 %v2217
  %2703 = vmatprep.subr.mxu0 0.0
  %2704 = vmatpush1.msra.mxu0 %v2218
  %2705 = vmatprep.subr.mxu0 0.0
  %2706 = vmatpush1.msra.mxu0 %v2219
  %2707 = vmatprep.subr.mxu0 0.0
  %2708 = vmatpush1.msra.mxu0 %v2220
  %2709 = vmatprep.subr.mxu0 0.0
  %2710 = vmatpush1.msra.mxu0 %v2221
  %2711 = vmatprep.subr.mxu0 0.0
  %2712 = vmatpush1.msra.mxu0 %v2222
  %2713 = vmatprep.subr.mxu0 0.0
  %2714 = vmatpush1.msra.mxu0 %v2223
  %2715 = vmatprep.mubr.f32.mxu0 %v736
  %2716 = vmatmul.mubr.f32.gmra.mrb[0].mxu0 %v735
  %v2717 = vpop.f32.mrb[0].mxu0
  %v2718 = vadd.f32 0.0, %v2717
  %v2719 = vpop.f32.mrb[0].mxu0
  %2720 = vdwg.mxu0
  %v2721 = vadd.f32 %v2648, %v2718
  %2722 = vmatprep.subr.mxu0 0.0
  %2723 = vmatpush1.msra.mxu0 %v2296
  %2724 = vmatprep.subr.mxu0 0.0
  %2725 = vmatpush1.msra.mxu0 %v2297
  %2726 = vmatprep.subr.mxu0 0.0
  %2727 = vmatpush1.msra.mxu0 %v2298
  %2728 = vmatprep.subr.mxu0 0.0
  %2729 = vmatpush1.msra.mxu0 %v2299
  %2730 = vmatprep.subr.mxu0 0.0
  %2731 = vmatpush1.msra.mxu0 %v2300
  %2732 = vmatprep.subr.mxu0 0.0
  %2733 = vmatpush1.msra.mxu0 %v2301
  %2734 = vmatprep.subr.mxu0 0.0
  %2735 = vmatpush1.msra.mxu0 %v2302
  %2736 = vmatprep.subr.mxu0 0.0
  %2737 = vmatpush1.msra.mxu0 %v2303
  %2738 = vmatprep.subr.mxu0 0.0
  %2739 = vmatpush1.msra.mxu0 %v2304
  %2740 = vmatprep.subr.mxu0 0.0
  %2741 = vmatpush1.msra.mxu0 %v2305
  %2742 = vmatprep.subr.mxu0 0.0
  %2743 = vmatpush1.msra.mxu0 %v2306
  %2744 = vmatprep.subr.mxu0 0.0
  %2745 = vmatpush1.msra.mxu0 %v2307
  %2746 = vmatprep.subr.mxu0 0.0
  %2747 = vmatpush1.msra.mxu0 %v2308
  %2748 = vmatprep.subr.mxu0 0.0
  %2749 = vmatpush1.msra.mxu0 %v2309
  %2750 = vmatprep.subr.mxu0 0.0
  %2751 = vmatpush1.msra.mxu0 %v2310
  %2752 = vmatprep.subr.mxu0 0.0
  %2753 = vmatpush1.msra.mxu0 %v2311
  %2754 = vmatprep.subr.mxu0 0.0
  %2755 = vmatpush1.msra.mxu0 %v2312
  %2756 = vmatprep.subr.mxu0 0.0
  %2757 = vmatpush1.msra.mxu0 %v2313
  %2758 = vmatprep.subr.mxu0 0.0
  %2759 = vmatpush1.msra.mxu0 %v2314
  %2760 = vmatprep.subr.mxu0 0.0
  %2761 = vmatpush1.msra.mxu0 %v2315
  %2762 = vmatprep.subr.mxu0 0.0
  %2763 = vmatpush1.msra.mxu0 %v2316
  %2764 = vmatprep.subr.mxu0 0.0
  %2765 = vmatpush1.msra.mxu0 %v2317
  %2766 = vmatprep.subr.mxu0 0.0
  %2767 = vmatpush1.msra.mxu0 %v2318
  %2768 = vmatprep.subr.mxu0 0.0
  %2769 = vmatpush1.msra.mxu0 %v2319
  %2770 = vmatprep.subr.mxu0 0.0
  %2771 = vmatpush1.msra.mxu0 %v2320
  %2772 = vmatprep.subr.mxu0 0.0
  %2773 = vmatpush1.msra.mxu0 %v2321
  %2774 = vmatprep.subr.mxu0 0.0
  %2775 = vmatpush1.msra.mxu0 %v2322
  %2776 = vmatprep.subr.mxu0 0.0
  %2777 = vmatpush1.msra.mxu0 %v2323
  %2778 = vmatprep.subr.mxu0 0.0
  %2779 = vmatpush1.msra.mxu0 %v2324
  %2780 = vmatprep.subr.mxu0 0.0
  %2781 = vmatpush1.msra.mxu0 %v2325
  %2782 = vmatprep.subr.mxu0 0.0
  %2783 = vmatpush1.msra.mxu0 %v2326
  %2784 = vmatprep.subr.mxu0 0.0
  %2785 = vmatpush1.msra.mxu0 %v2327
  %2786 = vmatprep.mubr.f32.mxu0 %v892
  %2787 = vmatmul.mubr.f32.gmra.mrb[0].mxu0 %v891
  %v2788 = vpop.f32.mrb[0].mxu0
  %v2789 = vadd.f32 0.0, %v2788
  %v2790 = vpop.f32.mrb[0].mxu0
  %2791 = vdwg.mxu0
  %v2792 = vadd.f32 %v2721, %v2789
  %2793 = vmatprep.subr.mxu0 0.0
  %2794 = vmatpush1.msra.mxu0 %v2400
  %2795 = vmatprep.subr.mxu0 0.0
  %2796 = vmatpush1.msra.mxu0 %v2401
  %2797 = vmatprep.subr.mxu0 0.0
  %2798 = vmatpush1.msra.mxu0 %v2402
  %2799 = vmatprep.subr.mxu0 0.0
  %2800 = vmatpush1.msra.mxu0 %v2403
  %2801 = vmatprep.subr.mxu0 0.0
  %2802 = vmatpush1.msra.mxu0 %v2404
  %2803 = vmatprep.subr.mxu0 0.0
  %2804 = vmatpush1.msra.mxu0 %v2405
  %2805 = vmatprep.subr.mxu0 0.0
  %2806 = vmatpush1.msra.mxu0 %v2406
  %2807 = vmatprep.subr.mxu0 0.0
  %2808 = vmatpush1.msra.mxu0 %v2407
  %2809 = vmatprep.subr.mxu0 0.0
  %2810 = vmatpush1.msra.mxu0 %v2408
  %2811 = vmatprep.subr.mxu0 0.0
  %2812 = vmatpush1.msra.mxu0 %v2409
  %2813 = vmatprep.subr.mxu0 0.0
  %2814 = vmatpush1.msra.mxu0 %v2410
  %2815 = vmatprep.subr.mxu0 0.0
  %2816 = vmatpush1.msra.mxu0 %v2411
  %2817 = vmatprep.subr.mxu0 0.0
  %2818 = vmatpush1.msra.mxu0 %v2412
  %2819 = vmatprep.subr.mxu0 0.0
  %2820 = vmatpush1.msra.mxu0 %v2413
  %2821 = vmatprep.subr.mxu0 0.0
  %2822 = vmatpush1.msra.mxu0 %v2414
  %2823 = vmatprep.subr.mxu0 0.0
  %2824 = vmatpush1.msra.mxu0 %v2415
  %2825 = vmatprep.subr.mxu0 0.0
  %2826 = vmatpush1.msra.mxu0 %v2416
  %2827 = vmatprep.subr.mxu0 0.0
  %2828 = vmatpush1.msra.mxu0 %v2417
  %2829 = vmatprep.subr.mxu0 0.0
  %2830 = vmatpush1.msra.mxu0 %v2418
  %2831 = vmatprep.subr.mxu0 0.0
  %2832 = vmatpush1.msra.mxu0 %v2419
  %2833 = vmatprep.subr.mxu0 0.0
  %2834 = vmatpush1.msra.mxu0 %v2420
  %2835 = vmatprep.subr.mxu0 0.0
  %2836 = vmatpush1.msra.mxu0 %v2421
  %2837 = vmatprep.subr.mxu0 0.0
  %2838 = vmatpush1.msra.mxu0 %v2422
  %2839 = vmatprep.subr.mxu0 0.0
  %2840 = vmatpush1.msra.mxu0 %v2423
  %2841 = vmatprep.subr.mxu0 0.0
  %2842 = vmatpush1.msra.mxu0 %v2424
  %2843 = vmatprep.subr.mxu0 0.0
  %2844 = vmatpush1.msra.mxu0 %v2425
  %2845 = vmatprep.subr.mxu0 0.0
  %2846 = vmatpush1.msra.mxu0 %v2426
  %2847 = vmatprep.subr.mxu0 0.0
  %2848 = vmatpush1.msra.mxu0 %v2427
  %2849 = vmatprep.subr.mxu0 0.0
  %2850 = vmatpush1.msra.mxu0 %v2428
  %2851 = vmatprep.subr.mxu0 0.0
  %2852 = vmatpush1.msra.mxu0 %v2429
  %2853 = vmatprep.subr.mxu0 0.0
  %2854 = vmatpush1.msra.mxu0 %v2430
  %2855 = vmatprep.subr.mxu0 0.0
  %2856 = vmatpush1.msra.mxu0 %v2431
  %2857 = vmatprep.mubr.f32.mxu0 %v1048
  %2858 = vmatmul.mubr.f32.gmra.mrb[0].mxu0 %v1047
  %v2859 = vpop.f32.mrb[0].mxu0
  %v2860 = vadd.f32 0.0, %v2859
  %v2861 = vpop.f32.mrb[0].mxu0
  %2862 = vdwg.mxu0
  %v2863 = vadd.f32 %v2792, %v2860
  %v2864 = vadd.f32 %v2863, %v2507
  %v2865 = vtanh.pop %v2864
  %v2866 = vadd.f32 %v2510, %v2865
  %v2867 = vmul.f32 %v2866, 0.5
  %2868 = vmatprep.subr.mxu0 0.0
  %2869 = vmatpush1.msra.mxu0 %v2019
  %2870 = vmatprep.subr.mxu0 0.0
  %2871 = vmatpush1.msra.mxu0 %v2020
  %2872 = vmatprep.subr.mxu0 0.0
  %2873 = vmatpush1.msra.mxu0 %v2021
  %2874 = vmatprep.subr.mxu0 0.0
  %2875 = vmatpush1.msra.mxu0 %v2022
  %2876 = vmatprep.subr.mxu0 0.0
  %2877 = vmatpush1.msra.mxu0 %v2023
  %2878 = vmatprep.subr.mxu0 0.0
  %2879 = vmatpush1.msra.mxu0 %v2024
  %2880 = vmatprep.subr.mxu0 0.0
  %2881 = vmatpush1.msra.mxu0 %v2025
  %2882 = vmatprep.subr.mxu0 0.0
  %2883 = vmatpush1.msra.mxu0 %v2026
  %2884 = vmatprep.subr.mxu0 0.0
  %2885 = vmatpush1.msra.mxu0 %v2027
  %2886 = vmatprep.subr.mxu0 0.0
  %2887 = vmatpush1.msra.mxu0 %v2028
  %2888 = vmatprep.subr.mxu0 0.0
  %2889 = vmatpush1.msra.mxu0 %v2029
  %2890 = vmatprep.subr.mxu0 0.0
  %2891 = vmatpush1.msra.mxu0 %v2030
  %2892 = vmatprep.subr.mxu0 0.0
  %2893 = vmatpush1.msra.mxu0 %v2031
  %2894 = vmatprep.subr.mxu0 0.0
  %2895 = vmatpush1.msra.mxu0 %v2032
  %2896 = vmatprep.subr.mxu0 0.0
  %2897 = vmatpush1.msra.mxu0 %v2033
  %2898 = vmatprep.subr.mxu0 0.0
  %2899 = vmatpush1.msra.mxu0 %v2034
  %2900 = vmatprep.subr.mxu0 0.0
  %2901 = vmatpush1.msra.mxu0 %v2035
  %2902 = vmatprep.subr.mxu0 0.0
  %2903 = vmatpush1.msra.mxu0 %v2036
  %2904 = vmatprep.subr.mxu0 0.0
  %2905 = vmatpush1.msra.mxu0 %v2037
  %2906 = vmatprep.subr.mxu0 0.0
  %2907 = vmatpush1.msra.mxu0 %v2038
  %2908 = vmatprep.subr.mxu0 0.0
  %2909 = vmatpush1.msra.mxu0 %v2039
  %2910 = vmatprep.subr.mxu0 0.0
  %2911 = vmatpush1.msra.mxu0 %v2040
  %2912 = vmatprep.subr.mxu0 0.0
  %2913 = vmatpush1.msra.mxu0 %v2041
  %2914 = vmatprep.subr.mxu0 0.0
  %2915 = vmatpush1.msra.mxu0 %v2042
  %2916 = vmatprep.subr.mxu0 0.0
  %2917 = vmatpush1.msra.mxu0 %v2043
  %2918 = vmatprep.subr.mxu0 0.0
  %2919 = vmatpush1.msra.mxu0 %v2044
  %2920 = vmatprep.subr.mxu0 0.0
  %2921 = vmatpush1.msra.mxu0 %v2045
  %2922 = vmatprep.subr.mxu0 0.0
  %2923 = vmatpush1.msra.mxu0 %v2046
  %2924 = vmatprep.subr.mxu0 0.0
  %2925 = vmatpush1.msra.mxu0 %v2047
  %2926 = vmatprep.subr.mxu0 0.0
  %2927 = vmatpush1.msra.mxu0 %v2048
  %2928 = vmatprep.subr.mxu0 0.0
  %2929 = vmatpush1.msra.mxu0 %v2049
  %2930 = vmatprep.subr.mxu0 0.0
  %2931 = vmatpush1.msra.mxu0 %v2050
  %2932 = vmatprep.mubr.f32.mxu0 %v736
  %2933 = vmatmul.mubr.f32.gmra.mrb[0].mxu0 %v735
  %v2934 = vpop.f32.mrb[0].mxu0
  %v2935 = vadd.f32 0.0, %v2934
  %v2936 = vpop.f32.mrb[0].mxu0
  %2937 = vdwg.mxu0
  %2938 = vmatprep.subr.mxu0 0.0
  %2939 = vmatpush1.msra.mxu0 %v1986
  %2940 = vmatprep.subr.mxu0 0.0
  %2941 = vmatpush1.msra.mxu0 %v1987
  %2942 = vmatprep.subr.mxu0 0.0
  %2943 = vmatpush1.msra.mxu0 %v1988
  %2944 = vmatprep.subr.mxu0 0.0
  %2945 = vmatpush1.msra.mxu0 %v1989
  %2946 = vmatprep.subr.mxu0 0.0
  %2947 = vmatpush1.msra.mxu0 %v1990
  %2948 = vmatprep.subr.mxu0 0.0
  %2949 = vmatpush1.msra.mxu0 %v1991
  %2950 = vmatprep.subr.mxu0 0.0
  %2951 = vmatpush1.msra.mxu0 %v1992
  %2952 = vmatprep.subr.mxu0 0.0
  %2953 = vmatpush1.msra.mxu0 %v1993
  %2954 = vmatprep.subr.mxu0 0.0
  %2955 = vmatpush1.msra.mxu0 %v1994
  %2956 = vmatprep.subr.mxu0 0.0
  %2957 = vmatpush1.msra.mxu0 %v1995
  %2958 = vmatprep.subr.mxu0 0.0
  %2959 = vmatpush1.msra.mxu0 %v1996
  %2960 = vmatprep.subr.mxu0 0.0
  %2961 = vmatpush1.msra.mxu0 %v1997
  %2962 = vmatprep.subr.mxu0 0.0
  %2963 = vmatpush1.msra.mxu0 %v1998
  %2964 = vmatprep.subr.mxu0 0.0
  %2965 = vmatpush1.msra.mxu0 %v1999
  %2966 = vmatprep.subr.mxu0 0.0
  %2967 = vmatpush1.msra.mxu0 %v2000
  %2968 = vmatprep.subr.mxu0 0.0
  %2969 = vmatpush1.msra.mxu0 %v2001
  %2970 = vmatprep.subr.mxu0 0.0
  %2971 = vmatpush1.msra.mxu0 %v2002
  %2972 = vmatprep.subr.mxu0 0.0
  %2973 = vmatpush1.msra.mxu0 %v2003
  %2974 = vmatprep.subr.mxu0 0.0
  %2975 = vmatpush1.msra.mxu0 %v2004
  %2976 = vmatprep.subr.mxu0 0.0
  %2977 = vmatpush1.msra.mxu0 %v2005
  %2978 = vmatprep.subr.mxu0 0.0
  %2979 = vmatpush1.msra.mxu0 %v2006
  %2980 = vmatprep.subr.mxu0 0.0
  %2981 = vmatpush1.msra.mxu0 %v2007
  %2982 = vmatprep.subr.mxu0 0.0
  %2983 = vmatpush1.msra.mxu0 %v2008
  %2984 = vmatprep.subr.mxu0 0.0
  %2985 = vmatpush1.msra.mxu0 %v2009
  %2986 = vmatprep.subr.mxu0 0.0
  %2987 = vmatpush1.msra.mxu0 %v2010
  %2988 = vmatprep.subr.mxu0 0.0
  %2989 = vmatpush1.msra.mxu0 %v2011
  %2990 = vmatprep.subr.mxu0 0.0
  %2991 = vmatpush1.msra.mxu0 %v2012
  %2992 = vmatprep.subr.mxu0 0.0
  %2993 = vmatpush1.msra.mxu0 %v2013
  %2994 = vmatprep.subr.mxu0 0.0
  %2995 = vmatpush1.msra.mxu0 %v2014
  %2996 = vmatprep.subr.mxu0 0.0
  %2997 = vmatpush1.msra.mxu0 %v2015
  %2998 = vmatprep.subr.mxu0 0.0
  %2999 = vmatpush1.msra.mxu0 %v2016
  %3000 = vmatprep.subr.mxu0 0.0
  %3001 = vmatpush1.msra.mxu0 %v2017
  %3002 = vmatprep.mubr.f32.mxu0 %v580
  %3003 = vmatmul.mubr.f32.gmra.mrb[0].mxu0 %v579
  %v3004 = vpop.f32.mrb[0].mxu0
  %v3005 = vadd.f32 %v2935, %v3004
  %v3006 = vpop.f32.mrb[0].mxu0
  %3007 = vdwg.mxu0
  %3008 = vmatprep.subr.mxu0 0.0
  %3009 = vmatpush1.msra.mxu0 %v2192
  %3010 = vmatprep.subr.mxu0 0.0
  %3011 = vmatpush1.msra.mxu0 %v2193
  %3012 = vmatprep.subr.mxu0 0.0
  %3013 = vmatpush1.msra.mxu0 %v2194
  %3014 = vmatprep.subr.mxu0 0.0
  %3015 = vmatpush1.msra.mxu0 %v2195
  %3016 = vmatprep.subr.mxu0 0.0
  %3017 = vmatpush1.msra.mxu0 %v2196
  %3018 = vmatprep.subr.mxu0 0.0
  %3019 = vmatpush1.msra.mxu0 %v2197
  %3020 = vmatprep.subr.mxu0 0.0
  %3021 = vmatpush1.msra.mxu0 %v2198
  %3022 = vmatprep.subr.mxu0 0.0
  %3023 = vmatpush1.msra.mxu0 %v2199
  %3024 = vmatprep.subr.mxu0 0.0
  %3025 = vmatpush1.msra.mxu0 %v2200
  %3026 = vmatprep.subr.mxu0 0.0
  %3027 = vmatpush1.msra.mxu0 %v2201
  %3028 = vmatprep.subr.mxu0 0.0
  %3029 = vmatpush1.msra.mxu0 %v2202
  %3030 = vmatprep.subr.mxu0 0.0
  %3031 = vmatpush1.msra.mxu0 %v2203
  %3032 = vmatprep.subr.mxu0 0.0
  %3033 = vmatpush1.msra.mxu0 %v2204
  %3034 = vmatprep.subr.mxu0 0.0
  %3035 = vmatpush1.msra.mxu0 %v2205
  %3036 = vmatprep.subr.mxu0 0.0
  %3037 = vmatpush1.msra.mxu0 %v2206
  %3038 = vmatprep.subr.mxu0 0.0
  %3039 = vmatpush1.msra.mxu0 %v2207
  %3040 = vmatprep.subr.mxu0 0.0
  %3041 = vmatpush1.msra.mxu0 %v2208
  %3042 = vmatprep.subr.mxu0 0.0
  %3043 = vmatpush1.msra.mxu0 %v2209
  %3044 = vmatprep.subr.mxu0 0.0
  %3045 = vmatpush1.msra.mxu0 %v2210
  %3046 = vmatprep.subr.mxu0 0.0
  %3047 = vmatpush1.msra.mxu0 %v2211
  %3048 = vmatprep.subr.mxu0 0.0
  %3049 = vmatpush1.msra.mxu0 %v2212
  %3050 = vmatprep.subr.mxu0 0.0
  %3051 = vmatpush1.msra.mxu0 %v2213
  %3052 = vmatprep.subr.mxu0 0.0
  %3053 = vmatpush1.msra.mxu0 %v2214
  %3054 = vmatprep.subr.mxu0 0.0
  %3055 = vmatpush1.msra.mxu0 %v2215
  %3056 = vmatprep.subr.mxu0 0.0
  %3057 = vmatpush1.msra.mxu0 %v2216
  %3058 = vmatprep.subr.mxu0 0.0
  %3059 = vmatpush1.msra.mxu0 %v2217
  %3060 = vmatprep.subr.mxu0 0.0
  %3061 = vmatpush1.msra.mxu0 %v2218
  %3062 = vmatprep.subr.mxu0 0.0
  %3063 = vmatpush1.msra.mxu0 %v2219
  %3064 = vmatprep.subr.mxu0 0.0
  %3065 = vmatpush1.msra.mxu0 %v2220
  %3066 = vmatprep.subr.mxu0 0.0
  %3067 = vmatpush1.msra.mxu0 %v2221
  %3068 = vmatprep.subr.mxu0 0.0
  %3069 = vmatpush1.msra.mxu0 %v2222
  %3070 = vmatprep.subr.mxu0 0.0
  %3071 = vmatpush1.msra.mxu0 %v2223
  %3072 = vmatprep.mubr.f32.mxu0 %v892
  %3073 = vmatmul.mubr.f32.gmra.mrb[0].mxu0 %v891
  %v3074 = vpop.f32.mrb[0].mxu0
  %v3075 = vadd.f32 0.0, %v3074
  %v3076 = vpop.f32.mrb[0].mxu0
  %3077 = vdwg.mxu0
  %v3078 = vadd.f32 %v3005, %v3075
  %3079 = vmatprep.subr.mxu0 0.0
  %3080 = vmatpush1.msra.mxu0 %v2296
  %3081 = vmatprep.subr.mxu0 0.0
  %3082 = vmatpush1.msra.mxu0 %v2297
  %3083 = vmatprep.subr.mxu0 0.0
  %3084 = vmatpush1.msra.mxu0 %v2298
  %3085 = vmatprep.subr.mxu0 0.0
  %3086 = vmatpush1.msra.mxu0 %v2299
  %3087 = vmatprep.subr.mxu0 0.0
  %3088 = vmatpush1.msra.mxu0 %v2300
  %3089 = vmatprep.subr.mxu0 0.0
  %3090 = vmatpush1.msra.mxu0 %v2301
  %3091 = vmatprep.subr.mxu0 0.0
  %3092 = vmatpush1.msra.mxu0 %v2302
  %3093 = vmatprep.subr.mxu0 0.0
  %3094 = vmatpush1.msra.mxu0 %v2303
  %3095 = vmatprep.subr.mxu0 0.0
  %3096 = vmatpush1.msra.mxu0 %v2304
  %3097 = vmatprep.subr.mxu0 0.0
  %3098 = vmatpush1.msra.mxu0 %v2305
  %3099 = vmatprep.subr.mxu0 0.0
  %3100 = vmatpush1.msra.mxu0 %v2306
  %3101 = vmatprep.subr.mxu0 0.0
  %3102 = vmatpush1.msra.mxu0 %v2307
  %3103 = vmatprep.subr.mxu0 0.0
  %3104 = vmatpush1.msra.mxu0 %v2308
  %3105 = vmatprep.subr.mxu0 0.0
  %3106 = vmatpush1.msra.mxu0 %v2309
  %3107 = vmatprep.subr.mxu0 0.0
  %3108 = vmatpush1.msra.mxu0 %v2310
  %3109 = vmatprep.subr.mxu0 0.0
  %3110 = vmatpush1.msra.mxu0 %v2311
  %3111 = vmatprep.subr.mxu0 0.0
  %3112 = vmatpush1.msra.mxu0 %v2312
  %3113 = vmatprep.subr.mxu0 0.0
  %3114 = vmatpush1.msra.mxu0 %v2313
  %3115 = vmatprep.subr.mxu0 0.0
  %3116 = vmatpush1.msra.mxu0 %v2314
  %3117 = vmatprep.subr.mxu0 0.0
  %3118 = vmatpush1.msra.mxu0 %v2315
  %3119 = vmatprep.subr.mxu0 0.0
  %3120 = vmatpush1.msra.mxu0 %v2316
  %3121 = vmatprep.subr.mxu0 0.0
  %3122 = vmatpush1.msra.mxu0 %v2317
  %3123 = vmatprep.subr.mxu0 0.0
  %3124 = vmatpush1.msra.mxu0 %v2318
  %3125 = vmatprep.subr.mxu0 0.0
  %3126 = vmatpush1.msra.mxu0 %v2319
  %3127 = vmatprep.subr.mxu0 0.0
  %3128 = vmatpush1.msra.mxu0 %v2320
  %3129 = vmatprep.subr.mxu0 0.0
  %3130 = vmatpush1.msra.mxu0 %v2321
  %3131 = vmatprep.subr.mxu0 0.0
  %3132 = vmatpush1.msra.mxu0 %v2322
  %3133 = vmatprep.subr.mxu0 0.0
  %3134 = vmatpush1.msra.mxu0 %v2323
  %3135 = vmatprep.subr.mxu0 0.0
  %3136 = vmatpush1.msra.mxu0 %v2324
  %3137 = vmatprep.subr.mxu0 0.0
  %3138 = vmatpush1.msra.mxu0 %v2325
  %3139 = vmatprep.subr.mxu0 0.0
  %3140 = vmatpush1.msra.mxu0 %v2326
  %3141 = vmatprep.subr.mxu0 0.0
  %3142 = vmatpush1.msra.mxu0 %v2327
  %3143 = vmatprep.mubr.f32.mxu0 %v1048
  %3144 = vmatmul.mubr.f32.gmra.mrb[0].mxu0 %v1047
  %v3145 = vpop.f32.mrb[0].mxu0
  %v3146 = vadd.f32 0.0, %v3145
  %v3147 = vpop.f32.mrb[0].mxu0
  %3148 = vdwg.mxu0
  %v3149 = vadd.f32 %v3078, %v3146
  %3150 = vmatprep.subr.mxu0 0.0
  %3151 = vmatpush1.msra.mxu0 %v2400
  %3152 = vmatprep.subr.mxu0 0.0
  %3153 = vmatpush1.msra.mxu0 %v2401
  %3154 = vmatprep.subr.mxu0 0.0
  %3155 = vmatpush1.msra.mxu0 %v2402
  %3156 = vmatprep.subr.mxu0 0.0
  %3157 = vmatpush1.msra.mxu0 %v2403
  %3158 = vmatprep.subr.mxu0 0.0
  %3159 = vmatpush1.msra.mxu0 %v2404
  %3160 = vmatprep.subr.mxu0 0.0
  %3161 = vmatpush1.msra.mxu0 %v2405
  %3162 = vmatprep.subr.mxu0 0.0
  %3163 = vmatpush1.msra.mxu0 %v2406
  %3164 = vmatprep.subr.mxu0 0.0
  %3165 = vmatpush1.msra.mxu0 %v2407
  %3166 = vmatprep.subr.mxu0 0.0
  %3167 = vmatpush1.msra.mxu0 %v2408
  %3168 = vmatprep.subr.mxu0 0.0
  %3169 = vmatpush1.msra.mxu0 %v2409
  %3170 = vmatprep.subr.mxu0 0.0
  %3171 = vmatpush1.msra.mxu0 %v2410
  %3172 = vmatprep.subr.mxu0 0.0
  %3173 = vmatpush1.msra.mxu0 %v2411
  %3174 = vmatprep.subr.mxu0 0.0
  %3175 = vmatpush1.msra.mxu0 %v2412
  %3176 = vmatprep.subr.mxu0 0.0
  %3177 = vmatpush1.msra.mxu0 %v2413
  %3178 = vmatprep.subr.mxu0 0.0
  %3179 = vmatpush1.msra.mxu0 %v2414
  %3180 = vmatprep.subr.mxu0 0.0
  %3181 = vmatpush1.msra.mxu0 %v2415
  %3182 = vmatprep.subr.mxu0 0.0
  %3183 = vmatpush1.msra.mxu0 %v2416
  %3184 = vmatprep.subr.mxu0 0.0
  %3185 = vmatpush1.msra.mxu0 %v2417
  %3186 = vmatprep.subr.mxu0 0.0
  %3187 = vmatpush1.msra.mxu0 %v2418
  %3188 = vmatprep.subr.mxu0 0.0
  %3189 = vmatpush1.msra.mxu0 %v2419
  %3190 = vmatprep.subr.mxu0 0.0
  %3191 = vmatpush1.msra.mxu0 %v2420
  %3192 = vmatprep.subr.mxu0 0.0
  %3193 = vmatpush1.msra.mxu0 %v2421
  %3194 = vmatprep.subr.mxu0 0.0
  %3195 = vmatpush1.msra.mxu0 %v2422
  %3196 = vmatprep.subr.mxu0 0.0
  %3197 = vmatpush1.msra.mxu0 %v2423
  %3198 = vmatprep.subr.mxu0 0.0
  %3199 = vmatpush1.msra.mxu0 %v2424
  %3200 = vmatprep.subr.mxu0 0.0
  %3201 = vmatpush1.msra.mxu0 %v2425
  %3202 = vmatprep.subr.mxu0 0.0
  %3203 = vmatpush1.msra.mxu0 %v2426
  %3204 = vmatprep.subr.mxu0 0.0
  %3205 = vmatpush1.msra.mxu0 %v2427
  %3206 = vmatprep.subr.mxu0 0.0
  %3207 = vmatpush1.msra.mxu0 %v2428
  %3208 = vmatprep.subr.mxu0 0.0
  %3209 = vmatpush1.msra.mxu0 %v2429
  %3210 = vmatprep.subr.mxu0 0.0
  %3211 = vmatpush1.msra.mxu0 %v2430
  %3212 = vmatprep.subr.mxu0 0.0
  %3213 = vmatpush1.msra.mxu0 %v2431
  %3214 = vmatprep.mubr.f32.mxu0 %v1204
  %3215 = vmatmul.mubr.f32.gmra.mrb[0].mxu0 %v1203
  %v3216 = vpop.f32.mrb[0].mxu0
  %v3217 = vadd.f32 0.0, %v3216
  %v3218 = vpop.f32.mrb[0].mxu0
  %3219 = vdwg.mxu0
  %v3220 = vadd.f32 %v3149, %v3217
  %v3221 = vadd.f32 %v3220, %v2507
  %v3222 = vtanh.pop %v3221
  %3223 = vmatprep.subr.mxu0 0.0
  %3224 = vmatpush1.msra.mxu0 %v2019
  %3225 = vmatprep.subr.mxu0 0.0
  %3226 = vmatpush1.msra.mxu0 %v2020
  %3227 = vmatprep.subr.mxu0 0.0
  %3228 = vmatpush1.msra.mxu0 %v2021
  %3229 = vmatprep.subr.mxu0 0.0
  %3230 = vmatpush1.msra.mxu0 %v2022
  %3231 = vmatprep.subr.mxu0 0.0
  %3232 = vmatpush1.msra.mxu0 %v2023
  %3233 = vmatprep.subr.mxu0 0.0
  %3234 = vmatpush1.msra.mxu0 %v2024
  %3235 = vmatprep.subr.mxu0 0.0
  %3236 = vmatpush1.msra.mxu0 %v2025
  %3237 = vmatprep.subr.mxu0 0.0
  %3238 = vmatpush1.msra.mxu0 %v2026
  %3239 = vmatprep.subr.mxu0 0.0
  %3240 = vmatpush1.msra.mxu0 %v2027
  %3241 = vmatprep.subr.mxu0 0.0
  %3242 = vmatpush1.msra.mxu0 %v2028
  %3243 = vmatprep.subr.mxu0 0.0
  %3244 = vmatpush1.msra.mxu0 %v2029
  %3245 = vmatprep.subr.mxu0 0.0
  %3246 = vmatpush1.msra.mxu0 %v2030
  %3247 = vmatprep.subr.mxu0 0.0
  %3248 = vmatpush1.msra.mxu0 %v2031
  %3249 = vmatprep.subr.mxu0 0.0
  %3250 = vmatpush1.msra.mxu0 %v2032
  %3251 = vmatprep.subr.mxu0 0.0
  %3252 = vmatpush1.msra.mxu0 %v2033
  %3253 = vmatprep.subr.mxu0 0.0
  %3254 = vmatpush1.msra.mxu0 %v2034
  %3255 = vmatprep.subr.mxu0 0.0
  %3256 = vmatpush1.msra.mxu0 %v2035
  %3257 = vmatprep.subr.mxu0 0.0
  %3258 = vmatpush1.msra.mxu0 %v2036
  %3259 = vmatprep.subr.mxu0 0.0
  %3260 = vmatpush1.msra.mxu0 %v2037
  %3261 = vmatprep.subr.mxu0 0.0
  %3262 = vmatpush1.msra.mxu0 %v2038
  %3263 = vmatprep.subr.mxu0 0.0
  %3264 = vmatpush1.msra.mxu0 %v2039
  %3265 = vmatprep.subr.mxu0 0.0
  %3266 = vmatpush1.msra.mxu0 %v2040
  %3267 = vmatprep.subr.mxu0 0.0
  %3268 = vmatpush1.msra.mxu0 %v2041
  %3269 = vmatprep.subr.mxu0 0.0
  %3270 = vmatpush1.msra.mxu0 %v2042
  %3271 = vmatprep.subr.mxu0 0.0
  %3272 = vmatpush1.msra.mxu0 %v2043
  %3273 = vmatprep.subr.mxu0 0.0
  %3274 = vmatpush1.msra.mxu0 %v2044
  %3275 = vmatprep.subr.mxu0 0.0
  %3276 = vmatpush1.msra.mxu0 %v2045
  %3277 = vmatprep.subr.mxu0 0.0
  %3278 = vmatpush1.msra.mxu0 %v2046
  %3279 = vmatprep.subr.mxu0 0.0
  %3280 = vmatpush1.msra.mxu0 %v2047
  %3281 = vmatprep.subr.mxu0 0.0
  %3282 = vmatpush1.msra.mxu0 %v2048
  %3283 = vmatprep.subr.mxu0 0.0
  %3284 = vmatpush1.msra.mxu0 %v2049
  %3285 = vmatprep.subr.mxu0 0.0
  %3286 = vmatpush1.msra.mxu0 %v2050
  %3287 = vmatprep.mubr.f32.mxu0 %v892
  %3288 = vmatmul.mubr.f32.gmra.mrb[0].mxu0 %v891
  %v3289 = vpop.f32.mrb[0].mxu0
  %v3290 = vadd.f32 0.0, %v3289
  %v3291 = vpop.f32.mrb[0].mxu0
  %3292 = vdwg.mxu0
  %3293 = vmatprep.subr.mxu0 0.0
  %3294 = vmatpush1.msra.mxu0 %v1986
  %3295 = vmatprep.subr.mxu0 0.0
  %3296 = vmatpush1.msra.mxu0 %v1987
  %3297 = vmatprep.subr.mxu0 0.0
  %3298 = vmatpush1.msra.mxu0 %v1988
  %3299 = vmatprep.subr.mxu0 0.0
  %3300 = vmatpush1.msra.mxu0 %v1989
  %3301 = vmatprep.subr.mxu0 0.0
  %3302 = vmatpush1.msra.mxu0 %v1990
  %3303 = vmatprep.subr.mxu0 0.0
  %3304 = vmatpush1.msra.mxu0 %v1991
  %3305 = vmatprep.subr.mxu0 0.0
  %3306 = vmatpush1.msra.mxu0 %v1992
  %3307 = vmatprep.subr.mxu0 0.0
  %3308 = vmatpush1.msra.mxu0 %v1993
  %3309 = vmatprep.subr.mxu0 0.0
  %3310 = vmatpush1.msra.mxu0 %v1994
  %3311 = vmatprep.subr.mxu0 0.0
  %3312 = vmatpush1.msra.mxu0 %v1995
  %3313 = vmatprep.subr.mxu0 0.0
  %3314 = vmatpush1.msra.mxu0 %v1996
  %3315 = vmatprep.subr.mxu0 0.0
  %3316 = vmatpush1.msra.mxu0 %v1997
  %3317 = vmatprep.subr.mxu0 0.0
  %3318 = vmatpush1.msra.mxu0 %v1998
  %3319 = vmatprep.subr.mxu0 0.0
  %3320 = vmatpush1.msra.mxu0 %v1999
  %3321 = vmatprep.subr.mxu0 0.0
  %3322 = vmatpush1.msra.mxu0 %v2000
  %3323 = vmatprep.subr.mxu0 0.0
  %3324 = vmatpush1.msra.mxu0 %v2001
  %3325 = vmatprep.subr.mxu0 0.0
  %3326 = vmatpush1.msra.mxu0 %v2002
  %3327 = vmatprep.subr.mxu0 0.0
  %3328 = vmatpush1.msra.mxu0 %v2003
  %3329 = vmatprep.subr.mxu0 0.0
  %3330 = vmatpush1.msra.mxu0 %v2004
  %3331 = vmatprep.subr.mxu0 0.0
  %3332 = vmatpush1.msra.mxu0 %v2005
  %3333 = vmatprep.subr.mxu0 0.0
  %3334 = vmatpush1.msra.mxu0 %v2006
  %3335 = vmatprep.subr.mxu0 0.0
  %3336 = vmatpush1.msra.mxu0 %v2007
  %3337 = vmatprep.subr.mxu0 0.0
  %3338 = vmatpush1.msra.mxu0 %v2008
  %3339 = vmatprep.subr.mxu0 0.0
  %3340 = vmatpush1.msra.mxu0 %v2009
  %3341 = vmatprep.subr.mxu0 0.0
  %3342 = vmatpush1.msra.mxu0 %v2010
  %3343 = vmatprep.subr.mxu0 0.0
  %3344 = vmatpush1.msra.mxu0 %v2011
  %3345 = vmatprep.subr.mxu0 0.0
  %3346 = vmatpush1.msra.mxu0 %v2012
  %3347 = vmatprep.subr.mxu0 0.0
  %3348 = vmatpush1.msra.mxu0 %v2013
  %3349 = vmatprep.subr.mxu0 0.0
  %3350 = vmatpush1.msra.mxu0 %v2014
  %3351 = vmatprep.subr.mxu0 0.0
  %3352 = vmatpush1.msra.mxu0 %v2015
  %3353 = vmatprep.subr.mxu0 0.0
  %3354 = vmatpush1.msra.mxu0 %v2016
  %3355 = vmatprep.subr.mxu0 0.0
  %3356 = vmatpush1.msra.mxu0 %v2017
  %3357 = vmatprep.mubr.f32.mxu0 %v736
  %3358 = vmatmul.mubr.f32.gmra.mrb[0].mxu0 %v735
  %v3359 = vpop.f32.mrb[0].mxu0
  %v3360 = vadd.f32 %v3290, %v3359
  %v3361 = vpop.f32.mrb[0].mxu0
  %3362 = vdwg.mxu0
  %3363 = vmatprep.subr.mxu0 0.0
  %3364 = vmatpush1.msra.mxu0 %v2192
  %3365 = vmatprep.subr.mxu0 0.0
  %3366 = vmatpush1.msra.mxu0 %v2193
  %3367 = vmatprep.subr.mxu0 0.0
  %3368 = vmatpush1.msra.mxu0 %v2194
  %3369 = vmatprep.subr.mxu0 0.0
  %3370 = vmatpush1.msra.mxu0 %v2195
  %3371 = vmatprep.subr.mxu0 0.0
  %3372 = vmatpush1.msra.mxu0 %v2196
  %3373 = vmatprep.subr.mxu0 0.0
  %3374 = vmatpush1.msra.mxu0 %v2197
  %3375 = vmatprep.subr.mxu0 0.0
  %3376 = vmatpush1.msra.mxu0 %v2198
  %3377 = vmatprep.subr.mxu0 0.0
  %3378 = vmatpush1.msra.mxu0 %v2199
  %3379 = vmatprep.subr.mxu0 0.0
  %3380 = vmatpush1.msra.mxu0 %v2200
  %3381 = vmatprep.subr.mxu0 0.0
  %3382 = vmatpush1.msra.mxu0 %v2201
  %3383 = vmatprep.subr.mxu0 0.0
  %3384 = vmatpush1.msra.mxu0 %v2202
  %3385 = vmatprep.subr.mxu0 0.0
  %3386 = vmatpush1.msra.mxu0 %v2203
  %3387 = vmatprep.subr.mxu0 0.0
  %3388 = vmatpush1.msra.mxu0 %v2204
  %3389 = vmatprep.subr.mxu0 0.0
  %3390 = vmatpush1.msra.mxu0 %v2205
  %3391 = vmatprep.subr.mxu0 0.0
  %3392 = vmatpush1.msra.mxu0 %v2206
  %3393 = vmatprep.subr.mxu0 0.0
  %3394 = vmatpush1.msra.mxu0 %v2207
  %3395 = vmatprep.subr.mxu0 0.0
  %3396 = vmatpush1.msra.mxu0 %v2208
  %3397 = vmatprep.subr.mxu0 0.0
  %3398 = vmatpush1.msra.mxu0 %v2209
  %3399 = vmatprep.subr.mxu0 0.0
  %3400 = vmatpush1.msra.mxu0 %v2210
  %3401 = vmatprep.subr.mxu0 0.0
  %3402 = vmatpush1.msra.mxu0 %v2211
  %3403 = vmatprep.subr.mxu0 0.0
  %3404 = vmatpush1.msra.mxu0 %v2212
  %3405 = vmatprep.subr.mxu0 0.0
  %3406 = vmatpush1.msra.mxu0 %v2213
  %3407 = vmatprep.subr.mxu0 0.0
  %3408 = vmatpush1.msra.mxu0 %v2214
  %3409 = vmatprep.subr.mxu0 0.0
  %3410 = vmatpush1.msra.mxu0 %v2215
  %3411 = vmatprep.subr.mxu0 0.0
  %3412 = vmatpush1.msra.mxu0 %v2216
  %3413 = vmatprep.subr.mxu0 0.0
  %3414 = vmatpush1.msra.mxu0 %v2217
  %3415 = vmatprep.subr.mxu0 0.0
  %3416 = vmatpush1.msra.mxu0 %v2218
  %3417 = vmatprep.subr.mxu0 0.0
  %3418 = vmatpush1.msra.mxu0 %v2219
  %3419 = vmatprep.subr.mxu0 0.0
  %3420 = vmatpush1.msra.mxu0 %v2220
  %3421 = vmatprep.subr.mxu0 0.0
  %3422 = vmatpush1.msra.mxu0 %v2221
  %3423 = vmatprep.subr.mxu0 0.0
  %3424 = vmatpush1.msra.mxu0 %v2222
  %3425 = vmatprep.subr.mxu0 0.0
  %3426 = vmatpush1.msra.mxu0 %v2223
  %3427 = vmatprep.mubr.f32.mxu0 %v1048
  %3428 = vmatmul.mubr.f32.gmra.mrb[0].mxu0 %v1047
  %v3429 = vpop.f32.mrb[0].mxu0
  %v3430 = vadd.f32 0.0, %v3429
  %v3431 = vpop.f32.mrb[0].mxu0
  %3432 = vdwg.mxu0
  %v3433 = vadd.f32 %v3360, %v3430
  %3434 = vmatprep.subr.mxu0 0.0
  %3435 = vmatpush1.msra.mxu0 %v2296
  %3436 = vmatprep.subr.mxu0 0.0
  %3437 = vmatpush1.msra.mxu0 %v2297
  %3438 = vmatprep.subr.mxu0 0.0
  %3439 = vmatpush1.msra.mxu0 %v2298
  %3440 = vmatprep.subr.mxu0 0.0
  %3441 = vmatpush1.msra.mxu0 %v2299
  %3442 = vmatprep.subr.mxu0 0.0
  %3443 = vmatpush1.msra.mxu0 %v2300
  %3444 = vmatprep.subr.mxu0 0.0
  %3445 = vmatpush1.msra.mxu0 %v2301
  %3446 = vmatprep.subr.mxu0 0.0
  %3447 = vmatpush1.msra.mxu0 %v2302
  %3448 = vmatprep.subr.mxu0 0.0
  %3449 = vmatpush1.msra.mxu0 %v2303
  %3450 = vmatprep.subr.mxu0 0.0
  %3451 = vmatpush1.msra.mxu0 %v2304
  %3452 = vmatprep.subr.mxu0 0.0
  %3453 = vmatpush1.msra.mxu0 %v2305
  %3454 = vmatprep.subr.mxu0 0.0
  %3455 = vmatpush1.msra.mxu0 %v2306
  %3456 = vmatprep.subr.mxu0 0.0
  %3457 = vmatpush1.msra.mxu0 %v2307
  %3458 = vmatprep.subr.mxu0 0.0
  %3459 = vmatpush1.msra.mxu0 %v2308
  %3460 = vmatprep.subr.mxu0 0.0
  %3461 = vmatpush1.msra.mxu0 %v2309
  %3462 = vmatprep.subr.mxu0 0.0
  %3463 = vmatpush1.msra.mxu0 %v2310
  %3464 = vmatprep.subr.mxu0 0.0
  %3465 = vmatpush1.msra.mxu0 %v2311
  %3466 = vmatprep.subr.mxu0 0.0
  %3467 = vmatpush1.msra.mxu0 %v2312
  %3468 = vmatprep.subr.mxu0 0.0
  %3469 = vmatpush1.msra.mxu0 %v2313
  %3470 = vmatprep.subr.mxu0 0.0
  %3471 = vmatpush1.msra.mxu0 %v2314
  %3472 = vmatprep.subr.mxu0 0.0
  %3473 = vmatpush1.msra.mxu0 %v2315
  %3474 = vmatprep.subr.mxu0 0.0
  %3475 = vmatpush1.msra.mxu0 %v2316
  %3476 = vmatprep.subr.mxu0 0.0
  %3477 = vmatpush1.msra.mxu0 %v2317
  %3478 = vmatprep.subr.mxu0 0.0
  %3479 = vmatpush1.msra.mxu0 %v2318
  %3480 = vmatprep.subr.mxu0 0.0
  %3481 = vmatpush1.msra.mxu0 %v2319
  %3482 = vmatprep.subr.mxu0 0.0
  %3483 = vmatpush1.msra.mxu0 %v2320
  %3484 = vmatprep.subr.mxu0 0.0
  %3485 = vmatpush1.msra.mxu0 %v2321
  %3486 = vmatprep.subr.mxu0 0.0
  %3487 = vmatpush1.msra.mxu0 %v2322
  %3488 = vmatprep.subr.mxu0 0.0
  %3489 = vmatpush1.msra.mxu0 %v2323
  %3490 = vmatprep.subr.mxu0 0.0
  %3491 = vmatpush1.msra.mxu0 %v2324
  %3492 = vmatprep.subr.mxu0 0.0
  %3493 = vmatpush1.msra.mxu0 %v2325
  %3494 = vmatprep.subr.mxu0 0.0
  %3495 = vmatpush1.msra.mxu0 %v2326
  %3496 = vmatprep.subr.mxu0 0.0
  %3497 = vmatpush1.msra.mxu0 %v2327
  %3498 = vmatprep.mubr.f32.mxu0 %v1204
  %3499 = vmatmul.mubr.f32.gmra.mrb[0].mxu0 %v1203
  %v3500 = vpop.f32.mrb[0].mxu0
  %v3501 = vadd.f32 0.0, %v3500
  %v3502 = vpop.f32.mrb[0].mxu0
  %3503 = vdwg.mxu0
  %v3504 = vadd.f32 %v3433, %v3501
  %3505 = vmatprep.subr.mxu0 0.0
  %3506 = vmatpush1.msra.mxu0 %v2400
  %3507 = vmatprep.subr.mxu0 0.0
  %3508 = vmatpush1.msra.mxu0 %v2401
  %3509 = vmatprep.subr.mxu0 0.0
  %3510 = vmatpush1.msra.mxu0 %v2402
  %3511 = vmatprep.subr.mxu0 0.0
  %3512 = vmatpush1.msra.mxu0 %v2403
  %3513 = vmatprep.subr.mxu0 0.0
  %3514 = vmatpush1.msra.mxu0 %v2404
  %3515 = vmatprep.subr.mxu0 0.0
  %3516 = vmatpush1.msra.mxu0 %v2405
  %3517 = vmatprep.subr.mxu0 0.0
  %3518 = vmatpush1.msra.mxu0 %v2406
  %3519 = vmatprep.subr.mxu0 0.0
  %3520 = vmatpush1.msra.mxu0 %v2407
  %3521 = vmatprep.subr.mxu0 0.0
  %3522 = vmatpush1.msra.mxu0 %v2408
  %3523 = vmatprep.subr.mxu0 0.0
  %3524 = vmatpush1.msra.mxu0 %v2409
  %3525 = vmatprep.subr.mxu0 0.0
  %3526 = vmatpush1.msra.mxu0 %v2410
  %3527 = vmatprep.subr.mxu0 0.0
  %3528 = vmatpush1.msra.mxu0 %v2411
  %3529 = vmatprep.subr.mxu0 0.0
  %3530 = vmatpush1.msra.mxu0 %v2412
  %3531 = vmatprep.subr.mxu0 0.0
  %3532 = vmatpush1.msra.mxu0 %v2413
  %3533 = vmatprep.subr.mxu0 0.0
  %3534 = vmatpush1.msra.mxu0 %v2414
  %3535 = vmatprep.subr.mxu0 0.0
  %3536 = vmatpush1.msra.mxu0 %v2415
  %3537 = vmatprep.subr.mxu0 0.0
  %3538 = vmatpush1.msra.mxu0 %v2416
  %3539 = vmatprep.subr.mxu0 0.0
  %3540 = vmatpush1.msra.mxu0 %v2417
  %3541 = vmatprep.subr.mxu0 0.0
  %3542 = vmatpush1.msra.mxu0 %v2418
  %3543 = vmatprep.subr.mxu0 0.0
  %3544 = vmatpush1.msra.mxu0 %v2419
  %3545 = vmatprep.subr.mxu0 0.0
  %3546 = vmatpush1.msra.mxu0 %v2420
  %3547 = vmatprep.subr.mxu0 0.0
  %3548 = vmatpush1.msra.mxu0 %v2421
  %3549 = vmatprep.subr.mxu0 0.0
  %3550 = vmatpush1.msra.mxu0 %v2422
  %3551 = vmatprep.subr.mxu0 0.0
  %3552 = vmatpush1.msra.mxu0 %v2423
  %3553 = vmatprep.subr.mxu0 0.0
  %3554 = vmatpush1.msra.mxu0 %v2424
  %3555 = vmatprep.subr.mxu0 0.0
  %3556 = vmatpush1.msra.mxu0 %v2425
  %3557 = vmatprep.subr.mxu0 0.0
  %3558 = vmatpush1.msra.mxu0 %v2426
  %3559 = vmatprep.subr.mxu0 0.0
  %3560 = vmatpush1.msra.mxu0 %v2427
  %3561 = vmatprep.subr.mxu0 0.0
  %3562 = vmatpush1.msra.mxu0 %v2428
  %3563 = vmatprep.subr.mxu0 0.0
  %3564 = vmatpush1.msra.mxu0 %v2429
  %3565 = vmatprep.subr.mxu0 0.0
  %3566 = vmatpush1.msra.mxu0 %v2430
  %3567 = vmatprep.subr.mxu0 0.0
  %3568 = vmatpush1.msra.mxu0 %v2431
  %3569 = vmatprep.mubr.f32.mxu0 %v1360
  %3570 = vmatmul.mubr.f32.gmra.mrb[0].mxu0 %v1359
  %v3571 = vpop.f32.mrb[0].mxu0
  %v3572 = vadd.f32 0.0, %v3571
  %v3573 = vpop.f32.mrb[0].mxu0
  %3574 = vdwg.mxu0
  %v3575 = vadd.f32 %v3504, %v3572
  %v3576 = vadd.f32 %v3575, %v2507
  %v3577 = vtanh.pop %v3576
  %v3578 = vadd.f32 %v3222, %v3577
  %v3579 = vmul.f32 %v3578, 0.5
  %3580 = vmatprep.subr.mxu0 0.0
  %3581 = vmatpush1.msra.mxu0 %v2019
  %3582 = vmatprep.subr.mxu0 0.0
  %3583 = vmatpush1.msra.mxu0 %v2020
  %3584 = vmatprep.subr.mxu0 0.0
  %3585 = vmatpush1.msra.mxu0 %v2021
  %3586 = vmatprep.subr.mxu0 0.0
  %3587 = vmatpush1.msra.mxu0 %v2022
  %3588 = vmatprep.subr.mxu0 0.0
  %3589 = vmatpush1.msra.mxu0 %v2023
  %3590 = vmatprep.subr.mxu0 0.0
  %3591 = vmatpush1.msra.mxu0 %v2024
  %3592 = vmatprep.subr.mxu0 0.0
  %3593 = vmatpush1.msra.mxu0 %v2025
  %3594 = vmatprep.subr.mxu0 0.0
  %3595 = vmatpush1.msra.mxu0 %v2026
  %3596 = vmatprep.subr.mxu0 0.0
  %3597 = vmatpush1.msra.mxu0 %v2027
  %3598 = vmatprep.subr.mxu0 0.0
  %3599 = vmatpush1.msra.mxu0 %v2028
  %3600 = vmatprep.subr.mxu0 0.0
  %3601 = vmatpush1.msra.mxu0 %v2029
  %3602 = vmatprep.subr.mxu0 0.0
  %3603 = vmatpush1.msra.mxu0 %v2030
  %3604 = vmatprep.subr.mxu0 0.0
  %3605 = vmatpush1.msra.mxu0 %v2031
  %3606 = vmatprep.subr.mxu0 0.0
  %3607 = vmatpush1.msra.mxu0 %v2032
  %3608 = vmatprep.subr.mxu0 0.0
  %3609 = vmatpush1.msra.mxu0 %v2033
  %3610 = vmatprep.subr.mxu0 0.0
  %3611 = vmatpush1.msra.mxu0 %v2034
  %3612 = vmatprep.subr.mxu0 0.0
  %3613 = vmatpush1.msra.mxu0 %v2035
  %3614 = vmatprep.subr.mxu0 0.0
  %3615 = vmatpush1.msra.mxu0 %v2036
  %3616 = vmatprep.subr.mxu0 0.0
  %3617 = vmatpush1.msra.mxu0 %v2037
  %3618 = vmatprep.subr.mxu0 0.0
  %3619 = vmatpush1.msra.mxu0 %v2038
  %3620 = vmatprep.subr.mxu0 0.0
  %3621 = vmatpush1.msra.mxu0 %v2039
  %3622 = vmatprep.subr.mxu0 0.0
  %3623 = vmatpush1.msra.mxu0 %v2040
  %3624 = vmatprep.subr.mxu0 0.0
  %3625 = vmatpush1.msra.mxu0 %v2041
  %3626 = vmatprep.subr.mxu0 0.0
  %3627 = vmatpush1.msra.mxu0 %v2042
  %3628 = vmatprep.subr.mxu0 0.0
  %3629 = vmatpush1.msra.mxu0 %v2043
  %3630 = vmatprep.subr.mxu0 0.0
  %3631 = vmatpush1.msra.mxu0 %v2044
  %3632 = vmatprep.subr.mxu0 0.0
  %3633 = vmatpush1.msra.mxu0 %v2045
  %3634 = vmatprep.subr.mxu0 0.0
  %3635 = vmatpush1.msra.mxu0 %v2046
  %3636 = vmatprep.subr.mxu0 0.0
  %3637 = vmatpush1.msra.mxu0 %v2047
  %3638 = vmatprep.subr.mxu0 0.0
  %3639 = vmatpush1.msra.mxu0 %v2048
  %3640 = vmatprep.subr.mxu0 0.0
  %3641 = vmatpush1.msra.mxu0 %v2049
  %3642 = vmatprep.subr.mxu0 0.0
  %3643 = vmatpush1.msra.mxu0 %v2050
  %3644 = vmatprep.mubr.f32.mxu0 %v1048
  %3645 = vmatmul.mubr.f32.gmra.mrb[0].mxu0 %v1047
  %v3646 = vpop.f32.mrb[0].mxu0
  %v3647 = vadd.f32 0.0, %v3646
  %v3648 = vpop.f32.mrb[0].mxu0
  %3649 = vdwg.mxu0
  %3650 = vmatprep.subr.mxu0 0.0
  %3651 = vmatpush1.msra.mxu0 %v1986
  %3652 = vmatprep.subr.mxu0 0.0
  %3653 = vmatpush1.msra.mxu0 %v1987
  %3654 = vmatprep.subr.mxu0 0.0
  %3655 = vmatpush1.msra.mxu0 %v1988
  %3656 = vmatprep.subr.mxu0 0.0
  %3657 = vmatpush1.msra.mxu0 %v1989
  %3658 = vmatprep.subr.mxu0 0.0
  %3659 = vmatpush1.msra.mxu0 %v1990
  %3660 = vmatprep.subr.mxu0 0.0
  %3661 = vmatpush1.msra.mxu0 %v1991
  %3662 = vmatprep.subr.mxu0 0.0
  %3663 = vmatpush1.msra.mxu0 %v1992
  %3664 = vmatprep.subr.mxu0 0.0
  %3665 = vmatpush1.msra.mxu0 %v1993
  %3666 = vmatprep.subr.mxu0 0.0
  %3667 = vmatpush1.msra.mxu0 %v1994
  %3668 = vmatprep.subr.mxu0 0.0
  %3669 = vmatpush1.msra.mxu0 %v1995
  %3670 = vmatprep.subr.mxu0 0.0
  %3671 = vmatpush1.msra.mxu0 %v1996
  %3672 = vmatprep.subr.mxu0 0.0
  %3673 = vmatpush1.msra.mxu0 %v1997
  %3674 = vmatprep.subr.mxu0 0.0
  %3675 = vmatpush1.msra.mxu0 %v1998
  %3676 = vmatprep.subr.mxu0 0.0
  %3677 = vmatpush1.msra.mxu0 %v1999
  %3678 = vmatprep.subr.mxu0 0.0
  %3679 = vmatpush1.msra.mxu0 %v2000
  %3680 = vmatprep.subr.mxu0 0.0
  %3681 = vmatpush1.msra.mxu0 %v2001
  %3682 = vmatprep.subr.mxu0 0.0
  %3683 = vmatpush1.msra.mxu0 %v2002
  %3684 = vmatprep.subr.mxu0 0.0
  %3685 = vmatpush1.msra.mxu0 %v2003
  %3686 = vmatprep.subr.mxu0 0.0
  %3687 = vmatpush1.msra.mxu0 %v2004
  %3688 = vmatprep.subr.mxu0 0.0
  %3689 = vmatpush1.msra.mxu0 %v2005
  %3690 = vmatprep.subr.mxu0 0.0
  %3691 = vmatpush1.msra.mxu0 %v2006
  %3692 = vmatprep.subr.mxu0 0.0
  %3693 = vmatpush1.msra.mxu0 %v2007
  %3694 = vmatprep.subr.mxu0 0.0
  %3695 = vmatpush1.msra.mxu0 %v2008
  %3696 = vmatprep.subr.mxu0 0.0
  %3697 = vmatpush1.msra.mxu0 %v2009
  %3698 = vmatprep.subr.mxu0 0.0
  %3699 = vmatpush1.msra.mxu0 %v2010
  %3700 = vmatprep.subr.mxu0 0.0
  %3701 = vmatpush1.msra.mxu0 %v2011
  %3702 = vmatprep.subr.mxu0 0.0
  %3703 = vmatpush1.msra.mxu0 %v2012
  %3704 = vmatprep.subr.mxu0 0.0
  %3705 = vmatpush1.msra.mxu0 %v2013
  %3706 = vmatprep.subr.mxu0 0.0
  %3707 = vmatpush1.msra.mxu0 %v2014
  %3708 = vmatprep.subr.mxu0 0.0
  %3709 = vmatpush1.msra.mxu0 %v2015
  %3710 = vmatprep.subr.mxu0 0.0
  %3711 = vmatpush1.msra.mxu0 %v2016
  %3712 = vmatprep.subr.mxu0 0.0
  %3713 = vmatpush1.msra.mxu0 %v2017
  %3714 = vmatprep.mubr.f32.mxu0 %v892
  %3715 = vmatmul.mubr.f32.gmra.mrb[0].mxu0 %v891
  %v3716 = vpop.f32.mrb[0].mxu0
  %v3717 = vadd.f32 %v3647, %v3716
  %v3718 = vpop.f32.mrb[0].mxu0
  %3719 = vdwg.mxu0
  %3720 = vmatprep.subr.mxu0 0.0
  %3721 = vmatpush1.msra.mxu0 %v2192
  %3722 = vmatprep.subr.mxu0 0.0
  %3723 = vmatpush1.msra.mxu0 %v2193
  %3724 = vmatprep.subr.mxu0 0.0
  %3725 = vmatpush1.msra.mxu0 %v2194
  %3726 = vmatprep.subr.mxu0 0.0
  %3727 = vmatpush1.msra.mxu0 %v2195
  %3728 = vmatprep.subr.mxu0 0.0
  %3729 = vmatpush1.msra.mxu0 %v2196
  %3730 = vmatprep.subr.mxu0 0.0
  %3731 = vmatpush1.msra.mxu0 %v2197
  %3732 = vmatprep.subr.mxu0 0.0
  %3733 = vmatpush1.msra.mxu0 %v2198
  %3734 = vmatprep.subr.mxu0 0.0
  %3735 = vmatpush1.msra.mxu0 %v2199
  %3736 = vmatprep.subr.mxu0 0.0
  %3737 = vmatpush1.msra.mxu0 %v2200
  %3738 = vmatprep.subr.mxu0 0.0
  %3739 = vmatpush1.msra.mxu0 %v2201
  %3740 = vmatprep.subr.mxu0 0.0
  %3741 = vmatpush1.msra.mxu0 %v2202
  %3742 = vmatprep.subr.mxu0 0.0
  %3743 = vmatpush1.msra.mxu0 %v2203
  %3744 = vmatprep.subr.mxu0 0.0
  %3745 = vmatpush1.msra.mxu0 %v2204
  %3746 = vmatprep.subr.mxu0 0.0
  %3747 = vmatpush1.msra.mxu0 %v2205
  %3748 = vmatprep.subr.mxu0 0.0
  %3749 = vmatpush1.msra.mxu0 %v2206
  %3750 = vmatprep.subr.mxu0 0.0
  %3751 = vmatpush1.msra.mxu0 %v2207
  %3752 = vmatprep.subr.mxu0 0.0
  %3753 = vmatpush1.msra.mxu0 %v2208
  %3754 = vmatprep.subr.mxu0 0.0
  %3755 = vmatpush1.msra.mxu0 %v2209
  %3756 = vmatprep.subr.mxu0 0.0
  %3757 = vmatpush1.msra.mxu0 %v2210
  %3758 = vmatprep.subr.mxu0 0.0
  %3759 = vmatpush1.msra.mxu0 %v2211
  %3760 = vmatprep.subr.mxu0 0.0
  %3761 = vmatpush1.msra.mxu0 %v2212
  %3762 = vmatprep.subr.mxu0 0.0
  %3763 = vmatpush1.msra.mxu0 %v2213
  %3764 = vmatprep.subr.mxu0 0.0
  %3765 = vmatpush1.msra.mxu0 %v2214
  %3766 = vmatprep.subr.mxu0 0.0
  %3767 = vmatpush1.msra.mxu0 %v2215
  %3768 = vmatprep.subr.mxu0 0.0
  %3769 = vmatpush1.msra.mxu0 %v2216
  %3770 = vmatprep.subr.mxu0 0.0
  %3771 = vmatpush1.msra.mxu0 %v2217
  %3772 = vmatprep.subr.mxu0 0.0
  %3773 = vmatpush1.msra.mxu0 %v2218
  %3774 = vmatprep.subr.mxu0 0.0
  %3775 = vmatpush1.msra.mxu0 %v2219
  %3776 = vmatprep.subr.mxu0 0.0
  %3777 = vmatpush1.msra.mxu0 %v2220
  %3778 = vmatprep.subr.mxu0 0.0
  %3779 = vmatpush1.msra.mxu0 %v2221
  %3780 = vmatprep.subr.mxu0 0.0
  %3781 = vmatpush1.msra.mxu0 %v2222
  %3782 = vmatprep.subr.mxu0 0.0
  %3783 = vmatpush1.msra.mxu0 %v2223
  %3784 = vmatprep.mubr.f32.mxu0 %v1204
  %3785 = vmatmul.mubr.f32.gmra.mrb[0].mxu0 %v1203
  %v3786 = vpop.f32.mrb[0].mxu0
  %v3787 = vadd.f32 0.0, %v3786
  %v3788 = vpop.f32.mrb[0].mxu0
  %3789 = vdwg.mxu0
  %v3790 = vadd.f32 %v3717, %v3787
  %3791 = vmatprep.subr.mxu0 0.0
  %3792 = vmatpush1.msra.mxu0 %v2296
  %3793 = vmatprep.subr.mxu0 0.0
  %3794 = vmatpush1.msra.mxu0 %v2297
  %3795 = vmatprep.subr.mxu0 0.0
  %3796 = vmatpush1.msra.mxu0 %v2298
  %3797 = vmatprep.subr.mxu0 0.0
  %3798 = vmatpush1.msra.mxu0 %v2299
  %3799 = vmatprep.subr.mxu0 0.0
  %3800 = vmatpush1.msra.mxu0 %v2300
  %3801 = vmatprep.subr.mxu0 0.0
  %3802 = vmatpush1.msra.mxu0 %v2301
  %3803 = vmatprep.subr.mxu0 0.0
  %3804 = vmatpush1.msra.mxu0 %v2302
  %3805 = vmatprep.subr.mxu0 0.0
  %3806 = vmatpush1.msra.mxu0 %v2303
  %3807 = vmatprep.subr.mxu0 0.0
  %3808 = vmatpush1.msra.mxu0 %v2304
  %3809 = vmatprep.subr.mxu0 0.0
  %3810 = vmatpush1.msra.mxu0 %v2305
  %3811 = vmatprep.subr.mxu0 0.0
  %3812 = vmatpush1.msra.mxu0 %v2306
  %3813 = vmatprep.subr.mxu0 0.0
  %3814 = vmatpush1.msra.mxu0 %v2307
  %3815 = vmatprep.subr.mxu0 0.0
  %3816 = vmatpush1.msra.mxu0 %v2308
  %3817 = vmatprep.subr.mxu0 0.0
  %3818 = vmatpush1.msra.mxu0 %v2309
  %3819 = vmatprep.subr.mxu0 0.0
  %3820 = vmatpush1.msra.mxu0 %v2310
  %3821 = vmatprep.subr.mxu0 0.0
  %3822 = vmatpush1.msra.mxu0 %v2311
  %3823 = vmatprep.subr.mxu0 0.0
  %3824 = vmatpush1.msra.mxu0 %v2312
  %3825 = vmatprep.subr.mxu0 0.0
  %3826 = vmatpush1.msra.mxu0 %v2313
  %3827 = vmatprep.subr.mxu0 0.0
  %3828 = vmatpush1.msra.mxu0 %v2314
  %3829 = vmatprep.subr.mxu0 0.0
  %3830 = vmatpush1.msra.mxu0 %v2315
  %3831 = vmatprep.subr.mxu0 0.0
  %3832 = vmatpush1.msra.mxu0 %v2316
  %3833 = vmatprep.subr.mxu0 0.0
  %3834 = vmatpush1.msra.mxu0 %v2317
  %3835 = vmatprep.subr.mxu0 0.0
  %3836 = vmatpush1.msra.mxu0 %v2318
  %3837 = vmatprep.subr.mxu0 0.0
  %3838 = vmatpush1.msra.mxu0 %v2319
  %3839 = vmatprep.subr.mxu0 0.0
  %3840 = vmatpush1.msra.mxu0 %v2320
  %3841 = vmatprep.subr.mxu0 0.0
  %3842 = vmatpush1.msra.mxu0 %v2321
  %3843 = vmatprep.subr.mxu0 0.0
  %3844 = vmatpush1.msra.mxu0 %v2322
  %3845 = vmatprep.subr.mxu0 0.0
  %3846 = vmatpush1.msra.mxu0 %v2323
  %3847 = vmatprep.subr.mxu0 0.0
  %3848 = vmatpush1.msra.mxu0 %v2324
  %3849 = vmatprep.subr.mxu0 0.0
  %3850 = vmatpush1.msra.mxu0 %v2325
  %3851 = vmatprep.subr.mxu0 0.0
  %3852 = vmatpush1.msra.mxu0 %v2326
  %3853 = vmatprep.subr.mxu0 0.0
  %3854 = vmatpush1.msra.mxu0 %v2327
  %3855 = vmatprep.mubr.f32.mxu0 %v1360
  %3856 = vmatmul.mubr.f32.gmra.mrb[0].mxu0 %v1359
  %v3857 = vpop.f32.mrb[0].mxu0
  %v3858 = vadd.f32 0.0, %v3857
  %v3859 = vpop.f32.mrb[0].mxu0
  %3860 = vdwg.mxu0
  %v3861 = vadd.f32 %v3790, %v3858
  %3862 = vmatprep.subr.mxu0 0.0
  %3863 = vmatpush1.msra.mxu0 %v2400
  %3864 = vmatprep.subr.mxu0 0.0
  %3865 = vmatpush1.msra.mxu0 %v2401
  %3866 = vmatprep.subr.mxu0 0.0
  %3867 = vmatpush1.msra.mxu0 %v2402
  %3868 = vmatprep.subr.mxu0 0.0
  %3869 = vmatpush1.msra.mxu0 %v2403
  %3870 = vmatprep.subr.mxu0 0.0
  %3871 = vmatpush1.msra.mxu0 %v2404
  %3872 = vmatprep.subr.mxu0 0.0
  %3873 = vmatpush1.msra.mxu0 %v2405
  %3874 = vmatprep.subr.mxu0 0.0
  %3875 = vmatpush1.msra.mxu0 %v2406
  %3876 = vmatprep.subr.mxu0 0.0
  %3877 = vmatpush1.msra.mxu0 %v2407
  %3878 = vmatprep.subr.mxu0 0.0
  %3879 = vmatpush1.msra.mxu0 %v2408
  %3880 = vmatprep.subr.mxu0 0.0
  %3881 = vmatpush1.msra.mxu0 %v2409
  %3882 = vmatprep.subr.mxu0 0.0
  %3883 = vmatpush1.msra.mxu0 %v2410
  %3884 = vmatprep.subr.mxu0 0.0
  %3885 = vmatpush1.msra.mxu0 %v2411
  %3886 = vmatprep.subr.mxu0 0.0
  %3887 = vmatpush1.msra.mxu0 %v2412
  %3888 = vmatprep.subr.mxu0 0.0
  %3889 = vmatpush1.msra.mxu0 %v2413
  %3890 = vmatprep.subr.mxu0 0.0
  %3891 = vmatpush1.msra.mxu0 %v2414
  %3892 = vmatprep.subr.mxu0 0.0
  %3893 = vmatpush1.msra.mxu0 %v2415
  %3894 = vmatprep.subr.mxu0 0.0
  %3895 = vmatpush1.msra.mxu0 %v2416
  %3896 = vmatprep.subr.mxu0 0.0
  %3897 = vmatpush1.msra.mxu0 %v2417
  %3898 = vmatprep.subr.mxu0 0.0
  %3899 = vmatpush1.msra.mxu0 %v2418
  %3900 = vmatprep.subr.mxu0 0.0
  %3901 = vmatpush1.msra.mxu0 %v2419
  %3902 = vmatprep.subr.mxu0 0.0
  %3903 = vmatpush1.msra.mxu0 %v2420
  %3904 = vmatprep.subr.mxu0 0.0
  %3905 = vmatpush1.msra.mxu0 %v2421
  %3906 = vmatprep.subr.mxu0 0.0
  %3907 = vmatpush1.msra.mxu0 %v2422
  %3908 = vmatprep.subr.mxu0 0.0
  %3909 = vmatpush1.msra.mxu0 %v2423
  %3910 = vmatprep.subr.mxu0 0.0
  %3911 = vmatpush1.msra.mxu0 %v2424
  %3912 = vmatprep.subr.mxu0 0.0
  %3913 = vmatpush1.msra.mxu0 %v2425
  %3914 = vmatprep.subr.mxu0 0.0
  %3915 = vmatpush1.msra.mxu0 %v2426
  %3916 = vmatprep.subr.mxu0 0.0
  %3917 = vmatpush1.msra.mxu0 %v2427
  %3918 = vmatprep.subr.mxu0 0.0
  %3919 = vmatpush1.msra.mxu0 %v2428
  %3920 = vmatprep.subr.mxu0 0.0
  %3921 = vmatpush1.msra.mxu0 %v2429
  %3922 = vmatprep.subr.mxu0 0.0
  %3923 = vmatpush1.msra.mxu0 %v2430
  %3924 = vmatprep.subr.mxu0 0.0
  %3925 = vmatpush1.msra.mxu0 %v2431
  %3926 = vmatprep.mubr.f32.mxu0 %v1516
  %3927 = vmatmul.mubr.f32.gmra.mrb[0].mxu0 %v1515
  %v3928 = vpop.f32.mrb[0].mxu0
  %v3929 = vadd.f32 0.0, %v3928
  %v3930 = vpop.f32.mrb[0].mxu0
  %3931 = vdwg.mxu0
  %v3932 = vadd.f32 %v3861, %v3929
  %v3933 = vadd.f32 %v3932, %v2507
  %v3934 = vtanh.pop %v3933
  %3935 = vmatprep.subr.mxu0 0.0
  %3936 = vmatpush1.msra.mxu0 %v2019
  %3937 = vmatprep.subr.mxu0 0.0
  %3938 = vmatpush1.msra.mxu0 %v2020
  %3939 = vmatprep.subr.mxu0 0.0
  %3940 = vmatpush1.msra.mxu0 %v2021
  %3941 = vmatprep.subr.mxu0 0.0
  %3942 = vmatpush1.msra.mxu0 %v2022
  %3943 = vmatprep.subr.mxu0 0.0
  %3944 = vmatpush1.msra.mxu0 %v2023
  %3945 = vmatprep.subr.mxu0 0.0
  %3946 = vmatpush1.msra.mxu0 %v2024
  %3947 = vmatprep.subr.mxu0 0.0
  %3948 = vmatpush1.msra.mxu0 %v2025
  %3949 = vmatprep.subr.mxu0 0.0
  %3950 = vmatpush1.msra.mxu0 %v2026
  %3951 = vmatprep.subr.mxu0 0.0
  %3952 = vmatpush1.msra.mxu0 %v2027
  %3953 = vmatprep.subr.mxu0 0.0
  %3954 = vmatpush1.msra.mxu0 %v2028
  %3955 = vmatprep.subr.mxu0 0.0
  %3956 = vmatpush1.msra.mxu0 %v2029
  %3957 = vmatprep.subr.mxu0 0.0
  %3958 = vmatpush1.msra.mxu0 %v2030
  %3959 = vmatprep.subr.mxu0 0.0
  %3960 = vmatpush1.msra.mxu0 %v2031
  %3961 = vmatprep.subr.mxu0 0.0
  %3962 = vmatpush1.msra.mxu0 %v2032
  %3963 = vmatprep.subr.mxu0 0.0
  %3964 = vmatpush1.msra.mxu0 %v2033
  %3965 = vmatprep.subr.mxu0 0.0
  %3966 = vmatpush1.msra.mxu0 %v2034
  %3967 = vmatprep.subr.mxu0 0.0
  %3968 = vmatpush1.msra.mxu0 %v2035
  %3969 = vmatprep.subr.mxu0 0.0
  %3970 = vmatpush1.msra.mxu0 %v2036
  %3971 = vmatprep.subr.mxu0 0.0
  %3972 = vmatpush1.msra.mxu0 %v2037
  %3973 = vmatprep.subr.mxu0 0.0
  %3974 = vmatpush1.msra.mxu0 %v2038
  %3975 = vmatprep.subr.mxu0 0.0
  %3976 = vmatpush1.msra.mxu0 %v2039
  %3977 = vmatprep.subr.mxu0 0.0
  %3978 = vmatpush1.msra.mxu0 %v2040
  %3979 = vmatprep.subr.mxu0 0.0
  %3980 = vmatpush1.msra.mxu0 %v2041
  %3981 = vmatprep.subr.mxu0 0.0
  %3982 = vmatpush1.msra.mxu0 %v2042
  %3983 = vmatprep.subr.mxu0 0.0
  %3984 = vmatpush1.msra.mxu0 %v2043
  %3985 = vmatprep.subr.mxu0 0.0
  %3986 = vmatpush1.msra.mxu0 %v2044
  %3987 = vmatprep.subr.mxu0 0.0
  %3988 = vmatpush1.msra.mxu0 %v2045
  %3989 = vmatprep.subr.mxu0 0.0
  %3990 = vmatpush1.msra.mxu0 %v2046
  %3991 = vmatprep.subr.mxu0 0.0
  %3992 = vmatpush1.msra.mxu0 %v2047
  %3993 = vmatprep.subr.mxu0 0.0
  %3994 = vmatpush1.msra.mxu0 %v2048
  %3995 = vmatprep.subr.mxu0 0.0
  %3996 = vmatpush1.msra.mxu0 %v2049
  %3997 = vmatprep.subr.mxu0 0.0
  %3998 = vmatpush1.msra.mxu0 %v2050
  %3999 = vmatprep.mubr.f32.mxu0 %v1204
  %4000 = vmatmul.mubr.f32.gmra.mrb[0].mxu0 %v1203
  %v4001 = vpop.f32.mrb[0].mxu0
  %v4002 = vadd.f32 0.0, %v4001
  %v4003 = vpop.f32.mrb[0].mxu0
  %4004 = vdwg.mxu0
  %4005 = vmatprep.subr.mxu0 0.0
  %4006 = vmatpush1.msra.mxu0 %v1986
  %4007 = vmatprep.subr.mxu0 0.0
  %4008 = vmatpush1.msra.mxu0 %v1987
  %4009 = vmatprep.subr.mxu0 0.0
  %4010 = vmatpush1.msra.mxu0 %v1988
  %4011 = vmatprep.subr.mxu0 0.0
  %4012 = vmatpush1.msra.mxu0 %v1989
  %4013 = vmatprep.subr.mxu0 0.0
  %4014 = vmatpush1.msra.mxu0 %v1990
  %4015 = vmatprep.subr.mxu0 0.0
  %4016 = vmatpush1.msra.mxu0 %v1991
  %4017 = vmatprep.subr.mxu0 0.0
  %4018 = vmatpush1.msra.mxu0 %v1992
  %4019 = vmatprep.subr.mxu0 0.0
  %4020 = vmatpush1.msra.mxu0 %v1993
  %4021 = vmatprep.subr.mxu0 0.0
  %4022 = vmatpush1.msra.mxu0 %v1994
  %4023 = vmatprep.subr.mxu0 0.0
  %4024 = vmatpush1.msra.mxu0 %v1995
  %4025 = vmatprep.subr.mxu0 0.0
  %4026 = vmatpush1.msra.mxu0 %v1996
  %4027 = vmatprep.subr.mxu0 0.0
  %4028 = vmatpush1.msra.mxu0 %v1997
  %4029 = vmatprep.subr.mxu0 0.0
  %4030 = vmatpush1.msra.mxu0 %v1998
  %4031 = vmatprep.subr.mxu0 0.0
  %4032 = vmatpush1.msra.mxu0 %v1999
  %4033 = vmatprep.subr.mxu0 0.0
  %4034 = vmatpush1.msra.mxu0 %v2000
  %4035 = vmatprep.subr.mxu0 0.0
  %4036 = vmatpush1.msra.mxu0 %v2001
  %4037 = vmatprep.subr.mxu0 0.0
  %4038 = vmatpush1.msra.mxu0 %v2002
  %4039 = vmatprep.subr.mxu0 0.0
  %4040 = vmatpush1.msra.mxu0 %v2003
  %4041 = vmatprep.subr.mxu0 0.0
  %4042 = vmatpush1.msra.mxu0 %v2004
  %4043 = vmatprep.subr.mxu0 0.0
  %4044 = vmatpush1.msra.mxu0 %v2005
  %4045 = vmatprep.subr.mxu0 0.0
  %4046 = vmatpush1.msra.mxu0 %v2006
  %4047 = vmatprep.subr.mxu0 0.0
  %4048 = vmatpush1.msra.mxu0 %v2007
  %4049 = vmatprep.subr.mxu0 0.0
  %4050 = vmatpush1.msra.mxu0 %v2008
  %4051 = vmatprep.subr.mxu0 0.0
  %4052 = vmatpush1.msra.mxu0 %v2009
  %4053 = vmatprep.subr.mxu0 0.0
  %4054 = vmatpush1.msra.mxu0 %v2010
  %4055 = vmatprep.subr.mxu0 0.0
  %4056 = vmatpush1.msra.mxu0 %v2011
  %4057 = vmatprep.subr.mxu0 0.0
  %4058 = vmatpush1.msra.mxu0 %v2012
  %4059 = vmatprep.subr.mxu0 0.0
  %4060 = vmatpush1.msra.mxu0 %v2013
  %4061 = vmatprep.subr.mxu0 0.0
  %4062 = vmatpush1.msra.mxu0 %v2014
  %4063 = vmatprep.subr.mxu0 0.0
  %4064 = vmatpush1.msra.mxu0 %v2015
  %4065 = vmatprep.subr.mxu0 0.0
  %4066 = vmatpush1.msra.mxu0 %v2016
  %4067 = vmatprep.subr.mxu0 0.0
  %4068 = vmatpush1.msra.mxu0 %v2017
  %4069 = vmatprep.mubr.f32.mxu0 %v1048
  %4070 = vmatmul.mubr.f32.gmra.mrb[0].mxu0 %v1047
  %v4071 = vpop.f32.mrb[0].mxu0
  %v4072 = vadd.f32 %v4002, %v4071
  %v4073 = vpop.f32.mrb[0].mxu0
  %4074 = vdwg.mxu0
  %4075 = vmatprep.subr.mxu0 0.0
  %4076 = vmatpush1.msra.mxu0 %v2192
  %4077 = vmatprep.subr.mxu0 0.0
  %4078 = vmatpush1.msra.mxu0 %v2193
  %4079 = vmatprep.subr.mxu0 0.0
  %4080 = vmatpush1.msra.mxu0 %v2194
  %4081 = vmatprep.subr.mxu0 0.0
  %4082 = vmatpush1.msra.mxu0 %v2195
  %4083 = vmatprep.subr.mxu0 0.0
  %4084 = vmatpush1.msra.mxu0 %v2196
  %4085 = vmatprep.subr.mxu0 0.0
  %4086 = vmatpush1.msra.mxu0 %v2197
  %4087 = vmatprep.subr.mxu0 0.0
  %4088 = vmatpush1.msra.mxu0 %v2198
  %4089 = vmatprep.subr.mxu0 0.0
  %4090 = vmatpush1.msra.mxu0 %v2199
  %4091 = vmatprep.subr.mxu0 0.0
  %4092 = vmatpush1.msra.mxu0 %v2200
  %4093 = vmatprep.subr.mxu0 0.0
  %4094 = vmatpush1.msra.mxu0 %v2201
  %4095 = vmatprep.subr.mxu0 0.0
  %4096 = vmatpush1.msra.mxu0 %v2202
  %4097 = vmatprep.subr.mxu0 0.0
  %4098 = vmatpush1.msra.mxu0 %v2203
  %4099 = vmatprep.subr.mxu0 0.0
  %4100 = vmatpush1.msra.mxu0 %v2204
  %4101 = vmatprep.subr.mxu0 0.0
  %4102 = vmatpush1.msra.mxu0 %v2205
  %4103 = vmatprep.subr.mxu0 0.0
  %4104 = vmatpush1.msra.mxu0 %v2206
  %4105 = vmatprep.subr.mxu0 0.0
  %4106 = vmatpush1.msra.mxu0 %v2207
  %4107 = vmatprep.subr.mxu0 0.0
  %4108 = vmatpush1.msra.mxu0 %v2208
  %4109 = vmatprep.subr.mxu0 0.0
  %4110 = vmatpush1.msra.mxu0 %v2209
  %4111 = vmatprep.subr.mxu0 0.0
  %4112 = vmatpush1.msra.mxu0 %v2210
  %4113 = vmatprep.subr.mxu0 0.0
  %4114 = vmatpush1.msra.mxu0 %v2211
  %4115 = vmatprep.subr.mxu0 0.0
  %4116 = vmatpush1.msra.mxu0 %v2212
  %4117 = vmatprep.subr.mxu0 0.0
  %4118 = vmatpush1.msra.mxu0 %v2213
  %4119 = vmatprep.subr.mxu0 0.0
  %4120 = vmatpush1.msra.mxu0 %v2214
  %4121 = vmatprep.subr.mxu0 0.0
  %4122 = vmatpush1.msra.mxu0 %v2215
  %4123 = vmatprep.subr.mxu0 0.0
  %4124 = vmatpush1.msra.mxu0 %v2216
  %4125 = vmatprep.subr.mxu0 0.0
  %4126 = vmatpush1.msra.mxu0 %v2217
  %4127 = vmatprep.subr.mxu0 0.0
  %4128 = vmatpush1.msra.mxu0 %v2218
  %4129 = vmatprep.subr.mxu0 0.0
  %4130 = vmatpush1.msra.mxu0 %v2219
  %4131 = vmatprep.subr.mxu0 0.0
  %4132 = vmatpush1.msra.mxu0 %v2220
  %4133 = vmatprep.subr.mxu0 0.0
  %4134 = vmatpush1.msra.mxu0 %v2221
  %4135 = vmatprep.subr.mxu0 0.0
  %4136 = vmatpush1.msra.mxu0 %v2222
  %4137 = vmatprep.subr.mxu0 0.0
  %4138 = vmatpush1.msra.mxu0 %v2223
  %4139 = vmatprep.mubr.f32.mxu0 %v1360
  %4140 = vmatmul.mubr.f32.gmra.mrb[0].mxu0 %v1359
  %v4141 = vpop.f32.mrb[0].mxu0
  %v4142 = vadd.f32 0.0, %v4141
  %v4143 = vpop.f32.mrb[0].mxu0
  %4144 = vdwg.mxu0
  %v4145 = vadd.f32 %v4072, %v4142
  %4146 = vmatprep.subr.mxu0 0.0
  %4147 = vmatpush1.msra.mxu0 %v2296
  %4148 = vmatprep.subr.mxu0 0.0
  %4149 = vmatpush1.msra.mxu0 %v2297
  %4150 = vmatprep.subr.mxu0 0.0
  %4151 = vmatpush1.msra.mxu0 %v2298
  %4152 = vmatprep.subr.mxu0 0.0
  %4153 = vmatpush1.msra.mxu0 %v2299
  %4154 = vmatprep.subr.mxu0 0.0
  %4155 = vmatpush1.msra.mxu0 %v2300
  %4156 = vmatprep.subr.mxu0 0.0
  %4157 = vmatpush1.msra.mxu0 %v2301
  %4158 = vmatprep.subr.mxu0 0.0
  %4159 = vmatpush1.msra.mxu0 %v2302
  %4160 = vmatprep.subr.mxu0 0.0
  %4161 = vmatpush1.msra.mxu0 %v2303
  %4162 = vmatprep.subr.mxu0 0.0
  %4163 = vmatpush1.msra.mxu0 %v2304
  %4164 = vmatprep.subr.mxu0 0.0
  %4165 = vmatpush1.msra.mxu0 %v2305
  %4166 = vmatprep.subr.mxu0 0.0
  %4167 = vmatpush1.msra.mxu0 %v2306
  %4168 = vmatprep.subr.mxu0 0.0
  %4169 = vmatpush1.msra.mxu0 %v2307
  %4170 = vmatprep.subr.mxu0 0.0
  %4171 = vmatpush1.msra.mxu0 %v2308
  %4172 = vmatprep.subr.mxu0 0.0
  %4173 = vmatpush1.msra.mxu0 %v2309
  %4174 = vmatprep.subr.mxu0 0.0
  %4175 = vmatpush1.msra.mxu0 %v2310
  %4176 = vmatprep.subr.mxu0 0.0
  %4177 = vmatpush1.msra.mxu0 %v2311
  %4178 = vmatprep.subr.mxu0 0.0
  %4179 = vmatpush1.msra.mxu0 %v2312
  %4180 = vmatprep.subr.mxu0 0.0
  %4181 = vmatpush1.msra.mxu0 %v2313
  %4182 = vmatprep.subr.mxu0 0.0
  %4183 = vmatpush1.msra.mxu0 %v2314
  %4184 = vmatprep.subr.mxu0 0.0
  %4185 = vmatpush1.msra.mxu0 %v2315
  %4186 = vmatprep.subr.mxu0 0.0
  %4187 = vmatpush1.msra.mxu0 %v2316
  %4188 = vmatprep.subr.mxu0 0.0
  %4189 = vmatpush1.msra.mxu0 %v2317
  %4190 = vmatprep.subr.mxu0 0.0
  %4191 = vmatpush1.msra.mxu0 %v2318
  %4192 = vmatprep.subr.mxu0 0.0
  %4193 = vmatpush1.msra.mxu0 %v2319
  %4194 = vmatprep.subr.mxu0 0.0
  %4195 = vmatpush1.msra.mxu0 %v2320
  %4196 = vmatprep.subr.mxu0 0.0
  %4197 = vmatpush1.msra.mxu0 %v2321
  %4198 = vmatprep.subr.mxu0 0.0
  %4199 = vmatpush1.msra.mxu0 %v2322
  %4200 = vmatprep.subr.mxu0 0.0
  %4201 = vmatpush1.msra.mxu0 %v2323
  %4202 = vmatprep.subr.mxu0 0.0
  %4203 = vmatpush1.msra.mxu0 %v2324
  %4204 = vmatprep.subr.mxu0 0.0
  %4205 = vmatpush1.msra.mxu0 %v2325
  %4206 = vmatprep.subr.mxu0 0.0
  %4207 = vmatpush1.msra.mxu0 %v2326
  %4208 = vmatprep.subr.mxu0 0.0
  %4209 = vmatpush1.msra.mxu0 %v2327
  %4210 = vmatprep.mubr.f32.mxu0 %v1516
  %4211 = vmatmul.mubr.f32.gmra.mrb[0].mxu0 %v1515
  %v4212 = vpop.f32.mrb[0].mxu0
  %v4213 = vadd.f32 0.0, %v4212
  %v4214 = vpop.f32.mrb[0].mxu0
  %4215 = vdwg.mxu0
  %v4216 = vadd.f32 %v4145, %v4213
  %4217 = vmatprep.subr.mxu0 0.0
  %4218 = vmatpush1.msra.mxu0 %v2400
  %4219 = vmatprep.subr.mxu0 0.0
  %4220 = vmatpush1.msra.mxu0 %v2401
  %4221 = vmatprep.subr.mxu0 0.0
  %4222 = vmatpush1.msra.mxu0 %v2402
  %4223 = vmatprep.subr.mxu0 0.0
  %4224 = vmatpush1.msra.mxu0 %v2403
  %4225 = vmatprep.subr.mxu0 0.0
  %4226 = vmatpush1.msra.mxu0 %v2404
  %4227 = vmatprep.subr.mxu0 0.0
  %4228 = vmatpush1.msra.mxu0 %v2405
  %4229 = vmatprep.subr.mxu0 0.0
  %4230 = vmatpush1.msra.mxu0 %v2406
  %4231 = vmatprep.subr.mxu0 0.0
  %4232 = vmatpush1.msra.mxu0 %v2407
  %4233 = vmatprep.subr.mxu0 0.0
  %4234 = vmatpush1.msra.mxu0 %v2408
  %4235 = vmatprep.subr.mxu0 0.0
  %4236 = vmatpush1.msra.mxu0 %v2409
  %4237 = vmatprep.subr.mxu0 0.0
  %4238 = vmatpush1.msra.mxu0 %v2410
  %4239 = vmatprep.subr.mxu0 0.0
  %4240 = vmatpush1.msra.mxu0 %v2411
  %4241 = vmatprep.subr.mxu0 0.0
  %4242 = vmatpush1.msra.mxu0 %v2412
  %4243 = vmatprep.subr.mxu0 0.0
  %4244 = vmatpush1.msra.mxu0 %v2413
  %4245 = vmatprep.subr.mxu0 0.0
  %4246 = vmatpush1.msra.mxu0 %v2414
  %4247 = vmatprep.subr.mxu0 0.0
  %4248 = vmatpush1.msra.mxu0 %v2415
  %4249 = vmatprep.subr.mxu0 0.0
  %4250 = vmatpush1.msra.mxu0 %v2416
  %4251 = vmatprep.subr.mxu0 0.0
  %4252 = vmatpush1.msra.mxu0 %v2417
  %4253 = vmatprep.subr.mxu0 0.0
  %4254 = vmatpush1.msra.mxu0 %v2418
  %4255 = vmatprep.subr.mxu0 0.0
  %4256 = vmatpush1.msra.mxu0 %v2419
  %4257 = vmatprep.subr.mxu0 0.0
  %4258 = vmatpush1.msra.mxu0 %v2420
  %4259 = vmatprep.subr.mxu0 0.0
  %4260 = vmatpush1.msra.mxu0 %v2421
  %4261 = vmatprep.subr.mxu0 0.0
  %4262 = vmatpush1.msra.mxu0 %v2422
  %4263 = vmatprep.subr.mxu0 0.0
  %4264 = vmatpush1.msra.mxu0 %v2423
  %4265 = vmatprep.subr.mxu0 0.0
  %4266 = vmatpush1.msra.mxu0 %v2424
  %4267 = vmatprep.subr.mxu0 0.0
  %4268 = vmatpush1.msra.mxu0 %v2425
  %4269 = vmatprep.subr.mxu0 0.0
  %4270 = vmatpush1.msra.mxu0 %v2426
  %4271 = vmatprep.subr.mxu0 0.0
  %4272 = vmatpush1.msra.mxu0 %v2427
  %4273 = vmatprep.subr.mxu0 0.0
  %4274 = vmatpush1.msra.mxu0 %v2428
  %4275 = vmatprep.subr.mxu0 0.0
  %4276 = vmatpush1.msra.mxu0 %v2429
  %4277 = vmatprep.subr.mxu0 0.0
  %4278 = vmatpush1.msra.mxu0 %v2430
  %4279 = vmatprep.subr.mxu0 0.0
  %4280 = vmatpush1.msra.mxu0 %v2431
  %4281 = vmatprep.mubr.f32.mxu0 %v1672
  %4282 = vmatmul.mubr.f32.gmra.mrb[0].mxu0 %v1671
  %v4283 = vpop.f32.mrb[0].mxu0
  %v4284 = vadd.f32 0.0, %v4283
  %v4285 = vpop.f32.mrb[0].mxu0
  %4286 = vdwg.mxu0
  %v4287 = vadd.f32 %v4216, %v4284
  %v4288 = vadd.f32 %v4287, %v2507
  %v4289 = vtanh.pop %v4288
  %v4290 = vadd.f32 %v3934, %v4289
  %v4291 = vmul.f32 %v4290, 0.5
  %4292 = vmatprep.subr.mxu0 0.0
  %4293 = vmatpush1.msra.mxu0 %v2019
  %4294 = vmatprep.subr.mxu0 0.0
  %4295 = vmatpush1.msra.mxu0 %v2020
  %4296 = vmatprep.subr.mxu0 0.0
  %4297 = vmatpush1.msra.mxu0 %v2021
  %4298 = vmatprep.subr.mxu0 0.0
  %4299 = vmatpush1.msra.mxu0 %v2022
  %4300 = vmatprep.subr.mxu0 0.0
  %4301 = vmatpush1.msra.mxu0 %v2023
  %4302 = vmatprep.subr.mxu0 0.0
  %4303 = vmatpush1.msra.mxu0 %v2024
  %4304 = vmatprep.subr.mxu0 0.0
  %4305 = vmatpush1.msra.mxu0 %v2025
  %4306 = vmatprep.subr.mxu0 0.0
  %4307 = vmatpush1.msra.mxu0 %v2026
  %4308 = vmatprep.subr.mxu0 0.0
  %4309 = vmatpush1.msra.mxu0 %v2027
  %4310 = vmatprep.subr.mxu0 0.0
  %4311 = vmatpush1.msra.mxu0 %v2028
  %4312 = vmatprep.subr.mxu0 0.0
  %4313 = vmatpush1.msra.mxu0 %v2029
  %4314 = vmatprep.subr.mxu0 0.0
  %4315 = vmatpush1.msra.mxu0 %v2030
  %4316 = vmatprep.subr.mxu0 0.0
  %4317 = vmatpush1.msra.mxu0 %v2031
  %4318 = vmatprep.subr.mxu0 0.0
  %4319 = vmatpush1.msra.mxu0 %v2032
  %4320 = vmatprep.subr.mxu0 0.0
  %4321 = vmatpush1.msra.mxu0 %v2033
  %4322 = vmatprep.subr.mxu0 0.0
  %4323 = vmatpush1.msra.mxu0 %v2034
  %4324 = vmatprep.subr.mxu0 0.0
  %4325 = vmatpush1.msra.mxu0 %v2035
  %4326 = vmatprep.subr.mxu0 0.0
  %4327 = vmatpush1.msra.mxu0 %v2036
  %4328 = vmatprep.subr.mxu0 0.0
  %4329 = vmatpush1.msra.mxu0 %v2037
  %4330 = vmatprep.subr.mxu0 0.0
  %4331 = vmatpush1.msra.mxu0 %v2038
  %4332 = vmatprep.subr.mxu0 0.0
  %4333 = vmatpush1.msra.mxu0 %v2039
  %4334 = vmatprep.subr.mxu0 0.0
  %4335 = vmatpush1.msra.mxu0 %v2040
  %4336 = vmatprep.subr.mxu0 0.0
  %4337 = vmatpush1.msra.mxu0 %v2041
  %4338 = vmatprep.subr.mxu0 0.0
  %4339 = vmatpush1.msra.mxu0 %v2042
  %4340 = vmatprep.subr.mxu0 0.0
  %4341 = vmatpush1.msra.mxu0 %v2043
  %4342 = vmatprep.subr.mxu0 0.0
  %4343 = vmatpush1.msra.mxu0 %v2044
  %4344 = vmatprep.subr.mxu0 0.0
  %4345 = vmatpush1.msra.mxu0 %v2045
  %4346 = vmatprep.subr.mxu0 0.0
  %4347 = vmatpush1.msra.mxu0 %v2046
  %4348 = vmatprep.subr.mxu0 0.0
  %4349 = vmatpush1.msra.mxu0 %v2047
  %4350 = vmatprep.subr.mxu0 0.0
  %4351 = vmatpush1.msra.mxu0 %v2048
  %4352 = vmatprep.subr.mxu0 0.0
  %4353 = vmatpush1.msra.mxu0 %v2049
  %4354 = vmatprep.subr.mxu0 0.0
  %4355 = vmatpush1.msra.mxu0 %v2050
  %4356 = vmatprep.mubr.f32.mxu0 %v1360
  %4357 = vmatmul.mubr.f32.gmra.mrb[0].mxu0 %v1359
  %v4358 = vpop.f32.mrb[0].mxu0
  %v4359 = vadd.f32 0.0, %v4358
  %v4360 = vpop.f32.mrb[0].mxu0
  %4361 = vdwg.mxu0
  %4362 = vmatprep.subr.mxu0 0.0
  %4363 = vmatpush1.msra.mxu0 %v1986
  %4364 = vmatprep.subr.mxu0 0.0
  %4365 = vmatpush1.msra.mxu0 %v1987
  %4366 = vmatprep.subr.mxu0 0.0
  %4367 = vmatpush1.msra.mxu0 %v1988
  %4368 = vmatprep.subr.mxu0 0.0
  %4369 = vmatpush1.msra.mxu0 %v1989
  %4370 = vmatprep.subr.mxu0 0.0
  %4371 = vmatpush1.msra.mxu0 %v1990
  %4372 = vmatprep.subr.mxu0 0.0
  %4373 = vmatpush1.msra.mxu0 %v1991
  %4374 = vmatprep.subr.mxu0 0.0
  %4375 = vmatpush1.msra.mxu0 %v1992
  %4376 = vmatprep.subr.mxu0 0.0
  %4377 = vmatpush1.msra.mxu0 %v1993
  %4378 = vmatprep.subr.mxu0 0.0
  %4379 = vmatpush1.msra.mxu0 %v1994
  %4380 = vmatprep.subr.mxu0 0.0
  %4381 = vmatpush1.msra.mxu0 %v1995
  %4382 = vmatprep.subr.mxu0 0.0
  %4383 = vmatpush1.msra.mxu0 %v1996
  %4384 = vmatprep.subr.mxu0 0.0
  %4385 = vmatpush1.msra.mxu0 %v1997
  %4386 = vmatprep.subr.mxu0 0.0
  %4387 = vmatpush1.msra.mxu0 %v1998
  %4388 = vmatprep.subr.mxu0 0.0
  %4389 = vmatpush1.msra.mxu0 %v1999
  %4390 = vmatprep.subr.mxu0 0.0
  %4391 = vmatpush1.msra.mxu0 %v2000
  %4392 = vmatprep.subr.mxu0 0.0
  %4393 = vmatpush1.msra.mxu0 %v2001
  %4394 = vmatprep.subr.mxu0 0.0
  %4395 = vmatpush1.msra.mxu0 %v2002
  %4396 = vmatprep.subr.mxu0 0.0
  %4397 = vmatpush1.msra.mxu0 %v2003
  %4398 = vmatprep.subr.mxu0 0.0
  %4399 = vmatpush1.msra.mxu0 %v2004
  %4400 = vmatprep.subr.mxu0 0.0
  %4401 = vmatpush1.msra.mxu0 %v2005
  %4402 = vmatprep.subr.mxu0 0.0
  %4403 = vmatpush1.msra.mxu0 %v2006
  %4404 = vmatprep.subr.mxu0 0.0
  %4405 = vmatpush1.msra.mxu0 %v2007
  %4406 = vmatprep.subr.mxu0 0.0
  %4407 = vmatpush1.msra.mxu0 %v2008
  %4408 = vmatprep.subr.mxu0 0.0
  %4409 = vmatpush1.msra.mxu0 %v2009
  %4410 = vmatprep.subr.mxu0 0.0
  %4411 = vmatpush1.msra.mxu0 %v2010
  %4412 = vmatprep.subr.mxu0 0.0
  %4413 = vmatpush1.msra.mxu0 %v2011
  %4414 = vmatprep.subr.mxu0 0.0
  %4415 = vmatpush1.msra.mxu0 %v2012
  %4416 = vmatprep.subr.mxu0 0.0
  %4417 = vmatpush1.msra.mxu0 %v2013
  %4418 = vmatprep.subr.mxu0 0.0
  %4419 = vmatpush1.msra.mxu0 %v2014
  %4420 = vmatprep.subr.mxu0 0.0
  %4421 = vmatpush1.msra.mxu0 %v2015
  %4422 = vmatprep.subr.mxu0 0.0
  %4423 = vmatpush1.msra.mxu0 %v2016
  %4424 = vmatprep.subr.mxu0 0.0
  %4425 = vmatpush1.msra.mxu0 %v2017
  %4426 = vmatprep.mubr.f32.mxu0 %v1204
  %4427 = vmatmul.mubr.f32.gmra.mrb[0].mxu0 %v1203
  %v4428 = vpop.f32.mrb[0].mxu0
  %v4429 = vadd.f32 %v4359, %v4428
  %v4430 = vpop.f32.mrb[0].mxu0
  %4431 = vdwg.mxu0
  %4432 = vmatprep.subr.mxu0 0.0
  %4433 = vmatpush1.msra.mxu0 %v2192
  %4434 = vmatprep.subr.mxu0 0.0
  %4435 = vmatpush1.msra.mxu0 %v2193
  %4436 = vmatprep.subr.mxu0 0.0
  %4437 = vmatpush1.msra.mxu0 %v2194
  %4438 = vmatprep.subr.mxu0 0.0
  %4439 = vmatpush1.msra.mxu0 %v2195
  %4440 = vmatprep.subr.mxu0 0.0
  %4441 = vmatpush1.msra.mxu0 %v2196
  %4442 = vmatprep.subr.mxu0 0.0
  %4443 = vmatpush1.msra.mxu0 %v2197
  %4444 = vmatprep.subr.mxu0 0.0
  %4445 = vmatpush1.msra.mxu0 %v2198
  %4446 = vmatprep.subr.mxu0 0.0
  %4447 = vmatpush1.msra.mxu0 %v2199
  %4448 = vmatprep.subr.mxu0 0.0
  %4449 = vmatpush1.msra.mxu0 %v2200
  %4450 = vmatprep.subr.mxu0 0.0
  %4451 = vmatpush1.msra.mxu0 %v2201
  %4452 = vmatprep.subr.mxu0 0.0
  %4453 = vmatpush1.msra.mxu0 %v2202
  %4454 = vmatprep.subr.mxu0 0.0
  %4455 = vmatpush1.msra.mxu0 %v2203
  %4456 = vmatprep.subr.mxu0 0.0
  %4457 = vmatpush1.msra.mxu0 %v2204
  %4458 = vmatprep.subr.mxu0 0.0
  %4459 = vmatpush1.msra.mxu0 %v2205
  %4460 = vmatprep.subr.mxu0 0.0
  %4461 = vmatpush1.msra.mxu0 %v2206
  %4462 = vmatprep.subr.mxu0 0.0
  %4463 = vmatpush1.msra.mxu0 %v2207
  %4464 = vmatprep.subr.mxu0 0.0
  %4465 = vmatpush1.msra.mxu0 %v2208
  %4466 = vmatprep.subr.mxu0 0.0
  %4467 = vmatpush1.msra.mxu0 %v2209
  %4468 = vmatprep.subr.mxu0 0.0
  %4469 = vmatpush1.msra.mxu0 %v2210
  %4470 = vmatprep.subr.mxu0 0.0
  %4471 = vmatpush1.msra.mxu0 %v2211
  %4472 = vmatprep.subr.mxu0 0.0
  %4473 = vmatpush1.msra.mxu0 %v2212
  %4474 = vmatprep.subr.mxu0 0.0
  %4475 = vmatpush1.msra.mxu0 %v2213
  %4476 = vmatprep.subr.mxu0 0.0
  %4477 = vmatpush1.msra.mxu0 %v2214
  %4478 = vmatprep.subr.mxu0 0.0
  %4479 = vmatpush1.msra.mxu0 %v2215
  %4480 = vmatprep.subr.mxu0 0.0
  %4481 = vmatpush1.msra.mxu0 %v2216
  %4482 = vmatprep.subr.mxu0 0.0
  %4483 = vmatpush1.msra.mxu0 %v2217
  %4484 = vmatprep.subr.mxu0 0.0
  %4485 = vmatpush1.msra.mxu0 %v2218
  %4486 = vmatprep.subr.mxu0 0.0
  %4487 = vmatpush1.msra.mxu0 %v2219
  %4488 = vmatprep.subr.mxu0 0.0
  %4489 = vmatpush1.msra.mxu0 %v2220
  %4490 = vmatprep.subr.mxu0 0.0
  %4491 = vmatpush1.msra.mxu0 %v2221
  %4492 = vmatprep.subr.mxu0 0.0
  %4493 = vmatpush1.msra.mxu0 %v2222
  %4494 = vmatprep.subr.mxu0 0.0
  %4495 = vmatpush1.msra.mxu0 %v2223
  %4496 = vmatprep.mubr.f32.mxu0 %v1516
  %4497 = vmatmul.mubr.f32.gmra.mrb[0].mxu0 %v1515
  %v4498 = vpop.f32.mrb[0].mxu0
  %v4499 = vadd.f32 0.0, %v4498
  %v4500 = vpop.f32.mrb[0].mxu0
  %4501 = vdwg.mxu0
  %v4502 = vadd.f32 %v4429, %v4499
  %4503 = vmatprep.subr.mxu0 0.0
  %4504 = vmatpush1.msra.mxu0 %v2296
  %4505 = vmatprep.subr.mxu0 0.0
  %4506 = vmatpush1.msra.mxu0 %v2297
  %4507 = vmatprep.subr.mxu0 0.0
  %4508 = vmatpush1.msra.mxu0 %v2298
  %4509 = vmatprep.subr.mxu0 0.0
  %4510 = vmatpush1.msra.mxu0 %v2299
  %4511 = vmatprep.subr.mxu0 0.0
  %4512 = vmatpush1.msra.mxu0 %v2300
  %4513 = vmatprep.subr.mxu0 0.0
  %4514 = vmatpush1.msra.mxu0 %v2301
  %4515 = vmatprep.subr.mxu0 0.0
  %4516 = vmatpush1.msra.mxu0 %v2302
  %4517 = vmatprep.subr.mxu0 0.0
  %4518 = vmatpush1.msra.mxu0 %v2303
  %4519 = vmatprep.subr.mxu0 0.0
  %4520 = vmatpush1.msra.mxu0 %v2304
  %4521 = vmatprep.subr.mxu0 0.0
  %4522 = vmatpush1.msra.mxu0 %v2305
  %4523 = vmatprep.subr.mxu0 0.0
  %4524 = vmatpush1.msra.mxu0 %v2306
  %4525 = vmatprep.subr.mxu0 0.0
  %4526 = vmatpush1.msra.mxu0 %v2307
  %4527 = vmatprep.subr.mxu0 0.0
  %4528 = vmatpush1.msra.mxu0 %v2308
  %4529 = vmatprep.subr.mxu0 0.0
  %4530 = vmatpush1.msra.mxu0 %v2309
  %4531 = vmatprep.subr.mxu0 0.0
  %4532 = vmatpush1.msra.mxu0 %v2310
  %4533 = vmatprep.subr.mxu0 0.0
  %4534 = vmatpush1.msra.mxu0 %v2311
  %4535 = vmatprep.subr.mxu0 0.0
  %4536 = vmatpush1.msra.mxu0 %v2312
  %4537 = vmatprep.subr.mxu0 0.0
  %4538 = vmatpush1.msra.mxu0 %v2313
  %4539 = vmatprep.subr.mxu0 0.0
  %4540 = vmatpush1.msra.mxu0 %v2314
  %4541 = vmatprep.subr.mxu0 0.0
  %4542 = vmatpush1.msra.mxu0 %v2315
  %4543 = vmatprep.subr.mxu0 0.0
  %4544 = vmatpush1.msra.mxu0 %v2316
  %4545 = vmatprep.subr.mxu0 0.0
  %4546 = vmatpush1.msra.mxu0 %v2317
  %4547 = vmatprep.subr.mxu0 0.0
  %4548 = vmatpush1.msra.mxu0 %v2318
  %4549 = vmatprep.subr.mxu0 0.0
  %4550 = vmatpush1.msra.mxu0 %v2319
  %4551 = vmatprep.subr.mxu0 0.0
  %4552 = vmatpush1.msra.mxu0 %v2320
  %4553 = vmatprep.subr.mxu0 0.0
  %4554 = vmatpush1.msra.mxu0 %v2321
  %4555 = vmatprep.subr.mxu0 0.0
  %4556 = vmatpush1.msra.mxu0 %v2322
  %4557 = vmatprep.subr.mxu0 0.0
  %4558 = vmatpush1.msra.mxu0 %v2323
  %4559 = vmatprep.subr.mxu0 0.0
  %4560 = vmatpush1.msra.mxu0 %v2324
  %4561 = vmatprep.subr.mxu0 0.0
  %4562 = vmatpush1.msra.mxu0 %v2325
  %4563 = vmatprep.subr.mxu0 0.0
  %4564 = vmatpush1.msra.mxu0 %v2326
  %4565 = vmatprep.subr.mxu0 0.0
  %4566 = vmatpush1.msra.mxu0 %v2327
  %4567 = vmatprep.mubr.f32.mxu0 %v1672
  %4568 = vmatmul.mubr.f32.gmra.mrb[0].mxu0 %v1671
  %v4569 = vpop.f32.mrb[0].mxu0
  %v4570 = vadd.f32 0.0, %v4569
  %v4571 = vpop.f32.mrb[0].mxu0
  %4572 = vdwg.mxu0
  %v4573 = vadd.f32 %v4502, %v4570
  %4574 = vmatprep.subr.mxu0 0.0
  %4575 = vmatpush1.msra.mxu0 %v2400
  %4576 = vmatprep.subr.mxu0 0.0
  %4577 = vmatpush1.msra.mxu0 %v2401
  %4578 = vmatprep.subr.mxu0 0.0
  %4579 = vmatpush1.msra.mxu0 %v2402
  %4580 = vmatprep.subr.mxu0 0.0
  %4581 = vmatpush1.msra.mxu0 %v2403
  %4582 = vmatprep.subr.mxu0 0.0
  %4583 = vmatpush1.msra.mxu0 %v2404
  %4584 = vmatprep.subr.mxu0 0.0
  %4585 = vmatpush1.msra.mxu0 %v2405
  %4586 = vmatprep.subr.mxu0 0.0
  %4587 = vmatpush1.msra.mxu0 %v2406
  %4588 = vmatprep.subr.mxu0 0.0
  %4589 = vmatpush1.msra.mxu0 %v2407
  %4590 = vmatprep.subr.mxu0 0.0
  %4591 = vmatpush1.msra.mxu0 %v2408
  %4592 = vmatprep.subr.mxu0 0.0
  %4593 = vmatpush1.msra.mxu0 %v2409
  %4594 = vmatprep.subr.mxu0 0.0
  %4595 = vmatpush1.msra.mxu0 %v2410
  %4596 = vmatprep.subr.mxu0 0.0
  %4597 = vmatpush1.msra.mxu0 %v2411
  %4598 = vmatprep.subr.mxu0 0.0
  %4599 = vmatpush1.msra.mxu0 %v2412
  %4600 = vmatprep.subr.mxu0 0.0
  %4601 = vmatpush1.msra.mxu0 %v2413
  %4602 = vmatprep.subr.mxu0 0.0
  %4603 = vmatpush1.msra.mxu0 %v2414
  %4604 = vmatprep.subr.mxu0 0.0
  %4605 = vmatpush1.msra.mxu0 %v2415
  %4606 = vmatprep.subr.mxu0 0.0
  %4607 = vmatpush1.msra.mxu0 %v2416
  %4608 = vmatprep.subr.mxu0 0.0
  %4609 = vmatpush1.msra.mxu0 %v2417
  %4610 = vmatprep.subr.mxu0 0.0
  %4611 = vmatpush1.msra.mxu0 %v2418
  %4612 = vmatprep.subr.mxu0 0.0
  %4613 = vmatpush1.msra.mxu0 %v2419
  %4614 = vmatprep.subr.mxu0 0.0
  %4615 = vmatpush1.msra.mxu0 %v2420
  %4616 = vmatprep.subr.mxu0 0.0
  %4617 = vmatpush1.msra.mxu0 %v2421
  %4618 = vmatprep.subr.mxu0 0.0
  %4619 = vmatpush1.msra.mxu0 %v2422
  %4620 = vmatprep.subr.mxu0 0.0
  %4621 = vmatpush1.msra.mxu0 %v2423
  %4622 = vmatprep.subr.mxu0 0.0
  %4623 = vmatpush1.msra.mxu0 %v2424
  %4624 = vmatprep.subr.mxu0 0.0
  %4625 = vmatpush1.msra.mxu0 %v2425
  %4626 = vmatprep.subr.mxu0 0.0
  %4627 = vmatpush1.msra.mxu0 %v2426
  %4628 = vmatprep.subr.mxu0 0.0
  %4629 = vmatpush1.msra.mxu0 %v2427
  %4630 = vmatprep.subr.mxu0 0.0
  %4631 = vmatpush1.msra.mxu0 %v2428
  %4632 = vmatprep.subr.mxu0 0.0
  %4633 = vmatpush1.msra.mxu0 %v2429
  %4634 = vmatprep.subr.mxu0 0.0
  %4635 = vmatpush1.msra.mxu0 %v2430
  %4636 = vmatprep.subr.mxu0 0.0
  %4637 = vmatpush1.msra.mxu0 %v2431
  %4638 = vmatprep.mubr.f32.mxu0 %v1828
  %4639 = vmatmul.mubr.f32.gmra.mrb[0].mxu0 %v1827
  %v4640 = vpop.f32.mrb[0].mxu0
  %v4641 = vadd.f32 0.0, %v4640
  %v4642 = vpop.f32.mrb[0].mxu0
  %4643 = vdwg.mxu0
  %v4644 = vadd.f32 %v4573, %v4641
  %v4645 = vadd.f32 %v4644, %v2507
  %v4646 = vtanh.pop %v4645
  %4647 = vmatprep.subr.mxu0 0.0
  %4648 = vmatpush1.msra.mxu0 %v2019
  %4649 = vmatprep.subr.mxu0 0.0
  %4650 = vmatpush1.msra.mxu0 %v2020
  %4651 = vmatprep.subr.mxu0 0.0
  %4652 = vmatpush1.msra.mxu0 %v2021
  %4653 = vmatprep.subr.mxu0 0.0
  %4654 = vmatpush1.msra.mxu0 %v2022
  %4655 = vmatprep.subr.mxu0 0.0
  %4656 = vmatpush1.msra.mxu0 %v2023
  %4657 = vmatprep.subr.mxu0 0.0
  %4658 = vmatpush1.msra.mxu0 %v2024
  %4659 = vmatprep.subr.mxu0 0.0
  %4660 = vmatpush1.msra.mxu0 %v2025
  %4661 = vmatprep.subr.mxu0 0.0
  %4662 = vmatpush1.msra.mxu0 %v2026
  %4663 = vmatprep.subr.mxu0 0.0
  %4664 = vmatpush1.msra.mxu0 %v2027
  %4665 = vmatprep.subr.mxu0 0.0
  %4666 = vmatpush1.msra.mxu0 %v2028
  %4667 = vmatprep.subr.mxu0 0.0
  %4668 = vmatpush1.msra.mxu0 %v2029
  %4669 = vmatprep.subr.mxu0 0.0
  %4670 = vmatpush1.msra.mxu0 %v2030
  %4671 = vmatprep.subr.mxu0 0.0
  %4672 = vmatpush1.msra.mxu0 %v2031
  %4673 = vmatprep.subr.mxu0 0.0
  %4674 = vmatpush1.msra.mxu0 %v2032
  %4675 = vmatprep.subr.mxu0 0.0
  %4676 = vmatpush1.msra.mxu0 %v2033
  %4677 = vmatprep.subr.mxu0 0.0
  %4678 = vmatpush1.msra.mxu0 %v2034
  %4679 = vmatprep.subr.mxu0 0.0
  %4680 = vmatpush1.msra.mxu0 %v2035
  %4681 = vmatprep.subr.mxu0 0.0
  %4682 = vmatpush1.msra.mxu0 %v2036
  %4683 = vmatprep.subr.mxu0 0.0
  %4684 = vmatpush1.msra.mxu0 %v2037
  %4685 = vmatprep.subr.mxu0 0.0
  %4686 = vmatpush1.msra.mxu0 %v2038
  %4687 = vmatprep.subr.mxu0 0.0
  %4688 = vmatpush1.msra.mxu0 %v2039
  %4689 = vmatprep.subr.mxu0 0.0
  %4690 = vmatpush1.msra.mxu0 %v2040
  %4691 = vmatprep.subr.mxu0 0.0
  %4692 = vmatpush1.msra.mxu0 %v2041
  %4693 = vmatprep.subr.mxu0 0.0
  %4694 = vmatpush1.msra.mxu0 %v2042
  %4695 = vmatprep.subr.mxu0 0.0
  %4696 = vmatpush1.msra.mxu0 %v2043
  %4697 = vmatprep.subr.mxu0 0.0
  %4698 = vmatpush1.msra.mxu0 %v2044
  %4699 = vmatprep.subr.mxu0 0.0
  %4700 = vmatpush1.msra.mxu0 %v2045
  %4701 = vmatprep.subr.mxu0 0.0
  %4702 = vmatpush1.msra.mxu0 %v2046
  %4703 = vmatprep.subr.mxu0 0.0
  %4704 = vmatpush1.msra.mxu0 %v2047
  %4705 = vmatprep.subr.mxu0 0.0
  %4706 = vmatpush1.msra.mxu0 %v2048
  %4707 = vmatprep.subr.mxu0 0.0
  %4708 = vmatpush1.msra.mxu0 %v2049
  %4709 = vmatprep.subr.mxu0 0.0
  %4710 = vmatpush1.msra.mxu0 %v2050
  %4711 = vmatprep.mubr.f32.mxu0 %v1516
  %4712 = vmatmul.mubr.f32.gmra.mrb[0].mxu0 %v1515
  %v4713 = vpop.f32.mrb[0].mxu0
  %v4714 = vadd.f32 0.0, %v4713
  %v4715 = vpop.f32.mrb[0].mxu0
  %4716 = vdwg.mxu0
  %4717 = vmatprep.subr.mxu0 0.0
  %4718 = vmatpush1.msra.mxu0 %v1986
  %4719 = vmatprep.subr.mxu0 0.0
  %4720 = vmatpush1.msra.mxu0 %v1987
  %4721 = vmatprep.subr.mxu0 0.0
  %4722 = vmatpush1.msra.mxu0 %v1988
  %4723 = vmatprep.subr.mxu0 0.0
  %4724 = vmatpush1.msra.mxu0 %v1989
  %4725 = vmatprep.subr.mxu0 0.0
  %4726 = vmatpush1.msra.mxu0 %v1990
  %4727 = vmatprep.subr.mxu0 0.0
  %4728 = vmatpush1.msra.mxu0 %v1991
  %4729 = vmatprep.subr.mxu0 0.0
  %4730 = vmatpush1.msra.mxu0 %v1992
  %4731 = vmatprep.subr.mxu0 0.0
  %4732 = vmatpush1.msra.mxu0 %v1993
  %4733 = vmatprep.subr.mxu0 0.0
  %4734 = vmatpush1.msra.mxu0 %v1994
  %4735 = vmatprep.subr.mxu0 0.0
  %4736 = vmatpush1.msra.mxu0 %v1995
  %4737 = vmatprep.subr.mxu0 0.0
  %4738 = vmatpush1.msra.mxu0 %v1996
  %4739 = vmatprep.subr.mxu0 0.0
  %4740 = vmatpush1.msra.mxu0 %v1997
  %4741 = vmatprep.subr.mxu0 0.0
  %4742 = vmatpush1.msra.mxu0 %v1998
  %4743 = vmatprep.subr.mxu0 0.0
  %4744 = vmatpush1.msra.mxu0 %v1999
  %4745 = vmatprep.subr.mxu0 0.0
  %4746 = vmatpush1.msra.mxu0 %v2000
  %4747 = vmatprep.subr.mxu0 0.0
  %4748 = vmatpush1.msra.mxu0 %v2001
  %4749 = vmatprep.subr.mxu0 0.0
  %4750 = vmatpush1.msra.mxu0 %v2002
  %4751 = vmatprep.subr.mxu0 0.0
  %4752 = vmatpush1.msra.mxu0 %v2003
  %4753 = vmatprep.subr.mxu0 0.0
  %4754 = vmatpush1.msra.mxu0 %v2004
  %4755 = vmatprep.subr.mxu0 0.0
  %4756 = vmatpush1.msra.mxu0 %v2005
  %4757 = vmatprep.subr.mxu0 0.0
  %4758 = vmatpush1.msra.mxu0 %v2006
  %4759 = vmatprep.subr.mxu0 0.0
  %4760 = vmatpush1.msra.mxu0 %v2007
  %4761 = vmatprep.subr.mxu0 0.0
  %4762 = vmatpush1.msra.mxu0 %v2008
  %4763 = vmatprep.subr.mxu0 0.0
  %4764 = vmatpush1.msra.mxu0 %v2009
  %4765 = vmatprep.subr.mxu0 0.0
  %4766 = vmatpush1.msra.mxu0 %v2010
  %4767 = vmatprep.subr.mxu0 0.0
  %4768 = vmatpush1.msra.mxu0 %v2011
  %4769 = vmatprep.subr.mxu0 0.0
  %4770 = vmatpush1.msra.mxu0 %v2012
  %4771 = vmatprep.subr.mxu0 0.0
  %4772 = vmatpush1.msra.mxu0 %v2013
  %4773 = vmatprep.subr.mxu0 0.0
  %4774 = vmatpush1.msra.mxu0 %v2014
  %4775 = vmatprep.subr.mxu0 0.0
  %4776 = vmatpush1.msra.mxu0 %v2015
  %4777 = vmatprep.subr.mxu0 0.0
  %4778 = vmatpush1.msra.mxu0 %v2016
  %4779 = vmatprep.subr.mxu0 0.0
  %4780 = vmatpush1.msra.mxu0 %v2017
  %4781 = vmatprep.mubr.f32.mxu0 %v1360
  %4782 = vmatmul.mubr.f32.gmra.mrb[0].mxu0 %v1359
  %v4783 = vpop.f32.mrb[0].mxu0
  %v4784 = vadd.f32 %v4714, %v4783
  %v4785 = vpop.f32.mrb[0].mxu0
  %4786 = vdwg.mxu0
  %4787 = vmatprep.subr.mxu0 0.0
  %4788 = vmatpush1.msra.mxu0 %v2192
  %4789 = vmatprep.subr.mxu0 0.0
  %4790 = vmatpush1.msra.mxu0 %v2193
  %4791 = vmatprep.subr.mxu0 0.0
  %4792 = vmatpush1.msra.mxu0 %v2194
  %4793 = vmatprep.subr.mxu0 0.0
  %4794 = vmatpush1.msra.mxu0 %v2195
  %4795 = vmatprep.subr.mxu0 0.0
  %4796 = vmatpush1.msra.mxu0 %v2196
  %4797 = vmatprep.subr.mxu0 0.0
  %4798 = vmatpush1.msra.mxu0 %v2197
  %4799 = vmatprep.subr.mxu0 0.0
  %4800 = vmatpush1.msra.mxu0 %v2198
  %4801 = vmatprep.subr.mxu0 0.0
  %4802 = vmatpush1.msra.mxu0 %v2199
  %4803 = vmatprep.subr.mxu0 0.0
  %4804 = vmatpush1.msra.mxu0 %v2200
  %4805 = vmatprep.subr.mxu0 0.0
  %4806 = vmatpush1.msra.mxu0 %v2201
  %4807 = vmatprep.subr.mxu0 0.0
  %4808 = vmatpush1.msra.mxu0 %v2202
  %4809 = vmatprep.subr.mxu0 0.0
  %4810 = vmatpush1.msra.mxu0 %v2203
  %4811 = vmatprep.subr.mxu0 0.0
  %4812 = vmatpush1.msra.mxu0 %v2204
  %4813 = vmatprep.subr.mxu0 0.0
  %4814 = vmatpush1.msra.mxu0 %v2205
  %4815 = vmatprep.subr.mxu0 0.0
  %4816 = vmatpush1.msra.mxu0 %v2206
  %4817 = vmatprep.subr.mxu0 0.0
  %4818 = vmatpush1.msra.mxu0 %v2207
  %4819 = vmatprep.subr.mxu0 0.0
  %4820 = vmatpush1.msra.mxu0 %v2208
  %4821 = vmatprep.subr.mxu0 0.0
  %4822 = vmatpush1.msra.mxu0 %v2209
  %4823 = vmatprep.subr.mxu0 0.0
  %4824 = vmatpush1.msra.mxu0 %v2210
  %4825 = vmatprep.subr.mxu0 0.0
  %4826 = vmatpush1.msra.mxu0 %v2211
  %4827 = vmatprep.subr.mxu0 0.0
  %4828 = vmatpush1.msra.mxu0 %v2212
  %4829 = vmatprep.subr.mxu0 0.0
  %4830 = vmatpush1.msra.mxu0 %v2213
  %4831 = vmatprep.subr.mxu0 0.0
  %4832 = vmatpush1.msra.mxu0 %v2214
  %4833 = vmatprep.subr.mxu0 0.0
  %4834 = vmatpush1.msra.mxu0 %v2215
  %4835 = vmatprep.subr.mxu0 0.0
  %4836 = vmatpush1.msra.mxu0 %v2216
  %4837 = vmatprep.subr.mxu0 0.0
  %4838 = vmatpush1.msra.mxu0 %v2217
  %4839 = vmatprep.subr.mxu0 0.0
  %4840 = vmatpush1.msra.mxu0 %v2218
  %4841 = vmatprep.subr.mxu0 0.0
  %4842 = vmatpush1.msra.mxu0 %v2219
  %4843 = vmatprep.subr.mxu0 0.0
  %4844 = vmatpush1.msra.mxu0 %v2220
  %4845 = vmatprep.subr.mxu0 0.0
  %4846 = vmatpush1.msra.mxu0 %v2221
  %4847 = vmatprep.subr.mxu0 0.0
  %4848 = vmatpush1.msra.mxu0 %v2222
  %4849 = vmatprep.subr.mxu0 0.0
  %4850 = vmatpush1.msra.mxu0 %v2223
  %4851 = vmatprep.mubr.f32.mxu0 %v1672
  %4852 = vmatmul.mubr.f32.gmra.mrb[0].mxu0 %v1671
  %v4853 = vpop.f32.mrb[0].mxu0
  %v4854 = vadd.f32 0.0, %v4853
  %v4855 = vpop.f32.mrb[0].mxu0
  %4856 = vdwg.mxu0
  %v4857 = vadd.f32 %v4784, %v4854
  %4858 = vmatprep.subr.mxu0 0.0
  %4859 = vmatpush1.msra.mxu0 %v2296
  %4860 = vmatprep.subr.mxu0 0.0
  %4861 = vmatpush1.msra.mxu0 %v2297
  %4862 = vmatprep.subr.mxu0 0.0
  %4863 = vmatpush1.msra.mxu0 %v2298
  %4864 = vmatprep.subr.mxu0 0.0
  %4865 = vmatpush1.msra.mxu0 %v2299
  %4866 = vmatprep.subr.mxu0 0.0
  %4867 = vmatpush1.msra.mxu0 %v2300
  %4868 = vmatprep.subr.mxu0 0.0
  %4869 = vmatpush1.msra.mxu0 %v2301
  %4870 = vmatprep.subr.mxu0 0.0
  %4871 = vmatpush1.msra.mxu0 %v2302
  %4872 = vmatprep.subr.mxu0 0.0
  %4873 = vmatpush1.msra.mxu0 %v2303
  %4874 = vmatprep.subr.mxu0 0.0
  %4875 = vmatpush1.msra.mxu0 %v2304
  %4876 = vmatprep.subr.mxu0 0.0
  %4877 = vmatpush1.msra.mxu0 %v2305
  %4878 = vmatprep.subr.mxu0 0.0
  %4879 = vmatpush1.msra.mxu0 %v2306
  %4880 = vmatprep.subr.mxu0 0.0
  %4881 = vmatpush1.msra.mxu0 %v2307
  %4882 = vmatprep.subr.mxu0 0.0
  %4883 = vmatpush1.msra.mxu0 %v2308
  %4884 = vmatprep.subr.mxu0 0.0
  %4885 = vmatpush1.msra.mxu0 %v2309
  %4886 = vmatprep.subr.mxu0 0.0
  %4887 = vmatpush1.msra.mxu0 %v2310
  %4888 = vmatprep.subr.mxu0 0.0
  %4889 = vmatpush1.msra.mxu0 %v2311
  %4890 = vmatprep.subr.mxu0 0.0
  %4891 = vmatpush1.msra.mxu0 %v2312
  %4892 = vmatprep.subr.mxu0 0.0
  %4893 = vmatpush1.msra.mxu0 %v2313
  %4894 = vmatprep.subr.mxu0 0.0
  %4895 = vmatpush1.msra.mxu0 %v2314
  %4896 = vmatprep.subr.mxu0 0.0
  %4897 = vmatpush1.msra.mxu0 %v2315
  %4898 = vmatprep.subr.mxu0 0.0
  %4899 = vmatpush1.msra.mxu0 %v2316
  %4900 = vmatprep.subr.mxu0 0.0
  %4901 = vmatpush1.msra.mxu0 %v2317
  %4902 = vmatprep.subr.mxu0 0.0
  %4903 = vmatpush1.msra.mxu0 %v2318
  %4904 = vmatprep.subr.mxu0 0.0
  %4905 = vmatpush1.msra.mxu0 %v2319
  %4906 = vmatprep.subr.mxu0 0.0
  %4907 = vmatpush1.msra.mxu0 %v2320
  %4908 = vmatprep.subr.mxu0 0.0
  %4909 = vmatpush1.msra.mxu0 %v2321
  %4910 = vmatprep.subr.mxu0 0.0
  %4911 = vmatpush1.msra.mxu0 %v2322
  %4912 = vmatprep.subr.mxu0 0.0
  %4913 = vmatpush1.msra.mxu0 %v2323
  %4914 = vmatprep.subr.mxu0 0.0
  %4915 = vmatpush1.msra.mxu0 %v2324
  %4916 = vmatprep.subr.mxu0 0.0
  %4917 = vmatpush1.msra.mxu0 %v2325
  %4918 = vmatprep.subr.mxu0 0.0
  %4919 = vmatpush1.msra.mxu0 %v2326
  %4920 = vmatprep.subr.mxu0 0.0
  %4921 = vmatpush1.msra.mxu0 %v2327
  %4922 = vmatprep.mubr.f32.mxu0 %v1828
  %4923 = vmatmul.mubr.f32.gmra.mrb[0].mxu0 %v1827
  %v4924 = vpop.f32.mrb[0].mxu0
  %v4925 = vadd.f32 0.0, %v4924
  %v4926 = vpop.f32.mrb[0].mxu0
  %4927 = vdwg.mxu0
  %v4928 = vadd.f32 %v4857, %v4925
  %4929 = vmatprep.subr.mxu0 0.0
  %4930 = vmatpush1.msra.mxu0 %v2400
  %4931 = vmatprep.subr.mxu0 0.0
  %4932 = vmatpush1.msra.mxu0 %v2401
  %4933 = vmatprep.subr.mxu0 0.0
  %4934 = vmatpush1.msra.mxu0 %v2402
  %4935 = vmatprep.subr.mxu0 0.0
  %4936 = vmatpush1.msra.mxu0 %v2403
  %4937 = vmatprep.subr.mxu0 0.0
  %4938 = vmatpush1.msra.mxu0 %v2404
  %4939 = vmatprep.subr.mxu0 0.0
  %4940 = vmatpush1.msra.mxu0 %v2405
  %4941 = vmatprep.subr.mxu0 0.0
  %4942 = vmatpush1.msra.mxu0 %v2406
  %4943 = vmatprep.subr.mxu0 0.0
  %4944 = vmatpush1.msra.mxu0 %v2407
  %4945 = vmatprep.subr.mxu0 0.0
  %4946 = vmatpush1.msra.mxu0 %v2408
  %4947 = vmatprep.subr.mxu0 0.0
  %4948 = vmatpush1.msra.mxu0 %v2409
  %4949 = vmatprep.subr.mxu0 0.0
  %4950 = vmatpush1.msra.mxu0 %v2410
  %4951 = vmatprep.subr.mxu0 0.0
  %4952 = vmatpush1.msra.mxu0 %v2411
  %4953 = vmatprep.subr.mxu0 0.0
  %4954 = vmatpush1.msra.mxu0 %v2412
  %4955 = vmatprep.subr.mxu0 0.0
  %4956 = vmatpush1.msra.mxu0 %v2413
  %4957 = vmatprep.subr.mxu0 0.0
  %4958 = vmatpush1.msra.mxu0 %v2414
  %4959 = vmatprep.subr.mxu0 0.0
  %4960 = vmatpush1.msra.mxu0 %v2415
  %4961 = vmatprep.subr.mxu0 0.0
  %4962 = vmatpush1.msra.mxu0 %v2416
  %4963 = vmatprep.subr.mxu0 0.0
  %4964 = vmatpush1.msra.mxu0 %v2417
  %4965 = vmatprep.subr.mxu0 0.0
  %4966 = vmatpush1.msra.mxu0 %v2418
  %4967 = vmatprep.subr.mxu0 0.0
  %4968 = vmatpush1.msra.mxu0 %v2419
  %4969 = vmatprep.subr.mxu0 0.0
  %4970 = vmatpush1.msra.mxu0 %v2420
  %4971 = vmatprep.subr.mxu0 0.0
  %4972 = vmatpush1.msra.mxu0 %v2421
  %4973 = vmatprep.subr.mxu0 0.0
  %4974 = vmatpush1.msra.mxu0 %v2422
  %4975 = vmatprep.subr.mxu0 0.0
  %4976 = vmatpush1.msra.mxu0 %v2423
  %4977 = vmatprep.subr.mxu0 0.0
  %4978 = vmatpush1.msra.mxu0 %v2424
  %4979 = vmatprep.subr.mxu0 0.0
  %4980 = vmatpush1.msra.mxu0 %v2425
  %4981 = vmatprep.subr.mxu0 0.0
  %4982 = vmatpush1.msra.mxu0 %v2426
  %4983 = vmatprep.subr.mxu0 0.0
  %4984 = vmatpush1.msra.mxu0 %v2427
  %4985 = vmatprep.subr.mxu0 0.0
  %4986 = vmatpush1.msra.mxu0 %v2428
  %4987 = vmatprep.subr.mxu0 0.0
  %4988 = vmatpush1.msra.mxu0 %v2429
  %4989 = vmatprep.subr.mxu0 0.0
  %4990 = vmatpush1.msra.mxu0 %v2430
  %4991 = vmatprep.subr.mxu0 0.0
  %4992 = vmatpush1.msra.mxu0 %v2431
  %4993 = vmatprep.mubr.f32.mxu0 %v1984
  %4994 = vmatmul.mubr.f32.gmra.mrb[0].mxu0 %v1983
  %v4995 = vpop.f32.mrb[0].mxu0
  %v4996 = vadd.f32 0.0, %v4995
  %v4997 = vpop.f32.mrb[0].mxu0
  %4998 = vdwg.mxu0
  %v4999 = vadd.f32 %v4928, %v4996
  %v5000 = vadd.f32 %v4999, %v2507
  %v5001 = vtanh.pop %v5000
  %v5002 = vadd.f32 %v4646, %v5001
  %v5003 = vmul.f32 %v5002, 0.5
  %v5004 = vld [vmem:[%s5] sm:$0xff]
  %v5005 = vld [vmem:[%s5 + $0x8] sm:$0xff]
  %v5006 = vld [vmem:[%s5 + $0x10] sm:$0xff]
  %v5007 = vld [vmem:[%s5 + $0x18] sm:$0xff]
  %v5008 = vld [vmem:[%s5 + $0x20] sm:$0xff]
  %v5009 = vld [vmem:[%s5 + $0x28] sm:$0xff]
  %v5010 = vld [vmem:[%s5 + $0x30] sm:$0xff]
  %v5011 = vld [vmem:[%s5 + $0x38] sm:$0xff]
  %v5012 = vld [vmem:[%s5 + $0x40] sm:$0xff]
  %v5013 = vld [vmem:[%s5 + $0x48] sm:$0xff]
  %v5014 = vld [vmem:[%s5 + $0x50] sm:$0xff]
  %v5015 = vld [vmem:[%s5 + $0x58] sm:$0xff]
  %v5016 = vld [vmem:[%s5 + $0x60] sm:$0xff]
  %v5017 = vld [vmem:[%s5 + $0x68] sm:$0xff]
  %v5018 = vld [vmem:[%s5 + $0x70] sm:$0xff]
  %v5019 = vld [vmem:[%s5 + $0x78] sm:$0xff]
  %s5020 = scalar_lea.vmem %s5, 128
  %v5021 = vld [vmem:[%s5020] sm:$0xff]
  %v5022 = vld [vmem:[%s5020 + $0x8] sm:$0xff]
  %v5023 = vld [vmem:[%s5020 + $0x10] sm:$0xff]
  %v5024 = vld [vmem:[%s5020 + $0x18] sm:$0xff]
  %v5025 = vld [vmem:[%s5020 + $0x20] sm:$0xff]
  %v5026 = vld [vmem:[%s5020 + $0x28] sm:$0xff]
  %v5027 = vld [vmem:[%s5020 + $0x30] sm:$0xff]
  %v5028 = vld [vmem:[%s5020 + $0x38] sm:$0xff]
  %v5029 = vld [vmem:[%s5020 + $0x40] sm:$0xff]
  %v5030 = vld [vmem:[%s5020 + $0x48] sm:$0xff]
  %v5031 = vld [vmem:[%s5020 + $0x50] sm:$0xff]
  %v5032 = vld [vmem:[%s5020 + $0x58] sm:$0xff]
  %v5033 = vld [vmem:[%s5020 + $0x60] sm:$0xff]
  %v5034 = vld [vmem:[%s5020 + $0x68] sm:$0xff]
  %v5035 = vld [vmem:[%s5020 + $0x70] sm:$0xff]
  %v5036 = vld [vmem:[%s5020 + $0x78] sm:$0xff]
  %5037 = vmatprep.subr.mxu0 0.0
  %5038 = vmatpush1.msra.mxu0 %v5021
  %5039 = vmatprep.subr.mxu0 0.0
  %5040 = vmatpush1.msra.mxu0 %v5022
  %5041 = vmatprep.subr.mxu0 0.0
  %5042 = vmatpush1.msra.mxu0 %v5023
  %5043 = vmatprep.subr.mxu0 0.0
  %5044 = vmatpush1.msra.mxu0 %v5024
  %5045 = vmatprep.subr.mxu0 0.0
  %5046 = vmatpush1.msra.mxu0 %v5025
  %5047 = vmatprep.subr.mxu0 0.0
  %5048 = vmatpush1.msra.mxu0 %v5026
  %5049 = vmatprep.subr.mxu0 0.0
  %5050 = vmatpush1.msra.mxu0 %v5027
  %5051 = vmatprep.subr.mxu0 0.0
  %5052 = vmatpush1.msra.mxu0 %v5028
  %5053 = vmatprep.subr.mxu0 0.0
  %5054 = vmatpush1.msra.mxu0 %v5029
  %5055 = vmatprep.subr.mxu0 0.0
  %5056 = vmatpush1.msra.mxu0 %v5030
  %5057 = vmatprep.subr.mxu0 0.0
  %5058 = vmatpush1.msra.mxu0 %v5031
  %5059 = vmatprep.subr.mxu0 0.0
  %5060 = vmatpush1.msra.mxu0 %v5032
  %5061 = vmatprep.subr.mxu0 0.0
  %5062 = vmatpush1.msra.mxu0 %v5033
  %5063 = vmatprep.subr.mxu0 0.0
  %5064 = vmatpush1.msra.mxu0 %v5034
  %5065 = vmatprep.subr.mxu0 0.0
  %5066 = vmatpush1.msra.mxu0 %v5035
  %5067 = vmatprep.subr.mxu0 0.0
  %5068 = vmatpush1.msra.mxu0 %v5036
  %5069 = vmatprep.subr.mxu0 0.0
  %5070 = vmatpush1.msra.mxu0 0.0
  %5071 = vmatprep.subr.mxu0 0.0
  %5072 = vmatpush1.msra.mxu0 0.0
  %5073 = vmatprep.subr.mxu0 0.0
  %5074 = vmatpush1.msra.mxu0 0.0
  %5075 = vmatprep.subr.mxu0 0.0
  %5076 = vmatpush1.msra.mxu0 0.0
  %5077 = vmatprep.subr.mxu0 0.0
  %5078 = vmatpush1.msra.mxu0 0.0
  %5079 = vmatprep.subr.mxu0 0.0
  %5080 = vmatpush1.msra.mxu0 0.0
  %5081 = vmatprep.subr.mxu0 0.0
  %5082 = vmatpush1.msra.mxu0 0.0
  %5083 = vmatprep.subr.mxu0 0.0
  %5084 = vmatpush1.msra.mxu0 0.0
  %5085 = vmatprep.subr.mxu0 0.0
  %5086 = vmatpush1.msra.mxu0 0.0
  %5087 = vmatprep.subr.mxu0 0.0
  %5088 = vmatpush1.msra.mxu0 0.0
  %5089 = vmatprep.subr.mxu0 0.0
  %5090 = vmatpush1.msra.mxu0 0.0
  %5091 = vmatprep.subr.mxu0 0.0
  %5092 = vmatpush1.msra.mxu0 0.0
  %5093 = vmatprep.subr.mxu0 0.0
  %5094 = vmatpush1.msra.mxu0 0.0
  %5095 = vmatprep.subr.mxu0 0.0
  %5096 = vmatpush1.msra.mxu0 0.0
  %5097 = vmatprep.subr.mxu0 0.0
  %5098 = vmatpush1.msra.mxu0 0.0
  %5099 = vmatprep.subr.mxu0 0.0
  %5100 = vmatpush1.msra.mxu0 0.0
  %5101 = vmatprep.mubr.f32.mxu0 0.0
  %5102 = vmatmul.mubr.f32.gmra.mrb[0].mxu0 %v3579
  %v5103 = vpop.f32.mrb[0].mxu0
  %v5104 = vadd.f32 0.0, %v5103
  %v5105 = vpop.f32.mrb[0].mxu0
  %5106 = vdwg.mxu0
  %5107 = vmatprep.subr.mxu0 0.0
  %5108 = vmatpush1.msra.mxu0 %v5004
  %5109 = vmatprep.subr.mxu0 0.0
  %5110 = vmatpush1.msra.mxu0 %v5005
  %5111 = vmatprep.subr.mxu0 0.0
  %5112 = vmatpush1.msra.mxu0 %v5006
  %5113 = vmatprep.subr.mxu0 0.0
  %5114 = vmatpush1.msra.mxu0 %v5007
  %5115 = vmatprep.subr.mxu0 0.0
  %5116 = vmatpush1.msra.mxu0 %v5008
  %5117 = vmatprep.subr.mxu0 0.0
  %5118 = vmatpush1.msra.mxu0 %v5009
  %5119 = vmatprep.subr.mxu0 0.0
  %5120 = vmatpush1.msra.mxu0 %v5010
  %5121 = vmatprep.subr.mxu0 0.0
  %5122 = vmatpush1.msra.mxu0 %v5011
  %5123 = vmatprep.subr.mxu0 0.0
  %5124 = vmatpush1.msra.mxu0 %v5012
  %5125 = vmatprep.subr.mxu0 0.0
  %5126 = vmatpush1.msra.mxu0 %v5013
  %5127 = vmatprep.subr.mxu0 0.0
  %5128 = vmatpush1.msra.mxu0 %v5014
  %5129 = vmatprep.subr.mxu0 0.0
  %5130 = vmatpush1.msra.mxu0 %v5015
  %5131 = vmatprep.subr.mxu0 0.0
  %5132 = vmatpush1.msra.mxu0 %v5016
  %5133 = vmatprep.subr.mxu0 0.0
  %5134 = vmatpush1.msra.mxu0 %v5017
  %5135 = vmatprep.subr.mxu0 0.0
  %5136 = vmatpush1.msra.mxu0 %v5018
  %5137 = vmatprep.subr.mxu0 0.0
  %5138 = vmatpush1.msra.mxu0 %v5019
  %5139 = vmatprep.subr.mxu0 0.0
  %5140 = vmatpush1.msra.mxu0 0.0
  %5141 = vmatprep.subr.mxu0 0.0
  %5142 = vmatpush1.msra.mxu0 0.0
  %5143 = vmatprep.subr.mxu0 0.0
  %5144 = vmatpush1.msra.mxu0 0.0
  %5145 = vmatprep.subr.mxu0 0.0
  %5146 = vmatpush1.msra.mxu0 0.0
  %5147 = vmatprep.subr.mxu0 0.0
  %5148 = vmatpush1.msra.mxu0 0.0
  %5149 = vmatprep.subr.mxu0 0.0
  %5150 = vmatpush1.msra.mxu0 0.0
  %5151 = vmatprep.subr.mxu0 0.0
  %5152 = vmatpush1.msra.mxu0 0.0
  %5153 = vmatprep.subr.mxu0 0.0
  %5154 = vmatpush1.msra.mxu0 0.0
  %5155 = vmatprep.subr.mxu0 0.0
  %5156 = vmatpush1.msra.mxu0 0.0
  %5157 = vmatprep.subr.mxu0 0.0
  %5158 = vmatpush1.msra.mxu0 0.0
  %5159 = vmatprep.subr.mxu0 0.0
  %5160 = vmatpush1.msra.mxu0 0.0
  %5161 = vmatprep.subr.mxu0 0.0
  %5162 = vmatpush1.msra.mxu0 0.0
  %5163 = vmatprep.subr.mxu0 0.0
  %5164 = vmatpush1.msra.mxu0 0.0
  %5165 = vmatprep.subr.mxu0 0.0
  %5166 = vmatpush1.msra.mxu0 0.0
  %5167 = vmatprep.subr.mxu0 0.0
  %5168 = vmatpush1.msra.mxu0 0.0
  %5169 = vmatprep.subr.mxu0 0.0
  %5170 = vmatpush1.msra.mxu0 0.0
  %5171 = vmatprep.mubr.f32.mxu0 0.0
  %5172 = vmatmul.mubr.f32.gmra.mrb[0].mxu0 %v2867
  %v5173 = vpop.f32.mrb[0].mxu0
  %v5174 = vadd.f32 %v5104, %v5173
  %v5175 = vpop.f32.mrb[0].mxu0
  %5176 = vdwg.mxu0
  %s5177 = scalar_lea.vmem %s5, 256
  %v5178 = vld [vmem:[%s5177] sm:$0xff]
  %v5179 = vld [vmem:[%s5177 + $0x8] sm:$0xff]
  %v5180 = vld [vmem:[%s5177 + $0x10] sm:$0xff]
  %v5181 = vld [vmem:[%s5177 + $0x18] sm:$0xff]
  %v5182 = vld [vmem:[%s5177 + $0x20] sm:$0xff]
  %v5183 = vld [vmem:[%s5177 + $0x28] sm:$0xff]
  %v5184 = vld [vmem:[%s5177 + $0x30] sm:$0xff]
  %v5185 = vld [vmem:[%s5177 + $0x38] sm:$0xff]
  %v5186 = vld [vmem:[%s5177 + $0x40] sm:$0xff]
  %v5187 = vld [vmem:[%s5177 + $0x48] sm:$0xff]
  %v5188 = vld [vmem:[%s5177 + $0x50] sm:$0xff]
  %v5189 = vld [vmem:[%s5177 + $0x58] sm:$0xff]
  %v5190 = vld [vmem:[%s5177 + $0x60] sm:$0xff]
  %v5191 = vld [vmem:[%s5177 + $0x68] sm:$0xff]
  %v5192 = vld [vmem:[%s5177 + $0x70] sm:$0xff]
  %v5193 = vld [vmem:[%s5177 + $0x78] sm:$0xff]
  %5194 = vmatprep.subr.mxu0 0.0
  %5195 = vmatpush1.msra.mxu0 %v5178
  %5196 = vmatprep.subr.mxu0 0.0
  %5197 = vmatpush1.msra.mxu0 %v5179
  %5198 = vmatprep.subr.mxu0 0.0
  %5199 = vmatpush1.msra.mxu0 %v5180
  %5200 = vmatprep.subr.mxu0 0.0
  %5201 = vmatpush1.msra.mxu0 %v5181
  %5202 = vmatprep.subr.mxu0 0.0
  %5203 = vmatpush1.msra.mxu0 %v5182
  %5204 = vmatprep.subr.mxu0 0.0
  %5205 = vmatpush1.msra.mxu0 %v5183
  %5206 = vmatprep.subr.mxu0 0.0
  %5207 = vmatpush1.msra.mxu0 %v5184
  %5208 = vmatprep.subr.mxu0 0.0
  %5209 = vmatpush1.msra.mxu0 %v5185
  %5210 = vmatprep.subr.mxu0 0.0
  %5211 = vmatpush1.msra.mxu0 %v5186
  %5212 = vmatprep.subr.mxu0 0.0
  %5213 = vmatpush1.msra.mxu0 %v5187
  %5214 = vmatprep.subr.mxu0 0.0
  %5215 = vmatpush1.msra.mxu0 %v5188
  %5216 = vmatprep.subr.mxu0 0.0
  %5217 = vmatpush1.msra.mxu0 %v5189
  %5218 = vmatprep.subr.mxu0 0.0
  %5219 = vmatpush1.msra.mxu0 %v5190
  %5220 = vmatprep.subr.mxu0 0.0
  %5221 = vmatpush1.msra.mxu0 %v5191
  %5222 = vmatprep.subr.mxu0 0.0
  %5223 = vmatpush1.msra.mxu0 %v5192
  %5224 = vmatprep.subr.mxu0 0.0
  %5225 = vmatpush1.msra.mxu0 %v5193
  %5226 = vmatprep.subr.mxu0 0.0
  %5227 = vmatpush1.msra.mxu0 0.0
  %5228 = vmatprep.subr.mxu0 0.0
  %5229 = vmatpush1.msra.mxu0 0.0
  %5230 = vmatprep.subr.mxu0 0.0
  %5231 = vmatpush1.msra.mxu0 0.0
  %5232 = vmatprep.subr.mxu0 0.0
  %5233 = vmatpush1.msra.mxu0 0.0
  %5234 = vmatprep.subr.mxu0 0.0
  %5235 = vmatpush1.msra.mxu0 0.0
  %5236 = vmatprep.subr.mxu0 0.0
  %5237 = vmatpush1.msra.mxu0 0.0
  %5238 = vmatprep.subr.mxu0 0.0
  %5239 = vmatpush1.msra.mxu0 0.0
  %5240 = vmatprep.subr.mxu0 0.0
  %5241 = vmatpush1.msra.mxu0 0.0
  %5242 = vmatprep.subr.mxu0 0.0
  %5243 = vmatpush1.msra.mxu0 0.0
  %5244 = vmatprep.subr.mxu0 0.0
  %5245 = vmatpush1.msra.mxu0 0.0
  %5246 = vmatprep.subr.mxu0 0.0
  %5247 = vmatpush1.msra.mxu0 0.0
  %5248 = vmatprep.subr.mxu0 0.0
  %5249 = vmatpush1.msra.mxu0 0.0
  %5250 = vmatprep.subr.mxu0 0.0
  %5251 = vmatpush1.msra.mxu0 0.0
  %5252 = vmatprep.subr.mxu0 0.0
  %5253 = vmatpush1.msra.mxu0 0.0
  %5254 = vmatprep.subr.mxu0 0.0
  %5255 = vmatpush1.msra.mxu0 0.0
  %5256 = vmatprep.subr.mxu0 0.0
  %5257 = vmatpush1.msra.mxu0 0.0
  %5258 = vmatprep.mubr.f32.mxu0 0.0
  %5259 = vmatmul.mubr.f32.gmra.mrb[0].mxu0 %v4291
  %v5260 = vpop.f32.mrb[0].mxu0
  %v5261 = vadd.f32 0.0, %v5260
  %v5262 = vpop.f32.mrb[0].mxu0
  %5263 = vdwg.mxu0
  %v5264 = vadd.f32 %v5174, %v5261
  %s5265 = scalar_lea.vmem %s5, 384
  %v5266 = vld [vmem:[%s5265] sm:$0xff]
  %v5267 = vld [vmem:[%s5265 + $0x8] sm:$0xff]
  %v5268 = vld [vmem:[%s5265 + $0x10] sm:$0xff]
  %v5269 = vld [vmem:[%s5265 + $0x18] sm:$0xff]
  %v5270 = vld [vmem:[%s5265 + $0x20] sm:$0xff]
  %v5271 = vld [vmem:[%s5265 + $0x28] sm:$0xff]
  %v5272 = vld [vmem:[%s5265 + $0x30] sm:$0xff]
  %v5273 = vld [vmem:[%s5265 + $0x38] sm:$0xff]
  %v5274 = vld [vmem:[%s5265 + $0x40] sm:$0xff]
  %v5275 = vld [vmem:[%s5265 + $0x48] sm:$0xff]
  %v5276 = vld [vmem:[%s5265 + $0x50] sm:$0xff]
  %v5277 = vld [vmem:[%s5265 + $0x58] sm:$0xff]
  %v5278 = vld [vmem:[%s5265 + $0x60] sm:$0xff]
  %v5279 = vld [vmem:[%s5265 + $0x68] sm:$0xff]
  %v5280 = vld [vmem:[%s5265 + $0x70] sm:$0xff]
  %v5281 = vld [vmem:[%s5265 + $0x78] sm:$0xff]
  %5282 = vmatprep.subr.mxu0 0.0
  %5283 = vmatpush1.msra.mxu0 %v5266
  %5284 = vmatprep.subr.mxu0 0.0
  %5285 = vmatpush1.msra.mxu0 %v5267
  %5286 = vmatprep.subr.mxu0 0.0
  %5287 = vmatpush1.msra.mxu0 %v5268
  %5288 = vmatprep.subr.mxu0 0.0
  %5289 = vmatpush1.msra.mxu0 %v5269
  %5290 = vmatprep.subr.mxu0 0.0
  %5291 = vmatpush1.msra.mxu0 %v5270
  %5292 = vmatprep.subr.mxu0 0.0
  %5293 = vmatpush1.msra.mxu0 %v5271
  %5294 = vmatprep.subr.mxu0 0.0
  %5295 = vmatpush1.msra.mxu0 %v5272
  %5296 = vmatprep.subr.mxu0 0.0
  %5297 = vmatpush1.msra.mxu0 %v5273
  %5298 = vmatprep.subr.mxu0 0.0
  %5299 = vmatpush1.msra.mxu0 %v5274
  %5300 = vmatprep.subr.mxu0 0.0
  %5301 = vmatpush1.msra.mxu0 %v5275
  %5302 = vmatprep.subr.mxu0 0.0
  %5303 = vmatpush1.msra.mxu0 %v5276
  %5304 = vmatprep.subr.mxu0 0.0
  %5305 = vmatpush1.msra.mxu0 %v5277
  %5306 = vmatprep.subr.mxu0 0.0
  %5307 = vmatpush1.msra.mxu0 %v5278
  %5308 = vmatprep.subr.mxu0 0.0
  %5309 = vmatpush1.msra.mxu0 %v5279
  %5310 = vmatprep.subr.mxu0 0.0
  %5311 = vmatpush1.msra.mxu0 %v5280
  %5312 = vmatprep.subr.mxu0 0.0
  %5313 = vmatpush1.msra.mxu0 %v5281
  %5314 = vmatprep.subr.mxu0 0.0
  %5315 = vmatpush1.msra.mxu0 0.0
  %5316 = vmatprep.subr.mxu0 0.0
  %5317 = vmatpush1.msra.mxu0 0.0
  %5318 = vmatprep.subr.mxu0 0.0
  %5319 = vmatpush1.msra.mxu0 0.0
  %5320 = vmatprep.subr.mxu0 0.0
  %5321 = vmatpush1.msra.mxu0 0.0
  %5322 = vmatprep.subr.mxu0 0.0
  %5323 = vmatpush1.msra.mxu0 0.0
  %5324 = vmatprep.subr.mxu0 0.0
  %5325 = vmatpush1.msra.mxu0 0.0
  %5326 = vmatprep.subr.mxu0 0.0
  %5327 = vmatpush1.msra.mxu0 0.0
  %5328 = vmatprep.subr.mxu0 0.0
  %5329 = vmatpush1.msra.mxu0 0.0
  %5330 = vmatprep.subr.mxu0 0.0
  %5331 = vmatpush1.msra.mxu0 0.0
  %5332 = vmatprep.subr.mxu0 0.0
  %5333 = vmatpush1.msra.mxu0 0.0
  %5334 = vmatprep.subr.mxu0 0.0
  %5335 = vmatpush1.msra.mxu0 0.0
  %5336 = vmatprep.subr.mxu0 0.0
  %5337 = vmatpush1.msra.mxu0 0.0
  %5338 = vmatprep.subr.mxu0 0.0
  %5339 = vmatpush1.msra.mxu0 0.0
  %5340 = vmatprep.subr.mxu0 0.0
  %5341 = vmatpush1.msra.mxu0 0.0
  %5342 = vmatprep.subr.mxu0 0.0
  %5343 = vmatpush1.msra.mxu0 0.0
  %5344 = vmatprep.subr.mxu0 0.0
  %5345 = vmatpush1.msra.mxu0 0.0
  %5346 = vmatprep.mubr.f32.mxu0 0.0
  %5347 = vmatmul.mubr.f32.gmra.mrb[0].mxu0 %v5003
  %v5348 = vpop.f32.mrb[0].mxu0
  %v5349 = vadd.f32 0.0, %v5348
  %v5350 = vpop.f32.mrb[0].mxu0
  %5351 = vdwg.mxu0
  %v5352 = vadd.f32 %v5264, %v5349
  %v5353 = vld [vmem:[%s6] sm:$0x1]
  %v5355 = vlaneseq
  %v5356 = vshrl.u32 %v5355, 7
  %v5357 = vsub.s32 0, %v5356
  %v5358 = vrot.slane %v5353, %v5357
  %v5360 = vadd.f32 %v5352, %v5358
  %v5361 = vtanh.pop %v5360
  %v5362 = vld [vmem:[%s7] sm:$0xff]
  %v5363 = vld [vmem:[%s7 + $0x8] sm:$0xff]
  %v5364 = vld [vmem:[%s7 + $0x10] sm:$0xff]
  %v5365 = vld [vmem:[%s7 + $0x18] sm:$0xff]
  %v5366 = vld [vmem:[%s7 + $0x20] sm:$0xff]
  %v5367 = vld [vmem:[%s7 + $0x28] sm:$0xff]
  %v5368 = vld [vmem:[%s7 + $0x30] sm:$0xff]
  %v5369 = vld [vmem:[%s7 + $0x38] sm:$0xff]
  %v5370 = vld [vmem:[%s7 + $0x40] sm:$0xff]
  %v5371 = vld [vmem:[%s7 + $0x48] sm:$0xff]
  %v5372 = vld [vmem:[%s7 + $0x50] sm:$0xff]
  %v5373 = vld [vmem:[%s7 + $0x58] sm:$0xff]
  %v5374 = vld [vmem:[%s7 + $0x60] sm:$0xff]
  %v5375 = vld [vmem:[%s7 + $0x68] sm:$0xff]
  %v5376 = vld [vmem:[%s7 + $0x70] sm:$0xff]
  %v5377 = vld [vmem:[%s7 + $0x78] sm:$0xff]
  %v5378 = vld [vmem:[%s8] sm:$0x1]
  %v5380 = vlaneseq
  %v5381 = vshrl.u32 %v5380, 7
  %v5382 = vsub.s32 0, %v5381
  %v5383 = vrot.slane %v5378, %v5382
  %5385 = vmatprep.subr.mxu0 0.0
  %5386 = vmatpush1.msra.mxu0 %v5362
  %5387 = vmatprep.subr.mxu0 0.0
  %5388 = vmatpush1.msra.mxu0 %v5363
  %5389 = vmatprep.subr.mxu0 0.0
  %5390 = vmatpush1.msra.mxu0 %v5364
  %5391 = vmatprep.subr.mxu0 0.0
  %5392 = vmatpush1.msra.mxu0 %v5365
  %5393 = vmatprep.subr.mxu0 0.0
  %5394 = vmatpush1.msra.mxu0 %v5366
  %5395 = vmatprep.subr.mxu0 0.0
  %5396 = vmatpush1.msra.mxu0 %v5367
  %5397 = vmatprep.subr.mxu0 0.0
  %5398 = vmatpush1.msra.mxu0 %v5368
  %5399 = vmatprep.subr.mxu0 0.0
  %5400 = vmatpush1.msra.mxu0 %v5369
  %5401 = vmatprep.subr.mxu0 0.0
  %5402 = vmatpush1.msra.mxu0 %v5370
  %5403 = vmatprep.subr.mxu0 0.0
  %5404 = vmatpush1.msra.mxu0 %v5371
  %5405 = vmatprep.subr.mxu0 0.0
  %5406 = vmatpush1.msra.mxu0 %v5372
  %5407 = vmatprep.subr.mxu0 0.0
  %5408 = vmatpush1.msra.mxu0 %v5373
  %5409 = vmatprep.subr.mxu0 0.0
  %5410 = vmatpush1.msra.mxu0 %v5374
  %5411 = vmatprep.subr.mxu0 0.0
  %5412 = vmatpush1.msra.mxu0 %v5375
  %5413 = vmatprep.subr.mxu0 0.0
  %5414 = vmatpush1.msra.mxu0 %v5376
  %5415 = vmatprep.subr.mxu0 0.0
  %5416 = vmatpush1.msra.mxu0 %v5377
  %5417 = vmatprep.subr.mxu0 0.0
  %5418 = vmatpush1.msra.mxu0 0.0
  %5419 = vmatprep.subr.mxu0 0.0
  %5420 = vmatpush1.msra.mxu0 0.0
  %5421 = vmatprep.subr.mxu0 0.0
  %5422 = vmatpush1.msra.mxu0 0.0
  %5423 = vmatprep.subr.mxu0 0.0
  %5424 = vmatpush1.msra.mxu0 0.0
  %5425 = vmatprep.subr.mxu0 0.0
  %5426 = vmatpush1.msra.mxu0 0.0
  %5427 = vmatprep.subr.mxu0 0.0
  %5428 = vmatpush1.msra.mxu0 0.0
  %5429 = vmatprep.subr.mxu0 0.0
  %5430 = vmatpush1.msra.mxu0 0.0
  %5431 = vmatprep.subr.mxu0 0.0
  %5432 = vmatpush1.msra.mxu0 0.0
  %5433 = vmatprep.subr.mxu0 0.0
  %5434 = vmatpush1.msra.mxu0 0.0
  %5435 = vmatprep.subr.mxu0 0.0
  %5436 = vmatpush1.msra.mxu0 0.0
  %5437 = vmatprep.subr.mxu0 0.0
  %5438 = vmatpush1.msra.mxu0 0.0
  %5439 = vmatprep.subr.mxu0 0.0
  %5440 = vmatpush1.msra.mxu0 0.0
  %5441 = vmatprep.subr.mxu0 0.0
  %5442 = vmatpush1.msra.mxu0 0.0
  %5443 = vmatprep.subr.mxu0 0.0
  %5444 = vmatpush1.msra.mxu0 0.0
  %5445 = vmatprep.subr.mxu0 0.0
  %5446 = vmatpush1.msra.mxu0 0.0
  %5447 = vmatprep.subr.mxu0 0.0
  %5448 = vmatpush1.msra.mxu0 0.0
  %5449 = vmatprep.mubr.f32.mxu0 0.0
  %5450 = vmatmul.mubr.f32.gmra.mrb[0].mxu0 %v5361
  %v5451 = vpop.f32.mrb[0].mxu0
  %v5452 = vadd.f32 %v5383, %v5451
  %v5453 = vpop.f32.mrb[0].mxu0
  %5454 = vdwg.mxu0
  %v5455 = vtanh.pop %v5452
  %v5456 = vld [vmem:[%s9] sm:$0xff]
  %v5457 = vld [vmem:[%s9 + $0x8] sm:$0xff]
  %v5458 = vld [vmem:[%s9 + $0x10] sm:$0xff]
  %v5459 = vld [vmem:[%s9 + $0x18] sm:$0xff]
  %v5460 = vld [vmem:[%s9 + $0x20] sm:$0xff]
  %v5461 = vld [vmem:[%s9 + $0x28] sm:$0xff]
  %v5462 = vld [vmem:[%s9 + $0x30] sm:$0xff]
  %v5463 = vld [vmem:[%s9 + $0x38] sm:$0xff]
  %v5464 = vld [vmem:[%s9 + $0x40] sm:$0xff]
  %v5465 = vld [vmem:[%s9 + $0x48] sm:$0xff]
  %v5466 = vld [vmem:[%s9 + $0x50] sm:$0xff]
  %v5467 = vld [vmem:[%s9 + $0x58] sm:$0xff]
  %v5468 = vld [vmem:[%s9 + $0x60] sm:$0xff]
  %v5469 = vld [vmem:[%s9 + $0x68] sm:$0xff]
  %v5470 = vld [vmem:[%s9 + $0x70] sm:$0xff]
  %v5471 = vld [vmem:[%s9 + $0x78] sm:$0xff]
  %v5472 = vld [vmem:[%s10] sm:$0x1]
  %v5474 = vlaneseq
  %v5475 = vshrl.u32 %v5474, 7
  %v5476 = vsub.s32 0, %v5475
  %v5477 = vrot.slane %v5472, %v5476
  %5479 = vmatprep.subr.mxu0 0.0
  %5480 = vmatpush1.msra.mxu0 %v5456
  %5481 = vmatprep.subr.mxu0 0.0
  %5482 = vmatpush1.msra.mxu0 %v5457
  %5483 = vmatprep.subr.mxu0 0.0
  %5484 = vmatpush1.msra.mxu0 %v5458
  %5485 = vmatprep.subr.mxu0 0.0
  %5486 = vmatpush1.msra.mxu0 %v5459
  %5487 = vmatprep.subr.mxu0 0.0
  %5488 = vmatpush1.msra.mxu0 %v5460
  %5489 = vmatprep.subr.mxu0 0.0
  %5490 = vmatpush1.msra.mxu0 %v5461
  %5491 = vmatprep.subr.mxu0 0.0
  %5492 = vmatpush1.msra.mxu0 %v5462
  %5493 = vmatprep.subr.mxu0 0.0
  %5494 = vmatpush1.msra.mxu0 %v5463
  %5495 = vmatprep.subr.mxu0 0.0
  %5496 = vmatpush1.msra.mxu0 %v5464
  %5497 = vmatprep.subr.mxu0 0.0
  %5498 = vmatpush1.msra.mxu0 %v5465
  %5499 = vmatprep.subr.mxu0 0.0
  %5500 = vmatpush1.msra.mxu0 %v5466
  %5501 = vmatprep.subr.mxu0 0.0
  %5502 = vmatpush1.msra.mxu0 %v5467
  %5503 = vmatprep.subr.mxu0 0.0
  %5504 = vmatpush1.msra.mxu0 %v5468
  %5505 = vmatprep.subr.mxu0 0.0
  %5506 = vmatpush1.msra.mxu0 %v5469
  %5507 = vmatprep.subr.mxu0 0.0
  %5508 = vmatpush1.msra.mxu0 %v5470
  %5509 = vmatprep.subr.mxu0 0.0
  %5510 = vmatpush1.msra.mxu0 %v5471
  %5511 = vmatprep.subr.mxu0 0.0
  %5512 = vmatpush1.msra.mxu0 0.0
  %5513 = vmatprep.subr.mxu0 0.0
  %5514 = vmatpush1.msra.mxu0 0.0
  %5515 = vmatprep.subr.mxu0 0.0
  %5516 = vmatpush1.msra.mxu0 0.0
  %5517 = vmatprep.subr.mxu0 0.0
  %5518 = vmatpush1.msra.mxu0 0.0
  %5519 = vmatprep.subr.mxu0 0.0
  %5520 = vmatpush1.msra.mxu0 0.0
  %5521 = vmatprep.subr.mxu0 0.0
  %5522 = vmatpush1.msra.mxu0 0.0
  %5523 = vmatprep.subr.mxu0 0.0
  %5524 = vmatpush1.msra.mxu0 0.0
  %5525 = vmatprep.subr.mxu0 0.0
  %5526 = vmatpush1.msra.mxu0 0.0
  %5527 = vmatprep.subr.mxu0 0.0
  %5528 = vmatpush1.msra.mxu0 0.0
  %5529 = vmatprep.subr.mxu0 0.0
  %5530 = vmatpush1.msra.mxu0 0.0
  %5531 = vmatprep.subr.mxu0 0.0
  %5532 = vmatpush1.msra.mxu0 0.0
  %5533 = vmatprep.subr.mxu0 0.0
  %5534 = vmatpush1.msra.mxu0 0.0
  %5535 = vmatprep.subr.mxu0 0.0
  %5536 = vmatpush1.msra.mxu0 0.0
  %5537 = vmatprep.subr.mxu0 0.0
  %5538 = vmatpush1.msra.mxu0 0.0
  %5539 = vmatprep.subr.mxu0 0.0
  %5540 = vmatpush1.msra.mxu0 0.0
  %5541 = vmatprep.subr.mxu0 0.0
  %5542 = vmatpush1.msra.mxu0 0.0
  %5543 = vmatprep.mubr.f32.mxu0 0.0
  %5544 = vmatmul.mubr.f32.gmra.mrb[0].mxu0 %v5455
  %v5545 = vpop.f32.mrb[0].mxu0
  %v5546 = vadd.f32 %v5477, %v5545
  %v5547 = vpop.f32.mrb[0].mxu0
  %5548 = vdwg.mxu0
  %v5549 = vlaneseq
  %v5550 = vand.u32 %v5549, 127
  %vm5551 = vcmp.lt.s32.totalorder %v5550, 10
  %v5552 = vsel %vm5551, %v5546, -1e+30
  %5553 = vmax.xlane.f32.xlu0 %v5552
  %v5554 = vpop.xlane.xlu0 %5553
  %v5555 = vsub.f32 %v5552, %v5554
  %v5556 = vmul.f32 %v5555, 1.442695
  %v5557 = vpow.pop %v5556
  %5558 = vadd.xlane.f32.xlu0 %v5557
  %v5559 = vpop.xlane.xlu0 %5558
  %v5560 = vrcp.pop %v5559
  %v5561 = vmul.f32 %v5557, %v5560
  %5562 = vst [vmem:[%s11] sm:$0xff] %v5561
  // Predicated region
  $region46: #{lenet5_forward.1} parent=0 // pred_check
    _
  $region47: #{lenet5_forward.1} parent=0 // pred_check_branch
    %5564 = sbr.rel (0) target = $region49
  $region48: #{lenet5_forward.1} parent=0 // pred_region
    _
  $region49: #{lenet5_forward.1} parent=0 // pred_fallthru
    _
  // Predicated region
  $region50: #{lenet5_forward.1} parent=0 // pred_check
    _
  $region51: #{lenet5_forward.1} parent=0 // pred_check_branch
    %5566 = sbr.rel (0) target = $region53
  $region52: #{lenet5_forward.1} parent=0 // pred_region
    _
  $region53: #{lenet5_forward.1} parent=0 // pred_fallthru
    _

</llo_original>
